<compile_context>
chip_gen: v6e
topology: v6e:2x2x1
jax: 0.10.0
libtpu: 0.0.40
codegen_flags: <defaults>
</compile_context>

<pallas_src>
import functools

import jax
import jax.numpy as jnp
from jax.experimental import pallas as pl
from jax.experimental.pallas import tpu as pltpu

BN_EPS = 1e-5


# --------------------------------------------------------------------------------------
# hardware-aware sizing helpers
# --------------------------------------------------------------------------------------
def _vmem_capacity_bytes():
    try:
        cap = int(pltpu.get_tpu_info().vmem_capacity_bytes)
        if cap > 0:
            return cap
    except Exception:
        pass
    return 64 * 1024 * 1024   # conservative fallback (v7x per-TensorCore VMEM)


def _pick_tq(N, cap, H):
    """Largest divisor of N (multiple of 128 preferred, else of 8) whose streamed
    (H, TQ, N) f32 score tile + softmax temporaries stay within ~1/4 of VMEM."""
    budget = cap // 4
    best8 = None
    for t in range(min(N, 512), 7, -1):
        if N % t:
            continue
        if 5 * 4 * H * t * N > budget:
            continue
        if t % 128 == 0:
            return t
        if best8 is None and t % 8 == 0:
            best8 = t
    # TODO(synk): masked ragged last tile for N with no friendly divisor.
    return best8 if best8 is not None else N


def _layer_cost(N, D, d_ff, H, return_scores):
    flops = 2 * N * D * 3 * D + 4 * N * N * D + 4 * N * D * d_ff
    transcendentals = H * N * N
    bytes_accessed = (8 * N * D
                      + 2 * (3 * D * D + D * d_ff + d_ff * D)
                      + 4 * (8 * D + d_ff)
                      + (4 * H * N * N if return_scores else 0))
    return pl.CostEstimate(flops=flops, transcendentals=transcendentals,
                           bytes_accessed=bytes_accessed)


# --------------------------------------------------------------------------------------
# single-invocation kernel (small N*D): whole layer fused, grid=(1,)
# --------------------------------------------------------------------------------------
def _layer_kernel_single(x_ref, wq_ref, bq_ref, wkv_ref, bkv_ref,
                         g1_ref, be1_ref, g2_ref, be2_ref,
                         w1_ref, bf1_ref, w2_ref, bf2_ref,
                         *out_refs, num_heads, with_scores):
    if with_scores:
        out_ref, attn_ref = out_refs
    else:
        (out_ref,) = out_refs

    N, D = out_ref.shape
    H = num_heads
    dh = D // H
    scale = 1.0 / (dh ** 0.5)

    x = x_ref[...]
    xb = x.astype(jnp.bfloat16)

    # Q/K/V projections (1/sqrt(dh) folded into Q at the (N, D) stage).
    q = ((jnp.dot(xb, wq_ref[...], preferred_element_type=jnp.float32) + bq_ref[...])
         * scale).astype(jnp.bfloat16)
    kv = jnp.dot(xb, wkv_ref[...], preferred_element_type=jnp.float32) + bkv_ref[...]
    k = kv[:, :D].astype(jnp.bfloat16)
    v = kv[:, D:].astype(jnp.bfloat16)

    q3 = q.reshape(N, H, dh)
    k3 = k.reshape(N, H, dh)
    v3 = v.reshape(N, H, dh)

    # NOTE: dh = D/H is tiny at these shapes -> attention is layout/VPU bound, not MXU.
    s = jnp.einsum('nhd,mhd->hnm', q3, k3, preferred_element_type=jnp.float32)
    if with_scores:
        attn_ref[...] = s.astype(attn_ref.dtype)   # pre-softmax scaled scores

    m = jnp.max(s, axis=-1, keepdims=True)
    p = jnp.exp(s - m)                             # (H, N, N) f32
    l = jnp.sum(p, axis=-1)                        # (H, N)
    ctx = jnp.einsum('hnm,mhd->nhd', p.astype(jnp.bfloat16), v3,
                     preferred_element_type=jnp.float32)          # (N, H, dh)
    inv = pl.reciprocal(l, approx=True).T                         # (N, H): normalize ctx, not p
    r1 = x + (ctx * inv[:, :, None]).reshape(N, D)                # attn dropout = identity

    mu1 = jnp.mean(r1, axis=0, keepdims=True)
    var1 = jnp.mean((r1 - mu1) ** 2, axis=0, keepdims=True)       # biased variance
    n1 = (r1 - mu1) * jax.lax.rsqrt(var1 + BN_EPS) * g1_ref[...] + be1_ref[...]

    h1 = jnp.maximum(
        jnp.dot(n1.astype(jnp.bfloat16), w1_ref[...],
                preferred_element_type=jnp.float32) + bf1_ref[...], 0.0)
    ffn = jnp.dot(h1.astype(jnp.bfloat16), w2_ref[...],
                  preferred_element_type=jnp.float32) + bf2_ref[...]

    r2 = n1 + ffn
    mu2 = jnp.mean(r2, axis=0, keepdims=True)
    var2 = jnp.mean((r2 - mu2) ** 2, axis=0, keepdims=True)
    out_ref[...] = ((r2 - mu2) * jax.lax.rsqrt(var2 + BN_EPS) * g2_ref[...]
                    + be2_ref[...]).astype(out_ref.dtype)


# --------------------------------------------------------------------------------------
# q-tiled kernel (general case): streamed final-layer scores, resident BN-coupled output
# --------------------------------------------------------------------------------------
def _layer_kernel_tiled(x_ref, wq_ref, bq_ref, wkv_ref, bkv_ref,
                        g1_ref, be1_ref, g2_ref, be2_ref,
                        w1_ref, bf1_ref, w2_ref, bf2_ref,
                        *refs, num_heads, tq, with_scores):
    if with_scores:
        out_ref, attn_ref, kT_scr, vT_scr, r1_scr, s1_scr, s2_scr = refs
    else:
        out_ref, kT_scr, vT_scr, r1_scr, s1_scr, s2_scr = refs
        attn_ref = None

    i = pl.program_id(0)
    n_tiles = pl.num_programs(0)
    N, D = out_ref.shape
    H = num_heads
    dh = D // H
    scale = 1.0 / (dh ** 0.5)

    # ---- tile 0: project K/V once, store head-major transposed (H, dh, N) bf16 so the
    #      per-tile score matmul RHS is lane-dense and needs no per-step relayout.
    @pl.when(i == 0)
    def _():
        xb = x_ref[...].astype(jnp.bfloat16)
        kv = jnp.dot(xb, wkv_ref[...], preferred_element_type=jnp.float32) + bkv_ref[...]
        kvT = kv.T.astype(jnp.bfloat16)                      # (2D, N): one-time transpose
        kT_scr[...] = kvT[:D, :].reshape(H, dh, N)
        vT_scr[...] = kvT[D:, :].reshape(H, dh, N)
        s1_scr[...] = jnp.zeros_like(s1_scr)
        s2_scr[...] = jnp.zeros_like(s2_scr)

    # ---- per q-tile attention (Q recomputed from x rows; no cached Q plane).
    row = pl.multiple_of(i * tq, tq)
    x_tile = x_ref[pl.ds(row, tq), :]                        # (tq, D) f32
    q = ((jnp.dot(x_tile.astype(jnp.bfloat16), wq_ref[...],
                  preferred_element_type=jnp.float32) + bq_ref[...]) * scale
         ).astype(jnp.bfloat16)
    q3 = q.reshape(tq, H, dh)

    s = jnp.einsum('thd,hdn->htn', q3, kT_scr[...],
                   preferred_element_type=jnp.float32)       # (H, tq, N) f32
    if with_scores:
        attn_ref[...] = s.astype(attn_ref.dtype)             # streamed, lane-dense N

    m = jnp.max(s, axis=-1, keepdims=True)
    p = jnp.exp(s - m)
    l = jnp.sum(p, axis=-1)                                  # (H, tq)
    ctx = jnp.einsum('htn,hdn->thd', p.astype(jnp.bfloat16), vT_scr[...],
                     preferred_element_type=jnp.float32)     # (tq, H, dh)
    inv = pl.reciprocal(l, approx=True).T                    # (tq, H)
    r1_tile = x_tile + (ctx * inv[:, :, None]).reshape(tq, D)
    r1_scr[pl.ds(row, tq), :] = r1_tile

    # incremental BN1 statistics: keeps the N-row reduction off the serial epilogue
    s1_scr[...] += jnp.sum(r1_tile, axis=0, keepdims=True)
    s2_scr[...] += jnp.sum(r1_tile * r1_tile, axis=0, keepdims=True)

    # ---- last tile: BN1 (from accumulated stats) + FFN + residual + BN2 over ALL tokens
    @pl.when(i == n_tiles - 1)
    def _():
        mu1 = s1_scr[...] * (1.0 / N)
        var1 = s2_scr[...] * (1.0 / N) - mu1 * mu1           # biased variance
        r1 = r1_scr[...]
        n1 = (r1 - mu1) * jax.lax.rsqrt(var1 + BN_EPS) * g1_ref[...] + be1_ref[...]

        h1 = jnp.maximum(
            jnp.dot(n1.astype(jnp.bfloat16), w1_ref[...],
                    preferred_element_type=jnp.float32) + bf1_ref[...], 0.0)
        ffn = jnp.dot(h1.astype(jnp.bfloat16), w2_ref[...],
                      preferred_element_type=jnp.float32) + bf2_ref[...]

        r2 = n1 + ffn
        mu2 = jnp.mean(r2, axis=0, keepdims=True)
        var2 = jnp.mean((r2 - mu2) ** 2, axis=0, keepdims=True)
        out_ref[...] = ((r2 - mu2) * jax.lax.rsqrt(var2 + BN_EPS) * g2_ref[...]
                        + be2_ref[...]).astype(out_ref.dtype)


# --------------------------------------------------------------------------------------
# wrapper
# --------------------------------------------------------------------------------------
def encoder_layer_pallas(x2d, params, num_heads, *, return_scores,
                         force_tiled=False, tq=None, score_dtype=jnp.float32):
    """One TimeSeriesTransformerEncoderLayer forward as a single Pallas kernel."""
    N, D = x2d.shape
    H = num_heads
    assert D % H == 0
    (wq, bq, wkv, bkv, g1, be1, g2, be2, w1, bf1, w2, bf2) = params
    d_ff = w1.shape[1]
    dh = D // H

    cap = _vmem_capacity_bytes()
    weight_bytes = 2 * (D * D + 2 * D * D + D * d_ff + d_ff * D) + 4 * (3 * D + d_ff + 5 * D)
    score_bytes = 4 * H * N * N if return_scores else 0

    # estimate for the fully-fused single-invocation variant (incl. double-buffered blocks)
    single_est = (4 * N * D * 4 + 2 * weight_bytes + 2 * score_bytes
                  + 3 * 4 * H * N * N + 4 * N * (3 * D + d_ff + 4 * D))
    use_single = (not force_tiled) and (single_est <= int(0.4 * cap))

    const = lambda s: pl.BlockSpec(s, lambda i: tuple(0 for _ in s))
    in_specs = [
        const((N, D)),                         # x (f32)
        const((D, D)), const((1, D)),          # Wq (bf16) / bq
        const((D, 2 * D)), const((1, 2 * D)),  # fused Wk|Wv (bf16) / bk|bv
        const((1, D)), const((1, D)),          # BN1 gamma / beta
        const((1, D)), const((1, D)),          # BN2 gamma / beta
        const((D, d_ff)), const((1, d_ff)),    # FFN W1 (bf16) / b1
        const((d_ff, D)), const((1, D)),       # FFN W2 (bf16) / b2
    ]
    # NOTE: all inputs are grid-invariant (same block every step); single-buffering them
    # (pl.Buffered(1)) would further cut VMEM at production shapes.

    if use_single:
        kernel = functools.partial(_layer_kernel_single, num_heads=H,
                                   with_scores=return_scores)
        grid = (1,)
        scratch = []
        if return_scores:
            out_shape = (jax.ShapeDtypeStruct((N, D), jnp.float32),
                         jax.ShapeDtypeStruct((H, N, N), score_dtype))
            out_specs = (const((N, D)), const((H, N, N)))
        else:
            out_shape = jax.ShapeDtypeStruct((N, D), jnp.float32)
            out_specs = const((N, D))
        vmem_est = single_est
    else:
        TQ = tq if tq is not None else _pick_tq(N, cap, H)
        assert N % TQ == 0, "q-tile must divide N"
        n_tiles = N // TQ
        kernel = functools.partial(_layer_kernel_tiled, num_heads=H, tq=TQ,
                                   with_scores=return_scores)
        grid = (n_tiles,)
        out_spec_y = pl.BlockSpec((N, D), lambda i: (0, 0))        # resident accumulator
        if return_scores:
            out_shape = (jax.ShapeDtypeStruct((N, D), jnp.float32),
                         jax.ShapeDtypeStruct((H, N, N), score_dtype))
            out_specs = (out_spec_y,
                         pl.BlockSpec((H, TQ, N), lambda i: (0, i, 0)))   # streamed per tile
        else:
            out_shape = jax.ShapeDtypeStruct((N, D), jnp.float32)
            out_specs = out_spec_y
        scratch = [pltpu.VMEM((H, dh, N), jnp.bfloat16),   # K^T, head-major
                   pltpu.VMEM((H, dh, N), jnp.bfloat16),   # V^T, head-major
                   pltpu.VMEM((N, D), jnp.float32),        # residual r1
                   pltpu.VMEM((1, D), jnp.float32),        # BN1 sum
                   pltpu.VMEM((1, D), jnp.float32)]        # BN1 sum of squares
        tile_score = 4 * H * TQ * N
        vmem_est = (4 * N * D * 4 + 2 * weight_bytes
                    + 2 * (2 * H * max(dh, 16) * N * 2)
                    + N * D * 4 + 8 * D
                    + (2 * tile_score if return_scores else 0)
                    + 3 * tile_score
                    + 4 * N * d_ff + 4 * N * 4 * D)

    # generation-aware scoped-VMEM request: never more than ~75% of physical VMEM.
    vmem_limit = min(int(0.75 * cap), max(32 * 1024 * 1024, 2 * int(vmem_est)))
    cost = _layer_cost(N, D, d_ff, H, return_scores)

    result = pl.pallas_call(
        kernel,
        out_shape=out_shape,
        grid_spec=pltpu.PrefetchScalarGridSpec(
            num_scalar_prefetch=0,
            grid=grid,
            in_specs=in_specs,
            out_specs=out_specs,
            scratch_shapes=scratch),
        # the grid axis must stay "arbitrary": the BatchNorm batch statistics couple all
        # N tokens (K/V cache filled at tile 0, BN/FFN epilogue at the last tile).
        compiler_params=pltpu.CompilerParams(
            dimension_semantics=("arbitrary",),
            vmem_limit_bytes=vmem_limit),
        cost_estimate=cost,
    )(x2d, wq, bq, wkv, bkv, g1, be1, g2, be2, w1, bf1, w2, bf2)

    if return_scores:
        return result[0], result[1]
    return result, None


def encoder_forward(X, layer_params, num_heads, *, force_tiled=False, tq=None):
    """TimeSeriesTransformerEncoder.forward: stack of layers; only the last layer's
    attention scores are materialized (only they are returned by the module)."""
    num_sensed, seq_len, d_model = X.shape
    x = X.reshape(num_sensed * seq_len, d_model)
    attn = None
    n_layers = len(layer_params)
    for li, p in enumerate(layer_params):
        last = li == n_layers - 1
        x, a = encoder_layer_pallas(x, p, num_heads, return_scores=last,
                                    force_tiled=force_tiled, tq=tq)
        if last:
            attn = a
    return x.reshape(num_sensed, seq_len, d_model), attn


# --------------------------------------------------------------------------------------
# reference (plain JAX, matching bf16 matmul inputs)
# --------------------------------------------------------------------------------------
def _ref_layer(x, p, num_heads):
    (wq, bq, wkv, bkv, g1, be1, g2, be2, w1, bf1, w2, bf2) = p
    N, D = x.shape
    dh = D // num_heads
    scale = 1.0 / (dh ** 0.5)
    xb = x.astype(jnp.bfloat16)
    q = (jnp.dot(xb, wq, preferred_element_type=jnp.float32) + bq).astype(jnp.bfloat16)
    kv = jnp.dot(xb, wkv, preferred_element_type=jnp.float32) + bkv
    k = kv[:, :D].astype(jnp.bfloat16)
    v = kv[:, D:].astype(jnp.bfloat16)
    q3 = q.reshape(N, num_heads, dh)
    k3 = k.reshape(N, num_heads, dh)
    v3 = v.reshape(N, num_heads, dh)
    scores = jnp.einsum('nhd,mhd->hnm', q3, k3, preferred_element_type=jnp.float32) * scale
    w = jax.nn.softmax(scores, axis=-1)
    ctx = jnp.einsum('hnm,mhd->nhd', w.astype(jnp.bfloat16), v3,
                     preferred_element_type=jnp.float32).reshape(N, D)
    r1 = x + ctx
    n1 = (r1 - r1.mean(0)) / jnp.sqrt(r1.var(0) + BN_EPS) * g1 + be1
    h1 = jax.nn.relu(jnp.dot(n1.astype(jnp.bfloat16), w1, preferred_element_type=jnp.float32) + bf1)
    ffn = jnp.dot(h1.astype(jnp.bfloat16), w2, preferred_element_type=jnp.float32) + bf2
    r2 = n1 + ffn
    n2 = (r2 - r2.mean(0)) / jnp.sqrt(r2.var(0) + BN_EPS) * g2 + be2
    return n2, scores


def _ref_encoder(X, layer_params, num_heads):
    num_sensed, seq_len, d_model = X.shape
    x = X.reshape(num_sensed * seq_len, d_model)
    attn = None
    for p in layer_params:
        x, attn = _ref_layer(x, p, num_heads)
    return x.reshape(num_sensed, seq_len, d_model), attn


# --------------------------------------------------------------------------------------
# parameter construction
# --------------------------------------------------------------------------------------
def _linear_init(key, fan_in, fan_out):
    """PyTorch nn.Linear-style uniform init; weight returned transposed to (in, out)."""
    kw, kb = jax.random.split(key)
    bound = 1.0 / (fan_in ** 0.5)
    w = jax.random.uniform(kw, (fan_in, fan_out), jnp.float32, -bound, bound)
    b = jax.random.uniform(kb, (1, fan_out), jnp.float32, -bound, bound)
    return w, b


def make_layer_params(key, d_model, d_ff):
    keys = jax.random.split(key, 5)
    wq, bq = _linear_init(keys[0], d_model, d_model)
    wk, bk = _linear_init(keys[1], d_model, d_model)
    wv, bv = _linear_init(keys[2], d_model, d_model)
    w1, bf1 = _linear_init(keys[3], d_model, d_ff)
    w2, bf2 = _linear_init(keys[4], d_ff, d_model)
    wkv = jnp.concatenate([wk, wv], axis=1).astype(jnp.bfloat16)   # fused (D, 2D) bf16
    bkv = jnp.concatenate([bk, bv], axis=1)                        # fused (1, 2D) f32
    g1 = jnp.ones((1, d_model), jnp.float32)    # BatchNorm1d default weight
    be1 = jnp.zeros((1, d_model), jnp.float32)  # BatchNorm1d default bias
    g2 = jnp.ones((1, d_model), jnp.float32)
    be2 = jnp.zeros((1, d_model), jnp.float32)
    return (wq.astype(jnp.bfloat16), bq, wkv, bkv, g1, be1, g2, be2,
            w1.astype(jnp.bfloat16), bf1, w2.astype(jnp.bfloat16), bf2)


if __name__ == "__main__":
    d_model, num_heads, d_ff, num_layers = 32, 4, 64, 2
    num_sensed, seq_len = 16, 16                # N = 256 tokens

    root = jax.random.PRNGKey(0)
    kx, kp = jax.random.split(root)
    X = jax.random.normal(kx, (num_sensed, seq_len, d_model), jnp.float32)
    layer_keys = jax.random.split(kp, num_layers)
    layer_params = [make_layer_params(k, d_model, d_ff) for k in layer_keys]

    N = num_sensed * seq_len
    ref_out, ref_attn = _ref_encoder(X, layer_params, num_heads)

    # fast path for small problems: whole layer fused into a single kernel invocation
    out, attn = encoder_forward(X, layer_params, num_heads)
    out, attn = jax.block_until_ready((out, attn))
    assert out.shape == (num_sensed, seq_len, d_model)
    assert attn.shape == (num_heads, N, N)
    assert jnp.allclose(out, ref_out, atol=3e-2, rtol=3e-2), \
        float(jnp.max(jnp.abs(out - ref_out)))
    assert jnp.allclose(attn, ref_attn, atol=3e-2, rtol=3e-2), \
        float(jnp.max(jnp.abs(attn - ref_attn)))

    # general path: q-tiled grid with streamed final-layer scores (exercised explicitly)
    out_t, attn_t = encoder_forward(X, layer_params, num_heads, force_tiled=True, tq=128)
    out_t, attn_t = jax.block_until_ready((out_t, attn_t))
    assert jnp.allclose(out_t, ref_out, atol=3e-2, rtol=3e-2), \
        float(jnp.max(jnp.abs(out_t - ref_out)))
    assert jnp.allclose(attn_t, ref_attn, atol=3e-2, rtol=3e-2), \
        float(jnp.max(jnp.abs(attn_t - ref_attn)))

    print("KERNEL_OK")
</pallas_src>

<mosaic_0001>
module attributes {stable_mosaic.version = 11 : i64} {
  func.func @_layer_kernel_single(%arg0: i32, %arg1: memref<256x32xf32, #tpu.memory_space<vmem>>, %arg2: memref<32x32xbf16, #tpu.memory_space<vmem>>, %arg3: memref<1x32xf32, #tpu.memory_space<vmem>>, %arg4: memref<32x64xbf16, #tpu.memory_space<vmem>>, %arg5: memref<1x64xf32, #tpu.memory_space<vmem>>, %arg6: memref<1x32xf32, #tpu.memory_space<vmem>>, %arg7: memref<1x32xf32, #tpu.memory_space<vmem>>, %arg8: memref<1x32xf32, #tpu.memory_space<vmem>>, %arg9: memref<1x32xf32, #tpu.memory_space<vmem>>, %arg10: memref<32x64xbf16, #tpu.memory_space<vmem>>, %arg11: memref<1x64xf32, #tpu.memory_space<vmem>>, %arg12: memref<64x32xbf16, #tpu.memory_space<vmem>>, %arg13: memref<1x32xf32, #tpu.memory_space<vmem>>, %arg14: memref<256x32xf32, #tpu.memory_space<vmem>>) attributes {dimension_semantics = [#tpu.dimension_semantics<arbitrary>], iteration_bounds = array<i64: 1>, scalar_prefetch = 0 : i64, scratch_operands = 0 : i64, tpu.core_type = #tpu.core_type<tc>, window_params = [{pipeline_mode = #tpu.pipeline_mode<synchronous>, transform_indices = @transform_0, window_bounds = array<i64: 256, 32>}, {pipeline_mode = #tpu.pipeline_mode<synchronous>, transform_indices = @transform_1, window_bounds = array<i64: 32, 32>}, {pipeline_mode = #tpu.pipeline_mode<synchronous>, transform_indices = @transform_2, window_bounds = array<i64: 1, 32>}, {pipeline_mode = #tpu.pipeline_mode<synchronous>, transform_indices = @transform_3, window_bounds = array<i64: 32, 64>}, {pipeline_mode = #tpu.pipeline_mode<synchronous>, transform_indices = @transform_4, window_bounds = array<i64: 1, 64>}, {pipeline_mode = #tpu.pipeline_mode<synchronous>, transform_indices = @transform_5, window_bounds = array<i64: 1, 32>}, {pipeline_mode = #tpu.pipeline_mode<synchronous>, transform_indices = @transform_6, window_bounds = array<i64: 1, 32>}, {pipeline_mode = #tpu.pipeline_mode<synchronous>, transform_indices = @transform_7, window_bounds = array<i64: 1, 32>}, {pipeline_mode = #tpu.pipeline_mode<synchronous>, transform_indices = @transform_8, window_bounds = array<i64: 1, 32>}, {pipeline_mode = #tpu.pipeline_mode<synchronous>, transform_indices = @transform_9, window_bounds = array<i64: 32, 64>}, {pipeline_mode = #tpu.pipeline_mode<synchronous>, transform_indices = @transform_10, window_bounds = array<i64: 1, 64>}, {pipeline_mode = #tpu.pipeline_mode<synchronous>, transform_indices = @transform_11, window_bounds = array<i64: 64, 32>}, {pipeline_mode = #tpu.pipeline_mode<synchronous>, transform_indices = @transform_12, window_bounds = array<i64: 1, 32>}, {pipeline_mode = #tpu.pipeline_mode<synchronous>, transform_indices = @transform_13, window_bounds = array<i64: 256, 32>}]} {
    %c0 = arith.constant 0 : index
    %c0_0 = arith.constant 0 : index
    %0 = vector.load %arg1[%c0, %c0_0] : memref<256x32xf32, #tpu.memory_space<vmem>>, vector<256x32xf32>
    %1 = arith.truncf %0 : vector<256x32xf32> to vector<256x32xbf16>
    %c0_1 = arith.constant 0 : index
    %c0_2 = arith.constant 0 : index
    %2 = vector.load %arg2[%c0_1, %c0_2] : memref<32x32xbf16, #tpu.memory_space<vmem>>, vector<32x32xbf16>
    %cst = arith.constant dense<0.000000e+00> : vector<256x32xf32>
    %3 = tpu.matmul %1, %2, %cst {dimension_numbers = #tpu.dot_dimension_numbers<[1], [0], [0], [1], [0, 0, 1, 1], [], []>} : vector<256x32xbf16>, vector<32x32xbf16>, vector<256x32xf32> -> vector<256x32xf32>
    %c0_3 = arith.constant 0 : index
    %c0_4 = arith.constant 0 : index
    %4 = vector.load %arg3[%c0_3, %c0_4] : memref<1x32xf32, #tpu.memory_space<vmem>>, vector<1x32xf32>
    %5 = vector.broadcast %4 : vector<1x32xf32> to vector<256x32xf32>
    %6 = arith.addf %3, %5 : vector<256x32xf32>
    %cst_5 = arith.constant 0.353553385 : f32
    %7 = vector.broadcast %cst_5 : f32 to vector<256x32xf32>
    %8 = arith.mulf %6, %7 : vector<256x32xf32>
    %9 = arith.truncf %8 : vector<256x32xf32> to vector<256x32xbf16>
    %c0_6 = arith.constant 0 : index
    %c0_7 = arith.constant 0 : index
    %10 = vector.load %arg4[%c0_6, %c0_7] : memref<32x64xbf16, #tpu.memory_space<vmem>>, vector<32x64xbf16>
    %cst_8 = arith.constant dense<0.000000e+00> : vector<256x64xf32>
    %11 = tpu.matmul %1, %10, %cst_8 {dimension_numbers = #tpu.dot_dimension_numbers<[1], [0], [0], [1], [0, 0, 1, 1], [], []>} : vector<256x32xbf16>, vector<32x64xbf16>, vector<256x64xf32> -> vector<256x64xf32>
    %c0_9 = arith.constant 0 : index
    %c0_10 = arith.constant 0 : index
    %12 = vector.load %arg5[%c0_9, %c0_10] : memref<1x64xf32, #tpu.memory_space<vmem>>, vector<1x64xf32>
    %13 = vector.broadcast %12 : vector<1x64xf32> to vector<256x64xf32>
    %14 = arith.addf %11, %13 : vector<256x64xf32>
    %15 = vector.extract_strided_slice %14 {offsets = [0, 0], sizes = [256, 32], strides = [1, 1]} : vector<256x64xf32> to vector<256x32xf32>
    %16 = arith.truncf %15 : vector<256x32xf32> to vector<256x32xbf16>
    %17 = vector.extract_strided_slice %14 {offsets = [0, 32], sizes = [256, 32], strides = [1, 1]} : vector<256x64xf32> to vector<256x32xf32>
    %18 = arith.truncf %17 : vector<256x32xf32> to vector<256x32xbf16>
    %19 = vector.shape_cast %9 : vector<256x32xbf16> to vector<256x4x8xbf16>
    %20 = vector.shape_cast %16 : vector<256x32xbf16> to vector<256x4x8xbf16>
    %21 = vector.shape_cast %18 : vector<256x32xbf16> to vector<256x4x8xbf16>
    "tpu.trace_start"() <{level = 10 : i32, message = "nhd,mhd->hnm"}> : () -> ()
    %cst_11 = arith.constant dense<0.000000e+00> : vector<4x256x256xf32>
    %22 = tpu.matmul %19, %20, %cst_11 {dimension_numbers = #tpu.dot_dimension_numbers<[2], [2], [0], [0], [0, 1, 0, 0, 1, 0], [1], [1]>} : vector<256x4x8xbf16>, vector<256x4x8xbf16>, vector<4x256x256xf32> -> vector<4x256x256xf32>
    "tpu.trace_stop"() : () -> ()
    %cst_12 = arith.constant dense<0xFF800000> : vector<4x256xf32>
    %23 = vector.multi_reduction <maximumf>, %22, %cst_12 [2] : vector<4x256x256xf32> to vector<4x256xf32>
    %24 = vector.shape_cast %23 : vector<4x256xf32> to vector<4x256x1xf32>
    %25 = vector.broadcast %24 : vector<4x256x1xf32> to vector<4x256x256xf32>
    %26 = arith.subf %22, %25 : vector<4x256x256xf32>
    %27 = math.exp %26 : vector<4x256x256xf32>
    %cst_13 = arith.constant dense<0.000000e+00> : vector<4x256xf32>
    %28 = vector.multi_reduction <add>, %27, %cst_13 [2] : vector<4x256x256xf32> to vector<4x256xf32>
    %29 = arith.truncf %27 : vector<4x256x256xf32> to vector<4x256x256xbf16>
    "tpu.trace_start"() <{level = 10 : i32, message = "hnm,mhd->nhd"}> : () -> ()
    %cst_14 = arith.constant dense<0.000000e+00> : vector<4x8x256xf32>
    %30 = tpu.matmul %21, %29, %cst_14 {dimension_numbers = #tpu.dot_dimension_numbers<[0], [2], [2], [1], [0, 1, 0, 2, 1, 1], [1], [0]>} : vector<256x4x8xbf16>, vector<4x256x256xbf16>, vector<4x8x256xf32> -> vector<4x8x256xf32>
    %31 = tpu.transpose %30, [2, 0, 1] : vector<4x8x256xf32> -> vector<256x4x8xf32>
    "tpu.trace_stop"() : () -> ()
    %32 = tpu.reciprocal %28 {approx = true} : vector<4x256xf32> -> vector<4x256xf32>
    %33 = tpu.transpose %32, [1, 0] : vector<4x256xf32> -> vector<256x4xf32>
    %34 = vector.shape_cast %33 : vector<256x4xf32> to vector<256x4x1xf32>
    %35 = vector.broadcast %34 : vector<256x4x1xf32> to vector<256x4x8xf32>
    %36 = arith.mulf %31, %35 : vector<256x4x8xf32>
    %37 = vector.shape_cast %36 : vector<256x4x8xf32> to vector<256x32xf32>
    %38 = arith.addf %0, %37 : vector<256x32xf32>
    %cst_15 = arith.constant dense<0.000000e+00> : vector<32xf32>
    %39 = vector.multi_reduction <add>, %38, %cst_15 [0] : vector<256x32xf32> to vector<32xf32>
    %40 = vector.shape_cast %39 : vector<32xf32> to vector<1x32xf32>
    %cst_16 = arith.constant 2.560000e+02 : f32
    %41 = vector.broadcast %cst_16 : f32 to vector<1x32xf32>
    %42 = arith.divf %40, %41 : vector<1x32xf32>
    %43 = vector.broadcast %42 : vector<1x32xf32> to vector<256x32xf32>
    %44 = arith.subf %38, %43 : vector<256x32xf32>
    %45 = arith.mulf %44, %44 : vector<256x32xf32>
    %cst_17 = arith.constant dense<0.000000e+00> : vector<32xf32>
    %46 = vector.multi_reduction <add>, %45, %cst_17 [0] : vector<256x32xf32> to vector<32xf32>
    %47 = vector.shape_cast %46 : vector<32xf32> to vector<1x32xf32>
    %cst_18 = arith.constant 2.560000e+02 : f32
    %48 = vector.broadcast %cst_18 : f32 to vector<1x32xf32>
    %49 = arith.divf %47, %48 : vector<1x32xf32>
    %50 = vector.broadcast %42 : vector<1x32xf32> to vector<256x32xf32>
    %51 = arith.subf %38, %50 : vector<256x32xf32>
    %cst_19 = arith.constant 9.99999974E-6 : f32
    %52 = vector.broadcast %cst_19 : f32 to vector<1x32xf32>
    %53 = arith.addf %49, %52 : vector<1x32xf32>
    %54 = math.rsqrt %53 : vector<1x32xf32>
    %55 = vector.broadcast %54 : vector<1x32xf32> to vector<256x32xf32>
    %56 = arith.mulf %51, %55 : vector<256x32xf32>
    %c0_20 = arith.constant 0 : index
    %c0_21 = arith.constant 0 : index
    %57 = vector.load %arg6[%c0_20, %c0_21] : memref<1x32xf32, #tpu.memory_space<vmem>>, vector<1x32xf32>
    %58 = vector.broadcast %57 : vector<1x32xf32> to vector<256x32xf32>
    %59 = arith.mulf %56, %58 : vector<256x32xf32>
    %c0_22 = arith.constant 0 : index
    %c0_23 = arith.constant 0 : index
    %60 = vector.load %arg7[%c0_22, %c0_23] : memref<1x32xf32, #tpu.memory_space<vmem>>, vector<1x32xf32>
    %61 = vector.broadcast %60 : vector<1x32xf32> to vector<256x32xf32>
    %62 = arith.addf %59, %61 : vector<256x32xf32>
    %63 = arith.truncf %62 : vector<256x32xf32> to vector<256x32xbf16>
    %c0_24 = arith.constant 0 : index
    %c0_25 = arith.constant 0 : index
    %64 = vector.load %arg10[%c0_24, %c0_25] : memref<32x64xbf16, #tpu.memory_space<vmem>>, vector<32x64xbf16>
    %cst_26 = arith.constant dense<0.000000e+00> : vector<256x64xf32>
    %65 = tpu.matmul %63, %64, %cst_26 {dimension_numbers = #tpu.dot_dimension_numbers<[1], [0], [0], [1], [0, 0, 1, 1], [], []>} : vector<256x32xbf16>, vector<32x64xbf16>, vector<256x64xf32> -> vector<256x64xf32>
    %c0_27 = arith.constant 0 : index
    %c0_28 = arith.constant 0 : index
    %66 = vector.load %arg11[%c0_27, %c0_28] : memref<1x64xf32, #tpu.memory_space<vmem>>, vector<1x64xf32>
    %67 = vector.broadcast %66 : vector<1x64xf32> to vector<256x64xf32>
    %68 = arith.addf %65, %67 : vector<256x64xf32>
    %cst_29 = arith.constant 0.000000e+00 : f32
    %69 = vector.broadcast %cst_29 : f32 to vector<256x64xf32>
    %70 = arith.maximumf %68, %69 : vector<256x64xf32>
    %71 = arith.truncf %70 : vector<256x64xf32> to vector<256x64xbf16>
    %c0_30 = arith.constant 0 : index
    %c0_31 = arith.constant 0 : index
    %72 = vector.load %arg12[%c0_30, %c0_31] : memref<64x32xbf16, #tpu.memory_space<vmem>>, vector<64x32xbf16>
    %cst_32 = arith.constant dense<0.000000e+00> : vector<256x32xf32>
    %73 = tpu.matmul %71, %72, %cst_32 {dimension_numbers = #tpu.dot_dimension_numbers<[1], [0], [0], [1], [0, 0, 1, 1], [], []>} : vector<256x64xbf16>, vector<64x32xbf16>, vector<256x32xf32> -> vector<256x32xf32>
    %c0_33 = arith.constant 0 : index
    %c0_34 = arith.constant 0 : index
    %74 = vector.load %arg13[%c0_33, %c0_34] : memref<1x32xf32, #tpu.memory_space<vmem>>, vector<1x32xf32>
    %75 = vector.broadcast %74 : vector<1x32xf32> to vector<256x32xf32>
    %76 = arith.addf %73, %75 : vector<256x32xf32>
    %77 = arith.addf %62, %76 : vector<256x32xf32>
    %cst_35 = arith.constant dense<0.000000e+00> : vector<32xf32>
    %78 = vector.multi_reduction <add>, %77, %cst_35 [0] : vector<256x32xf32> to vector<32xf32>
    %79 = vector.shape_cast %78 : vector<32xf32> to vector<1x32xf32>
    %cst_36 = arith.constant 2.560000e+02 : f32
    %80 = vector.broadcast %cst_36 : f32 to vector<1x32xf32>
    %81 = arith.divf %79, %80 : vector<1x32xf32>
    %82 = vector.broadcast %81 : vector<1x32xf32> to vector<256x32xf32>
    %83 = arith.subf %77, %82 : vector<256x32xf32>
    %84 = arith.mulf %83, %83 : vector<256x32xf32>
    %cst_37 = arith.constant dense<0.000000e+00> : vector<32xf32>
    %85 = vector.multi_reduction <add>, %84, %cst_37 [0] : vector<256x32xf32> to vector<32xf32>
    %86 = vector.shape_cast %85 : vector<32xf32> to vector<1x32xf32>
    %cst_38 = arith.constant 2.560000e+02 : f32
    %87 = vector.broadcast %cst_38 : f32 to vector<1x32xf32>
    %88 = arith.divf %86, %87 : vector<1x32xf32>
    %89 = vector.broadcast %81 : vector<1x32xf32> to vector<256x32xf32>
    %90 = arith.subf %77, %89 : vector<256x32xf32>
    %cst_39 = arith.constant 9.99999974E-6 : f32
    %91 = vector.broadcast %cst_39 : f32 to vector<1x32xf32>
    %92 = arith.addf %88, %91 : vector<1x32xf32>
    %93 = math.rsqrt %92 : vector<1x32xf32>
    %94 = vector.broadcast %93 : vector<1x32xf32> to vector<256x32xf32>
    %95 = arith.mulf %90, %94 : vector<256x32xf32>
    %c0_40 = arith.constant 0 : index
    %c0_41 = arith.constant 0 : index
    %96 = vector.load %arg8[%c0_40, %c0_41] : memref<1x32xf32, #tpu.memory_space<vmem>>, vector<1x32xf32>
    %97 = vector.broadcast %96 : vector<1x32xf32> to vector<256x32xf32>
    %98 = arith.mulf %95, %97 : vector<256x32xf32>
    %c0_42 = arith.constant 0 : index
    %c0_43 = arith.constant 0 : index
    %99 = vector.load %arg9[%c0_42, %c0_43] : memref<1x32xf32, #tpu.memory_space<vmem>>, vector<1x32xf32>
    %100 = vector.broadcast %99 : vector<1x32xf32> to vector<256x32xf32>
    %101 = arith.addf %98, %100 : vector<256x32xf32>
    %c0_44 = arith.constant 0 : index
    %c0_45 = arith.constant 0 : index
    %102 = vector.load %arg14[%c0_44, %c0_45] : memref<256x32xf32, #tpu.memory_space<vmem>>, vector<256x32xf32>
    tpu.vector_store %arg14[%c0_44, %c0_45], %101 {strides = array<i32>} : memref<256x32xf32, #tpu.memory_space<vmem>>, vector<256x32xf32>,
    return
  }
  func.func @transform_0(%arg0: i32) -> (i32, i32) {
    %c0_i32 = arith.constant 0 : i32
    %c0_i32_0 = arith.constant 0 : i32
    %c0_i32_1 = arith.constant 0 : i32
    return %c0_i32, %c0_i32_0 : i32, i32
  }
  func.func @transform_1(%arg0: i32) -> (i32, i32) {
    %c0_i32 = arith.constant 0 : i32
    %c0_i32_0 = arith.constant 0 : i32
    %c0_i32_1 = arith.constant 0 : i32
    return %c0_i32, %c0_i32_0 : i32, i32
  }
  func.func @transform_2(%arg0: i32) -> (i32, i32) {
    %c0_i32 = arith.constant 0 : i32
    %c0_i32_0 = arith.constant 0 : i32
    %c0_i32_1 = arith.constant 0 : i32
    return %c0_i32, %c0_i32_0 : i32, i32
  }
  func.func @transform_3(%arg0: i32) -> (i32, i32) {
    %c0_i32 = arith.constant 0 : i32
    %c0_i32_0 = arith.constant 0 : i32
    %c0_i32_1 = arith.constant 0 : i32
    return %c0_i32, %c0_i32_0 : i32, i32
  }
  func.func @transform_4(%arg0: i32) -> (i32, i32) {
    %c0_i32 = arith.constant 0 : i32
    %c0_i32_0 = arith.constant 0 : i32
    %c0_i32_1 = arith.constant 0 : i32
    return %c0_i32, %c0_i32_0 : i32, i32
  }
  func.func @transform_5(%arg0: i32) -> (i32, i32) {
    %c0_i32 = arith.constant 0 : i32
    %c0_i32_0 = arith.constant 0 : i32
    %c0_i32_1 = arith.constant 0 : i32
    return %c0_i32, %c0_i32_0 : i32, i32
  }
  func.func @transform_6(%arg0: i32) -> (i32, i32) {
    %c0_i32 = arith.constant 0 : i32
    %c0_i32_0 = arith.constant 0 : i32
    %c0_i32_1 = arith.constant 0 : i32
    return %c0_i32, %c0_i32_0 : i32, i32
  }
  func.func @transform_7(%arg0: i32) -> (i32, i32) {
    %c0_i32 = arith.constant 0 : i32
    %c0_i32_0 = arith.constant 0 : i32
    %c0_i32_1 = arith.constant 0 : i32
    return %c0_i32, %c0_i32_0 : i32, i32
  }
  func.func @transform_8(%arg0: i32) -> (i32, i32) {
    %c0_i32 = arith.constant 0 : i32
    %c0_i32_0 = arith.constant 0 : i32
    %c0_i32_1 = arith.constant 0 : i32
    return %c0_i32, %c0_i32_0 : i32, i32
  }
  func.func @transform_9(%arg0: i32) -> (i32, i32) {
    %c0_i32 = arith.constant 0 : i32
    %c0_i32_0 = arith.constant 0 : i32
    %c0_i32_1 = arith.constant 0 : i32
    return %c0_i32, %c0_i32_0 : i32, i32
  }
  func.func @transform_10(%arg0: i32) -> (i32, i32) {
    %c0_i32 = arith.constant 0 : i32
    %c0_i32_0 = arith.constant 0 : i32
    %c0_i32_1 = arith.constant 0 : i32
    return %c0_i32, %c0_i32_0 : i32, i32
  }
  func.func @transform_11(%arg0: i32) -> (i32, i32) {
    %c0_i32 = arith.constant 0 : i32
    %c0_i32_0 = arith.constant 0 : i32
    %c0_i32_1 = arith.constant 0 : i32
    return %c0_i32, %c0_i32_0 : i32, i32
  }
  func.func @transform_12(%arg0: i32) -> (i32, i32) {
    %c0_i32 = arith.constant 0 : i32
    %c0_i32_0 = arith.constant 0 : i32
    %c0_i32_1 = arith.constant 0 : i32
    return %c0_i32, %c0_i32_0 : i32, i32
  }
  func.func @transform_13(%arg0: i32) -> (i32, i32) {
    %c0_i32 = arith.constant 0 : i32
    %c0_i32_0 = arith.constant 0 : i32
    %c0_i32_1 = arith.constant 0 : i32
    return %c0_i32, %c0_i32_0 : i32, i32
  }
}

</mosaic_0001>

<llo_original>
// kernel: tpu_custom_call.1
$region0: #{tpu_custom_call.1}
  #allocation0 [shape = 'u32[]', space=smem, size = 0x4, offset = 0x4, fixed_abs, tag = 'smem constant byte address 0x4 - core index']
  #allocation1 [shape = 'u32[144,128]{1,0:T(1,128)}', space=vmem, size = 0x12000, scoped, tag = 'internal scratch']
  %s0 = inlined_call_operand.vmem [shape: f32[256,32], index: 0, kind: input, shape index: {}]
  %s1 = inlined_call_operand.vmem [shape: bf16[32,32], index: 1, kind: input, shape index: {}]
  %s2 = inlined_call_operand.vmem [shape: f32[1,32], index: 2, kind: input, shape index: {}]
  %s3 = inlined_call_operand.vmem [shape: bf16[32,64], index: 3, kind: input, shape index: {}]
  %s4 = inlined_call_operand.vmem [shape: f32[1,64], index: 4, kind: input, shape index: {}]
  %s5 = inlined_call_operand.vmem [shape: f32[1,32], index: 5, kind: input, shape index: {}]
  %s6 = inlined_call_operand.vmem [shape: f32[1,32], index: 6, kind: input, shape index: {}]
  %s7 = inlined_call_operand.vmem [shape: f32[1,32], index: 7, kind: input, shape index: {}]
  %s8 = inlined_call_operand.vmem [shape: f32[1,32], index: 8, kind: input, shape index: {}]
  %s9 = inlined_call_operand.vmem [shape: bf16[32,64], index: 9, kind: input, shape index: {}]
  %s10 = inlined_call_operand.vmem [shape: f32[1,64], index: 10, kind: input, shape index: {}]
  %s11 = inlined_call_operand.vmem [shape: bf16[64,32], index: 11, kind: input, shape index: {}]
  %s12 = inlined_call_operand.vmem [shape: f32[1,32], index: 12, kind: input, shape index: {}]
  %s13 = inlined_call_operand.vmem [shape: f32[256,32], index: 13, kind: output, shape index: {}]
  %s14 = sld [smem:[#allocation0]]
  $region62: #{tpu_custom_call.1} parent=0
    _
  %s16 = ssub.s32 1, %s14
  %s17 = scalar_select 0, %s16, %s14
  // Predicated region
  $region2: #{tpu_custom_call.1} parent=0 // pred_check
    _
  $region3: #{tpu_custom_call.1} parent=0 // pred_check_branch
    %19 = sbr.rel (0) target = $region5
  $region4: #{tpu_custom_call.1} parent=0 // pred_region
    _
  $region5: #{tpu_custom_call.1} parent=0 // pred_fallthru
    _
  // Predicated region
  $region6: #{tpu_custom_call.1} parent=0 // pred_check
    _
  $region7: #{tpu_custom_call.1} parent=0 // pred_check_branch
    %21 = sbr.rel (0) target = $region9
  $region8: #{tpu_custom_call.1} parent=0 // pred_region
    _
  $region9: #{tpu_custom_call.1} parent=0 // pred_fallthru
    _
  // Predicated region
  $region10: #{tpu_custom_call.1} parent=0 // pred_check
    _
  $region11: #{tpu_custom_call.1} parent=0 // pred_check_branch
    %23 = sbr.rel (0) target = $region13
  $region12: #{tpu_custom_call.1} parent=0 // pred_region
    _
  $region13: #{tpu_custom_call.1} parent=0 // pred_fallthru
    _
  // Predicated region
  $region14: #{tpu_custom_call.1} parent=0 // pred_check
    _
  $region15: #{tpu_custom_call.1} parent=0 // pred_check_branch
    %25 = sbr.rel (0) target = $region17
  $region16: #{tpu_custom_call.1} parent=0 // pred_region
    _
  $region17: #{tpu_custom_call.1} parent=0 // pred_fallthru
    _
  // Predicated region
  $region18: #{tpu_custom_call.1} parent=0 // pred_check
    _
  $region19: #{tpu_custom_call.1} parent=0 // pred_check_branch
    %27 = sbr.rel (0) target = $region21
  $region20: #{tpu_custom_call.1} parent=0 // pred_region
    _
  $region21: #{tpu_custom_call.1} parent=0 // pred_fallthru
    _
  // Predicated region
  $region22: #{tpu_custom_call.1} parent=0 // pred_check
    _
  $region23: #{tpu_custom_call.1} parent=0 // pred_check_branch
    %29 = sbr.rel (0) target = $region25
  $region24: #{tpu_custom_call.1} parent=0 // pred_region
    _
  $region25: #{tpu_custom_call.1} parent=0 // pred_fallthru
    _
  // Predicated region
  $region26: #{tpu_custom_call.1} parent=0 // pred_check
    _
  $region27: #{tpu_custom_call.1} parent=0 // pred_check_branch
    %31 = sbr.rel (0) target = $region29
  $region28: #{tpu_custom_call.1} parent=0 // pred_region
    _
  $region29: #{tpu_custom_call.1} parent=0 // pred_fallthru
    _
  // Predicated region
  $region30: #{tpu_custom_call.1} parent=0 // pred_check
    _
  $region31: #{tpu_custom_call.1} parent=0 // pred_check_branch
    %33 = sbr.rel (0) target = $region33
  $region32: #{tpu_custom_call.1} parent=0 // pred_region
    _
  $region33: #{tpu_custom_call.1} parent=0 // pred_fallthru
    _
  // Predicated region
  $region34: #{tpu_custom_call.1} parent=0 // pred_check
    _
  $region35: #{tpu_custom_call.1} parent=0 // pred_check_branch
    %35 = sbr.rel (0) target = $region37
  $region36: #{tpu_custom_call.1} parent=0 // pred_region
    _
  $region37: #{tpu_custom_call.1} parent=0 // pred_fallthru
    _
  // Predicated region
  $region38: #{tpu_custom_call.1} parent=0 // pred_check
    _
  $region39: #{tpu_custom_call.1} parent=0 // pred_check_branch
    %37 = sbr.rel (0) target = $region41
  $region40: #{tpu_custom_call.1} parent=0 // pred_region
    _
  $region41: #{tpu_custom_call.1} parent=0 // pred_fallthru
    _
  // Predicated region
  $region42: #{tpu_custom_call.1} parent=0 // pred_check
    _
  $region43: #{tpu_custom_call.1} parent=0 // pred_check_branch
    %39 = sbr.rel (0) target = $region45
  $region44: #{tpu_custom_call.1} parent=0 // pred_region
    _
  $region45: #{tpu_custom_call.1} parent=0 // pred_fallthru
    _
  // Predicated region
  $region46: #{tpu_custom_call.1} parent=0 // pred_check
    _
  $region47: #{tpu_custom_call.1} parent=0 // pred_check_branch
    %41 = sbr.rel (0) target = $region49
  $region48: #{tpu_custom_call.1} parent=0 // pred_region
    _
  $region49: #{tpu_custom_call.1} parent=0 // pred_fallthru
    _
  // Predicated region
  $region50: #{tpu_custom_call.1} parent=0 // pred_check
    _
  $region51: #{tpu_custom_call.1} parent=0 // pred_check_branch
    %43 = sbr.rel (0) target = $region53
  $region52: #{tpu_custom_call.1} parent=0 // pred_region
    _
  $region53: #{tpu_custom_call.1} parent=0 // pred_fallthru
    _
  %v45 = vld [vmem:[%s0] sm:$0xff]
  %v46 = vld [vmem:[%s0 + $0x8] sm:$0xff]
  %v47 = vld [vmem:[%s0 + $0x10] sm:$0xff]
  %v48 = vld [vmem:[%s0 + $0x18] sm:$0xff]
  %v49 = vld [vmem:[%s0 + $0x20] sm:$0xff]
  %v50 = vld [vmem:[%s0 + $0x28] sm:$0xff]
  %v51 = vld [vmem:[%s0 + $0x30] sm:$0xff]
  %v52 = vld [vmem:[%s0 + $0x38] sm:$0xff]
  %v53 = vld [vmem:[%s0 + $0x40] sm:$0xff]
  %v54 = vld [vmem:[%s0 + $0x48] sm:$0xff]
  %v55 = vld [vmem:[%s0 + $0x50] sm:$0xff]
  %v56 = vld [vmem:[%s0 + $0x58] sm:$0xff]
  %v57 = vld [vmem:[%s0 + $0x60] sm:$0xff]
  %v58 = vld [vmem:[%s0 + $0x68] sm:$0xff]
  %v59 = vld [vmem:[%s0 + $0x70] sm:$0xff]
  %v60 = vld [vmem:[%s0 + $0x78] sm:$0xff]
  %v61 = vld [vmem:[%s0 + $0x80] sm:$0xff]
  %v62 = vld [vmem:[%s0 + $0x88] sm:$0xff]
  %v63 = vld [vmem:[%s0 + $0x90] sm:$0xff]
  %v64 = vld [vmem:[%s0 + $0x98] sm:$0xff]
  %v65 = vld [vmem:[%s0 + $0xa0] sm:$0xff]
  %v66 = vld [vmem:[%s0 + $0xa8] sm:$0xff]
  %v67 = vld [vmem:[%s0 + $0xb0] sm:$0xff]
  %v68 = vld [vmem:[%s0 + $0xb8] sm:$0xff]
  %v69 = vld [vmem:[%s0 + $0xc0] sm:$0xff]
  %v70 = vld [vmem:[%s0 + $0xc8] sm:$0xff]
  %v71 = vld [vmem:[%s0 + $0xd0] sm:$0xff]
  %v72 = vld [vmem:[%s0 + $0xd8] sm:$0xff]
  %v73 = vld [vmem:[%s0 + $0xe0] sm:$0xff]
  %v74 = vld [vmem:[%s0 + $0xe8] sm:$0xff]
  %v75 = vld [vmem:[%s0 + $0xf0] sm:$0xff]
  %v76 = vld [vmem:[%s0 + $0xf8] sm:$0xff]
  %v77 = vpack.c.bf16 %v46, %v45
  %v78 = vpack.c.bf16 %v48, %v47
  %v79 = vpack.c.bf16 %v50, %v49
  %v80 = vpack.c.bf16 %v52, %v51
  %v81 = vpack.c.bf16 %v54, %v53
  %v82 = vpack.c.bf16 %v56, %v55
  %v83 = vpack.c.bf16 %v58, %v57
  %v84 = vpack.c.bf16 %v60, %v59
  %v85 = vpack.c.bf16 %v62, %v61
  %v86 = vpack.c.bf16 %v64, %v63
  %v87 = vpack.c.bf16 %v66, %v65
  %v88 = vpack.c.bf16 %v68, %v67
  %v89 = vpack.c.bf16 %v70, %v69
  %v90 = vpack.c.bf16 %v72, %v71
  %v91 = vpack.c.bf16 %v74, %v73
  %v92 = vpack.c.bf16 %v76, %v75
  %v93 = vld [vmem:[%s1] sm:$0xf]
  %v94 = vld [vmem:[%s1 + $0x4] sm:$0xf]
  %v95 = vld [vmem:[%s1 + $0x8] sm:$0xf]
  %v96 = vld [vmem:[%s1 + $0xc] sm:$0xf]
  %v97 = vld [vmem:[%s2] sm:$0x1]
  %v99 = vlaneseq
  %v100 = vshrl.u32 %v99, 7
  %v101 = vsub.s32 0, %v100
  %v102 = vrot.slane %v97, %v101
  %v108 = vunpack.c.l.b16 %v93
  %v109 = vunpack.c.l.b16 %v94
  %v110 = vunpack.c.l.b16 %v95
  %v111 = vunpack.c.l.b16 %v96
  %v112 = vpack.c.b16 %v109, %v108
  %v113 = vpack.c.b16 %v111, %v110
  %vm116 = vcmask 261120
  %v118 = vsel %vm116, %v77, 0
  %v121 = vsel %vm116, %v78, 0
  %v124 = vsel %vm116, %v79, 0
  %v127 = vsel %vm116, %v80, 0
  %v130 = vsel %vm116, %v81, 0
  %v133 = vsel %vm116, %v82, 0
  %v136 = vsel %vm116, %v83, 0
  %v139 = vsel %vm116, %v84, 0
  %v142 = vsel %vm116, %v85, 0
  %v145 = vsel %vm116, %v86, 0
  %v148 = vsel %vm116, %v87, 0
  %v151 = vsel %vm116, %v88, 0
  %v154 = vsel %vm116, %v89, 0
  %v157 = vsel %vm116, %v90, 0
  %v160 = vsel %vm116, %v91, 0
  %v163 = vsel %vm116, %v92, 0
  %165 = vmatprep.subr.bf16.mxu0 0
  %166 = vmatpush1.bf16.msra.mxu0 0
  %167 = vmatprep.subr.bf16.mxu0 0
  %168 = vmatpush1.bf16.msra.mxu0 0
  %169 = vmatprep.subr.bf16.mxu0 0
  %170 = vmatpush1.bf16.msra.mxu0 0
  %171 = vmatprep.subr.bf16.mxu0 0
  %172 = vmatpush1.bf16.msra.mxu0 0
  %173 = vmatprep.subr.bf16.mxu0 0
  %174 = vmatpush1.bf16.msra.mxu0 0
  %175 = vmatprep.subr.bf16.mxu0 0
  %176 = vmatpush1.bf16.msra.mxu0 0
  %177 = vmatprep.subr.bf16.mxu0 0
  %178 = vmatpush1.bf16.msra.mxu0 %v113
  %179 = vmatprep.subr.bf16.mxu0 0
  %180 = vmatpush1.bf16.msra.mxu0 %v112
  %181 = vmatprep.subr.bf16.mxu0 0
  %182 = vmatpush2.bf16.msra.mxu0 0
  %183 = vmatprep.subr.bf16.mxu0 0
  %184 = vmatpush2.bf16.msra.mxu0 0
  %185 = vmatprep.subr.bf16.mxu0 0
  %186 = vmatpush2.bf16.msra.mxu0 0
  %187 = vmatprep.subr.bf16.mxu0 0
  %188 = vmatpush2.bf16.msra.mxu0 0
  %189 = vmatprep.subr.bf16.mxu0 0
  %190 = vmatpush2.bf16.msra.mxu0 0
  %191 = vmatprep.subr.bf16.mxu0 0
  %192 = vmatpush2.bf16.msra.mxu0 0
  %193 = vmatprep.subr.bf16.mxu0 0
  %194 = vmatpush2.bf16.msra.mxu0 0
  %195 = vmatprep.subr.bf16.mxu0 0
  %196 = vmatpush2.bf16.msra.mxu0 0
  %197 = vmatprep.mubr.bf16.mxu0 0
  %198 = vmatmul.mubr.bf16.gmra.mxu0 %v118
  %v199 = vpop.f32.mrf.mxu0
  %v200 = vadd.f32 %v102, %v199
  %v201 = vpop.f32.mrf.mxu0
  %v202 = vpop.f32.mrf.mxu0
  %v203 = vadd.f32 %v102, %v202
  %v204 = vpop.f32.mrf.mxu0
  %205 = vmatprep.mubr.bf16.mxu0 0
  %206 = vmatmul.mubr.bf16.gmra.mxu0 %v121
  %v207 = vpop.f32.mrf.mxu0
  %v208 = vadd.f32 %v102, %v207
  %v209 = vpop.f32.mrf.mxu0
  %v210 = vpop.f32.mrf.mxu0
  %v211 = vadd.f32 %v102, %v210
  %v212 = vpop.f32.mrf.mxu0
  %213 = vmatprep.mubr.bf16.mxu0 0
  %214 = vmatmul.mubr.bf16.gmra.mxu0 %v124
  %v215 = vpop.f32.mrf.mxu0
  %v216 = vadd.f32 %v102, %v215
  %v217 = vpop.f32.mrf.mxu0
  %v218 = vpop.f32.mrf.mxu0
  %v219 = vadd.f32 %v102, %v218
  %v220 = vpop.f32.mrf.mxu0
  %221 = vmatprep.mubr.bf16.mxu0 0
  %222 = vmatmul.mubr.bf16.gmra.mxu0 %v127
  %v223 = vpop.f32.mrf.mxu0
  %v224 = vadd.f32 %v102, %v223
  %v225 = vpop.f32.mrf.mxu0
  %v226 = vpop.f32.mrf.mxu0
  %v227 = vadd.f32 %v102, %v226
  %v228 = vpop.f32.mrf.mxu0
  %229 = vmatprep.mubr.bf16.mxu0 0
  %230 = vmatmul.mubr.bf16.gmra.mxu0 %v130
  %v231 = vpop.f32.mrf.mxu0
  %v232 = vadd.f32 %v102, %v231
  %v233 = vpop.f32.mrf.mxu0
  %v234 = vpop.f32.mrf.mxu0
  %v235 = vadd.f32 %v102, %v234
  %v236 = vpop.f32.mrf.mxu0
  %237 = vmatprep.mubr.bf16.mxu0 0
  %238 = vmatmul.mubr.bf16.gmra.mxu0 %v133
  %v239 = vpop.f32.mrf.mxu0
  %v240 = vadd.f32 %v102, %v239
  %v241 = vpop.f32.mrf.mxu0
  %v242 = vpop.f32.mrf.mxu0
  %v243 = vadd.f32 %v102, %v242
  %v244 = vpop.f32.mrf.mxu0
  %245 = vmatprep.mubr.bf16.mxu0 0
  %246 = vmatmul.mubr.bf16.gmra.mxu0 %v136
  %v247 = vpop.f32.mrf.mxu0
  %v248 = vadd.f32 %v102, %v247
  %v249 = vpop.f32.mrf.mxu0
  %v250 = vpop.f32.mrf.mxu0
  %v251 = vadd.f32 %v102, %v250
  %v252 = vpop.f32.mrf.mxu0
  %253 = vmatprep.mubr.bf16.mxu0 0
  %254 = vmatmul.mubr.bf16.gmra.mxu0 %v139
  %v255 = vpop.f32.mrf.mxu0
  %v256 = vadd.f32 %v102, %v255
  %v257 = vpop.f32.mrf.mxu0
  %v258 = vpop.f32.mrf.mxu0
  %v259 = vadd.f32 %v102, %v258
  %v260 = vpop.f32.mrf.mxu0
  %261 = vmatprep.mubr.bf16.mxu0 0
  %262 = vmatmul.mubr.bf16.gmra.mxu0 %v142
  %v263 = vpop.f32.mrf.mxu0
  %v264 = vadd.f32 %v102, %v263
  %v265 = vpop.f32.mrf.mxu0
  %v266 = vpop.f32.mrf.mxu0
  %v267 = vadd.f32 %v102, %v266
  %v268 = vpop.f32.mrf.mxu0
  %269 = vmatprep.mubr.bf16.mxu0 0
  %270 = vmatmul.mubr.bf16.gmra.mxu0 %v145
  %v271 = vpop.f32.mrf.mxu0
  %v272 = vadd.f32 %v102, %v271
  %v273 = vpop.f32.mrf.mxu0
  %v274 = vpop.f32.mrf.mxu0
  %v275 = vadd.f32 %v102, %v274
  %v276 = vpop.f32.mrf.mxu0
  %277 = vmatprep.mubr.bf16.mxu0 0
  %278 = vmatmul.mubr.bf16.gmra.mxu0 %v148
  %v279 = vpop.f32.mrf.mxu0
  %v280 = vadd.f32 %v102, %v279
  %v281 = vpop.f32.mrf.mxu0
  %v282 = vpop.f32.mrf.mxu0
  %v283 = vadd.f32 %v102, %v282
  %v284 = vpop.f32.mrf.mxu0
  %285 = vmatprep.mubr.bf16.mxu0 0
  %286 = vmatmul.mubr.bf16.gmra.mxu0 %v151
  %v287 = vpop.f32.mrf.mxu0
  %v288 = vadd.f32 %v102, %v287
  %v289 = vpop.f32.mrf.mxu0
  %v290 = vpop.f32.mrf.mxu0
  %v291 = vadd.f32 %v102, %v290
  %v292 = vpop.f32.mrf.mxu0
  %293 = vmatprep.mubr.bf16.mxu0 0
  %294 = vmatmul.mubr.bf16.gmra.mxu0 %v154
  %v295 = vpop.f32.mrf.mxu0
  %v296 = vadd.f32 %v102, %v295
  %v297 = vpop.f32.mrf.mxu0
  %v298 = vpop.f32.mrf.mxu0
  %v299 = vadd.f32 %v102, %v298
  %v300 = vpop.f32.mrf.mxu0
  %301 = vmatprep.mubr.bf16.mxu0 0
  %302 = vmatmul.mubr.bf16.gmra.mxu0 %v157
  %v303 = vpop.f32.mrf.mxu0
  %v304 = vadd.f32 %v102, %v303
  %v305 = vpop.f32.mrf.mxu0
  %v306 = vpop.f32.mrf.mxu0
  %v307 = vadd.f32 %v102, %v306
  %v308 = vpop.f32.mrf.mxu0
  %309 = vmatprep.mubr.bf16.mxu0 0
  %310 = vmatmul.mubr.bf16.gmra.mxu0 %v160
  %v311 = vpop.f32.mrf.mxu0
  %v312 = vadd.f32 %v102, %v311
  %v313 = vpop.f32.mrf.mxu0
  %v314 = vpop.f32.mrf.mxu0
  %v315 = vadd.f32 %v102, %v314
  %v316 = vpop.f32.mrf.mxu0
  %317 = vmatprep.mubr.bf16.mxu0 0
  %318 = vmatmul.mubr.bf16.gmra.mxu0 %v163
  %v319 = vpop.f32.mrf.mxu0
  %v320 = vadd.f32 %v102, %v319
  %v321 = vpop.f32.mrf.mxu0
  %v322 = vpop.f32.mrf.mxu0
  %v323 = vadd.f32 %v102, %v322
  %v324 = vpop.f32.mrf.mxu0
  %325 = vdwg.mxu0
  %v326 = vmul.f32 %v200, 0.35355338
  %v327 = vmul.f32 %v203, 0.35355338
  %v328 = vmul.f32 %v208, 0.35355338
  %v329 = vmul.f32 %v211, 0.35355338
  %v330 = vmul.f32 %v216, 0.35355338
  %v331 = vmul.f32 %v219, 0.35355338
  %v332 = vmul.f32 %v224, 0.35355338
  %v333 = vmul.f32 %v227, 0.35355338
  %v334 = vmul.f32 %v232, 0.35355338
  %v335 = vmul.f32 %v235, 0.35355338
  %v336 = vmul.f32 %v240, 0.35355338
  %v337 = vmul.f32 %v243, 0.35355338
  %v338 = vmul.f32 %v248, 0.35355338
  %v339 = vmul.f32 %v251, 0.35355338
  %v340 = vmul.f32 %v256, 0.35355338
  %v341 = vmul.f32 %v259, 0.35355338
  %v342 = vmul.f32 %v264, 0.35355338
  %v343 = vmul.f32 %v267, 0.35355338
  %v344 = vmul.f32 %v272, 0.35355338
  %v345 = vmul.f32 %v275, 0.35355338
  %v346 = vmul.f32 %v280, 0.35355338
  %v347 = vmul.f32 %v283, 0.35355338
  %v348 = vmul.f32 %v288, 0.35355338
  %v349 = vmul.f32 %v291, 0.35355338
  %v350 = vmul.f32 %v296, 0.35355338
  %v351 = vmul.f32 %v299, 0.35355338
  %v352 = vmul.f32 %v304, 0.35355338
  %v353 = vmul.f32 %v307, 0.35355338
  %v354 = vmul.f32 %v312, 0.35355338
  %v355 = vmul.f32 %v315, 0.35355338
  %v356 = vmul.f32 %v320, 0.35355338
  %v357 = vmul.f32 %v323, 0.35355338
  %v358 = vpack.c.bf16 %v327, %v326
  %v359 = vpack.c.bf16 %v329, %v328
  %v360 = vpack.c.bf16 %v331, %v330
  %v361 = vpack.c.bf16 %v333, %v332
  %v362 = vpack.c.bf16 %v335, %v334
  %v363 = vpack.c.bf16 %v337, %v336
  %v364 = vpack.c.bf16 %v339, %v338
  %v365 = vpack.c.bf16 %v341, %v340
  %v366 = vpack.c.bf16 %v343, %v342
  %v367 = vpack.c.bf16 %v345, %v344
  %v368 = vpack.c.bf16 %v347, %v346
  %v369 = vpack.c.bf16 %v349, %v348
  %v370 = vpack.c.bf16 %v351, %v350
  %v371 = vpack.c.bf16 %v353, %v352
  %v372 = vpack.c.bf16 %v355, %v354
  %v373 = vpack.c.bf16 %v357, %v356
  %v374 = vld [vmem:[%s3] sm:$0xf]
  %v375 = vld [vmem:[%s3 + $0x4] sm:$0xf]
  %v376 = vld [vmem:[%s3 + $0x8] sm:$0xf]
  %v377 = vld [vmem:[%s3 + $0xc] sm:$0xf]
  %v378 = vld [vmem:[%s4] sm:$0x1]
  %v380 = vlaneseq
  %v381 = vshrl.u32 %v380, 7
  %v382 = vsub.s32 0, %v381
  %v383 = vrot.slane %v378, %v382
  %v389 = vunpack.c.l.b16 %v374
  %v390 = vunpack.c.l.b16 %v375
  %v391 = vunpack.c.l.b16 %v376
  %v392 = vunpack.c.l.b16 %v377
  %v393 = vpack.c.b16 %v390, %v389
  %v394 = vpack.c.b16 %v392, %v391
  %397 = vmatprep.subr.bf16.mxu0 0
  %398 = vmatpush1.bf16.msra.mxu0 0
  %399 = vmatprep.subr.bf16.mxu0 0
  %400 = vmatpush1.bf16.msra.mxu0 0
  %401 = vmatprep.subr.bf16.mxu0 0
  %402 = vmatpush1.bf16.msra.mxu0 0
  %403 = vmatprep.subr.bf16.mxu0 0
  %404 = vmatpush1.bf16.msra.mxu0 0
  %405 = vmatprep.subr.bf16.mxu0 0
  %406 = vmatpush1.bf16.msra.mxu0 0
  %407 = vmatprep.subr.bf16.mxu0 0
  %408 = vmatpush1.bf16.msra.mxu0 0
  %409 = vmatprep.subr.bf16.mxu0 0
  %410 = vmatpush1.bf16.msra.mxu0 %v394
  %411 = vmatprep.subr.bf16.mxu0 0
  %412 = vmatpush1.bf16.msra.mxu0 %v393
  %413 = vmatprep.subr.bf16.mxu0 0
  %414 = vmatpush2.bf16.msra.mxu0 0
  %415 = vmatprep.subr.bf16.mxu0 0
  %416 = vmatpush2.bf16.msra.mxu0 0
  %417 = vmatprep.subr.bf16.mxu0 0
  %418 = vmatpush2.bf16.msra.mxu0 0
  %419 = vmatprep.subr.bf16.mxu0 0
  %420 = vmatpush2.bf16.msra.mxu0 0
  %421 = vmatprep.subr.bf16.mxu0 0
  %422 = vmatpush2.bf16.msra.mxu0 0
  %423 = vmatprep.subr.bf16.mxu0 0
  %424 = vmatpush2.bf16.msra.mxu0 0
  %425 = vmatprep.subr.bf16.mxu0 0
  %426 = vmatpush2.bf16.msra.mxu0 0
  %427 = vmatprep.subr.bf16.mxu0 0
  %428 = vmatpush2.bf16.msra.mxu0 0
  %429 = vmatprep.mubr.bf16.mxu0 0
  %430 = vmatmul.mubr.bf16.gmra.mxu0 %v118
  %v431 = vpop.f32.mrf.mxu0
  %v432 = vadd.f32 %v383, %v431
  %v433 = vpop.f32.mrf.mxu0
  %v434 = vpop.f32.mrf.mxu0
  %v435 = vadd.f32 %v383, %v434
  %v436 = vpop.f32.mrf.mxu0
  %437 = vmatprep.mubr.bf16.mxu0 0
  %438 = vmatmul.mubr.bf16.gmra.mxu0 %v121
  %v439 = vpop.f32.mrf.mxu0
  %v440 = vadd.f32 %v383, %v439
  %v441 = vpop.f32.mrf.mxu0
  %v442 = vpop.f32.mrf.mxu0
  %v443 = vadd.f32 %v383, %v442
  %v444 = vpop.f32.mrf.mxu0
  %445 = vmatprep.mubr.bf16.mxu0 0
  %446 = vmatmul.mubr.bf16.gmra.mxu0 %v124
  %v447 = vpop.f32.mrf.mxu0
  %v448 = vadd.f32 %v383, %v447
  %v449 = vpop.f32.mrf.mxu0
  %v450 = vpop.f32.mrf.mxu0
  %v451 = vadd.f32 %v383, %v450
  %v452 = vpop.f32.mrf.mxu0
  %453 = vmatprep.mubr.bf16.mxu0 0
  %454 = vmatmul.mubr.bf16.gmra.mxu0 %v127
  %v455 = vpop.f32.mrf.mxu0
  %v456 = vadd.f32 %v383, %v455
  %v457 = vpop.f32.mrf.mxu0
  %v458 = vpop.f32.mrf.mxu0
  %v459 = vadd.f32 %v383, %v458
  %v460 = vpop.f32.mrf.mxu0
  %461 = vmatprep.mubr.bf16.mxu0 0
  %462 = vmatmul.mubr.bf16.gmra.mxu0 %v130
  %v463 = vpop.f32.mrf.mxu0
  %v464 = vadd.f32 %v383, %v463
  %v465 = vpop.f32.mrf.mxu0
  %v466 = vpop.f32.mrf.mxu0
  %v467 = vadd.f32 %v383, %v466
  %v468 = vpop.f32.mrf.mxu0
  %469 = vmatprep.mubr.bf16.mxu0 0
  %470 = vmatmul.mubr.bf16.gmra.mxu0 %v133
  %v471 = vpop.f32.mrf.mxu0
  %v472 = vadd.f32 %v383, %v471
  %v473 = vpop.f32.mrf.mxu0
  %v474 = vpop.f32.mrf.mxu0
  %v475 = vadd.f32 %v383, %v474
  %v476 = vpop.f32.mrf.mxu0
  %477 = vmatprep.mubr.bf16.mxu0 0
  %478 = vmatmul.mubr.bf16.gmra.mxu0 %v136
  %v479 = vpop.f32.mrf.mxu0
  %v480 = vadd.f32 %v383, %v479
  %v481 = vpop.f32.mrf.mxu0
  %v482 = vpop.f32.mrf.mxu0
  %v483 = vadd.f32 %v383, %v482
  %v484 = vpop.f32.mrf.mxu0
  %485 = vmatprep.mubr.bf16.mxu0 0
  %486 = vmatmul.mubr.bf16.gmra.mxu0 %v139
  %v487 = vpop.f32.mrf.mxu0
  %v488 = vadd.f32 %v383, %v487
  %v489 = vpop.f32.mrf.mxu0
  %v490 = vpop.f32.mrf.mxu0
  %v491 = vadd.f32 %v383, %v490
  %v492 = vpop.f32.mrf.mxu0
  %493 = vmatprep.mubr.bf16.mxu0 0
  %494 = vmatmul.mubr.bf16.gmra.mxu0 %v142
  %v495 = vpop.f32.mrf.mxu0
  %v496 = vadd.f32 %v383, %v495
  %v497 = vpop.f32.mrf.mxu0
  %v498 = vpop.f32.mrf.mxu0
  %v499 = vadd.f32 %v383, %v498
  %v500 = vpop.f32.mrf.mxu0
  %501 = vmatprep.mubr.bf16.mxu0 0
  %502 = vmatmul.mubr.bf16.gmra.mxu0 %v145
  %v503 = vpop.f32.mrf.mxu0
  %v504 = vadd.f32 %v383, %v503
  %v505 = vpop.f32.mrf.mxu0
  %v506 = vpop.f32.mrf.mxu0
  %v507 = vadd.f32 %v383, %v506
  %v508 = vpop.f32.mrf.mxu0
  %509 = vmatprep.mubr.bf16.mxu0 0
  %510 = vmatmul.mubr.bf16.gmra.mxu0 %v148
  %v511 = vpop.f32.mrf.mxu0
  %v512 = vadd.f32 %v383, %v511
  %v513 = vpop.f32.mrf.mxu0
  %v514 = vpop.f32.mrf.mxu0
  %v515 = vadd.f32 %v383, %v514
  %v516 = vpop.f32.mrf.mxu0
  %517 = vmatprep.mubr.bf16.mxu0 0
  %518 = vmatmul.mubr.bf16.gmra.mxu0 %v151
  %v519 = vpop.f32.mrf.mxu0
  %v520 = vadd.f32 %v383, %v519
  %v521 = vpop.f32.mrf.mxu0
  %v522 = vpop.f32.mrf.mxu0
  %v523 = vadd.f32 %v383, %v522
  %v524 = vpop.f32.mrf.mxu0
  %525 = vmatprep.mubr.bf16.mxu0 0
  %526 = vmatmul.mubr.bf16.gmra.mxu0 %v154
  %v527 = vpop.f32.mrf.mxu0
  %v528 = vadd.f32 %v383, %v527
  %v529 = vpop.f32.mrf.mxu0
  %v530 = vpop.f32.mrf.mxu0
  %v531 = vadd.f32 %v383, %v530
  %v532 = vpop.f32.mrf.mxu0
  %533 = vmatprep.mubr.bf16.mxu0 0
  %534 = vmatmul.mubr.bf16.gmra.mxu0 %v157
  %v535 = vpop.f32.mrf.mxu0
  %v536 = vadd.f32 %v383, %v535
  %v537 = vpop.f32.mrf.mxu0
  %v538 = vpop.f32.mrf.mxu0
  %v539 = vadd.f32 %v383, %v538
  %v540 = vpop.f32.mrf.mxu0
  %541 = vmatprep.mubr.bf16.mxu0 0
  %542 = vmatmul.mubr.bf16.gmra.mxu0 %v160
  %v543 = vpop.f32.mrf.mxu0
  %v544 = vadd.f32 %v383, %v543
  %v545 = vpop.f32.mrf.mxu0
  %v546 = vpop.f32.mrf.mxu0
  %v547 = vadd.f32 %v383, %v546
  %v548 = vpop.f32.mrf.mxu0
  %549 = vmatprep.mubr.bf16.mxu0 0
  %550 = vmatmul.mubr.bf16.gmra.mxu0 %v163
  %v551 = vpop.f32.mrf.mxu0
  %v552 = vadd.f32 %v383, %v551
  %v553 = vpop.f32.mrf.mxu0
  %v554 = vpop.f32.mrf.mxu0
  %v555 = vadd.f32 %v383, %v554
  %v556 = vpop.f32.mrf.mxu0
  %557 = vdwg.mxu0
  %v558 = vpack.c.bf16 %v435, %v432
  %v559 = vpack.c.bf16 %v443, %v440
  %v560 = vpack.c.bf16 %v451, %v448
  %v561 = vpack.c.bf16 %v459, %v456
  %v562 = vpack.c.bf16 %v467, %v464
  %v563 = vpack.c.bf16 %v475, %v472
  %v564 = vpack.c.bf16 %v483, %v480
  %v565 = vpack.c.bf16 %v491, %v488
  %v566 = vpack.c.bf16 %v499, %v496
  %v567 = vpack.c.bf16 %v507, %v504
  %v568 = vpack.c.bf16 %v515, %v512
  %v569 = vpack.c.bf16 %v523, %v520
  %v570 = vpack.c.bf16 %v531, %v528
  %v571 = vpack.c.bf16 %v539, %v536
  %v572 = vpack.c.bf16 %v547, %v544
  %v573 = vpack.c.bf16 %v555, %v552
  %590 = vrot.lane.b32.xlu0 %v358, 120
  %v591 = vpop.permute.xlu0 %590
  %592 = vrot.lane.b32.xlu0 %v359, 120
  %v593 = vpop.permute.xlu0 %592
  %594 = vrot.lane.b32.xlu0 %v360, 120
  %v595 = vpop.permute.xlu0 %594
  %596 = vrot.lane.b32.xlu0 %v361, 120
  %v597 = vpop.permute.xlu0 %596
  %598 = vrot.lane.b32.xlu0 %v362, 120
  %v599 = vpop.permute.xlu0 %598
  %600 = vrot.lane.b32.xlu0 %v363, 120
  %v601 = vpop.permute.xlu0 %600
  %602 = vrot.lane.b32.xlu0 %v364, 120
  %v603 = vpop.permute.xlu0 %602
  %604 = vrot.lane.b32.xlu0 %v365, 120
  %v605 = vpop.permute.xlu0 %604
  %606 = vrot.lane.b32.xlu0 %v366, 120
  %v607 = vpop.permute.xlu0 %606
  %608 = vrot.lane.b32.xlu0 %v367, 120
  %v609 = vpop.permute.xlu0 %608
  %610 = vrot.lane.b32.xlu0 %v368, 120
  %v611 = vpop.permute.xlu0 %610
  %612 = vrot.lane.b32.xlu0 %v369, 120
  %v613 = vpop.permute.xlu0 %612
  %614 = vrot.lane.b32.xlu0 %v370, 120
  %v615 = vpop.permute.xlu0 %614
  %616 = vrot.lane.b32.xlu0 %v371, 120
  %v617 = vpop.permute.xlu0 %616
  %618 = vrot.lane.b32.xlu0 %v372, 120
  %v619 = vpop.permute.xlu0 %618
  %620 = vrot.lane.b32.xlu0 %v373, 120
  %v621 = vpop.permute.xlu0 %620
  %622 = vrot.lane.b32.xlu0 %v358, 112
  %v623 = vpop.permute.xlu0 %622
  %624 = vrot.lane.b32.xlu0 %v359, 112
  %v625 = vpop.permute.xlu0 %624
  %626 = vrot.lane.b32.xlu0 %v360, 112
  %v627 = vpop.permute.xlu0 %626
  %628 = vrot.lane.b32.xlu0 %v361, 112
  %v629 = vpop.permute.xlu0 %628
  %630 = vrot.lane.b32.xlu0 %v362, 112
  %v631 = vpop.permute.xlu0 %630
  %632 = vrot.lane.b32.xlu0 %v363, 112
  %v633 = vpop.permute.xlu0 %632
  %634 = vrot.lane.b32.xlu0 %v364, 112
  %v635 = vpop.permute.xlu0 %634
  %636 = vrot.lane.b32.xlu0 %v365, 112
  %v637 = vpop.permute.xlu0 %636
  %638 = vrot.lane.b32.xlu0 %v366, 112
  %v639 = vpop.permute.xlu0 %638
  %640 = vrot.lane.b32.xlu0 %v367, 112
  %v641 = vpop.permute.xlu0 %640
  %642 = vrot.lane.b32.xlu0 %v368, 112
  %v643 = vpop.permute.xlu0 %642
  %644 = vrot.lane.b32.xlu0 %v369, 112
  %v645 = vpop.permute.xlu0 %644
  %646 = vrot.lane.b32.xlu0 %v370, 112
  %v647 = vpop.permute.xlu0 %646
  %648 = vrot.lane.b32.xlu0 %v371, 112
  %v649 = vpop.permute.xlu0 %648
  %650 = vrot.lane.b32.xlu0 %v372, 112
  %v651 = vpop.permute.xlu0 %650
  %652 = vrot.lane.b32.xlu0 %v373, 112
  %v653 = vpop.permute.xlu0 %652
  %654 = vrot.lane.b32.xlu0 %v358, 104
  %v655 = vpop.permute.xlu0 %654
  %656 = vrot.lane.b32.xlu0 %v359, 104
  %v657 = vpop.permute.xlu0 %656
  %658 = vrot.lane.b32.xlu0 %v360, 104
  %v659 = vpop.permute.xlu0 %658
  %660 = vrot.lane.b32.xlu0 %v361, 104
  %v661 = vpop.permute.xlu0 %660
  %662 = vrot.lane.b32.xlu0 %v362, 104
  %v663 = vpop.permute.xlu0 %662
  %664 = vrot.lane.b32.xlu0 %v363, 104
  %v665 = vpop.permute.xlu0 %664
  %666 = vrot.lane.b32.xlu0 %v364, 104
  %v667 = vpop.permute.xlu0 %666
  %668 = vrot.lane.b32.xlu0 %v365, 104
  %v669 = vpop.permute.xlu0 %668
  %670 = vrot.lane.b32.xlu0 %v366, 104
  %v671 = vpop.permute.xlu0 %670
  %672 = vrot.lane.b32.xlu0 %v367, 104
  %v673 = vpop.permute.xlu0 %672
  %674 = vrot.lane.b32.xlu0 %v368, 104
  %v675 = vpop.permute.xlu0 %674
  %676 = vrot.lane.b32.xlu0 %v369, 104
  %v677 = vpop.permute.xlu0 %676
  %678 = vrot.lane.b32.xlu0 %v370, 104
  %v679 = vpop.permute.xlu0 %678
  %680 = vrot.lane.b32.xlu0 %v371, 104
  %v681 = vpop.permute.xlu0 %680
  %682 = vrot.lane.b32.xlu0 %v372, 104
  %v683 = vpop.permute.xlu0 %682
  %684 = vrot.lane.b32.xlu0 %v373, 104
  %v685 = vpop.permute.xlu0 %684
  %702 = vrot.lane.b32.xlu0 %v558, 120
  %v703 = vpop.permute.xlu0 %702
  %704 = vrot.lane.b32.xlu0 %v559, 120
  %v705 = vpop.permute.xlu0 %704
  %706 = vrot.lane.b32.xlu0 %v560, 120
  %v707 = vpop.permute.xlu0 %706
  %708 = vrot.lane.b32.xlu0 %v561, 120
  %v709 = vpop.permute.xlu0 %708
  %710 = vrot.lane.b32.xlu0 %v562, 120
  %v711 = vpop.permute.xlu0 %710
  %712 = vrot.lane.b32.xlu0 %v563, 120
  %v713 = vpop.permute.xlu0 %712
  %714 = vrot.lane.b32.xlu0 %v564, 120
  %v715 = vpop.permute.xlu0 %714
  %716 = vrot.lane.b32.xlu0 %v565, 120
  %v717 = vpop.permute.xlu0 %716
  %718 = vrot.lane.b32.xlu0 %v566, 120
  %v719 = vpop.permute.xlu0 %718
  %720 = vrot.lane.b32.xlu0 %v567, 120
  %v721 = vpop.permute.xlu0 %720
  %722 = vrot.lane.b32.xlu0 %v568, 120
  %v723 = vpop.permute.xlu0 %722
  %724 = vrot.lane.b32.xlu0 %v569, 120
  %v725 = vpop.permute.xlu0 %724
  %726 = vrot.lane.b32.xlu0 %v570, 120
  %v727 = vpop.permute.xlu0 %726
  %728 = vrot.lane.b32.xlu0 %v571, 120
  %v729 = vpop.permute.xlu0 %728
  %730 = vrot.lane.b32.xlu0 %v572, 120
  %v731 = vpop.permute.xlu0 %730
  %732 = vrot.lane.b32.xlu0 %v573, 120
  %v733 = vpop.permute.xlu0 %732
  %750 = vrot.lane.b32.xlu0 %v558, 112
  %v751 = vpop.permute.xlu0 %750
  %752 = vrot.lane.b32.xlu0 %v559, 112
  %v753 = vpop.permute.xlu0 %752
  %754 = vrot.lane.b32.xlu0 %v560, 112
  %v755 = vpop.permute.xlu0 %754
  %756 = vrot.lane.b32.xlu0 %v561, 112
  %v757 = vpop.permute.xlu0 %756
  %758 = vrot.lane.b32.xlu0 %v562, 112
  %v759 = vpop.permute.xlu0 %758
  %760 = vrot.lane.b32.xlu0 %v563, 112
  %v761 = vpop.permute.xlu0 %760
  %762 = vrot.lane.b32.xlu0 %v564, 112
  %v763 = vpop.permute.xlu0 %762
  %764 = vrot.lane.b32.xlu0 %v565, 112
  %v765 = vpop.permute.xlu0 %764
  %766 = vrot.lane.b32.xlu0 %v566, 112
  %v767 = vpop.permute.xlu0 %766
  %768 = vrot.lane.b32.xlu0 %v567, 112
  %v769 = vpop.permute.xlu0 %768
  %770 = vrot.lane.b32.xlu0 %v568, 112
  %v771 = vpop.permute.xlu0 %770
  %772 = vrot.lane.b32.xlu0 %v569, 112
  %v773 = vpop.permute.xlu0 %772
  %774 = vrot.lane.b32.xlu0 %v570, 112
  %v775 = vpop.permute.xlu0 %774
  %776 = vrot.lane.b32.xlu0 %v571, 112
  %v777 = vpop.permute.xlu0 %776
  %778 = vrot.lane.b32.xlu0 %v572, 112
  %v779 = vpop.permute.xlu0 %778
  %780 = vrot.lane.b32.xlu0 %v573, 112
  %v781 = vpop.permute.xlu0 %780
  %798 = vrot.lane.b32.xlu0 %v558, 104
  %v799 = vpop.permute.xlu0 %798
  %800 = vrot.lane.b32.xlu0 %v559, 104
  %v801 = vpop.permute.xlu0 %800
  %802 = vrot.lane.b32.xlu0 %v560, 104
  %v803 = vpop.permute.xlu0 %802
  %804 = vrot.lane.b32.xlu0 %v561, 104
  %v805 = vpop.permute.xlu0 %804
  %806 = vrot.lane.b32.xlu0 %v562, 104
  %v807 = vpop.permute.xlu0 %806
  %808 = vrot.lane.b32.xlu0 %v563, 104
  %v809 = vpop.permute.xlu0 %808
  %810 = vrot.lane.b32.xlu0 %v564, 104
  %v811 = vpop.permute.xlu0 %810
  %812 = vrot.lane.b32.xlu0 %v565, 104
  %v813 = vpop.permute.xlu0 %812
  %814 = vrot.lane.b32.xlu0 %v566, 104
  %v815 = vpop.permute.xlu0 %814
  %816 = vrot.lane.b32.xlu0 %v567, 104
  %v817 = vpop.permute.xlu0 %816
  %818 = vrot.lane.b32.xlu0 %v568, 104
  %v819 = vpop.permute.xlu0 %818
  %820 = vrot.lane.b32.xlu0 %v569, 104
  %v821 = vpop.permute.xlu0 %820
  %822 = vrot.lane.b32.xlu0 %v570, 104
  %v823 = vpop.permute.xlu0 %822
  %824 = vrot.lane.b32.xlu0 %v571, 104
  %v825 = vpop.permute.xlu0 %824
  %826 = vrot.lane.b32.xlu0 %v572, 104
  %v827 = vpop.permute.xlu0 %826
  %828 = vrot.lane.b32.xlu0 %v573, 104
  %v829 = vpop.permute.xlu0 %828
  %846 = vxpose.xlu0.c.b16.start [1/8] %v558, 128
  %847 = vxpose.xlu0.c.b16.cont [2/8] %v559, 128
  %848 = vxpose.xlu0.c.b16.cont [3/8] %v560, 128
  %849 = vxpose.xlu0.c.b16.cont [4/8] %v561, 128
  %850 = vxpose.xlu0.c.b16.cont [5/8] %v562, 128
  %851 = vxpose.xlu0.c.b16.cont [6/8] %v563, 128
  %852 = vxpose.xlu0.c.b16.cont [7/8] %v564, 128
  %853 = vxpose.xlu0.c.b16.end [8/8] %v565, 128
  %v854 = vpop.trf.xlu0
  %v855 = vpop.trf.xlu0
  %v856 = vpop.trf.xlu0
  %v857 = vpop.trf.xlu0
  %v858 = vpop.trf.xlu0
  %v859 = vpop.trf.xlu0
  %v860 = vpop.trf.xlu0
  %v861 = vpop.trf.xlu0
  %862 = vxpose.xlu0.c.b16.start [1/8] %v566, 128
  %863 = vxpose.xlu0.c.b16.cont [2/8] %v567, 128
  %864 = vxpose.xlu0.c.b16.cont [3/8] %v568, 128
  %865 = vxpose.xlu0.c.b16.cont [4/8] %v569, 128
  %866 = vxpose.xlu0.c.b16.cont [5/8] %v570, 128
  %867 = vxpose.xlu0.c.b16.cont [6/8] %v571, 128
  %868 = vxpose.xlu0.c.b16.cont [7/8] %v572, 128
  %869 = vxpose.xlu0.c.b16.end [8/8] %v573, 128
  %v870 = vpop.trf.xlu0
  %v871 = vpop.trf.xlu0
  %v872 = vpop.trf.xlu0
  %v873 = vpop.trf.xlu0
  %v874 = vpop.trf.xlu0
  %v875 = vpop.trf.xlu0
  %v876 = vpop.trf.xlu0
  %v877 = vpop.trf.xlu0
  %878 = vxpose.xlu0.c.b16.start [1/8] %v703, 128
  %879 = vxpose.xlu0.c.b16.cont [2/8] %v705, 128
  %880 = vxpose.xlu0.c.b16.cont [3/8] %v707, 128
  %881 = vxpose.xlu0.c.b16.cont [4/8] %v709, 128
  %882 = vxpose.xlu0.c.b16.cont [5/8] %v711, 128
  %883 = vxpose.xlu0.c.b16.cont [6/8] %v713, 128
  %884 = vxpose.xlu0.c.b16.cont [7/8] %v715, 128
  %885 = vxpose.xlu0.c.b16.end [8/8] %v717, 128
  %v886 = vpop.trf.xlu0
  %v887 = vpop.trf.xlu0
  %v888 = vpop.trf.xlu0
  %v889 = vpop.trf.xlu0
  %v890 = vpop.trf.xlu0
  %v891 = vpop.trf.xlu0
  %v892 = vpop.trf.xlu0
  %v893 = vpop.trf.xlu0
  %894 = vxpose.xlu0.c.b16.start [1/8] %v719, 128
  %895 = vxpose.xlu0.c.b16.cont [2/8] %v721, 128
  %896 = vxpose.xlu0.c.b16.cont [3/8] %v723, 128
  %897 = vxpose.xlu0.c.b16.cont [4/8] %v725, 128
  %898 = vxpose.xlu0.c.b16.cont [5/8] %v727, 128
  %899 = vxpose.xlu0.c.b16.cont [6/8] %v729, 128
  %900 = vxpose.xlu0.c.b16.cont [7/8] %v731, 128
  %901 = vxpose.xlu0.c.b16.end [8/8] %v733, 128
  %v902 = vpop.trf.xlu0
  %v903 = vpop.trf.xlu0
  %v904 = vpop.trf.xlu0
  %v905 = vpop.trf.xlu0
  %v906 = vpop.trf.xlu0
  %v907 = vpop.trf.xlu0
  %v908 = vpop.trf.xlu0
  %v909 = vpop.trf.xlu0
  %910 = vxpose.xlu0.c.b16.start [1/8] %v751, 128
  %911 = vxpose.xlu0.c.b16.cont [2/8] %v753, 128
  %912 = vxpose.xlu0.c.b16.cont [3/8] %v755, 128
  %913 = vxpose.xlu0.c.b16.cont [4/8] %v757, 128
  %914 = vxpose.xlu0.c.b16.cont [5/8] %v759, 128
  %915 = vxpose.xlu0.c.b16.cont [6/8] %v761, 128
  %916 = vxpose.xlu0.c.b16.cont [7/8] %v763, 128
  %917 = vxpose.xlu0.c.b16.end [8/8] %v765, 128
  %v918 = vpop.trf.xlu0
  %v919 = vpop.trf.xlu0
  %v920 = vpop.trf.xlu0
  %v921 = vpop.trf.xlu0
  %v922 = vpop.trf.xlu0
  %v923 = vpop.trf.xlu0
  %v924 = vpop.trf.xlu0
  %v925 = vpop.trf.xlu0
  %926 = vxpose.xlu0.c.b16.start [1/8] %v767, 128
  %927 = vxpose.xlu0.c.b16.cont [2/8] %v769, 128
  %928 = vxpose.xlu0.c.b16.cont [3/8] %v771, 128
  %929 = vxpose.xlu0.c.b16.cont [4/8] %v773, 128
  %930 = vxpose.xlu0.c.b16.cont [5/8] %v775, 128
  %931 = vxpose.xlu0.c.b16.cont [6/8] %v777, 128
  %932 = vxpose.xlu0.c.b16.cont [7/8] %v779, 128
  %933 = vxpose.xlu0.c.b16.end [8/8] %v781, 128
  %v934 = vpop.trf.xlu0
  %v935 = vpop.trf.xlu0
  %v936 = vpop.trf.xlu0
  %v937 = vpop.trf.xlu0
  %v938 = vpop.trf.xlu0
  %v939 = vpop.trf.xlu0
  %v940 = vpop.trf.xlu0
  %v941 = vpop.trf.xlu0
  %942 = vxpose.xlu0.c.b16.start [1/8] %v799, 128
  %943 = vxpose.xlu0.c.b16.cont [2/8] %v801, 128
  %944 = vxpose.xlu0.c.b16.cont [3/8] %v803, 128
  %945 = vxpose.xlu0.c.b16.cont [4/8] %v805, 128
  %946 = vxpose.xlu0.c.b16.cont [5/8] %v807, 128
  %947 = vxpose.xlu0.c.b16.cont [6/8] %v809, 128
  %948 = vxpose.xlu0.c.b16.cont [7/8] %v811, 128
  %949 = vxpose.xlu0.c.b16.end [8/8] %v813, 128
  %v950 = vpop.trf.xlu0
  %v951 = vpop.trf.xlu0
  %v952 = vpop.trf.xlu0
  %v953 = vpop.trf.xlu0
  %v954 = vpop.trf.xlu0
  %v955 = vpop.trf.xlu0
  %v956 = vpop.trf.xlu0
  %v957 = vpop.trf.xlu0
  %958 = vxpose.xlu0.c.b16.start [1/8] %v815, 128
  %959 = vxpose.xlu0.c.b16.cont [2/8] %v817, 128
  %960 = vxpose.xlu0.c.b16.cont [3/8] %v819, 128
  %961 = vxpose.xlu0.c.b16.cont [4/8] %v821, 128
  %962 = vxpose.xlu0.c.b16.cont [5/8] %v823, 128
  %963 = vxpose.xlu0.c.b16.cont [6/8] %v825, 128
  %964 = vxpose.xlu0.c.b16.cont [7/8] %v827, 128
  %965 = vxpose.xlu0.c.b16.end [8/8] %v829, 128
  %v966 = vpop.trf.xlu0
  %v967 = vpop.trf.xlu0
  %v968 = vpop.trf.xlu0
  %v969 = vpop.trf.xlu0
  %v970 = vpop.trf.xlu0
  %v971 = vpop.trf.xlu0
  %v972 = vpop.trf.xlu0
  %v973 = vpop.trf.xlu0
  %vm974 = vcmask 64512
  %v976 = vsel %vm974, %v358, 0
  %v979 = vsel %vm974, %v359, 0
  %v982 = vsel %vm974, %v360, 0
  %v985 = vsel %vm974, %v361, 0
  %v988 = vsel %vm974, %v362, 0
  %v991 = vsel %vm974, %v363, 0
  %v994 = vsel %vm974, %v364, 0
  %v997 = vsel %vm974, %v365, 0
  %v1000 = vsel %vm974, %v366, 0
  %v1003 = vsel %vm974, %v367, 0
  %v1006 = vsel %vm974, %v368, 0
  %v1009 = vsel %vm974, %v369, 0
  %v1012 = vsel %vm974, %v370, 0
  %v1015 = vsel %vm974, %v371, 0
  %v1018 = vsel %vm974, %v372, 0
  %v1021 = vsel %vm974, %v373, 0
  %vm1023 = vcmask 1043456
  %v1025 = vsel %vm1023, %v854, 0
  %v1028 = vsel %vm1023, %v870, 0
  %1030 = vmatprep.subr.bf16.mxu0 0
  %1031 = vmatpush1.bf16.msra.mxu0 0
  %1032 = vmatprep.subr.bf16.mxu0 0
  %1033 = vmatpush1.bf16.msra.mxu0 0
  %1034 = vmatprep.subr.bf16.mxu0 0
  %1035 = vmatpush1.bf16.msra.mxu0 0
  %1036 = vmatprep.subr.bf16.mxu0 0
  %1037 = vmatpush1.bf16.msra.mxu0 0
  %1038 = vmatprep.subr.bf16.mxu0 0
  %1039 = vmatpush1.bf16.msra.mxu0 0
  %1040 = vmatprep.subr.bf16.mxu0 0
  %1041 = vmatpush1.bf16.msra.mxu0 0
  %1042 = vmatprep.subr.bf16.mxu0 0
  %1043 = vmatpush1.bf16.msra.mxu0 0
  %1044 = vmatprep.subr.bf16.mxu0 %v1028
  %1045 = vmatpush1.bf16.msra.mxu0 %v1025
  %1046 = vmatprep.subr.bf16.mxu0 0
  %1047 = vmatpush2.bf16.msra.mxu0 0
  %1048 = vmatprep.subr.bf16.mxu0 0
  %1049 = vmatpush2.bf16.msra.mxu0 0
  %1050 = vmatprep.subr.bf16.mxu0 0
  %1051 = vmatpush2.bf16.msra.mxu0 0
  %1052 = vmatprep.subr.bf16.mxu0 0
  %1053 = vmatpush2.bf16.msra.mxu0 0
  %1054 = vmatprep.subr.bf16.mxu0 0
  %1055 = vmatpush2.bf16.msra.mxu0 0
  %1056 = vmatprep.subr.bf16.mxu0 0
  %1057 = vmatpush2.bf16.msra.mxu0 0
  %1058 = vmatprep.subr.bf16.mxu0 0
  %1059 = vmatpush2.bf16.msra.mxu0 0
  %1060 = vmatprep.subr.bf16.mxu0 0
  %1061 = vmatpush2.bf16.msra.mxu0 0
  %1062 = vmatprep.mubr.bf16.mxu0 0
  %1063 = vmatmul.mubr.bf16.gmra.mxu0 %v976
  %v1064 = vpop.f32.mrf.mxu0
  %v1065 = vadd.f32 0.0, %v1064
  %v1066 = vpop.f32.mrf.mxu0
  %v1067 = vadd.f32 0.0, %v1066
  %v1068 = vpop.f32.mrf.mxu0
  %v1069 = vadd.f32 0.0, %v1068
  %v1070 = vpop.f32.mrf.mxu0
  %v1071 = vadd.f32 0.0, %v1070
  %1072 = vmatprep.mubr.bf16.mxu0 0
  %1073 = vmatmul.mubr.bf16.gmra.mxu0 %v979
  %v1074 = vpop.f32.mrf.mxu0
  %v1075 = vadd.f32 0.0, %v1074
  %v1076 = vpop.f32.mrf.mxu0
  %v1077 = vadd.f32 0.0, %v1076
  %v1078 = vpop.f32.mrf.mxu0
  %v1079 = vadd.f32 0.0, %v1078
  %v1080 = vpop.f32.mrf.mxu0
  %v1081 = vadd.f32 0.0, %v1080
  %1082 = vmatprep.mubr.bf16.mxu0 0
  %1083 = vmatmul.mubr.bf16.gmra.mxu0 %v982
  %v1084 = vpop.f32.mrf.mxu0
  %v1085 = vadd.f32 0.0, %v1084
  %v1086 = vpop.f32.mrf.mxu0
  %v1087 = vadd.f32 0.0, %v1086
  %v1088 = vpop.f32.mrf.mxu0
  %v1089 = vadd.f32 0.0, %v1088
  %v1090 = vpop.f32.mrf.mxu0
  %v1091 = vadd.f32 0.0, %v1090
  %1092 = vmatprep.mubr.bf16.mxu0 0
  %1093 = vmatmul.mubr.bf16.gmra.mxu0 %v985
  %v1094 = vpop.f32.mrf.mxu0
  %v1095 = vadd.f32 0.0, %v1094
  %v1096 = vpop.f32.mrf.mxu0
  %v1097 = vadd.f32 0.0, %v1096
  %v1098 = vpop.f32.mrf.mxu0
  %v1099 = vadd.f32 0.0, %v1098
  %v1100 = vpop.f32.mrf.mxu0
  %v1101 = vadd.f32 0.0, %v1100
  %1102 = vmatprep.mubr.bf16.mxu0 0
  %1103 = vmatmul.mubr.bf16.gmra.mxu0 %v988
  %v1104 = vpop.f32.mrf.mxu0
  %v1105 = vadd.f32 0.0, %v1104
  %v1106 = vpop.f32.mrf.mxu0
  %v1107 = vadd.f32 0.0, %v1106
  %v1108 = vpop.f32.mrf.mxu0
  %v1109 = vadd.f32 0.0, %v1108
  %v1110 = vpop.f32.mrf.mxu0
  %v1111 = vadd.f32 0.0, %v1110
  %1112 = vmatprep.mubr.bf16.mxu0 0
  %1113 = vmatmul.mubr.bf16.gmra.mxu0 %v991
  %v1114 = vpop.f32.mrf.mxu0
  %v1115 = vadd.f32 0.0, %v1114
  %v1116 = vpop.f32.mrf.mxu0
  %v1117 = vadd.f32 0.0, %v1116
  %v1118 = vpop.f32.mrf.mxu0
  %v1119 = vadd.f32 0.0, %v1118
  %v1120 = vpop.f32.mrf.mxu0
  %v1121 = vadd.f32 0.0, %v1120
  %1122 = vmatprep.mubr.bf16.mxu0 0
  %1123 = vmatmul.mubr.bf16.gmra.mxu0 %v994
  %v1124 = vpop.f32.mrf.mxu0
  %v1125 = vadd.f32 0.0, %v1124
  %v1126 = vpop.f32.mrf.mxu0
  %v1127 = vadd.f32 0.0, %v1126
  %v1128 = vpop.f32.mrf.mxu0
  %v1129 = vadd.f32 0.0, %v1128
  %v1130 = vpop.f32.mrf.mxu0
  %v1131 = vadd.f32 0.0, %v1130
  %1132 = vmatprep.mubr.bf16.mxu0 0
  %1133 = vmatmul.mubr.bf16.gmra.mxu0 %v997
  %v1134 = vpop.f32.mrf.mxu0
  %v1135 = vadd.f32 0.0, %v1134
  %v1136 = vpop.f32.mrf.mxu0
  %v1137 = vadd.f32 0.0, %v1136
  %v1138 = vpop.f32.mrf.mxu0
  %v1139 = vadd.f32 0.0, %v1138
  %v1140 = vpop.f32.mrf.mxu0
  %v1141 = vadd.f32 0.0, %v1140
  %1142 = vmatprep.mubr.bf16.mxu0 0
  %1143 = vmatmul.mubr.bf16.gmra.mxu0 %v1000
  %v1144 = vpop.f32.mrf.mxu0
  %v1145 = vadd.f32 0.0, %v1144
  %v1146 = vpop.f32.mrf.mxu0
  %v1147 = vadd.f32 0.0, %v1146
  %v1148 = vpop.f32.mrf.mxu0
  %v1149 = vadd.f32 0.0, %v1148
  %v1150 = vpop.f32.mrf.mxu0
  %v1151 = vadd.f32 0.0, %v1150
  %1152 = vmatprep.mubr.bf16.mxu0 0
  %1153 = vmatmul.mubr.bf16.gmra.mxu0 %v1003
  %v1154 = vpop.f32.mrf.mxu0
  %v1155 = vadd.f32 0.0, %v1154
  %v1156 = vpop.f32.mrf.mxu0
  %v1157 = vadd.f32 0.0, %v1156
  %v1158 = vpop.f32.mrf.mxu0
  %v1159 = vadd.f32 0.0, %v1158
  %v1160 = vpop.f32.mrf.mxu0
  %v1161 = vadd.f32 0.0, %v1160
  %1162 = vmatprep.mubr.bf16.mxu0 0
  %1163 = vmatmul.mubr.bf16.gmra.mxu0 %v1006
  %v1164 = vpop.f32.mrf.mxu0
  %v1165 = vadd.f32 0.0, %v1164
  %v1166 = vpop.f32.mrf.mxu0
  %v1167 = vadd.f32 0.0, %v1166
  %v1168 = vpop.f32.mrf.mxu0
  %v1169 = vadd.f32 0.0, %v1168
  %v1170 = vpop.f32.mrf.mxu0
  %v1171 = vadd.f32 0.0, %v1170
  %1172 = vmatprep.mubr.bf16.mxu0 0
  %1173 = vmatmul.mubr.bf16.gmra.mxu0 %v1009
  %v1174 = vpop.f32.mrf.mxu0
  %v1175 = vadd.f32 0.0, %v1174
  %v1176 = vpop.f32.mrf.mxu0
  %v1177 = vadd.f32 0.0, %v1176
  %v1178 = vpop.f32.mrf.mxu0
  %v1179 = vadd.f32 0.0, %v1178
  %v1180 = vpop.f32.mrf.mxu0
  %v1181 = vadd.f32 0.0, %v1180
  %1182 = vmatprep.mubr.bf16.mxu0 0
  %1183 = vmatmul.mubr.bf16.gmra.mxu0 %v1012
  %v1184 = vpop.f32.mrf.mxu0
  %v1185 = vadd.f32 0.0, %v1184
  %v1186 = vpop.f32.mrf.mxu0
  %v1187 = vadd.f32 0.0, %v1186
  %v1188 = vpop.f32.mrf.mxu0
  %v1189 = vadd.f32 0.0, %v1188
  %v1190 = vpop.f32.mrf.mxu0
  %v1191 = vadd.f32 0.0, %v1190
  %1192 = vmatprep.mubr.bf16.mxu0 0
  %1193 = vmatmul.mubr.bf16.gmra.mxu0 %v1015
  %v1194 = vpop.f32.mrf.mxu0
  %v1195 = vadd.f32 0.0, %v1194
  %v1196 = vpop.f32.mrf.mxu0
  %v1197 = vadd.f32 0.0, %v1196
  %v1198 = vpop.f32.mrf.mxu0
  %v1199 = vadd.f32 0.0, %v1198
  %v1200 = vpop.f32.mrf.mxu0
  %v1201 = vadd.f32 0.0, %v1200
  %1202 = vmatprep.mubr.bf16.mxu0 0
  %1203 = vmatmul.mubr.bf16.gmra.mxu0 %v1018
  %v1204 = vpop.f32.mrf.mxu0
  %v1205 = vadd.f32 0.0, %v1204
  %v1206 = vpop.f32.mrf.mxu0
  %v1207 = vadd.f32 0.0, %v1206
  %v1208 = vpop.f32.mrf.mxu0
  %v1209 = vadd.f32 0.0, %v1208
  %v1210 = vpop.f32.mrf.mxu0
  %v1211 = vadd.f32 0.0, %v1210
  %1212 = vmatprep.mubr.bf16.mxu0 0
  %1213 = vmatmul.mubr.bf16.gmra.mxu0 %v1021
  %v1214 = vpop.f32.mrf.mxu0
  %v1215 = vadd.f32 0.0, %v1214
  %v1216 = vpop.f32.mrf.mxu0
  %v1217 = vadd.f32 0.0, %v1216
  %v1218 = vpop.f32.mrf.mxu0
  %v1219 = vadd.f32 0.0, %v1218
  %v1220 = vpop.f32.mrf.mxu0
  %v1221 = vadd.f32 0.0, %v1220
  %1222 = vdwg.mxu0
  %v1224 = vsel %vm974, %v591, 0
  %v1227 = vsel %vm974, %v593, 0
  %v1230 = vsel %vm974, %v595, 0
  %v1233 = vsel %vm974, %v597, 0
  %v1236 = vsel %vm974, %v599, 0
  %v1239 = vsel %vm974, %v601, 0
  %v1242 = vsel %vm974, %v603, 0
  %v1245 = vsel %vm974, %v605, 0
  %v1248 = vsel %vm974, %v607, 0
  %v1251 = vsel %vm974, %v609, 0
  %v1254 = vsel %vm974, %v611, 0
  %v1257 = vsel %vm974, %v613, 0
  %v1260 = vsel %vm974, %v615, 0
  %v1263 = vsel %vm974, %v617, 0
  %v1266 = vsel %vm974, %v619, 0
  %v1269 = vsel %vm974, %v621, 0
  %v1272 = vsel %vm1023, %v886, 0
  %v1275 = vsel %vm1023, %v902, 0
  %1277 = vmatprep.subr.bf16.mxu0 0
  %1278 = vmatpush1.bf16.msra.mxu0 0
  %1279 = vmatprep.subr.bf16.mxu0 0
  %1280 = vmatpush1.bf16.msra.mxu0 0
  %1281 = vmatprep.subr.bf16.mxu0 0
  %1282 = vmatpush1.bf16.msra.mxu0 0
  %1283 = vmatprep.subr.bf16.mxu0 0
  %1284 = vmatpush1.bf16.msra.mxu0 0
  %1285 = vmatprep.subr.bf16.mxu0 0
  %1286 = vmatpush1.bf16.msra.mxu0 0
  %1287 = vmatprep.subr.bf16.mxu0 0
  %1288 = vmatpush1.bf16.msra.mxu0 0
  %1289 = vmatprep.subr.bf16.mxu0 0
  %1290 = vmatpush1.bf16.msra.mxu0 0
  %1291 = vmatprep.subr.bf16.mxu0 %v1275
  %1292 = vmatpush1.bf16.msra.mxu0 %v1272
  %1293 = vmatprep.subr.bf16.mxu0 0
  %1294 = vmatpush2.bf16.msra.mxu0 0
  %1295 = vmatprep.subr.bf16.mxu0 0
  %1296 = vmatpush2.bf16.msra.mxu0 0
  %1297 = vmatprep.subr.bf16.mxu0 0
  %1298 = vmatpush2.bf16.msra.mxu0 0
  %1299 = vmatprep.subr.bf16.mxu0 0
  %1300 = vmatpush2.bf16.msra.mxu0 0
  %1301 = vmatprep.subr.bf16.mxu0 0
  %1302 = vmatpush2.bf16.msra.mxu0 0
  %1303 = vmatprep.subr.bf16.mxu0 0
  %1304 = vmatpush2.bf16.msra.mxu0 0
  %1305 = vmatprep.subr.bf16.mxu0 0
  %1306 = vmatpush2.bf16.msra.mxu0 0
  %1307 = vmatprep.subr.bf16.mxu0 0
  %1308 = vmatpush2.bf16.msra.mxu0 0
  %1309 = vmatprep.mubr.bf16.mxu0 0
  %1310 = vmatmul.mubr.bf16.gmra.mxu0 %v1224
  %v1311 = vpop.f32.mrf.mxu0
  %v1312 = vadd.f32 0.0, %v1311
  %v1313 = vpop.f32.mrf.mxu0
  %v1314 = vadd.f32 0.0, %v1313
  %v1315 = vpop.f32.mrf.mxu0
  %v1316 = vadd.f32 0.0, %v1315
  %v1317 = vpop.f32.mrf.mxu0
  %v1318 = vadd.f32 0.0, %v1317
  %1319 = vmatprep.mubr.bf16.mxu0 0
  %1320 = vmatmul.mubr.bf16.gmra.mxu0 %v1227
  %v1321 = vpop.f32.mrf.mxu0
  %v1322 = vadd.f32 0.0, %v1321
  %v1323 = vpop.f32.mrf.mxu0
  %v1324 = vadd.f32 0.0, %v1323
  %v1325 = vpop.f32.mrf.mxu0
  %v1326 = vadd.f32 0.0, %v1325
  %v1327 = vpop.f32.mrf.mxu0
  %v1328 = vadd.f32 0.0, %v1327
  %1329 = vmatprep.mubr.bf16.mxu0 0
  %1330 = vmatmul.mubr.bf16.gmra.mxu0 %v1230
  %v1331 = vpop.f32.mrf.mxu0
  %v1332 = vadd.f32 0.0, %v1331
  %v1333 = vpop.f32.mrf.mxu0
  %v1334 = vadd.f32 0.0, %v1333
  %v1335 = vpop.f32.mrf.mxu0
  %v1336 = vadd.f32 0.0, %v1335
  %v1337 = vpop.f32.mrf.mxu0
  %v1338 = vadd.f32 0.0, %v1337
  %1339 = vmatprep.mubr.bf16.mxu0 0
  %1340 = vmatmul.mubr.bf16.gmra.mxu0 %v1233
  %v1341 = vpop.f32.mrf.mxu0
  %v1342 = vadd.f32 0.0, %v1341
  %v1343 = vpop.f32.mrf.mxu0
  %v1344 = vadd.f32 0.0, %v1343
  %v1345 = vpop.f32.mrf.mxu0
  %v1346 = vadd.f32 0.0, %v1345
  %v1347 = vpop.f32.mrf.mxu0
  %v1348 = vadd.f32 0.0, %v1347
  %1349 = vmatprep.mubr.bf16.mxu0 0
  %1350 = vmatmul.mubr.bf16.gmra.mxu0 %v1236
  %v1351 = vpop.f32.mrf.mxu0
  %v1352 = vadd.f32 0.0, %v1351
  %v1353 = vpop.f32.mrf.mxu0
  %v1354 = vadd.f32 0.0, %v1353
  %v1355 = vpop.f32.mrf.mxu0
  %v1356 = vadd.f32 0.0, %v1355
  %v1357 = vpop.f32.mrf.mxu0
  %v1358 = vadd.f32 0.0, %v1357
  %1359 = vmatprep.mubr.bf16.mxu0 0
  %1360 = vmatmul.mubr.bf16.gmra.mxu0 %v1239
  %v1361 = vpop.f32.mrf.mxu0
  %v1362 = vadd.f32 0.0, %v1361
  %v1363 = vpop.f32.mrf.mxu0
  %v1364 = vadd.f32 0.0, %v1363
  %v1365 = vpop.f32.mrf.mxu0
  %v1366 = vadd.f32 0.0, %v1365
  %v1367 = vpop.f32.mrf.mxu0
  %v1368 = vadd.f32 0.0, %v1367
  %1369 = vmatprep.mubr.bf16.mxu0 0
  %1370 = vmatmul.mubr.bf16.gmra.mxu0 %v1242
  %v1371 = vpop.f32.mrf.mxu0
  %v1372 = vadd.f32 0.0, %v1371
  %v1373 = vpop.f32.mrf.mxu0
  %v1374 = vadd.f32 0.0, %v1373
  %v1375 = vpop.f32.mrf.mxu0
  %v1376 = vadd.f32 0.0, %v1375
  %v1377 = vpop.f32.mrf.mxu0
  %v1378 = vadd.f32 0.0, %v1377
  %1379 = vmatprep.mubr.bf16.mxu0 0
  %1380 = vmatmul.mubr.bf16.gmra.mxu0 %v1245
  %v1381 = vpop.f32.mrf.mxu0
  %v1382 = vadd.f32 0.0, %v1381
  %v1383 = vpop.f32.mrf.mxu0
  %v1384 = vadd.f32 0.0, %v1383
  %v1385 = vpop.f32.mrf.mxu0
  %v1386 = vadd.f32 0.0, %v1385
  %v1387 = vpop.f32.mrf.mxu0
  %v1388 = vadd.f32 0.0, %v1387
  %1389 = vmatprep.mubr.bf16.mxu0 0
  %1390 = vmatmul.mubr.bf16.gmra.mxu0 %v1248
  %v1391 = vpop.f32.mrf.mxu0
  %v1392 = vadd.f32 0.0, %v1391
  %v1393 = vpop.f32.mrf.mxu0
  %v1394 = vadd.f32 0.0, %v1393
  %v1395 = vpop.f32.mrf.mxu0
  %v1396 = vadd.f32 0.0, %v1395
  %v1397 = vpop.f32.mrf.mxu0
  %v1398 = vadd.f32 0.0, %v1397
  %1399 = vmatprep.mubr.bf16.mxu0 0
  %1400 = vmatmul.mubr.bf16.gmra.mxu0 %v1251
  %v1401 = vpop.f32.mrf.mxu0
  %v1402 = vadd.f32 0.0, %v1401
  %v1403 = vpop.f32.mrf.mxu0
  %v1404 = vadd.f32 0.0, %v1403
  %v1405 = vpop.f32.mrf.mxu0
  %v1406 = vadd.f32 0.0, %v1405
  %v1407 = vpop.f32.mrf.mxu0
  %v1408 = vadd.f32 0.0, %v1407
  %1409 = vmatprep.mubr.bf16.mxu0 0
  %1410 = vmatmul.mubr.bf16.gmra.mxu0 %v1254
  %v1411 = vpop.f32.mrf.mxu0
  %v1412 = vadd.f32 0.0, %v1411
  %v1413 = vpop.f32.mrf.mxu0
  %v1414 = vadd.f32 0.0, %v1413
  %v1415 = vpop.f32.mrf.mxu0
  %v1416 = vadd.f32 0.0, %v1415
  %v1417 = vpop.f32.mrf.mxu0
  %v1418 = vadd.f32 0.0, %v1417
  %1419 = vmatprep.mubr.bf16.mxu0 0
  %1420 = vmatmul.mubr.bf16.gmra.mxu0 %v1257
  %v1421 = vpop.f32.mrf.mxu0
  %v1422 = vadd.f32 0.0, %v1421
  %v1423 = vpop.f32.mrf.mxu0
  %v1424 = vadd.f32 0.0, %v1423
  %v1425 = vpop.f32.mrf.mxu0
  %v1426 = vadd.f32 0.0, %v1425
  %v1427 = vpop.f32.mrf.mxu0
  %v1428 = vadd.f32 0.0, %v1427
  %1429 = vmatprep.mubr.bf16.mxu0 0
  %1430 = vmatmul.mubr.bf16.gmra.mxu0 %v1260
  %v1431 = vpop.f32.mrf.mxu0
  %v1432 = vadd.f32 0.0, %v1431
  %v1433 = vpop.f32.mrf.mxu0
  %v1434 = vadd.f32 0.0, %v1433
  %v1435 = vpop.f32.mrf.mxu0
  %v1436 = vadd.f32 0.0, %v1435
  %v1437 = vpop.f32.mrf.mxu0
  %v1438 = vadd.f32 0.0, %v1437
  %1439 = vmatprep.mubr.bf16.mxu0 0
  %1440 = vmatmul.mubr.bf16.gmra.mxu0 %v1263
  %v1441 = vpop.f32.mrf.mxu0
  %v1442 = vadd.f32 0.0, %v1441
  %v1443 = vpop.f32.mrf.mxu0
  %v1444 = vadd.f32 0.0, %v1443
  %v1445 = vpop.f32.mrf.mxu0
  %v1446 = vadd.f32 0.0, %v1445
  %v1447 = vpop.f32.mrf.mxu0
  %v1448 = vadd.f32 0.0, %v1447
  %1449 = vmatprep.mubr.bf16.mxu0 0
  %1450 = vmatmul.mubr.bf16.gmra.mxu0 %v1266
  %v1451 = vpop.f32.mrf.mxu0
  %v1452 = vadd.f32 0.0, %v1451
  %v1453 = vpop.f32.mrf.mxu0
  %v1454 = vadd.f32 0.0, %v1453
  %v1455 = vpop.f32.mrf.mxu0
  %v1456 = vadd.f32 0.0, %v1455
  %v1457 = vpop.f32.mrf.mxu0
  %v1458 = vadd.f32 0.0, %v1457
  %1459 = vmatprep.mubr.bf16.mxu0 0
  %1460 = vmatmul.mubr.bf16.gmra.mxu0 %v1269
  %v1461 = vpop.f32.mrf.mxu0
  %v1462 = vadd.f32 0.0, %v1461
  %v1463 = vpop.f32.mrf.mxu0
  %v1464 = vadd.f32 0.0, %v1463
  %v1465 = vpop.f32.mrf.mxu0
  %v1466 = vadd.f32 0.0, %v1465
  %v1467 = vpop.f32.mrf.mxu0
  %v1468 = vadd.f32 0.0, %v1467
  %1469 = vdwg.mxu0
  %v1471 = vsel %vm974, %v623, 0
  %v1474 = vsel %vm974, %v625, 0
  %v1477 = vsel %vm974, %v627, 0
  %v1480 = vsel %vm974, %v629, 0
  %v1483 = vsel %vm974, %v631, 0
  %v1486 = vsel %vm974, %v633, 0
  %v1489 = vsel %vm974, %v635, 0
  %v1492 = vsel %vm974, %v637, 0
  %v1495 = vsel %vm974, %v639, 0
  %v1498 = vsel %vm974, %v641, 0
  %v1501 = vsel %vm974, %v643, 0
  %v1504 = vsel %vm974, %v645, 0
  %v1507 = vsel %vm974, %v647, 0
  %v1510 = vsel %vm974, %v649, 0
  %v1513 = vsel %vm974, %v651, 0
  %v1516 = vsel %vm974, %v653, 0
  %v1519 = vsel %vm1023, %v918, 0
  %v1522 = vsel %vm1023, %v934, 0
  %1524 = vmatprep.subr.bf16.mxu0 0
  %1525 = vmatpush1.bf16.msra.mxu0 0
  %1526 = vmatprep.subr.bf16.mxu0 0
  %1527 = vmatpush1.bf16.msra.mxu0 0
  %1528 = vmatprep.subr.bf16.mxu0 0
  %1529 = vmatpush1.bf16.msra.mxu0 0
  %1530 = vmatprep.subr.bf16.mxu0 0
  %1531 = vmatpush1.bf16.msra.mxu0 0
  %1532 = vmatprep.subr.bf16.mxu0 0
  %1533 = vmatpush1.bf16.msra.mxu0 0
  %1534 = vmatprep.subr.bf16.mxu0 0
  %1535 = vmatpush1.bf16.msra.mxu0 0
  %1536 = vmatprep.subr.bf16.mxu0 0
  %1537 = vmatpush1.bf16.msra.mxu0 0
  %1538 = vmatprep.subr.bf16.mxu0 %v1522
  %1539 = vmatpush1.bf16.msra.mxu0 %v1519
  %1540 = vmatprep.subr.bf16.mxu0 0
  %1541 = vmatpush2.bf16.msra.mxu0 0
  %1542 = vmatprep.subr.bf16.mxu0 0
  %1543 = vmatpush2.bf16.msra.mxu0 0
  %1544 = vmatprep.subr.bf16.mxu0 0
  %1545 = vmatpush2.bf16.msra.mxu0 0
  %1546 = vmatprep.subr.bf16.mxu0 0
  %1547 = vmatpush2.bf16.msra.mxu0 0
  %1548 = vmatprep.subr.bf16.mxu0 0
  %1549 = vmatpush2.bf16.msra.mxu0 0
  %1550 = vmatprep.subr.bf16.mxu0 0
  %1551 = vmatpush2.bf16.msra.mxu0 0
  %1552 = vmatprep.subr.bf16.mxu0 0
  %1553 = vmatpush2.bf16.msra.mxu0 0
  %1554 = vmatprep.subr.bf16.mxu0 0
  %1555 = vmatpush2.bf16.msra.mxu0 0
  %1556 = vmatprep.mubr.bf16.mxu0 0
  %1557 = vmatmul.mubr.bf16.gmra.mxu0 %v1471
  %v1558 = vpop.f32.mrf.mxu0
  %v1559 = vadd.f32 0.0, %v1558
  %v1560 = vpop.f32.mrf.mxu0
  %v1561 = vadd.f32 0.0, %v1560
  %v1562 = vpop.f32.mrf.mxu0
  %v1563 = vadd.f32 0.0, %v1562
  %v1564 = vpop.f32.mrf.mxu0
  %v1565 = vadd.f32 0.0, %v1564
  %1566 = vmatprep.mubr.bf16.mxu0 0
  %1567 = vmatmul.mubr.bf16.gmra.mxu0 %v1474
  %v1568 = vpop.f32.mrf.mxu0
  %v1569 = vadd.f32 0.0, %v1568
  %v1570 = vpop.f32.mrf.mxu0
  %v1571 = vadd.f32 0.0, %v1570
  %v1572 = vpop.f32.mrf.mxu0
  %v1573 = vadd.f32 0.0, %v1572
  %v1574 = vpop.f32.mrf.mxu0
  %v1575 = vadd.f32 0.0, %v1574
  %1576 = vmatprep.mubr.bf16.mxu0 0
  %1577 = vmatmul.mubr.bf16.gmra.mxu0 %v1477
  %v1578 = vpop.f32.mrf.mxu0
  %v1579 = vadd.f32 0.0, %v1578
  %v1580 = vpop.f32.mrf.mxu0
  %v1581 = vadd.f32 0.0, %v1580
  %v1582 = vpop.f32.mrf.mxu0
  %v1583 = vadd.f32 0.0, %v1582
  %v1584 = vpop.f32.mrf.mxu0
  %v1585 = vadd.f32 0.0, %v1584
  %1586 = vmatprep.mubr.bf16.mxu0 0
  %1587 = vmatmul.mubr.bf16.gmra.mxu0 %v1480
  %v1588 = vpop.f32.mrf.mxu0
  %v1589 = vadd.f32 0.0, %v1588
  %v1590 = vpop.f32.mrf.mxu0
  %v1591 = vadd.f32 0.0, %v1590
  %v1592 = vpop.f32.mrf.mxu0
  %v1593 = vadd.f32 0.0, %v1592
  %v1594 = vpop.f32.mrf.mxu0
  %v1595 = vadd.f32 0.0, %v1594
  %1596 = vmatprep.mubr.bf16.mxu0 0
  %1597 = vmatmul.mubr.bf16.gmra.mxu0 %v1483
  %v1598 = vpop.f32.mrf.mxu0
  %v1599 = vadd.f32 0.0, %v1598
  %v1600 = vpop.f32.mrf.mxu0
  %v1601 = vadd.f32 0.0, %v1600
  %v1602 = vpop.f32.mrf.mxu0
  %v1603 = vadd.f32 0.0, %v1602
  %v1604 = vpop.f32.mrf.mxu0
  %v1605 = vadd.f32 0.0, %v1604
  %1606 = vmatprep.mubr.bf16.mxu0 0
  %1607 = vmatmul.mubr.bf16.gmra.mxu0 %v1486
  %v1608 = vpop.f32.mrf.mxu0
  %v1609 = vadd.f32 0.0, %v1608
  %v1610 = vpop.f32.mrf.mxu0
  %v1611 = vadd.f32 0.0, %v1610
  %v1612 = vpop.f32.mrf.mxu0
  %v1613 = vadd.f32 0.0, %v1612
  %v1614 = vpop.f32.mrf.mxu0
  %v1615 = vadd.f32 0.0, %v1614
  %1616 = vmatprep.mubr.bf16.mxu0 0
  %1617 = vmatmul.mubr.bf16.gmra.mxu0 %v1489
  %v1618 = vpop.f32.mrf.mxu0
  %v1619 = vadd.f32 0.0, %v1618
  %v1620 = vpop.f32.mrf.mxu0
  %v1621 = vadd.f32 0.0, %v1620
  %v1622 = vpop.f32.mrf.mxu0
  %v1623 = vadd.f32 0.0, %v1622
  %v1624 = vpop.f32.mrf.mxu0
  %v1625 = vadd.f32 0.0, %v1624
  %1626 = vmatprep.mubr.bf16.mxu0 0
  %1627 = vmatmul.mubr.bf16.gmra.mxu0 %v1492
  %v1628 = vpop.f32.mrf.mxu0
  %v1629 = vadd.f32 0.0, %v1628
  %v1630 = vpop.f32.mrf.mxu0
  %v1631 = vadd.f32 0.0, %v1630
  %v1632 = vpop.f32.mrf.mxu0
  %v1633 = vadd.f32 0.0, %v1632
  %v1634 = vpop.f32.mrf.mxu0
  %v1635 = vadd.f32 0.0, %v1634
  %1636 = vmatprep.mubr.bf16.mxu0 0
  %1637 = vmatmul.mubr.bf16.gmra.mxu0 %v1495
  %v1638 = vpop.f32.mrf.mxu0
  %v1639 = vadd.f32 0.0, %v1638
  %v1640 = vpop.f32.mrf.mxu0
  %v1641 = vadd.f32 0.0, %v1640
  %v1642 = vpop.f32.mrf.mxu0
  %v1643 = vadd.f32 0.0, %v1642
  %v1644 = vpop.f32.mrf.mxu0
  %v1645 = vadd.f32 0.0, %v1644
  %1646 = vmatprep.mubr.bf16.mxu0 0
  %1647 = vmatmul.mubr.bf16.gmra.mxu0 %v1498
  %v1648 = vpop.f32.mrf.mxu0
  %v1649 = vadd.f32 0.0, %v1648
  %v1650 = vpop.f32.mrf.mxu0
  %v1651 = vadd.f32 0.0, %v1650
  %v1652 = vpop.f32.mrf.mxu0
  %v1653 = vadd.f32 0.0, %v1652
  %v1654 = vpop.f32.mrf.mxu0
  %v1655 = vadd.f32 0.0, %v1654
  %1656 = vmatprep.mubr.bf16.mxu0 0
  %1657 = vmatmul.mubr.bf16.gmra.mxu0 %v1501
  %v1658 = vpop.f32.mrf.mxu0
  %v1659 = vadd.f32 0.0, %v1658
  %v1660 = vpop.f32.mrf.mxu0
  %v1661 = vadd.f32 0.0, %v1660
  %v1662 = vpop.f32.mrf.mxu0
  %v1663 = vadd.f32 0.0, %v1662
  %v1664 = vpop.f32.mrf.mxu0
  %v1665 = vadd.f32 0.0, %v1664
  %1666 = vmatprep.mubr.bf16.mxu0 0
  %1667 = vmatmul.mubr.bf16.gmra.mxu0 %v1504
  %v1668 = vpop.f32.mrf.mxu0
  %v1669 = vadd.f32 0.0, %v1668
  %v1670 = vpop.f32.mrf.mxu0
  %v1671 = vadd.f32 0.0, %v1670
  %v1672 = vpop.f32.mrf.mxu0
  %v1673 = vadd.f32 0.0, %v1672
  %v1674 = vpop.f32.mrf.mxu0
  %v1675 = vadd.f32 0.0, %v1674
  %1676 = vmatprep.mubr.bf16.mxu0 0
  %1677 = vmatmul.mubr.bf16.gmra.mxu0 %v1507
  %v1678 = vpop.f32.mrf.mxu0
  %v1679 = vadd.f32 0.0, %v1678
  %v1680 = vpop.f32.mrf.mxu0
  %v1681 = vadd.f32 0.0, %v1680
  %v1682 = vpop.f32.mrf.mxu0
  %v1683 = vadd.f32 0.0, %v1682
  %v1684 = vpop.f32.mrf.mxu0
  %v1685 = vadd.f32 0.0, %v1684
  %1686 = vmatprep.mubr.bf16.mxu0 0
  %1687 = vmatmul.mubr.bf16.gmra.mxu0 %v1510
  %v1688 = vpop.f32.mrf.mxu0
  %v1689 = vadd.f32 0.0, %v1688
  %v1690 = vpop.f32.mrf.mxu0
  %v1691 = vadd.f32 0.0, %v1690
  %v1692 = vpop.f32.mrf.mxu0
  %v1693 = vadd.f32 0.0, %v1692
  %v1694 = vpop.f32.mrf.mxu0
  %v1695 = vadd.f32 0.0, %v1694
  %1696 = vmatprep.mubr.bf16.mxu0 0
  %1697 = vmatmul.mubr.bf16.gmra.mxu0 %v1513
  %v1698 = vpop.f32.mrf.mxu0
  %v1699 = vadd.f32 0.0, %v1698
  %v1700 = vpop.f32.mrf.mxu0
  %v1701 = vadd.f32 0.0, %v1700
  %v1702 = vpop.f32.mrf.mxu0
  %v1703 = vadd.f32 0.0, %v1702
  %v1704 = vpop.f32.mrf.mxu0
  %v1705 = vadd.f32 0.0, %v1704
  %1706 = vmatprep.mubr.bf16.mxu0 0
  %1707 = vmatmul.mubr.bf16.gmra.mxu0 %v1516
  %v1708 = vpop.f32.mrf.mxu0
  %v1709 = vadd.f32 0.0, %v1708
  %v1710 = vpop.f32.mrf.mxu0
  %v1711 = vadd.f32 0.0, %v1710
  %v1712 = vpop.f32.mrf.mxu0
  %v1713 = vadd.f32 0.0, %v1712
  %v1714 = vpop.f32.mrf.mxu0
  %v1715 = vadd.f32 0.0, %v1714
  %1716 = vdwg.mxu0
  %v1718 = vsel %vm974, %v655, 0
  %v1721 = vsel %vm974, %v657, 0
  %v1724 = vsel %vm974, %v659, 0
  %v1727 = vsel %vm974, %v661, 0
  %v1730 = vsel %vm974, %v663, 0
  %v1733 = vsel %vm974, %v665, 0
  %v1736 = vsel %vm974, %v667, 0
  %v1739 = vsel %vm974, %v669, 0
  %v1742 = vsel %vm974, %v671, 0
  %v1745 = vsel %vm974, %v673, 0
  %v1748 = vsel %vm974, %v675, 0
  %v1751 = vsel %vm974, %v677, 0
  %v1754 = vsel %vm974, %v679, 0
  %v1757 = vsel %vm974, %v681, 0
  %v1760 = vsel %vm974, %v683, 0
  %v1763 = vsel %vm974, %v685, 0
  %v1766 = vsel %vm1023, %v950, 0
  %v1769 = vsel %vm1023, %v966, 0
  %1771 = vmatprep.subr.bf16.mxu0 0
  %1772 = vmatpush1.bf16.msra.mxu0 0
  %1773 = vmatprep.subr.bf16.mxu0 0
  %1774 = vmatpush1.bf16.msra.mxu0 0
  %1775 = vmatprep.subr.bf16.mxu0 0
  %1776 = vmatpush1.bf16.msra.mxu0 0
  %1777 = vmatprep.subr.bf16.mxu0 0
  %1778 = vmatpush1.bf16.msra.mxu0 0
  %1779 = vmatprep.subr.bf16.mxu0 0
  %1780 = vmatpush1.bf16.msra.mxu0 0
  %1781 = vmatprep.subr.bf16.mxu0 0
  %1782 = vmatpush1.bf16.msra.mxu0 0
  %1783 = vmatprep.subr.bf16.mxu0 0
  %1784 = vmatpush1.bf16.msra.mxu0 0
  %1785 = vmatprep.subr.bf16.mxu0 %v1769
  %1786 = vmatpush1.bf16.msra.mxu0 %v1766
  %1787 = vmatprep.subr.bf16.mxu0 0
  %1788 = vmatpush2.bf16.msra.mxu0 0
  %1789 = vmatprep.subr.bf16.mxu0 0
  %1790 = vmatpush2.bf16.msra.mxu0 0
  %1791 = vmatprep.subr.bf16.mxu0 0
  %1792 = vmatpush2.bf16.msra.mxu0 0
  %1793 = vmatprep.subr.bf16.mxu0 0
  %1794 = vmatpush2.bf16.msra.mxu0 0
  %1795 = vmatprep.subr.bf16.mxu0 0
  %1796 = vmatpush2.bf16.msra.mxu0 0
  %1797 = vmatprep.subr.bf16.mxu0 0
  %1798 = vmatpush2.bf16.msra.mxu0 0
  %1799 = vmatprep.subr.bf16.mxu0 0
  %1800 = vmatpush2.bf16.msra.mxu0 0
  %1801 = vmatprep.subr.bf16.mxu0 0
  %1802 = vmatpush2.bf16.msra.mxu0 0
  %1803 = vmatprep.mubr.bf16.mxu0 0
  %1804 = vmatmul.mubr.bf16.gmra.mxu0 %v1718
  %v1805 = vpop.f32.mrf.mxu0
  %v1806 = vadd.f32 0.0, %v1805
  %v1807 = vpop.f32.mrf.mxu0
  %v1808 = vadd.f32 0.0, %v1807
  %v1809 = vpop.f32.mrf.mxu0
  %v1810 = vadd.f32 0.0, %v1809
  %v1811 = vpop.f32.mrf.mxu0
  %v1812 = vadd.f32 0.0, %v1811
  %1813 = vmatprep.mubr.bf16.mxu0 0
  %1814 = vmatmul.mubr.bf16.gmra.mxu0 %v1721
  %v1815 = vpop.f32.mrf.mxu0
  %v1816 = vadd.f32 0.0, %v1815
  %v1817 = vpop.f32.mrf.mxu0
  %v1818 = vadd.f32 0.0, %v1817
  %v1819 = vpop.f32.mrf.mxu0
  %v1820 = vadd.f32 0.0, %v1819
  %v1821 = vpop.f32.mrf.mxu0
  %v1822 = vadd.f32 0.0, %v1821
  %1823 = vmatprep.mubr.bf16.mxu0 0
  %1824 = vmatmul.mubr.bf16.gmra.mxu0 %v1724
  %v1825 = vpop.f32.mrf.mxu0
  %v1826 = vadd.f32 0.0, %v1825
  %v1827 = vpop.f32.mrf.mxu0
  %v1828 = vadd.f32 0.0, %v1827
  %v1829 = vpop.f32.mrf.mxu0
  %v1830 = vadd.f32 0.0, %v1829
  %v1831 = vpop.f32.mrf.mxu0
  %v1832 = vadd.f32 0.0, %v1831
  %1833 = vmatprep.mubr.bf16.mxu0 0
  %1834 = vmatmul.mubr.bf16.gmra.mxu0 %v1727
  %v1835 = vpop.f32.mrf.mxu0
  %v1836 = vadd.f32 0.0, %v1835
  %v1837 = vpop.f32.mrf.mxu0
  %v1838 = vadd.f32 0.0, %v1837
  %v1839 = vpop.f32.mrf.mxu0
  %v1840 = vadd.f32 0.0, %v1839
  %v1841 = vpop.f32.mrf.mxu0
  %v1842 = vadd.f32 0.0, %v1841
  %1843 = vmatprep.mubr.bf16.mxu0 0
  %1844 = vmatmul.mubr.bf16.gmra.mxu0 %v1730
  %v1845 = vpop.f32.mrf.mxu0
  %v1846 = vadd.f32 0.0, %v1845
  %v1847 = vpop.f32.mrf.mxu0
  %v1848 = vadd.f32 0.0, %v1847
  %v1849 = vpop.f32.mrf.mxu0
  %v1850 = vadd.f32 0.0, %v1849
  %v1851 = vpop.f32.mrf.mxu0
  %v1852 = vadd.f32 0.0, %v1851
  %1853 = vmatprep.mubr.bf16.mxu0 0
  %1854 = vmatmul.mubr.bf16.gmra.mxu0 %v1733
  %v1855 = vpop.f32.mrf.mxu0
  %v1856 = vadd.f32 0.0, %v1855
  %v1857 = vpop.f32.mrf.mxu0
  %v1858 = vadd.f32 0.0, %v1857
  %v1859 = vpop.f32.mrf.mxu0
  %v1860 = vadd.f32 0.0, %v1859
  %v1861 = vpop.f32.mrf.mxu0
  %v1862 = vadd.f32 0.0, %v1861
  %1863 = vmatprep.mubr.bf16.mxu0 0
  %1864 = vmatmul.mubr.bf16.gmra.mxu0 %v1736
  %v1865 = vpop.f32.mrf.mxu0
  %v1866 = vadd.f32 0.0, %v1865
  %v1867 = vpop.f32.mrf.mxu0
  %v1868 = vadd.f32 0.0, %v1867
  %v1869 = vpop.f32.mrf.mxu0
  %v1870 = vadd.f32 0.0, %v1869
  %v1871 = vpop.f32.mrf.mxu0
  %v1872 = vadd.f32 0.0, %v1871
  %1873 = vmatprep.mubr.bf16.mxu0 0
  %1874 = vmatmul.mubr.bf16.gmra.mxu0 %v1739
  %v1875 = vpop.f32.mrf.mxu0
  %v1876 = vadd.f32 0.0, %v1875
  %v1877 = vpop.f32.mrf.mxu0
  %v1878 = vadd.f32 0.0, %v1877
  %v1879 = vpop.f32.mrf.mxu0
  %v1880 = vadd.f32 0.0, %v1879
  %v1881 = vpop.f32.mrf.mxu0
  %v1882 = vadd.f32 0.0, %v1881
  %1883 = vmatprep.mubr.bf16.mxu0 0
  %1884 = vmatmul.mubr.bf16.gmra.mxu0 %v1742
  %v1885 = vpop.f32.mrf.mxu0
  %v1886 = vadd.f32 0.0, %v1885
  %v1887 = vpop.f32.mrf.mxu0
  %v1888 = vadd.f32 0.0, %v1887
  %v1889 = vpop.f32.mrf.mxu0
  %v1890 = vadd.f32 0.0, %v1889
  %v1891 = vpop.f32.mrf.mxu0
  %v1892 = vadd.f32 0.0, %v1891
  %1893 = vmatprep.mubr.bf16.mxu0 0
  %1894 = vmatmul.mubr.bf16.gmra.mxu0 %v1745
  %v1895 = vpop.f32.mrf.mxu0
  %v1896 = vadd.f32 0.0, %v1895
  %v1897 = vpop.f32.mrf.mxu0
  %v1898 = vadd.f32 0.0, %v1897
  %v1899 = vpop.f32.mrf.mxu0
  %v1900 = vadd.f32 0.0, %v1899
  %v1901 = vpop.f32.mrf.mxu0
  %v1902 = vadd.f32 0.0, %v1901
  %1903 = vmatprep.mubr.bf16.mxu0 0
  %1904 = vmatmul.mubr.bf16.gmra.mxu0 %v1748
  %v1905 = vpop.f32.mrf.mxu0
  %v1906 = vadd.f32 0.0, %v1905
  %v1907 = vpop.f32.mrf.mxu0
  %v1908 = vadd.f32 0.0, %v1907
  %v1909 = vpop.f32.mrf.mxu0
  %v1910 = vadd.f32 0.0, %v1909
  %v1911 = vpop.f32.mrf.mxu0
  %v1912 = vadd.f32 0.0, %v1911
  %1913 = vmatprep.mubr.bf16.mxu0 0
  %1914 = vmatmul.mubr.bf16.gmra.mxu0 %v1751
  %v1915 = vpop.f32.mrf.mxu0
  %v1916 = vadd.f32 0.0, %v1915
  %v1917 = vpop.f32.mrf.mxu0
  %v1918 = vadd.f32 0.0, %v1917
  %v1919 = vpop.f32.mrf.mxu0
  %v1920 = vadd.f32 0.0, %v1919
  %v1921 = vpop.f32.mrf.mxu0
  %v1922 = vadd.f32 0.0, %v1921
  %1923 = vmatprep.mubr.bf16.mxu0 0
  %1924 = vmatmul.mubr.bf16.gmra.mxu0 %v1754
  %v1925 = vpop.f32.mrf.mxu0
  %v1926 = vadd.f32 0.0, %v1925
  %v1927 = vpop.f32.mrf.mxu0
  %v1928 = vadd.f32 0.0, %v1927
  %v1929 = vpop.f32.mrf.mxu0
  %v1930 = vadd.f32 0.0, %v1929
  %v1931 = vpop.f32.mrf.mxu0
  %v1932 = vadd.f32 0.0, %v1931
  %1933 = vmatprep.mubr.bf16.mxu0 0
  %1934 = vmatmul.mubr.bf16.gmra.mxu0 %v1757
  %v1935 = vpop.f32.mrf.mxu0
  %v1936 = vadd.f32 0.0, %v1935
  %v1937 = vpop.f32.mrf.mxu0
  %v1938 = vadd.f32 0.0, %v1937
  %v1939 = vpop.f32.mrf.mxu0
  %v1940 = vadd.f32 0.0, %v1939
  %v1941 = vpop.f32.mrf.mxu0
  %v1942 = vadd.f32 0.0, %v1941
  %1943 = vmatprep.mubr.bf16.mxu0 0
  %1944 = vmatmul.mubr.bf16.gmra.mxu0 %v1760
  %v1945 = vpop.f32.mrf.mxu0
  %v1946 = vadd.f32 0.0, %v1945
  %v1947 = vpop.f32.mrf.mxu0
  %v1948 = vadd.f32 0.0, %v1947
  %v1949 = vpop.f32.mrf.mxu0
  %v1950 = vadd.f32 0.0, %v1949
  %v1951 = vpop.f32.mrf.mxu0
  %v1952 = vadd.f32 0.0, %v1951
  %1953 = vmatprep.mubr.bf16.mxu0 0
  %1954 = vmatmul.mubr.bf16.gmra.mxu0 %v1763
  %v1955 = vpop.f32.mrf.mxu0
  %v1956 = vadd.f32 0.0, %v1955
  %v1957 = vpop.f32.mrf.mxu0
  %v1958 = vadd.f32 0.0, %v1957
  %v1959 = vpop.f32.mrf.mxu0
  %v1960 = vadd.f32 0.0, %v1959
  %v1961 = vpop.f32.mrf.mxu0
  %v1962 = vadd.f32 0.0, %v1961
  %1963 = vdwg.mxu0
  %v1964 = vmax.f32 %v1065, %v1067
  %1965 = vmax.xlane.f32.xlu0 %v1964
  %v1966 = vpop.xlane.xlu0 %1965
  %v1967 = vmax.f32 %v1069, %v1071
  %1968 = vmax.xlane.f32.xlu0 %v1967
  %v1969 = vpop.xlane.xlu0 %1968
  %v1970 = vmax.f32 %v1075, %v1077
  %1971 = vmax.xlane.f32.xlu0 %v1970
  %v1972 = vpop.xlane.xlu0 %1971
  %v1973 = vmax.f32 %v1079, %v1081
  %1974 = vmax.xlane.f32.xlu0 %v1973
  %v1975 = vpop.xlane.xlu0 %1974
  %v1976 = vmax.f32 %v1085, %v1087
  %1977 = vmax.xlane.f32.xlu0 %v1976
  %v1978 = vpop.xlane.xlu0 %1977
  %v1979 = vmax.f32 %v1089, %v1091
  %1980 = vmax.xlane.f32.xlu0 %v1979
  %v1981 = vpop.xlane.xlu0 %1980
  %v1982 = vmax.f32 %v1095, %v1097
  %1983 = vmax.xlane.f32.xlu0 %v1982
  %v1984 = vpop.xlane.xlu0 %1983
  %v1985 = vmax.f32 %v1099, %v1101
  %1986 = vmax.xlane.f32.xlu0 %v1985
  %v1987 = vpop.xlane.xlu0 %1986
  %v1988 = vmax.f32 %v1105, %v1107
  %1989 = vmax.xlane.f32.xlu0 %v1988
  %v1990 = vpop.xlane.xlu0 %1989
  %v1991 = vmax.f32 %v1109, %v1111
  %1992 = vmax.xlane.f32.xlu0 %v1991
  %v1993 = vpop.xlane.xlu0 %1992
  %v1994 = vmax.f32 %v1115, %v1117
  %1995 = vmax.xlane.f32.xlu0 %v1994
  %v1996 = vpop.xlane.xlu0 %1995
  %v1997 = vmax.f32 %v1119, %v1121
  %1998 = vmax.xlane.f32.xlu0 %v1997
  %v1999 = vpop.xlane.xlu0 %1998
  %v2000 = vmax.f32 %v1125, %v1127
  %2001 = vmax.xlane.f32.xlu0 %v2000
  %v2002 = vpop.xlane.xlu0 %2001
  %v2003 = vmax.f32 %v1129, %v1131
  %2004 = vmax.xlane.f32.xlu0 %v2003
  %v2005 = vpop.xlane.xlu0 %2004
  %v2006 = vmax.f32 %v1135, %v1137
  %2007 = vmax.xlane.f32.xlu0 %v2006
  %v2008 = vpop.xlane.xlu0 %2007
  %v2009 = vmax.f32 %v1139, %v1141
  %2010 = vmax.xlane.f32.xlu0 %v2009
  %v2011 = vpop.xlane.xlu0 %2010
  %v2012 = vmax.f32 %v1145, %v1147
  %2013 = vmax.xlane.f32.xlu0 %v2012
  %v2014 = vpop.xlane.xlu0 %2013
  %v2015 = vmax.f32 %v1149, %v1151
  %2016 = vmax.xlane.f32.xlu0 %v2015
  %v2017 = vpop.xlane.xlu0 %2016
  %v2018 = vmax.f32 %v1155, %v1157
  %2019 = vmax.xlane.f32.xlu0 %v2018
  %v2020 = vpop.xlane.xlu0 %2019
  %v2021 = vmax.f32 %v1159, %v1161
  %2022 = vmax.xlane.f32.xlu0 %v2021
  %v2023 = vpop.xlane.xlu0 %2022
  %v2024 = vmax.f32 %v1165, %v1167
  %2025 = vmax.xlane.f32.xlu0 %v2024
  %v2026 = vpop.xlane.xlu0 %2025
  %v2027 = vmax.f32 %v1169, %v1171
  %2028 = vmax.xlane.f32.xlu0 %v2027
  %v2029 = vpop.xlane.xlu0 %2028
  %v2030 = vmax.f32 %v1175, %v1177
  %2031 = vmax.xlane.f32.xlu0 %v2030
  %v2032 = vpop.xlane.xlu0 %2031
  %v2033 = vmax.f32 %v1179, %v1181
  %2034 = vmax.xlane.f32.xlu0 %v2033
  %v2035 = vpop.xlane.xlu0 %2034
  %v2036 = vmax.f32 %v1185, %v1187
  %2037 = vmax.xlane.f32.xlu0 %v2036
  %v2038 = vpop.xlane.xlu0 %2037
  %v2039 = vmax.f32 %v1189, %v1191
  %2040 = vmax.xlane.f32.xlu0 %v2039
  %v2041 = vpop.xlane.xlu0 %2040
  %v2042 = vmax.f32 %v1195, %v1197
  %2043 = vmax.xlane.f32.xlu0 %v2042
  %v2044 = vpop.xlane.xlu0 %2043
  %v2045 = vmax.f32 %v1199, %v1201
  %2046 = vmax.xlane.f32.xlu0 %v2045
  %v2047 = vpop.xlane.xlu0 %2046
  %v2048 = vmax.f32 %v1205, %v1207
  %2049 = vmax.xlane.f32.xlu0 %v2048
  %v2050 = vpop.xlane.xlu0 %2049
  %v2051 = vmax.f32 %v1209, %v1211
  %2052 = vmax.xlane.f32.xlu0 %v2051
  %v2053 = vpop.xlane.xlu0 %2052
  %v2054 = vmax.f32 %v1215, %v1217
  %2055 = vmax.xlane.f32.xlu0 %v2054
  %v2056 = vpop.xlane.xlu0 %2055
  %v2057 = vmax.f32 %v1219, %v1221
  %2058 = vmax.xlane.f32.xlu0 %v2057
  %v2059 = vpop.xlane.xlu0 %2058
  %v2060 = vmax.f32 %v1312, %v1314
  %2061 = vmax.xlane.f32.xlu0 %v2060
  %v2062 = vpop.xlane.xlu0 %2061
  %v2063 = vmax.f32 %v1316, %v1318
  %2064 = vmax.xlane.f32.xlu0 %v2063
  %v2065 = vpop.xlane.xlu0 %2064
  %v2066 = vmax.f32 %v1322, %v1324
  %2067 = vmax.xlane.f32.xlu0 %v2066
  %v2068 = vpop.xlane.xlu0 %2067
  %v2069 = vmax.f32 %v1326, %v1328
  %2070 = vmax.xlane.f32.xlu0 %v2069
  %v2071 = vpop.xlane.xlu0 %2070
  %v2072 = vmax.f32 %v1332, %v1334
  %2073 = vmax.xlane.f32.xlu0 %v2072
  %v2074 = vpop.xlane.xlu0 %2073
  %v2075 = vmax.f32 %v1336, %v1338
  %2076 = vmax.xlane.f32.xlu0 %v2075
  %v2077 = vpop.xlane.xlu0 %2076
  %v2078 = vmax.f32 %v1342, %v1344
  %2079 = vmax.xlane.f32.xlu0 %v2078
  %v2080 = vpop.xlane.xlu0 %2079
  %v2081 = vmax.f32 %v1346, %v1348
  %2082 = vmax.xlane.f32.xlu0 %v2081
  %v2083 = vpop.xlane.xlu0 %2082
  %v2084 = vmax.f32 %v1352, %v1354
  %2085 = vmax.xlane.f32.xlu0 %v2084
  %v2086 = vpop.xlane.xlu0 %2085
  %v2087 = vmax.f32 %v1356, %v1358
  %2088 = vmax.xlane.f32.xlu0 %v2087
  %v2089 = vpop.xlane.xlu0 %2088
  %v2090 = vmax.f32 %v1362, %v1364
  %2091 = vmax.xlane.f32.xlu0 %v2090
  %v2092 = vpop.xlane.xlu0 %2091
  %v2093 = vmax.f32 %v1366, %v1368
  %2094 = vmax.xlane.f32.xlu0 %v2093
  %v2095 = vpop.xlane.xlu0 %2094
  %v2096 = vmax.f32 %v1372, %v1374
  %2097 = vmax.xlane.f32.xlu0 %v2096
  %v2098 = vpop.xlane.xlu0 %2097
  %v2099 = vmax.f32 %v1376, %v1378
  %2100 = vmax.xlane.f32.xlu0 %v2099
  %v2101 = vpop.xlane.xlu0 %2100
  %v2102 = vmax.f32 %v1382, %v1384
  %2103 = vmax.xlane.f32.xlu0 %v2102
  %v2104 = vpop.xlane.xlu0 %2103
  %v2105 = vmax.f32 %v1386, %v1388
  %2106 = vmax.xlane.f32.xlu0 %v2105
  %v2107 = vpop.xlane.xlu0 %2106
  %v2108 = vmax.f32 %v1392, %v1394
  %2109 = vmax.xlane.f32.xlu0 %v2108
  %v2110 = vpop.xlane.xlu0 %2109
  %v2111 = vmax.f32 %v1396, %v1398
  %2112 = vmax.xlane.f32.xlu0 %v2111
  %v2113 = vpop.xlane.xlu0 %2112
  %v2114 = vmax.f32 %v1402, %v1404
  %2115 = vmax.xlane.f32.xlu0 %v2114
  %v2116 = vpop.xlane.xlu0 %2115
  %v2117 = vmax.f32 %v1406, %v1408
  %2118 = vmax.xlane.f32.xlu0 %v2117
  %v2119 = vpop.xlane.xlu0 %2118
  %v2120 = vmax.f32 %v1412, %v1414
  %2121 = vmax.xlane.f32.xlu0 %v2120
  %v2122 = vpop.xlane.xlu0 %2121
  %v2123 = vmax.f32 %v1416, %v1418
  %2124 = vmax.xlane.f32.xlu0 %v2123
  %v2125 = vpop.xlane.xlu0 %2124
  %v2126 = vmax.f32 %v1422, %v1424
  %2127 = vmax.xlane.f32.xlu0 %v2126
  %v2128 = vpop.xlane.xlu0 %2127
  %v2129 = vmax.f32 %v1426, %v1428
  %2130 = vmax.xlane.f32.xlu0 %v2129
  %v2131 = vpop.xlane.xlu0 %2130
  %v2132 = vmax.f32 %v1432, %v1434
  %2133 = vmax.xlane.f32.xlu0 %v2132
  %v2134 = vpop.xlane.xlu0 %2133
  %v2135 = vmax.f32 %v1436, %v1438
  %2136 = vmax.xlane.f32.xlu0 %v2135
  %v2137 = vpop.xlane.xlu0 %2136
  %v2138 = vmax.f32 %v1442, %v1444
  %2139 = vmax.xlane.f32.xlu0 %v2138
  %v2140 = vpop.xlane.xlu0 %2139
  %v2141 = vmax.f32 %v1446, %v1448
  %2142 = vmax.xlane.f32.xlu0 %v2141
  %v2143 = vpop.xlane.xlu0 %2142
  %v2144 = vmax.f32 %v1452, %v1454
  %2145 = vmax.xlane.f32.xlu0 %v2144
  %v2146 = vpop.xlane.xlu0 %2145
  %v2147 = vmax.f32 %v1456, %v1458
  %2148 = vmax.xlane.f32.xlu0 %v2147
  %v2149 = vpop.xlane.xlu0 %2148
  %v2150 = vmax.f32 %v1462, %v1464
  %2151 = vmax.xlane.f32.xlu0 %v2150
  %v2152 = vpop.xlane.xlu0 %2151
  %v2153 = vmax.f32 %v1466, %v1468
  %2154 = vmax.xlane.f32.xlu0 %v2153
  %v2155 = vpop.xlane.xlu0 %2154
  %v2156 = vmax.f32 %v1559, %v1561
  %2157 = vmax.xlane.f32.xlu0 %v2156
  %v2158 = vpop.xlane.xlu0 %2157
  %v2159 = vmax.f32 %v1563, %v1565
  %2160 = vmax.xlane.f32.xlu0 %v2159
  %v2161 = vpop.xlane.xlu0 %2160
  %v2162 = vmax.f32 %v1569, %v1571
  %2163 = vmax.xlane.f32.xlu0 %v2162
  %v2164 = vpop.xlane.xlu0 %2163
  %v2165 = vmax.f32 %v1573, %v1575
  %2166 = vmax.xlane.f32.xlu0 %v2165
  %v2167 = vpop.xlane.xlu0 %2166
  %v2168 = vmax.f32 %v1579, %v1581
  %2169 = vmax.xlane.f32.xlu0 %v2168
  %v2170 = vpop.xlane.xlu0 %2169
  %v2171 = vmax.f32 %v1583, %v1585
  %2172 = vmax.xlane.f32.xlu0 %v2171
  %v2173 = vpop.xlane.xlu0 %2172
  %v2174 = vmax.f32 %v1589, %v1591
  %2175 = vmax.xlane.f32.xlu0 %v2174
  %v2176 = vpop.xlane.xlu0 %2175
  %v2177 = vmax.f32 %v1593, %v1595
  %2178 = vmax.xlane.f32.xlu0 %v2177
  %v2179 = vpop.xlane.xlu0 %2178
  %v2180 = vmax.f32 %v1599, %v1601
  %2181 = vmax.xlane.f32.xlu0 %v2180
  %v2182 = vpop.xlane.xlu0 %2181
  %v2183 = vmax.f32 %v1603, %v1605
  %2184 = vmax.xlane.f32.xlu0 %v2183
  %v2185 = vpop.xlane.xlu0 %2184
  %v2186 = vmax.f32 %v1609, %v1611
  %2187 = vmax.xlane.f32.xlu0 %v2186
  %v2188 = vpop.xlane.xlu0 %2187
  %v2189 = vmax.f32 %v1613, %v1615
  %2190 = vmax.xlane.f32.xlu0 %v2189
  %v2191 = vpop.xlane.xlu0 %2190
  %v2192 = vmax.f32 %v1619, %v1621
  %2193 = vmax.xlane.f32.xlu0 %v2192
  %v2194 = vpop.xlane.xlu0 %2193
  %v2195 = vmax.f32 %v1623, %v1625
  %2196 = vmax.xlane.f32.xlu0 %v2195
  %v2197 = vpop.xlane.xlu0 %2196
  %v2198 = vmax.f32 %v1629, %v1631
  %2199 = vmax.xlane.f32.xlu0 %v2198
  %v2200 = vpop.xlane.xlu0 %2199
  %v2201 = vmax.f32 %v1633, %v1635
  %2202 = vmax.xlane.f32.xlu0 %v2201
  %v2203 = vpop.xlane.xlu0 %2202
  %v2204 = vmax.f32 %v1639, %v1641
  %2205 = vmax.xlane.f32.xlu0 %v2204
  %v2206 = vpop.xlane.xlu0 %2205
  %v2207 = vmax.f32 %v1643, %v1645
  %2208 = vmax.xlane.f32.xlu0 %v2207
  %v2209 = vpop.xlane.xlu0 %2208
  %v2210 = vmax.f32 %v1649, %v1651
  %2211 = vmax.xlane.f32.xlu0 %v2210
  %v2212 = vpop.xlane.xlu0 %2211
  %v2213 = vmax.f32 %v1653, %v1655
  %2214 = vmax.xlane.f32.xlu0 %v2213
  %v2215 = vpop.xlane.xlu0 %2214
  %v2216 = vmax.f32 %v1659, %v1661
  %2217 = vmax.xlane.f32.xlu0 %v2216
  %v2218 = vpop.xlane.xlu0 %2217
  %v2219 = vmax.f32 %v1663, %v1665
  %2220 = vmax.xlane.f32.xlu0 %v2219
  %v2221 = vpop.xlane.xlu0 %2220
  %v2222 = vmax.f32 %v1669, %v1671
  %2223 = vmax.xlane.f32.xlu0 %v2222
  %v2224 = vpop.xlane.xlu0 %2223
  %v2225 = vmax.f32 %v1673, %v1675
  %2226 = vmax.xlane.f32.xlu0 %v2225
  %v2227 = vpop.xlane.xlu0 %2226
  %v2228 = vmax.f32 %v1679, %v1681
  %2229 = vmax.xlane.f32.xlu0 %v2228
  %v2230 = vpop.xlane.xlu0 %2229
  %v2231 = vmax.f32 %v1683, %v1685
  %2232 = vmax.xlane.f32.xlu0 %v2231
  %v2233 = vpop.xlane.xlu0 %2232
  %v2234 = vmax.f32 %v1689, %v1691
  %2235 = vmax.xlane.f32.xlu0 %v2234
  %v2236 = vpop.xlane.xlu0 %2235
  %v2237 = vmax.f32 %v1693, %v1695
  %2238 = vmax.xlane.f32.xlu0 %v2237
  %v2239 = vpop.xlane.xlu0 %2238
  %v2240 = vmax.f32 %v1699, %v1701
  %2241 = vmax.xlane.f32.xlu0 %v2240
  %v2242 = vpop.xlane.xlu0 %2241
  %v2243 = vmax.f32 %v1703, %v1705
  %2244 = vmax.xlane.f32.xlu0 %v2243
  %v2245 = vpop.xlane.xlu0 %2244
  %v2246 = vmax.f32 %v1709, %v1711
  %2247 = vmax.xlane.f32.xlu0 %v2246
  %v2248 = vpop.xlane.xlu0 %2247
  %v2249 = vmax.f32 %v1713, %v1715
  %2250 = vmax.xlane.f32.xlu0 %v2249
  %v2251 = vpop.xlane.xlu0 %2250
  %v2252 = vmax.f32 %v1806, %v1808
  %2253 = vmax.xlane.f32.xlu0 %v2252
  %v2254 = vpop.xlane.xlu0 %2253
  %v2255 = vmax.f32 %v1810, %v1812
  %2256 = vmax.xlane.f32.xlu0 %v2255
  %v2257 = vpop.xlane.xlu0 %2256
  %v2258 = vmax.f32 %v1816, %v1818
  %2259 = vmax.xlane.f32.xlu0 %v2258
  %v2260 = vpop.xlane.xlu0 %2259
  %v2261 = vmax.f32 %v1820, %v1822
  %2262 = vmax.xlane.f32.xlu0 %v2261
  %v2263 = vpop.xlane.xlu0 %2262
  %v2264 = vmax.f32 %v1826, %v1828
  %2265 = vmax.xlane.f32.xlu0 %v2264
  %v2266 = vpop.xlane.xlu0 %2265
  %v2267 = vmax.f32 %v1830, %v1832
  %2268 = vmax.xlane.f32.xlu0 %v2267
  %v2269 = vpop.xlane.xlu0 %2268
  %v2270 = vmax.f32 %v1836, %v1838
  %2271 = vmax.xlane.f32.xlu0 %v2270
  %v2272 = vpop.xlane.xlu0 %2271
  %v2273 = vmax.f32 %v1840, %v1842
  %2274 = vmax.xlane.f32.xlu0 %v2273
  %v2275 = vpop.xlane.xlu0 %2274
  %v2276 = vmax.f32 %v1846, %v1848
  %2277 = vmax.xlane.f32.xlu0 %v2276
  %v2278 = vpop.xlane.xlu0 %2277
  %v2279 = vmax.f32 %v1850, %v1852
  %2280 = vmax.xlane.f32.xlu0 %v2279
  %v2281 = vpop.xlane.xlu0 %2280
  %v2282 = vmax.f32 %v1856, %v1858
  %2283 = vmax.xlane.f32.xlu0 %v2282
  %v2284 = vpop.xlane.xlu0 %2283
  %v2285 = vmax.f32 %v1860, %v1862
  %2286 = vmax.xlane.f32.xlu0 %v2285
  %v2287 = vpop.xlane.xlu0 %2286
  %v2288 = vmax.f32 %v1866, %v1868
  %2289 = vmax.xlane.f32.xlu0 %v2288
  %v2290 = vpop.xlane.xlu0 %2289
  %v2291 = vmax.f32 %v1870, %v1872
  %2292 = vmax.xlane.f32.xlu0 %v2291
  %v2293 = vpop.xlane.xlu0 %2292
  %v2294 = vmax.f32 %v1876, %v1878
  %2295 = vmax.xlane.f32.xlu0 %v2294
  %v2296 = vpop.xlane.xlu0 %2295
  %v2297 = vmax.f32 %v1880, %v1882
  %2298 = vmax.xlane.f32.xlu0 %v2297
  %v2299 = vpop.xlane.xlu0 %2298
  %v2300 = vmax.f32 %v1886, %v1888
  %2301 = vmax.xlane.f32.xlu0 %v2300
  %v2302 = vpop.xlane.xlu0 %2301
  %v2303 = vmax.f32 %v1890, %v1892
  %2304 = vmax.xlane.f32.xlu0 %v2303
  %v2305 = vpop.xlane.xlu0 %2304
  %v2306 = vmax.f32 %v1896, %v1898
  %2307 = vmax.xlane.f32.xlu0 %v2306
  %v2308 = vpop.xlane.xlu0 %2307
  %v2309 = vmax.f32 %v1900, %v1902
  %2310 = vmax.xlane.f32.xlu0 %v2309
  %v2311 = vpop.xlane.xlu0 %2310
  %v2312 = vmax.f32 %v1906, %v1908
  %2313 = vmax.xlane.f32.xlu0 %v2312
  %v2314 = vpop.xlane.xlu0 %2313
  %v2315 = vmax.f32 %v1910, %v1912
  %2316 = vmax.xlane.f32.xlu0 %v2315
  %v2317 = vpop.xlane.xlu0 %2316
  %v2318 = vmax.f32 %v1916, %v1918
  %2319 = vmax.xlane.f32.xlu0 %v2318
  %v2320 = vpop.xlane.xlu0 %2319
  %v2321 = vmax.f32 %v1920, %v1922
  %2322 = vmax.xlane.f32.xlu0 %v2321
  %v2323 = vpop.xlane.xlu0 %2322
  %v2324 = vmax.f32 %v1926, %v1928
  %2325 = vmax.xlane.f32.xlu0 %v2324
  %v2326 = vpop.xlane.xlu0 %2325
  %v2327 = vmax.f32 %v1930, %v1932
  %2328 = vmax.xlane.f32.xlu0 %v2327
  %v2329 = vpop.xlane.xlu0 %2328
  %v2330 = vmax.f32 %v1936, %v1938
  %2331 = vmax.xlane.f32.xlu0 %v2330
  %v2332 = vpop.xlane.xlu0 %2331
  %v2333 = vmax.f32 %v1940, %v1942
  %2334 = vmax.xlane.f32.xlu0 %v2333
  %v2335 = vpop.xlane.xlu0 %2334
  %v2336 = vmax.f32 %v1946, %v1948
  %2337 = vmax.xlane.f32.xlu0 %v2336
  %v2338 = vpop.xlane.xlu0 %2337
  %v2339 = vmax.f32 %v1950, %v1952
  %2340 = vmax.xlane.f32.xlu0 %v2339
  %v2341 = vpop.xlane.xlu0 %2340
  %v2342 = vmax.f32 %v1956, %v1958
  %2343 = vmax.xlane.f32.xlu0 %v2342
  %v2344 = vpop.xlane.xlu0 %2343
  %v2345 = vmax.f32 %v1960, %v1962
  %2346 = vmax.xlane.f32.xlu0 %v2345
  %v2347 = vpop.xlane.xlu0 %2346
  %v2348 = vsub.f32 %v1065, %v1966
  %v2349 = vsub.f32 %v1067, %v1966
  %v2350 = vsub.f32 %v1069, %v1969
  %v2351 = vsub.f32 %v1071, %v1969
  %v2352 = vsub.f32 %v1075, %v1972
  %v2353 = vsub.f32 %v1077, %v1972
  %v2354 = vsub.f32 %v1079, %v1975
  %v2355 = vsub.f32 %v1081, %v1975
  %v2356 = vsub.f32 %v1085, %v1978
  %v2357 = vsub.f32 %v1087, %v1978
  %v2358 = vsub.f32 %v1089, %v1981
  %v2359 = vsub.f32 %v1091, %v1981
  %v2360 = vsub.f32 %v1095, %v1984
  %v2361 = vsub.f32 %v1097, %v1984
  %v2362 = vsub.f32 %v1099, %v1987
  %v2363 = vsub.f32 %v1101, %v1987
  %v2364 = vsub.f32 %v1105, %v1990
  %v2365 = vsub.f32 %v1107, %v1990
  %v2366 = vsub.f32 %v1109, %v1993
  %v2367 = vsub.f32 %v1111, %v1993
  %v2368 = vsub.f32 %v1115, %v1996
  %v2369 = vsub.f32 %v1117, %v1996
  %v2370 = vsub.f32 %v1119, %v1999
  %v2371 = vsub.f32 %v1121, %v1999
  %v2372 = vsub.f32 %v1125, %v2002
  %v2373 = vsub.f32 %v1127, %v2002
  %v2374 = vsub.f32 %v1129, %v2005
  %v2375 = vsub.f32 %v1131, %v2005
  %v2376 = vsub.f32 %v1135, %v2008
  %v2377 = vsub.f32 %v1137, %v2008
  %v2378 = vsub.f32 %v1139, %v2011
  %v2379 = vsub.f32 %v1141, %v2011
  %v2380 = vsub.f32 %v1145, %v2014
  %v2381 = vsub.f32 %v1147, %v2014
  %v2382 = vsub.f32 %v1149, %v2017
  %v2383 = vsub.f32 %v1151, %v2017
  %v2384 = vsub.f32 %v1155, %v2020
  %v2385 = vsub.f32 %v1157, %v2020
  %v2386 = vsub.f32 %v1159, %v2023
  %v2387 = vsub.f32 %v1161, %v2023
  %v2388 = vsub.f32 %v1165, %v2026
  %v2389 = vsub.f32 %v1167, %v2026
  %v2390 = vsub.f32 %v1169, %v2029
  %v2391 = vsub.f32 %v1171, %v2029
  %v2392 = vsub.f32 %v1175, %v2032
  %v2393 = vsub.f32 %v1177, %v2032
  %v2394 = vsub.f32 %v1179, %v2035
  %v2395 = vsub.f32 %v1181, %v2035
  %v2396 = vsub.f32 %v1185, %v2038
  %v2397 = vsub.f32 %v1187, %v2038
  %v2398 = vsub.f32 %v1189, %v2041
  %v2399 = vsub.f32 %v1191, %v2041
  %v2400 = vsub.f32 %v1195, %v2044
  %v2401 = vsub.f32 %v1197, %v2044
  %v2402 = vsub.f32 %v1199, %v2047
  %v2403 = vsub.f32 %v1201, %v2047
  %v2404 = vsub.f32 %v1205, %v2050
  %v2405 = vsub.f32 %v1207, %v2050
  %v2406 = vsub.f32 %v1209, %v2053
  %v2407 = vsub.f32 %v1211, %v2053
  %v2408 = vsub.f32 %v1215, %v2056
  %v2409 = vsub.f32 %v1217, %v2056
  %v2410 = vsub.f32 %v1219, %v2059
  %v2411 = vsub.f32 %v1221, %v2059
  %v2412 = vsub.f32 %v1312, %v2062
  %v2413 = vsub.f32 %v1314, %v2062
  %v2414 = vsub.f32 %v1316, %v2065
  %v2415 = vsub.f32 %v1318, %v2065
  %v2416 = vsub.f32 %v1322, %v2068
  %v2417 = vsub.f32 %v1324, %v2068
  %v2418 = vsub.f32 %v1326, %v2071
  %v2419 = vsub.f32 %v1328, %v2071
  %v2420 = vsub.f32 %v1332, %v2074
  %v2421 = vsub.f32 %v1334, %v2074
  %v2422 = vsub.f32 %v1336, %v2077
  %v2423 = vsub.f32 %v1338, %v2077
  %v2424 = vsub.f32 %v1342, %v2080
  %v2425 = vsub.f32 %v1344, %v2080
  %v2426 = vsub.f32 %v1346, %v2083
  %v2427 = vsub.f32 %v1348, %v2083
  %v2428 = vsub.f32 %v1352, %v2086
  %v2429 = vsub.f32 %v1354, %v2086
  %v2430 = vsub.f32 %v1356, %v2089
  %v2431 = vsub.f32 %v1358, %v2089
  %v2432 = vsub.f32 %v1362, %v2092
  %v2433 = vsub.f32 %v1364, %v2092
  %v2434 = vsub.f32 %v1366, %v2095
  %v2435 = vsub.f32 %v1368, %v2095
  %v2436 = vsub.f32 %v1372, %v2098
  %v2437 = vsub.f32 %v1374, %v2098
  %v2438 = vsub.f32 %v1376, %v2101
  %v2439 = vsub.f32 %v1378, %v2101
  %v2440 = vsub.f32 %v1382, %v2104
  %v2441 = vsub.f32 %v1384, %v2104
  %v2442 = vsub.f32 %v1386, %v2107
  %v2443 = vsub.f32 %v1388, %v2107
  %v2444 = vsub.f32 %v1392, %v2110
  %v2445 = vsub.f32 %v1394, %v2110
  %v2446 = vsub.f32 %v1396, %v2113
  %v2447 = vsub.f32 %v1398, %v2113
  %v2448 = vsub.f32 %v1402, %v2116
  %v2449 = vsub.f32 %v1404, %v2116
  %v2450 = vsub.f32 %v1406, %v2119
  %v2451 = vsub.f32 %v1408, %v2119
  %v2452 = vsub.f32 %v1412, %v2122
  %v2453 = vsub.f32 %v1414, %v2122
  %v2454 = vsub.f32 %v1416, %v2125
  %v2455 = vsub.f32 %v1418, %v2125
  %v2456 = vsub.f32 %v1422, %v2128
  %v2457 = vsub.f32 %v1424, %v2128
  %v2458 = vsub.f32 %v1426, %v2131
  %v2459 = vsub.f32 %v1428, %v2131
  %v2460 = vsub.f32 %v1432, %v2134
  %v2461 = vsub.f32 %v1434, %v2134
  %v2462 = vsub.f32 %v1436, %v2137
  %v2463 = vsub.f32 %v1438, %v2137
  %v2464 = vsub.f32 %v1442, %v2140
  %v2465 = vsub.f32 %v1444, %v2140
  %v2466 = vsub.f32 %v1446, %v2143
  %v2467 = vsub.f32 %v1448, %v2143
  %v2468 = vsub.f32 %v1452, %v2146
  %v2469 = vsub.f32 %v1454, %v2146
  %v2470 = vsub.f32 %v1456, %v2149
  %v2471 = vsub.f32 %v1458, %v2149
  %v2472 = vsub.f32 %v1462, %v2152
  %v2473 = vsub.f32 %v1464, %v2152
  %v2474 = vsub.f32 %v1466, %v2155
  %v2475 = vsub.f32 %v1468, %v2155
  %v2476 = vsub.f32 %v1559, %v2158
  %v2477 = vsub.f32 %v1561, %v2158
  %v2478 = vsub.f32 %v1563, %v2161
  %v2479 = vsub.f32 %v1565, %v2161
  %v2480 = vsub.f32 %v1569, %v2164
  %v2481 = vsub.f32 %v1571, %v2164
  %v2482 = vsub.f32 %v1573, %v2167
  %v2483 = vsub.f32 %v1575, %v2167
  %v2484 = vsub.f32 %v1579, %v2170
  %v2485 = vsub.f32 %v1581, %v2170
  %v2486 = vsub.f32 %v1583, %v2173
  %v2487 = vsub.f32 %v1585, %v2173
  %v2488 = vsub.f32 %v1589, %v2176
  %v2489 = vsub.f32 %v1591, %v2176
  %v2490 = vsub.f32 %v1593, %v2179
  %v2491 = vsub.f32 %v1595, %v2179
  %v2492 = vsub.f32 %v1599, %v2182
  %v2493 = vsub.f32 %v1601, %v2182
  %v2494 = vsub.f32 %v1603, %v2185
  %v2495 = vsub.f32 %v1605, %v2185
  %v2496 = vsub.f32 %v1609, %v2188
  %v2497 = vsub.f32 %v1611, %v2188
  %v2498 = vsub.f32 %v1613, %v2191
  %v2499 = vsub.f32 %v1615, %v2191
  %v2500 = vsub.f32 %v1619, %v2194
  %v2501 = vsub.f32 %v1621, %v2194
  %v2502 = vsub.f32 %v1623, %v2197
  %v2503 = vsub.f32 %v1625, %v2197
  %v2504 = vsub.f32 %v1629, %v2200
  %v2505 = vsub.f32 %v1631, %v2200
  %v2506 = vsub.f32 %v1633, %v2203
  %v2507 = vsub.f32 %v1635, %v2203
  %v2508 = vsub.f32 %v1639, %v2206
  %v2509 = vsub.f32 %v1641, %v2206
  %v2510 = vsub.f32 %v1643, %v2209
  %v2511 = vsub.f32 %v1645, %v2209
  %v2512 = vsub.f32 %v1649, %v2212
  %v2513 = vsub.f32 %v1651, %v2212
  %v2514 = vsub.f32 %v1653, %v2215
  %v2515 = vsub.f32 %v1655, %v2215
  %v2516 = vsub.f32 %v1659, %v2218
  %v2517 = vsub.f32 %v1661, %v2218
  %v2518 = vsub.f32 %v1663, %v2221
  %v2519 = vsub.f32 %v1665, %v2221
  %v2520 = vsub.f32 %v1669, %v2224
  %v2521 = vsub.f32 %v1671, %v2224
  %v2522 = vsub.f32 %v1673, %v2227
  %v2523 = vsub.f32 %v1675, %v2227
  %v2524 = vsub.f32 %v1679, %v2230
  %v2525 = vsub.f32 %v1681, %v2230
  %v2526 = vsub.f32 %v1683, %v2233
  %v2527 = vsub.f32 %v1685, %v2233
  %v2528 = vsub.f32 %v1689, %v2236
  %v2529 = vsub.f32 %v1691, %v2236
  %v2530 = vsub.f32 %v1693, %v2239
  %v2531 = vsub.f32 %v1695, %v2239
  %v2532 = vsub.f32 %v1699, %v2242
  %v2533 = vsub.f32 %v1701, %v2242
  %v2534 = vsub.f32 %v1703, %v2245
  %v2535 = vsub.f32 %v1705, %v2245
  %v2536 = vsub.f32 %v1709, %v2248
  %v2537 = vsub.f32 %v1711, %v2248
  %v2538 = vsub.f32 %v1713, %v2251
  %v2539 = vsub.f32 %v1715, %v2251
  %v2540 = vsub.f32 %v1806, %v2254
  %v2541 = vsub.f32 %v1808, %v2254
  %v2542 = vsub.f32 %v1810, %v2257
  %v2543 = vsub.f32 %v1812, %v2257
  %v2544 = vsub.f32 %v1816, %v2260
  %v2545 = vsub.f32 %v1818, %v2260
  %v2546 = vsub.f32 %v1820, %v2263
  %v2547 = vsub.f32 %v1822, %v2263
  %v2548 = vsub.f32 %v1826, %v2266
  %v2549 = vsub.f32 %v1828, %v2266
  %v2550 = vsub.f32 %v1830, %v2269
  %v2551 = vsub.f32 %v1832, %v2269
  %v2552 = vsub.f32 %v1836, %v2272
  %v2553 = vsub.f32 %v1838, %v2272
  %v2554 = vsub.f32 %v1840, %v2275
  %v2555 = vsub.f32 %v1842, %v2275
  %v2556 = vsub.f32 %v1846, %v2278
  %v2557 = vsub.f32 %v1848, %v2278
  %v2558 = vsub.f32 %v1850, %v2281
  %v2559 = vsub.f32 %v1852, %v2281
  %v2560 = vsub.f32 %v1856, %v2284
  %v2561 = vsub.f32 %v1858, %v2284
  %v2562 = vsub.f32 %v1860, %v2287
  %v2563 = vsub.f32 %v1862, %v2287
  %v2564 = vsub.f32 %v1866, %v2290
  %v2565 = vsub.f32 %v1868, %v2290
  %v2566 = vsub.f32 %v1870, %v2293
  %v2567 = vsub.f32 %v1872, %v2293
  %v2568 = vsub.f32 %v1876, %v2296
  %v2569 = vsub.f32 %v1878, %v2296
  %v2570 = vsub.f32 %v1880, %v2299
  %v2571 = vsub.f32 %v1882, %v2299
  %v2572 = vsub.f32 %v1886, %v2302
  %v2573 = vsub.f32 %v1888, %v2302
  %v2574 = vsub.f32 %v1890, %v2305
  %v2575 = vsub.f32 %v1892, %v2305
  %v2576 = vsub.f32 %v1896, %v2308
  %v2577 = vsub.f32 %v1898, %v2308
  %v2578 = vsub.f32 %v1900, %v2311
  %v2579 = vsub.f32 %v1902, %v2311
  %v2580 = vsub.f32 %v1906, %v2314
  %v2581 = vsub.f32 %v1908, %v2314
  %v2582 = vsub.f32 %v1910, %v2317
  %v2583 = vsub.f32 %v1912, %v2317
  %v2584 = vsub.f32 %v1916, %v2320
  %v2585 = vsub.f32 %v1918, %v2320
  %v2586 = vsub.f32 %v1920, %v2323
  %v2587 = vsub.f32 %v1922, %v2323
  %v2588 = vsub.f32 %v1926, %v2326
  %v2589 = vsub.f32 %v1928, %v2326
  %v2590 = vsub.f32 %v1930, %v2329
  %v2591 = vsub.f32 %v1932, %v2329
  %v2592 = vsub.f32 %v1936, %v2332
  %v2593 = vsub.f32 %v1938, %v2332
  %v2594 = vsub.f32 %v1940, %v2335
  %v2595 = vsub.f32 %v1942, %v2335
  %v2596 = vsub.f32 %v1946, %v2338
  %v2597 = vsub.f32 %v1948, %v2338
  %v2598 = vsub.f32 %v1950, %v2341
  %v2599 = vsub.f32 %v1952, %v2341
  %v2600 = vsub.f32 %v1956, %v2344
  %v2601 = vsub.f32 %v1958, %v2344
  %v2602 = vsub.f32 %v1960, %v2347
  %v2603 = vsub.f32 %v1962, %v2347
  %v2604 = vmul.f32 %v2348, 1.442695
  %v2605 = vpow.pop %v2604
  %v2606 = vmul.f32 %v2349, 1.442695
  %v2607 = vpow.pop %v2606
  %v2608 = vmul.f32 %v2350, 1.442695
  %v2609 = vpow.pop %v2608
  %v2610 = vmul.f32 %v2351, 1.442695
  %v2611 = vpow.pop %v2610
  %v2612 = vmul.f32 %v2352, 1.442695
  %v2613 = vpow.pop %v2612
  %v2614 = vmul.f32 %v2353, 1.442695
  %v2615 = vpow.pop %v2614
  %v2616 = vmul.f32 %v2354, 1.442695
  %v2617 = vpow.pop %v2616
  %v2618 = vmul.f32 %v2355, 1.442695
  %v2619 = vpow.pop %v2618
  %v2620 = vmul.f32 %v2356, 1.442695
  %v2621 = vpow.pop %v2620
  %v2622 = vmul.f32 %v2357, 1.442695
  %v2623 = vpow.pop %v2622
  %v2624 = vmul.f32 %v2358, 1.442695
  %v2625 = vpow.pop %v2624
  %v2626 = vmul.f32 %v2359, 1.442695
  %v2627 = vpow.pop %v2626
  %v2628 = vmul.f32 %v2360, 1.442695
  %v2629 = vpow.pop %v2628
  %v2630 = vmul.f32 %v2361, 1.442695
  %v2631 = vpow.pop %v2630
  %v2632 = vmul.f32 %v2362, 1.442695
  %v2633 = vpow.pop %v2632
  %v2634 = vmul.f32 %v2363, 1.442695
  %v2635 = vpow.pop %v2634
  %v2636 = vmul.f32 %v2364, 1.442695
  %v2637 = vpow.pop %v2636
  %v2638 = vmul.f32 %v2365, 1.442695
  %v2639 = vpow.pop %v2638
  %v2640 = vmul.f32 %v2366, 1.442695
  %v2641 = vpow.pop %v2640
  %v2642 = vmul.f32 %v2367, 1.442695
  %v2643 = vpow.pop %v2642
  %v2644 = vmul.f32 %v2368, 1.442695
  %v2645 = vpow.pop %v2644
  %v2646 = vmul.f32 %v2369, 1.442695
  %v2647 = vpow.pop %v2646
  %v2648 = vmul.f32 %v2370, 1.442695
  %v2649 = vpow.pop %v2648
  %v2650 = vmul.f32 %v2371, 1.442695
  %v2651 = vpow.pop %v2650
  %v2652 = vmul.f32 %v2372, 1.442695
  %v2653 = vpow.pop %v2652
  %v2654 = vmul.f32 %v2373, 1.442695
  %v2655 = vpow.pop %v2654
  %v2656 = vmul.f32 %v2374, 1.442695
  %v2657 = vpow.pop %v2656
  %v2658 = vmul.f32 %v2375, 1.442695
  %v2659 = vpow.pop %v2658
  %v2660 = vmul.f32 %v2376, 1.442695
  %v2661 = vpow.pop %v2660
  %v2662 = vmul.f32 %v2377, 1.442695
  %v2663 = vpow.pop %v2662
  %v2664 = vmul.f32 %v2378, 1.442695
  %v2665 = vpow.pop %v2664
  %v2666 = vmul.f32 %v2379, 1.442695
  %v2667 = vpow.pop %v2666
  %v2668 = vmul.f32 %v2380, 1.442695
  %v2669 = vpow.pop %v2668
  %v2670 = vmul.f32 %v2381, 1.442695
  %v2671 = vpow.pop %v2670
  %v2672 = vmul.f32 %v2382, 1.442695
  %v2673 = vpow.pop %v2672
  %v2674 = vmul.f32 %v2383, 1.442695
  %v2675 = vpow.pop %v2674
  %v2676 = vmul.f32 %v2384, 1.442695
  %v2677 = vpow.pop %v2676
  %v2678 = vmul.f32 %v2385, 1.442695
  %v2679 = vpow.pop %v2678
  %v2680 = vmul.f32 %v2386, 1.442695
  %v2681 = vpow.pop %v2680
  %v2682 = vmul.f32 %v2387, 1.442695
  %v2683 = vpow.pop %v2682
  %v2684 = vmul.f32 %v2388, 1.442695
  %v2685 = vpow.pop %v2684
  %v2686 = vmul.f32 %v2389, 1.442695
  %v2687 = vpow.pop %v2686
  %v2688 = vmul.f32 %v2390, 1.442695
  %v2689 = vpow.pop %v2688
  %v2690 = vmul.f32 %v2391, 1.442695
  %v2691 = vpow.pop %v2690
  %v2692 = vmul.f32 %v2392, 1.442695
  %v2693 = vpow.pop %v2692
  %v2694 = vmul.f32 %v2393, 1.442695
  %v2695 = vpow.pop %v2694
  %v2696 = vmul.f32 %v2394, 1.442695
  %v2697 = vpow.pop %v2696
  %v2698 = vmul.f32 %v2395, 1.442695
  %v2699 = vpow.pop %v2698
  %v2700 = vmul.f32 %v2396, 1.442695
  %v2701 = vpow.pop %v2700
  %v2702 = vmul.f32 %v2397, 1.442695
  %v2703 = vpow.pop %v2702
  %v2704 = vmul.f32 %v2398, 1.442695
  %v2705 = vpow.pop %v2704
  %v2706 = vmul.f32 %v2399, 1.442695
  %v2707 = vpow.pop %v2706
  %v2708 = vmul.f32 %v2400, 1.442695
  %v2709 = vpow.pop %v2708
  %v2710 = vmul.f32 %v2401, 1.442695
  %v2711 = vpow.pop %v2710
  %v2712 = vmul.f32 %v2402, 1.442695
  %v2713 = vpow.pop %v2712
  %v2714 = vmul.f32 %v2403, 1.442695
  %v2715 = vpow.pop %v2714
  %v2716 = vmul.f32 %v2404, 1.442695
  %v2717 = vpow.pop %v2716
  %v2718 = vmul.f32 %v2405, 1.442695
  %v2719 = vpow.pop %v2718
  %v2720 = vmul.f32 %v2406, 1.442695
  %v2721 = vpow.pop %v2720
  %v2722 = vmul.f32 %v2407, 1.442695
  %v2723 = vpow.pop %v2722
  %v2724 = vmul.f32 %v2408, 1.442695
  %v2725 = vpow.pop %v2724
  %v2726 = vmul.f32 %v2409, 1.442695
  %v2727 = vpow.pop %v2726
  %v2728 = vmul.f32 %v2410, 1.442695
  %v2729 = vpow.pop %v2728
  %v2730 = vmul.f32 %v2411, 1.442695
  %v2731 = vpow.pop %v2730
  %v2732 = vmul.f32 %v2412, 1.442695
  %v2733 = vpow.pop %v2732
  %v2734 = vmul.f32 %v2413, 1.442695
  %v2735 = vpow.pop %v2734
  %v2736 = vmul.f32 %v2414, 1.442695
  %v2737 = vpow.pop %v2736
  %v2738 = vmul.f32 %v2415, 1.442695
  %v2739 = vpow.pop %v2738
  %v2740 = vmul.f32 %v2416, 1.442695
  %v2741 = vpow.pop %v2740
  %v2742 = vmul.f32 %v2417, 1.442695
  %v2743 = vpow.pop %v2742
  %v2744 = vmul.f32 %v2418, 1.442695
  %v2745 = vpow.pop %v2744
  %v2746 = vmul.f32 %v2419, 1.442695
  %v2747 = vpow.pop %v2746
  %v2748 = vmul.f32 %v2420, 1.442695
  %v2749 = vpow.pop %v2748
  %v2750 = vmul.f32 %v2421, 1.442695
  %v2751 = vpow.pop %v2750
  %v2752 = vmul.f32 %v2422, 1.442695
  %v2753 = vpow.pop %v2752
  %v2754 = vmul.f32 %v2423, 1.442695
  %v2755 = vpow.pop %v2754
  %v2756 = vmul.f32 %v2424, 1.442695
  %v2757 = vpow.pop %v2756
  %v2758 = vmul.f32 %v2425, 1.442695
  %v2759 = vpow.pop %v2758
  %v2760 = vmul.f32 %v2426, 1.442695
  %v2761 = vpow.pop %v2760
  %v2762 = vmul.f32 %v2427, 1.442695
  %v2763 = vpow.pop %v2762
  %v2764 = vmul.f32 %v2428, 1.442695
  %v2765 = vpow.pop %v2764
  %v2766 = vmul.f32 %v2429, 1.442695
  %v2767 = vpow.pop %v2766
  %v2768 = vmul.f32 %v2430, 1.442695
  %v2769 = vpow.pop %v2768
  %v2770 = vmul.f32 %v2431, 1.442695
  %v2771 = vpow.pop %v2770
  %v2772 = vmul.f32 %v2432, 1.442695
  %v2773 = vpow.pop %v2772
  %v2774 = vmul.f32 %v2433, 1.442695
  %v2775 = vpow.pop %v2774
  %v2776 = vmul.f32 %v2434, 1.442695
  %v2777 = vpow.pop %v2776
  %v2778 = vmul.f32 %v2435, 1.442695
  %v2779 = vpow.pop %v2778
  %v2780 = vmul.f32 %v2436, 1.442695
  %v2781 = vpow.pop %v2780
  %v2782 = vmul.f32 %v2437, 1.442695
  %v2783 = vpow.pop %v2782
  %v2784 = vmul.f32 %v2438, 1.442695
  %v2785 = vpow.pop %v2784
  %v2786 = vmul.f32 %v2439, 1.442695
  %v2787 = vpow.pop %v2786
  %v2788 = vmul.f32 %v2440, 1.442695
  %v2789 = vpow.pop %v2788
  %v2790 = vmul.f32 %v2441, 1.442695
  %v2791 = vpow.pop %v2790
  %v2792 = vmul.f32 %v2442, 1.442695
  %v2793 = vpow.pop %v2792
  %v2794 = vmul.f32 %v2443, 1.442695
  %v2795 = vpow.pop %v2794
  %v2796 = vmul.f32 %v2444, 1.442695
  %v2797 = vpow.pop %v2796
  %v2798 = vmul.f32 %v2445, 1.442695
  %v2799 = vpow.pop %v2798
  %v2800 = vmul.f32 %v2446, 1.442695
  %v2801 = vpow.pop %v2800
  %v2802 = vmul.f32 %v2447, 1.442695
  %v2803 = vpow.pop %v2802
  %v2804 = vmul.f32 %v2448, 1.442695
  %v2805 = vpow.pop %v2804
  %v2806 = vmul.f32 %v2449, 1.442695
  %v2807 = vpow.pop %v2806
  %v2808 = vmul.f32 %v2450, 1.442695
  %v2809 = vpow.pop %v2808
  %v2810 = vmul.f32 %v2451, 1.442695
  %v2811 = vpow.pop %v2810
  %v2812 = vmul.f32 %v2452, 1.442695
  %v2813 = vpow.pop %v2812
  %v2814 = vmul.f32 %v2453, 1.442695
  %v2815 = vpow.pop %v2814
  %v2816 = vmul.f32 %v2454, 1.442695
  %v2817 = vpow.pop %v2816
  %v2818 = vmul.f32 %v2455, 1.442695
  %v2819 = vpow.pop %v2818
  %v2820 = vmul.f32 %v2456, 1.442695
  %v2821 = vpow.pop %v2820
  %v2822 = vmul.f32 %v2457, 1.442695
  %v2823 = vpow.pop %v2822
  %v2824 = vmul.f32 %v2458, 1.442695
  %v2825 = vpow.pop %v2824
  %v2826 = vmul.f32 %v2459, 1.442695
  %v2827 = vpow.pop %v2826
  %v2828 = vmul.f32 %v2460, 1.442695
  %v2829 = vpow.pop %v2828
  %v2830 = vmul.f32 %v2461, 1.442695
  %v2831 = vpow.pop %v2830
  %v2832 = vmul.f32 %v2462, 1.442695
  %v2833 = vpow.pop %v2832
  %v2834 = vmul.f32 %v2463, 1.442695
  %v2835 = vpow.pop %v2834
  %v2836 = vmul.f32 %v2464, 1.442695
  %v2837 = vpow.pop %v2836
  %v2838 = vmul.f32 %v2465, 1.442695
  %v2839 = vpow.pop %v2838
  %v2840 = vmul.f32 %v2466, 1.442695
  %v2841 = vpow.pop %v2840
  %v2842 = vmul.f32 %v2467, 1.442695
  %v2843 = vpow.pop %v2842
  %v2844 = vmul.f32 %v2468, 1.442695
  %v2845 = vpow.pop %v2844
  %v2846 = vmul.f32 %v2469, 1.442695
  %v2847 = vpow.pop %v2846
  %v2848 = vmul.f32 %v2470, 1.442695
  %v2849 = vpow.pop %v2848
  %v2850 = vmul.f32 %v2471, 1.442695
  %v2851 = vpow.pop %v2850
  %v2852 = vmul.f32 %v2472, 1.442695
  %v2853 = vpow.pop %v2852
  %v2854 = vmul.f32 %v2473, 1.442695
  %v2855 = vpow.pop %v2854
  %v2856 = vmul.f32 %v2474, 1.442695
  %v2857 = vpow.pop %v2856
  %v2858 = vmul.f32 %v2475, 1.442695
  %v2859 = vpow.pop %v2858
  %v2860 = vmul.f32 %v2476, 1.442695
  %v2861 = vpow.pop %v2860
  %v2862 = vmul.f32 %v2477, 1.442695
  %v2863 = vpow.pop %v2862
  %v2864 = vmul.f32 %v2478, 1.442695
  %v2865 = vpow.pop %v2864
  %v2866 = vmul.f32 %v2479, 1.442695
  %v2867 = vpow.pop %v2866
  %v2868 = vmul.f32 %v2480, 1.442695
  %v2869 = vpow.pop %v2868
  %v2870 = vmul.f32 %v2481, 1.442695
  %v2871 = vpow.pop %v2870
  %v2872 = vmul.f32 %v2482, 1.442695
  %v2873 = vpow.pop %v2872
  %v2874 = vmul.f32 %v2483, 1.442695
  %v2875 = vpow.pop %v2874
  %v2876 = vmul.f32 %v2484, 1.442695
  %v2877 = vpow.pop %v2876
  %v2878 = vmul.f32 %v2485, 1.442695
  %v2879 = vpow.pop %v2878
  %v2880 = vmul.f32 %v2486, 1.442695
  %v2881 = vpow.pop %v2880
  %v2882 = vmul.f32 %v2487, 1.442695
  %v2883 = vpow.pop %v2882
  %v2884 = vmul.f32 %v2488, 1.442695
  %v2885 = vpow.pop %v2884
  %v2886 = vmul.f32 %v2489, 1.442695
  %v2887 = vpow.pop %v2886
  %v2888 = vmul.f32 %v2490, 1.442695
  %v2889 = vpow.pop %v2888
  %v2890 = vmul.f32 %v2491, 1.442695
  %v2891 = vpow.pop %v2890
  %v2892 = vmul.f32 %v2492, 1.442695
  %v2893 = vpow.pop %v2892
  %v2894 = vmul.f32 %v2493, 1.442695
  %v2895 = vpow.pop %v2894
  %v2896 = vmul.f32 %v2494, 1.442695
  %v2897 = vpow.pop %v2896
  %v2898 = vmul.f32 %v2495, 1.442695
  %v2899 = vpow.pop %v2898
  %v2900 = vmul.f32 %v2496, 1.442695
  %v2901 = vpow.pop %v2900
  %v2902 = vmul.f32 %v2497, 1.442695
  %v2903 = vpow.pop %v2902
  %v2904 = vmul.f32 %v2498, 1.442695
  %v2905 = vpow.pop %v2904
  %v2906 = vmul.f32 %v2499, 1.442695
  %v2907 = vpow.pop %v2906
  %v2908 = vmul.f32 %v2500, 1.442695
  %v2909 = vpow.pop %v2908
  %v2910 = vmul.f32 %v2501, 1.442695
  %v2911 = vpow.pop %v2910
  %v2912 = vmul.f32 %v2502, 1.442695
  %v2913 = vpow.pop %v2912
  %v2914 = vmul.f32 %v2503, 1.442695
  %v2915 = vpow.pop %v2914
  %v2916 = vmul.f32 %v2504, 1.442695
  %v2917 = vpow.pop %v2916
  %v2918 = vmul.f32 %v2505, 1.442695
  %v2919 = vpow.pop %v2918
  %v2920 = vmul.f32 %v2506, 1.442695
  %v2921 = vpow.pop %v2920
  %v2922 = vmul.f32 %v2507, 1.442695
  %v2923 = vpow.pop %v2922
  %v2924 = vmul.f32 %v2508, 1.442695
  %v2925 = vpow.pop %v2924
  %v2926 = vmul.f32 %v2509, 1.442695
  %v2927 = vpow.pop %v2926
  %v2928 = vmul.f32 %v2510, 1.442695
  %v2929 = vpow.pop %v2928
  %v2930 = vmul.f32 %v2511, 1.442695
  %v2931 = vpow.pop %v2930
  %v2932 = vmul.f32 %v2512, 1.442695
  %v2933 = vpow.pop %v2932
  %v2934 = vmul.f32 %v2513, 1.442695
  %v2935 = vpow.pop %v2934
  %v2936 = vmul.f32 %v2514, 1.442695
  %v2937 = vpow.pop %v2936
  %v2938 = vmul.f32 %v2515, 1.442695
  %v2939 = vpow.pop %v2938
  %v2940 = vmul.f32 %v2516, 1.442695
  %v2941 = vpow.pop %v2940
  %v2942 = vmul.f32 %v2517, 1.442695
  %v2943 = vpow.pop %v2942
  %v2944 = vmul.f32 %v2518, 1.442695
  %v2945 = vpow.pop %v2944
  %v2946 = vmul.f32 %v2519, 1.442695
  %v2947 = vpow.pop %v2946
  %v2948 = vmul.f32 %v2520, 1.442695
  %v2949 = vpow.pop %v2948
  %v2950 = vmul.f32 %v2521, 1.442695
  %v2951 = vpow.pop %v2950
  %v2952 = vmul.f32 %v2522, 1.442695
  %v2953 = vpow.pop %v2952
  %v2954 = vmul.f32 %v2523, 1.442695
  %v2955 = vpow.pop %v2954
  %v2956 = vmul.f32 %v2524, 1.442695
  %v2957 = vpow.pop %v2956
  %v2958 = vmul.f32 %v2525, 1.442695
  %v2959 = vpow.pop %v2958
  %v2960 = vmul.f32 %v2526, 1.442695
  %v2961 = vpow.pop %v2960
  %v2962 = vmul.f32 %v2527, 1.442695
  %v2963 = vpow.pop %v2962
  %v2964 = vmul.f32 %v2528, 1.442695
  %v2965 = vpow.pop %v2964
  %v2966 = vmul.f32 %v2529, 1.442695
  %v2967 = vpow.pop %v2966
  %v2968 = vmul.f32 %v2530, 1.442695
  %v2969 = vpow.pop %v2968
  %v2970 = vmul.f32 %v2531, 1.442695
  %v2971 = vpow.pop %v2970
  %v2972 = vmul.f32 %v2532, 1.442695
  %v2973 = vpow.pop %v2972
  %v2974 = vmul.f32 %v2533, 1.442695
  %v2975 = vpow.pop %v2974
  %v2976 = vmul.f32 %v2534, 1.442695
  %v2977 = vpow.pop %v2976
  %v2978 = vmul.f32 %v2535, 1.442695
  %v2979 = vpow.pop %v2978
  %v2980 = vmul.f32 %v2536, 1.442695
  %v2981 = vpow.pop %v2980
  %v2982 = vmul.f32 %v2537, 1.442695
  %v2983 = vpow.pop %v2982
  %v2984 = vmul.f32 %v2538, 1.442695
  %v2985 = vpow.pop %v2984
  %v2986 = vmul.f32 %v2539, 1.442695
  %v2987 = vpow.pop %v2986
  %v2988 = vmul.f32 %v2540, 1.442695
  %v2989 = vpow.pop %v2988
  %v2990 = vmul.f32 %v2541, 1.442695
  %v2991 = vpow.pop %v2990
  %v2992 = vmul.f32 %v2542, 1.442695
  %v2993 = vpow.pop %v2992
  %v2994 = vmul.f32 %v2543, 1.442695
  %v2995 = vpow.pop %v2994
  %v2996 = vmul.f32 %v2544, 1.442695
  %v2997 = vpow.pop %v2996
  %v2998 = vmul.f32 %v2545, 1.442695
  %v2999 = vpow.pop %v2998
  %v3000 = vmul.f32 %v2546, 1.442695
  %v3001 = vpow.pop %v3000
  %v3002 = vmul.f32 %v2547, 1.442695
  %v3003 = vpow.pop %v3002
  %v3004 = vmul.f32 %v2548, 1.442695
  %v3005 = vpow.pop %v3004
  %v3006 = vmul.f32 %v2549, 1.442695
  %v3007 = vpow.pop %v3006
  %v3008 = vmul.f32 %v2550, 1.442695
  %v3009 = vpow.pop %v3008
  %v3010 = vmul.f32 %v2551, 1.442695
  %v3011 = vpow.pop %v3010
  %v3012 = vmul.f32 %v2552, 1.442695
  %v3013 = vpow.pop %v3012
  %v3014 = vmul.f32 %v2553, 1.442695
  %v3015 = vpow.pop %v3014
  %v3016 = vmul.f32 %v2554, 1.442695
  %v3017 = vpow.pop %v3016
  %v3018 = vmul.f32 %v2555, 1.442695
  %v3019 = vpow.pop %v3018
  %v3020 = vmul.f32 %v2556, 1.442695
  %v3021 = vpow.pop %v3020
  %v3022 = vmul.f32 %v2557, 1.442695
  %v3023 = vpow.pop %v3022
  %v3024 = vmul.f32 %v2558, 1.442695
  %v3025 = vpow.pop %v3024
  %v3026 = vmul.f32 %v2559, 1.442695
  %v3027 = vpow.pop %v3026
  %v3028 = vmul.f32 %v2560, 1.442695
  %v3029 = vpow.pop %v3028
  %v3030 = vmul.f32 %v2561, 1.442695
  %v3031 = vpow.pop %v3030
  %v3032 = vmul.f32 %v2562, 1.442695
  %v3033 = vpow.pop %v3032
  %v3034 = vmul.f32 %v2563, 1.442695
  %v3035 = vpow.pop %v3034
  %v3036 = vmul.f32 %v2564, 1.442695
  %v3037 = vpow.pop %v3036
  %v3038 = vmul.f32 %v2565, 1.442695
  %v3039 = vpow.pop %v3038
  %v3040 = vmul.f32 %v2566, 1.442695
  %v3041 = vpow.pop %v3040
  %v3042 = vmul.f32 %v2567, 1.442695
  %v3043 = vpow.pop %v3042
  %v3044 = vmul.f32 %v2568, 1.442695
  %v3045 = vpow.pop %v3044
  %v3046 = vmul.f32 %v2569, 1.442695
  %v3047 = vpow.pop %v3046
  %v3048 = vmul.f32 %v2570, 1.442695
  %v3049 = vpow.pop %v3048
  %v3050 = vmul.f32 %v2571, 1.442695
  %v3051 = vpow.pop %v3050
  %v3052 = vmul.f32 %v2572, 1.442695
  %v3053 = vpow.pop %v3052
  %v3054 = vmul.f32 %v2573, 1.442695
  %v3055 = vpow.pop %v3054
  %v3056 = vmul.f32 %v2574, 1.442695
  %v3057 = vpow.pop %v3056
  %v3058 = vmul.f32 %v2575, 1.442695
  %v3059 = vpow.pop %v3058
  %v3060 = vmul.f32 %v2576, 1.442695
  %v3061 = vpow.pop %v3060
  %v3062 = vmul.f32 %v2577, 1.442695
  %v3063 = vpow.pop %v3062
  %v3064 = vmul.f32 %v2578, 1.442695
  %v3065 = vpow.pop %v3064
  %v3066 = vmul.f32 %v2579, 1.442695
  %v3067 = vpow.pop %v3066
  %v3068 = vmul.f32 %v2580, 1.442695
  %v3069 = vpow.pop %v3068
  %v3070 = vmul.f32 %v2581, 1.442695
  %v3071 = vpow.pop %v3070
  %v3072 = vmul.f32 %v2582, 1.442695
  %v3073 = vpow.pop %v3072
  %v3074 = vmul.f32 %v2583, 1.442695
  %v3075 = vpow.pop %v3074
  %v3076 = vmul.f32 %v2584, 1.442695
  %v3077 = vpow.pop %v3076
  %v3078 = vmul.f32 %v2585, 1.442695
  %v3079 = vpow.pop %v3078
  %v3080 = vmul.f32 %v2586, 1.442695
  %v3081 = vpow.pop %v3080
  %v3082 = vmul.f32 %v2587, 1.442695
  %v3083 = vpow.pop %v3082
  %v3084 = vmul.f32 %v2588, 1.442695
  %v3085 = vpow.pop %v3084
  %v3086 = vmul.f32 %v2589, 1.442695
  %v3087 = vpow.pop %v3086
  %v3088 = vmul.f32 %v2590, 1.442695
  %v3089 = vpow.pop %v3088
  %v3090 = vmul.f32 %v2591, 1.442695
  %v3091 = vpow.pop %v3090
  %v3092 = vmul.f32 %v2592, 1.442695
  %v3093 = vpow.pop %v3092
  %v3094 = vmul.f32 %v2593, 1.442695
  %v3095 = vpow.pop %v3094
  %v3096 = vmul.f32 %v2594, 1.442695
  %v3097 = vpow.pop %v3096
  %v3098 = vmul.f32 %v2595, 1.442695
  %v3099 = vpow.pop %v3098
  %v3100 = vmul.f32 %v2596, 1.442695
  %v3101 = vpow.pop %v3100
  %v3102 = vmul.f32 %v2597, 1.442695
  %v3103 = vpow.pop %v3102
  %v3104 = vmul.f32 %v2598, 1.442695
  %v3105 = vpow.pop %v3104
  %v3106 = vmul.f32 %v2599, 1.442695
  %v3107 = vpow.pop %v3106
  %v3108 = vmul.f32 %v2600, 1.442695
  %v3109 = vpow.pop %v3108
  %v3110 = vmul.f32 %v2601, 1.442695
  %v3111 = vpow.pop %v3110
  %v3112 = vmul.f32 %v2602, 1.442695
  %v3113 = vpow.pop %v3112
  %v3114 = vmul.f32 %v2603, 1.442695
  %v3115 = vpow.pop %v3114
  %v3116 = vadd.f32 %v2605, %v2607
  %3117 = vadd.xlane.f32.xlu0 %v3116
  %v3118 = vpop.xlane.xlu0 %3117
  %v3119 = vadd.f32 %v2609, %v2611
  %3120 = vadd.xlane.f32.xlu0 %v3119
  %v3121 = vpop.xlane.xlu0 %3120
  %v3122 = vadd.f32 %v2613, %v2615
  %3123 = vadd.xlane.f32.xlu0 %v3122
  %v3124 = vpop.xlane.xlu0 %3123
  %v3125 = vadd.f32 %v2617, %v2619
  %3126 = vadd.xlane.f32.xlu0 %v3125
  %v3127 = vpop.xlane.xlu0 %3126
  %v3128 = vadd.f32 %v2621, %v2623
  %3129 = vadd.xlane.f32.xlu0 %v3128
  %v3130 = vpop.xlane.xlu0 %3129
  %v3131 = vadd.f32 %v2625, %v2627
  %3132 = vadd.xlane.f32.xlu0 %v3131
  %v3133 = vpop.xlane.xlu0 %3132
  %v3134 = vadd.f32 %v2629, %v2631
  %3135 = vadd.xlane.f32.xlu0 %v3134
  %v3136 = vpop.xlane.xlu0 %3135
  %v3137 = vadd.f32 %v2633, %v2635
  %3138 = vadd.xlane.f32.xlu0 %v3137
  %v3139 = vpop.xlane.xlu0 %3138
  %v3140 = vadd.f32 %v2637, %v2639
  %3141 = vadd.xlane.f32.xlu0 %v3140
  %v3142 = vpop.xlane.xlu0 %3141
  %v3143 = vadd.f32 %v2641, %v2643
  %3144 = vadd.xlane.f32.xlu0 %v3143
  %v3145 = vpop.xlane.xlu0 %3144
  %v3146 = vadd.f32 %v2645, %v2647
  %3147 = vadd.xlane.f32.xlu0 %v3146
  %v3148 = vpop.xlane.xlu0 %3147
  %v3149 = vadd.f32 %v2649, %v2651
  %3150 = vadd.xlane.f32.xlu0 %v3149
  %v3151 = vpop.xlane.xlu0 %3150
  %v3152 = vadd.f32 %v2653, %v2655
  %3153 = vadd.xlane.f32.xlu0 %v3152
  %v3154 = vpop.xlane.xlu0 %3153
  %v3155 = vadd.f32 %v2657, %v2659
  %3156 = vadd.xlane.f32.xlu0 %v3155
  %v3157 = vpop.xlane.xlu0 %3156
  %v3158 = vadd.f32 %v2661, %v2663
  %3159 = vadd.xlane.f32.xlu0 %v3158
  %v3160 = vpop.xlane.xlu0 %3159
  %v3161 = vadd.f32 %v2665, %v2667
  %3162 = vadd.xlane.f32.xlu0 %v3161
  %v3163 = vpop.xlane.xlu0 %3162
  %v3164 = vadd.f32 %v2669, %v2671
  %3165 = vadd.xlane.f32.xlu0 %v3164
  %v3166 = vpop.xlane.xlu0 %3165
  %v3167 = vadd.f32 %v2673, %v2675
  %3168 = vadd.xlane.f32.xlu0 %v3167
  %v3169 = vpop.xlane.xlu0 %3168
  %v3170 = vadd.f32 %v2677, %v2679
  %3171 = vadd.xlane.f32.xlu0 %v3170
  %v3172 = vpop.xlane.xlu0 %3171
  %v3173 = vadd.f32 %v2681, %v2683
  %3174 = vadd.xlane.f32.xlu0 %v3173
  %v3175 = vpop.xlane.xlu0 %3174
  %v3176 = vadd.f32 %v2685, %v2687
  %3177 = vadd.xlane.f32.xlu0 %v3176
  %v3178 = vpop.xlane.xlu0 %3177
  %v3179 = vadd.f32 %v2689, %v2691
  %3180 = vadd.xlane.f32.xlu0 %v3179
  %v3181 = vpop.xlane.xlu0 %3180
  %v3182 = vadd.f32 %v2693, %v2695
  %3183 = vadd.xlane.f32.xlu0 %v3182
  %v3184 = vpop.xlane.xlu0 %3183
  %v3185 = vadd.f32 %v2697, %v2699
  %3186 = vadd.xlane.f32.xlu0 %v3185
  %v3187 = vpop.xlane.xlu0 %3186
  %v3188 = vadd.f32 %v2701, %v2703
  %3189 = vadd.xlane.f32.xlu0 %v3188
  %v3190 = vpop.xlane.xlu0 %3189
  %v3191 = vadd.f32 %v2705, %v2707
  %3192 = vadd.xlane.f32.xlu0 %v3191
  %v3193 = vpop.xlane.xlu0 %3192
  %v3194 = vadd.f32 %v2709, %v2711
  %3195 = vadd.xlane.f32.xlu0 %v3194
  %v3196 = vpop.xlane.xlu0 %3195
  %v3197 = vadd.f32 %v2713, %v2715
  %3198 = vadd.xlane.f32.xlu0 %v3197
  %v3199 = vpop.xlane.xlu0 %3198
  %v3200 = vadd.f32 %v2717, %v2719
  %3201 = vadd.xlane.f32.xlu0 %v3200
  %v3202 = vpop.xlane.xlu0 %3201
  %v3203 = vadd.f32 %v2721, %v2723
  %3204 = vadd.xlane.f32.xlu0 %v3203
  %v3205 = vpop.xlane.xlu0 %3204
  %v3206 = vadd.f32 %v2725, %v2727
  %3207 = vadd.xlane.f32.xlu0 %v3206
  %v3208 = vpop.xlane.xlu0 %3207
  %v3209 = vadd.f32 %v2729, %v2731
  %3210 = vadd.xlane.f32.xlu0 %v3209
  %v3211 = vpop.xlane.xlu0 %3210
  %v3212 = vadd.f32 %v2733, %v2735
  %3213 = vadd.xlane.f32.xlu0 %v3212
  %v3214 = vpop.xlane.xlu0 %3213
  %v3215 = vadd.f32 %v2737, %v2739
  %3216 = vadd.xlane.f32.xlu0 %v3215
  %v3217 = vpop.xlane.xlu0 %3216
  %v3218 = vadd.f32 %v2741, %v2743
  %3219 = vadd.xlane.f32.xlu0 %v3218
  %v3220 = vpop.xlane.xlu0 %3219
  %v3221 = vadd.f32 %v2745, %v2747
  %3222 = vadd.xlane.f32.xlu0 %v3221
  %v3223 = vpop.xlane.xlu0 %3222
  %v3224 = vadd.f32 %v2749, %v2751
  %3225 = vadd.xlane.f32.xlu0 %v3224
  %v3226 = vpop.xlane.xlu0 %3225
  %v3227 = vadd.f32 %v2753, %v2755
  %3228 = vadd.xlane.f32.xlu0 %v3227
  %v3229 = vpop.xlane.xlu0 %3228
  %v3230 = vadd.f32 %v2757, %v2759
  %3231 = vadd.xlane.f32.xlu0 %v3230
  %v3232 = vpop.xlane.xlu0 %3231
  %v3233 = vadd.f32 %v2761, %v2763
  %3234 = vadd.xlane.f32.xlu0 %v3233
  %v3235 = vpop.xlane.xlu0 %3234
  %v3236 = vadd.f32 %v2765, %v2767
  %3237 = vadd.xlane.f32.xlu0 %v3236
  %v3238 = vpop.xlane.xlu0 %3237
  %v3239 = vadd.f32 %v2769, %v2771
  %3240 = vadd.xlane.f32.xlu0 %v3239
  %v3241 = vpop.xlane.xlu0 %3240
  %v3242 = vadd.f32 %v2773, %v2775
  %3243 = vadd.xlane.f32.xlu0 %v3242
  %v3244 = vpop.xlane.xlu0 %3243
  %v3245 = vadd.f32 %v2777, %v2779
  %3246 = vadd.xlane.f32.xlu0 %v3245
  %v3247 = vpop.xlane.xlu0 %3246
  %v3248 = vadd.f32 %v2781, %v2783
  %3249 = vadd.xlane.f32.xlu0 %v3248
  %v3250 = vpop.xlane.xlu0 %3249
  %v3251 = vadd.f32 %v2785, %v2787
  %3252 = vadd.xlane.f32.xlu0 %v3251
  %v3253 = vpop.xlane.xlu0 %3252
  %v3254 = vadd.f32 %v2789, %v2791
  %3255 = vadd.xlane.f32.xlu0 %v3254
  %v3256 = vpop.xlane.xlu0 %3255
  %v3257 = vadd.f32 %v2793, %v2795
  %3258 = vadd.xlane.f32.xlu0 %v3257
  %v3259 = vpop.xlane.xlu0 %3258
  %v3260 = vadd.f32 %v2797, %v2799
  %3261 = vadd.xlane.f32.xlu0 %v3260
  %v3262 = vpop.xlane.xlu0 %3261
  %v3263 = vadd.f32 %v2801, %v2803
  %3264 = vadd.xlane.f32.xlu0 %v3263
  %v3265 = vpop.xlane.xlu0 %3264
  %v3266 = vadd.f32 %v2805, %v2807
  %3267 = vadd.xlane.f32.xlu0 %v3266
  %v3268 = vpop.xlane.xlu0 %3267
  %v3269 = vadd.f32 %v2809, %v2811
  %3270 = vadd.xlane.f32.xlu0 %v3269
  %v3271 = vpop.xlane.xlu0 %3270
  %v3272 = vadd.f32 %v2813, %v2815
  %3273 = vadd.xlane.f32.xlu0 %v3272
  %v3274 = vpop.xlane.xlu0 %3273
  %v3275 = vadd.f32 %v2817, %v2819
  %3276 = vadd.xlane.f32.xlu0 %v3275
  %v3277 = vpop.xlane.xlu0 %3276
  %v3278 = vadd.f32 %v2821, %v2823
  %3279 = vadd.xlane.f32.xlu0 %v3278
  %v3280 = vpop.xlane.xlu0 %3279
  %v3281 = vadd.f32 %v2825, %v2827
  %3282 = vadd.xlane.f32.xlu0 %v3281
  %v3283 = vpop.xlane.xlu0 %3282
  %v3284 = vadd.f32 %v2829, %v2831
  %3285 = vadd.xlane.f32.xlu0 %v3284
  %v3286 = vpop.xlane.xlu0 %3285
  %v3287 = vadd.f32 %v2833, %v2835
  %3288 = vadd.xlane.f32.xlu0 %v3287
  %v3289 = vpop.xlane.xlu0 %3288
  %v3290 = vadd.f32 %v2837, %v2839
  %3291 = vadd.xlane.f32.xlu0 %v3290
  %v3292 = vpop.xlane.xlu0 %3291
  %v3293 = vadd.f32 %v2841, %v2843
  %3294 = vadd.xlane.f32.xlu0 %v3293
  %v3295 = vpop.xlane.xlu0 %3294
  %v3296 = vadd.f32 %v2845, %v2847
  %3297 = vadd.xlane.f32.xlu0 %v3296
  %v3298 = vpop.xlane.xlu0 %3297
  %v3299 = vadd.f32 %v2849, %v2851
  %3300 = vadd.xlane.f32.xlu0 %v3299
  %v3301 = vpop.xlane.xlu0 %3300
  %v3302 = vadd.f32 %v2853, %v2855
  %3303 = vadd.xlane.f32.xlu0 %v3302
  %v3304 = vpop.xlane.xlu0 %3303
  %v3305 = vadd.f32 %v2857, %v2859
  %3306 = vadd.xlane.f32.xlu0 %v3305
  %v3307 = vpop.xlane.xlu0 %3306
  %v3308 = vadd.f32 %v2861, %v2863
  %3309 = vadd.xlane.f32.xlu0 %v3308
  %v3310 = vpop.xlane.xlu0 %3309
  %v3311 = vadd.f32 %v2865, %v2867
  %3312 = vadd.xlane.f32.xlu0 %v3311
  %v3313 = vpop.xlane.xlu0 %3312
  %v3314 = vadd.f32 %v2869, %v2871
  %3315 = vadd.xlane.f32.xlu0 %v3314
  %v3316 = vpop.xlane.xlu0 %3315
  %v3317 = vadd.f32 %v2873, %v2875
  %3318 = vadd.xlane.f32.xlu0 %v3317
  %v3319 = vpop.xlane.xlu0 %3318
  %v3320 = vadd.f32 %v2877, %v2879
  %3321 = vadd.xlane.f32.xlu0 %v3320
  %v3322 = vpop.xlane.xlu0 %3321
  %v3323 = vadd.f32 %v2881, %v2883
  %3324 = vadd.xlane.f32.xlu0 %v3323
  %v3325 = vpop.xlane.xlu0 %3324
  %v3326 = vadd.f32 %v2885, %v2887
  %3327 = vadd.xlane.f32.xlu0 %v3326
  %v3328 = vpop.xlane.xlu0 %3327
  %v3329 = vadd.f32 %v2889, %v2891
  %3330 = vadd.xlane.f32.xlu0 %v3329
  %v3331 = vpop.xlane.xlu0 %3330
  %v3332 = vadd.f32 %v2893, %v2895
  %3333 = vadd.xlane.f32.xlu0 %v3332
  %v3334 = vpop.xlane.xlu0 %3333
  %v3335 = vadd.f32 %v2897, %v2899
  %3336 = vadd.xlane.f32.xlu0 %v3335
  %v3337 = vpop.xlane.xlu0 %3336
  %v3338 = vadd.f32 %v2901, %v2903
  %3339 = vadd.xlane.f32.xlu0 %v3338
  %v3340 = vpop.xlane.xlu0 %3339
  %v3341 = vadd.f32 %v2905, %v2907
  %3342 = vadd.xlane.f32.xlu0 %v3341
  %v3343 = vpop.xlane.xlu0 %3342
  %v3344 = vadd.f32 %v2909, %v2911
  %3345 = vadd.xlane.f32.xlu0 %v3344
  %v3346 = vpop.xlane.xlu0 %3345
  %v3347 = vadd.f32 %v2913, %v2915
  %3348 = vadd.xlane.f32.xlu0 %v3347
  %v3349 = vpop.xlane.xlu0 %3348
  %v3350 = vadd.f32 %v2917, %v2919
  %3351 = vadd.xlane.f32.xlu0 %v3350
  %v3352 = vpop.xlane.xlu0 %3351
  %v3353 = vadd.f32 %v2921, %v2923
  %3354 = vadd.xlane.f32.xlu0 %v3353
  %v3355 = vpop.xlane.xlu0 %3354
  %v3356 = vadd.f32 %v2925, %v2927
  %3357 = vadd.xlane.f32.xlu0 %v3356
  %v3358 = vpop.xlane.xlu0 %3357
  %v3359 = vadd.f32 %v2929, %v2931
  %3360 = vadd.xlane.f32.xlu0 %v3359
  %v3361 = vpop.xlane.xlu0 %3360
  %v3362 = vadd.f32 %v2933, %v2935
  %3363 = vadd.xlane.f32.xlu0 %v3362
  %v3364 = vpop.xlane.xlu0 %3363
  %v3365 = vadd.f32 %v2937, %v2939
  %3366 = vadd.xlane.f32.xlu0 %v3365
  %v3367 = vpop.xlane.xlu0 %3366
  %v3368 = vadd.f32 %v2941, %v2943
  %3369 = vadd.xlane.f32.xlu0 %v3368
  %v3370 = vpop.xlane.xlu0 %3369
  %v3371 = vadd.f32 %v2945, %v2947
  %3372 = vadd.xlane.f32.xlu0 %v3371
  %v3373 = vpop.xlane.xlu0 %3372
  %v3374 = vadd.f32 %v2949, %v2951
  %3375 = vadd.xlane.f32.xlu0 %v3374
  %v3376 = vpop.xlane.xlu0 %3375
  %v3377 = vadd.f32 %v2953, %v2955
  %3378 = vadd.xlane.f32.xlu0 %v3377
  %v3379 = vpop.xlane.xlu0 %3378
  %v3380 = vadd.f32 %v2957, %v2959
  %3381 = vadd.xlane.f32.xlu0 %v3380
  %v3382 = vpop.xlane.xlu0 %3381
  %v3383 = vadd.f32 %v2961, %v2963
  %3384 = vadd.xlane.f32.xlu0 %v3383
  %v3385 = vpop.xlane.xlu0 %3384
  %v3386 = vadd.f32 %v2965, %v2967
  %3387 = vadd.xlane.f32.xlu0 %v3386
  %v3388 = vpop.xlane.xlu0 %3387
  %v3389 = vadd.f32 %v2969, %v2971
  %3390 = vadd.xlane.f32.xlu0 %v3389
  %v3391 = vpop.xlane.xlu0 %3390
  %v3392 = vadd.f32 %v2973, %v2975
  %3393 = vadd.xlane.f32.xlu0 %v3392
  %v3394 = vpop.xlane.xlu0 %3393
  %v3395 = vadd.f32 %v2977, %v2979
  %3396 = vadd.xlane.f32.xlu0 %v3395
  %v3397 = vpop.xlane.xlu0 %3396
  %v3398 = vadd.f32 %v2981, %v2983
  %3399 = vadd.xlane.f32.xlu0 %v3398
  %v3400 = vpop.xlane.xlu0 %3399
  %v3401 = vadd.f32 %v2985, %v2987
  %3402 = vadd.xlane.f32.xlu0 %v3401
  %v3403 = vpop.xlane.xlu0 %3402
  %v3404 = vadd.f32 %v2989, %v2991
  %3405 = vadd.xlane.f32.xlu0 %v3404
  %v3406 = vpop.xlane.xlu0 %3405
  %v3407 = vadd.f32 %v2993, %v2995
  %3408 = vadd.xlane.f32.xlu0 %v3407
  %v3409 = vpop.xlane.xlu0 %3408
  %v3410 = vadd.f32 %v2997, %v2999
  %3411 = vadd.xlane.f32.xlu0 %v3410
  %v3412 = vpop.xlane.xlu0 %3411
  %v3413 = vadd.f32 %v3001, %v3003
  %3414 = vadd.xlane.f32.xlu0 %v3413
  %v3415 = vpop.xlane.xlu0 %3414
  %v3416 = vadd.f32 %v3005, %v3007
  %3417 = vadd.xlane.f32.xlu0 %v3416
  %v3418 = vpop.xlane.xlu0 %3417
  %v3419 = vadd.f32 %v3009, %v3011
  %3420 = vadd.xlane.f32.xlu0 %v3419
  %v3421 = vpop.xlane.xlu0 %3420
  %v3422 = vadd.f32 %v3013, %v3015
  %3423 = vadd.xlane.f32.xlu0 %v3422
  %v3424 = vpop.xlane.xlu0 %3423
  %v3425 = vadd.f32 %v3017, %v3019
  %3426 = vadd.xlane.f32.xlu0 %v3425
  %v3427 = vpop.xlane.xlu0 %3426
  %v3428 = vadd.f32 %v3021, %v3023
  %3429 = vadd.xlane.f32.xlu0 %v3428
  %v3430 = vpop.xlane.xlu0 %3429
  %v3431 = vadd.f32 %v3025, %v3027
  %3432 = vadd.xlane.f32.xlu0 %v3431
  %v3433 = vpop.xlane.xlu0 %3432
  %v3434 = vadd.f32 %v3029, %v3031
  %3435 = vadd.xlane.f32.xlu0 %v3434
  %v3436 = vpop.xlane.xlu0 %3435
  %v3437 = vadd.f32 %v3033, %v3035
  %3438 = vadd.xlane.f32.xlu0 %v3437
  %v3439 = vpop.xlane.xlu0 %3438
  %v3440 = vadd.f32 %v3037, %v3039
  %3441 = vadd.xlane.f32.xlu0 %v3440
  %v3442 = vpop.xlane.xlu0 %3441
  %v3443 = vadd.f32 %v3041, %v3043
  %3444 = vadd.xlane.f32.xlu0 %v3443
  %v3445 = vpop.xlane.xlu0 %3444
  %v3446 = vadd.f32 %v3045, %v3047
  %3447 = vadd.xlane.f32.xlu0 %v3446
  %v3448 = vpop.xlane.xlu0 %3447
  %v3449 = vadd.f32 %v3049, %v3051
  %3450 = vadd.xlane.f32.xlu0 %v3449
  %v3451 = vpop.xlane.xlu0 %3450
  %v3452 = vadd.f32 %v3053, %v3055
  %3453 = vadd.xlane.f32.xlu0 %v3452
  %v3454 = vpop.xlane.xlu0 %3453
  %v3455 = vadd.f32 %v3057, %v3059
  %3456 = vadd.xlane.f32.xlu0 %v3455
  %v3457 = vpop.xlane.xlu0 %3456
  %v3458 = vadd.f32 %v3061, %v3063
  %3459 = vadd.xlane.f32.xlu0 %v3458
  %v3460 = vpop.xlane.xlu0 %3459
  %v3461 = vadd.f32 %v3065, %v3067
  %3462 = vadd.xlane.f32.xlu0 %v3461
  %v3463 = vpop.xlane.xlu0 %3462
  %v3464 = vadd.f32 %v3069, %v3071
  %3465 = vadd.xlane.f32.xlu0 %v3464
  %v3466 = vpop.xlane.xlu0 %3465
  %v3467 = vadd.f32 %v3073, %v3075
  %3468 = vadd.xlane.f32.xlu0 %v3467
  %v3469 = vpop.xlane.xlu0 %3468
  %v3470 = vadd.f32 %v3077, %v3079
  %3471 = vadd.xlane.f32.xlu0 %v3470
  %v3472 = vpop.xlane.xlu0 %3471
  %v3473 = vadd.f32 %v3081, %v3083
  %3474 = vadd.xlane.f32.xlu0 %v3473
  %v3475 = vpop.xlane.xlu0 %3474
  %v3476 = vadd.f32 %v3085, %v3087
  %3477 = vadd.xlane.f32.xlu0 %v3476
  %v3478 = vpop.xlane.xlu0 %3477
  %v3479 = vadd.f32 %v3089, %v3091
  %3480 = vadd.xlane.f32.xlu0 %v3479
  %v3481 = vpop.xlane.xlu0 %3480
  %v3482 = vadd.f32 %v3093, %v3095
  %3483 = vadd.xlane.f32.xlu0 %v3482
  %v3484 = vpop.xlane.xlu0 %3483
  %v3485 = vadd.f32 %v3097, %v3099
  %3486 = vadd.xlane.f32.xlu0 %v3485
  %v3487 = vpop.xlane.xlu0 %3486
  %v3488 = vadd.f32 %v3101, %v3103
  %3489 = vadd.xlane.f32.xlu0 %v3488
  %v3490 = vpop.xlane.xlu0 %3489
  %v3491 = vadd.f32 %v3105, %v3107
  %3492 = vadd.xlane.f32.xlu0 %v3491
  %v3493 = vpop.xlane.xlu0 %3492
  %v3494 = vadd.f32 %v3109, %v3111
  %3495 = vadd.xlane.f32.xlu0 %v3494
  %v3496 = vpop.xlane.xlu0 %3495
  %v3497 = vadd.f32 %v3113, %v3115
  %3498 = vadd.xlane.f32.xlu0 %v3497
  %v3499 = vpop.xlane.xlu0 %3498
  %v3500 = vpack.c.bf16 %v2609, %v2605
  %v3501 = vpack.c.bf16 %v2611, %v2607
  %v3502 = vpack.c.bf16 %v2617, %v2613
  %v3503 = vpack.c.bf16 %v2619, %v2615
  %v3504 = vpack.c.bf16 %v2625, %v2621
  %v3505 = vpack.c.bf16 %v2627, %v2623
  %v3506 = vpack.c.bf16 %v2633, %v2629
  %v3507 = vpack.c.bf16 %v2635, %v2631
  %v3508 = vpack.c.bf16 %v2641, %v2637
  %v3509 = vpack.c.bf16 %v2643, %v2639
  %v3510 = vpack.c.bf16 %v2649, %v2645
  %v3511 = vpack.c.bf16 %v2651, %v2647
  %v3512 = vpack.c.bf16 %v2657, %v2653
  %v3513 = vpack.c.bf16 %v2659, %v2655
  %v3514 = vpack.c.bf16 %v2665, %v2661
  %v3515 = vpack.c.bf16 %v2667, %v2663
  %v3516 = vpack.c.bf16 %v2673, %v2669
  %v3517 = vpack.c.bf16 %v2675, %v2671
  %v3518 = vpack.c.bf16 %v2681, %v2677
  %v3519 = vpack.c.bf16 %v2683, %v2679
  %v3520 = vpack.c.bf16 %v2689, %v2685
  %v3521 = vpack.c.bf16 %v2691, %v2687
  %v3522 = vpack.c.bf16 %v2697, %v2693
  %v3523 = vpack.c.bf16 %v2699, %v2695
  %v3524 = vpack.c.bf16 %v2705, %v2701
  %v3525 = vpack.c.bf16 %v2707, %v2703
  %v3526 = vpack.c.bf16 %v2713, %v2709
  %v3527 = vpack.c.bf16 %v2715, %v2711
  %v3528 = vpack.c.bf16 %v2721, %v2717
  %v3529 = vpack.c.bf16 %v2723, %v2719
  %v3530 = vpack.c.bf16 %v2729, %v2725
  %v3531 = vpack.c.bf16 %v2731, %v2727
  %v3532 = vpack.c.bf16 %v2737, %v2733
  %v3533 = vpack.c.bf16 %v2739, %v2735
  %v3534 = vpack.c.bf16 %v2745, %v2741
  %v3535 = vpack.c.bf16 %v2747, %v2743
  %v3536 = vpack.c.bf16 %v2753, %v2749
  %v3537 = vpack.c.bf16 %v2755, %v2751
  %v3538 = vpack.c.bf16 %v2761, %v2757
  %v3539 = vpack.c.bf16 %v2763, %v2759
  %v3540 = vpack.c.bf16 %v2769, %v2765
  %v3541 = vpack.c.bf16 %v2771, %v2767
  %v3542 = vpack.c.bf16 %v2777, %v2773
  %v3543 = vpack.c.bf16 %v2779, %v2775
  %v3544 = vpack.c.bf16 %v2785, %v2781
  %v3545 = vpack.c.bf16 %v2787, %v2783
  %v3546 = vpack.c.bf16 %v2793, %v2789
  %v3547 = vpack.c.bf16 %v2795, %v2791
  %v3548 = vpack.c.bf16 %v2801, %v2797
  %v3549 = vpack.c.bf16 %v2803, %v2799
  %v3550 = vpack.c.bf16 %v2809, %v2805
  %v3551 = vpack.c.bf16 %v2811, %v2807
  %v3552 = vpack.c.bf16 %v2817, %v2813
  %v3553 = vpack.c.bf16 %v2819, %v2815
  %v3554 = vpack.c.bf16 %v2825, %v2821
  %v3555 = vpack.c.bf16 %v2827, %v2823
  %v3556 = vpack.c.bf16 %v2833, %v2829
  %v3557 = vpack.c.bf16 %v2835, %v2831
  %v3558 = vpack.c.bf16 %v2841, %v2837
  %v3559 = vpack.c.bf16 %v2843, %v2839
  %v3560 = vpack.c.bf16 %v2849, %v2845
  %v3561 = vpack.c.bf16 %v2851, %v2847
  %v3562 = vpack.c.bf16 %v2857, %v2853
  %v3563 = vpack.c.bf16 %v2859, %v2855
  %v3564 = vpack.c.bf16 %v2865, %v2861
  %v3565 = vpack.c.bf16 %v2867, %v2863
  %v3566 = vpack.c.bf16 %v2873, %v2869
  %v3567 = vpack.c.bf16 %v2875, %v2871
  %v3568 = vpack.c.bf16 %v2881, %v2877
  %v3569 = vpack.c.bf16 %v2883, %v2879
  %v3570 = vpack.c.bf16 %v2889, %v2885
  %v3571 = vpack.c.bf16 %v2891, %v2887
  %v3572 = vpack.c.bf16 %v2897, %v2893
  %v3573 = vpack.c.bf16 %v2899, %v2895
  %v3574 = vpack.c.bf16 %v2905, %v2901
  %v3575 = vpack.c.bf16 %v2907, %v2903
  %v3576 = vpack.c.bf16 %v2913, %v2909
  %v3577 = vpack.c.bf16 %v2915, %v2911
  %v3578 = vpack.c.bf16 %v2921, %v2917
  %v3579 = vpack.c.bf16 %v2923, %v2919
  %v3580 = vpack.c.bf16 %v2929, %v2925
  %v3581 = vpack.c.bf16 %v2931, %v2927
  %v3582 = vpack.c.bf16 %v2937, %v2933
  %v3583 = vpack.c.bf16 %v2939, %v2935
  %v3584 = vpack.c.bf16 %v2945, %v2941
  %v3585 = vpack.c.bf16 %v2947, %v2943
  %v3586 = vpack.c.bf16 %v2953, %v2949
  %v3587 = vpack.c.bf16 %v2955, %v2951
  %v3588 = vpack.c.bf16 %v2961, %v2957
  %v3589 = vpack.c.bf16 %v2963, %v2959
  %v3590 = vpack.c.bf16 %v2969, %v2965
  %v3591 = vpack.c.bf16 %v2971, %v2967
  %v3592 = vpack.c.bf16 %v2977, %v2973
  %v3593 = vpack.c.bf16 %v2979, %v2975
  %v3594 = vpack.c.bf16 %v2985, %v2981
  %v3595 = vpack.c.bf16 %v2987, %v2983
  %v3596 = vpack.c.bf16 %v2993, %v2989
  %v3597 = vpack.c.bf16 %v2995, %v2991
  %v3598 = vpack.c.bf16 %v3001, %v2997
  %v3599 = vpack.c.bf16 %v3003, %v2999
  %v3600 = vpack.c.bf16 %v3009, %v3005
  %v3601 = vpack.c.bf16 %v3011, %v3007
  %v3602 = vpack.c.bf16 %v3017, %v3013
  %v3603 = vpack.c.bf16 %v3019, %v3015
  %v3604 = vpack.c.bf16 %v3025, %v3021
  %v3605 = vpack.c.bf16 %v3027, %v3023
  %v3606 = vpack.c.bf16 %v3033, %v3029
  %v3607 = vpack.c.bf16 %v3035, %v3031
  %v3608 = vpack.c.bf16 %v3041, %v3037
  %v3609 = vpack.c.bf16 %v3043, %v3039
  %v3610 = vpack.c.bf16 %v3049, %v3045
  %v3611 = vpack.c.bf16 %v3051, %v3047
  %v3612 = vpack.c.bf16 %v3057, %v3053
  %v3613 = vpack.c.bf16 %v3059, %v3055
  %v3614 = vpack.c.bf16 %v3065, %v3061
  %v3615 = vpack.c.bf16 %v3067, %v3063
  %v3616 = vpack.c.bf16 %v3073, %v3069
  %v3617 = vpack.c.bf16 %v3075, %v3071
  %v3618 = vpack.c.bf16 %v3081, %v3077
  %v3619 = vpack.c.bf16 %v3083, %v3079
  %v3620 = vpack.c.bf16 %v3089, %v3085
  %v3621 = vpack.c.bf16 %v3091, %v3087
  %v3622 = vpack.c.bf16 %v3097, %v3093
  %v3623 = vpack.c.bf16 %v3099, %v3095
  %v3624 = vpack.c.bf16 %v3105, %v3101
  %v3625 = vpack.c.bf16 %v3107, %v3103
  %v3626 = vpack.c.bf16 %v3113, %v3109
  %v3627 = vpack.c.bf16 %v3115, %v3111
  %3628 = vrot.lane.b32.xlu0 %v558, 96
  %v3629 = vpop.permute.xlu0 %3628
  %3630 = vrot.lane.b32.xlu0 %v559, 96
  %v3631 = vpop.permute.xlu0 %3630
  %3632 = vrot.lane.b32.xlu0 %v560, 96
  %v3633 = vpop.permute.xlu0 %3632
  %3634 = vrot.lane.b32.xlu0 %v561, 96
  %v3635 = vpop.permute.xlu0 %3634
  %3636 = vrot.lane.b32.xlu0 %v562, 96
  %v3637 = vpop.permute.xlu0 %3636
  %3638 = vrot.lane.b32.xlu0 %v563, 96
  %v3639 = vpop.permute.xlu0 %3638
  %3640 = vrot.lane.b32.xlu0 %v564, 96
  %v3641 = vpop.permute.xlu0 %3640
  %3642 = vrot.lane.b32.xlu0 %v565, 96
  %v3643 = vpop.permute.xlu0 %3642
  %3644 = vrot.lane.b32.xlu0 %v566, 96
  %v3645 = vpop.permute.xlu0 %3644
  %3646 = vrot.lane.b32.xlu0 %v567, 96
  %v3647 = vpop.permute.xlu0 %3646
  %3648 = vrot.lane.b32.xlu0 %v568, 96
  %v3649 = vpop.permute.xlu0 %3648
  %3650 = vrot.lane.b32.xlu0 %v569, 96
  %v3651 = vpop.permute.xlu0 %3650
  %3652 = vrot.lane.b32.xlu0 %v570, 96
  %v3653 = vpop.permute.xlu0 %3652
  %3654 = vrot.lane.b32.xlu0 %v571, 96
  %v3655 = vpop.permute.xlu0 %3654
  %3656 = vrot.lane.b32.xlu0 %v572, 96
  %v3657 = vpop.permute.xlu0 %3656
  %3658 = vrot.lane.b32.xlu0 %v573, 96
  %v3659 = vpop.permute.xlu0 %3658
  %3660 = vrot.lane.b32.xlu0 %v703, 96
  %v3661 = vpop.permute.xlu0 %3660
  %3662 = vrot.lane.b32.xlu0 %v705, 96
  %v3663 = vpop.permute.xlu0 %3662
  %3664 = vrot.lane.b32.xlu0 %v707, 96
  %v3665 = vpop.permute.xlu0 %3664
  %3666 = vrot.lane.b32.xlu0 %v709, 96
  %v3667 = vpop.permute.xlu0 %3666
  %3668 = vrot.lane.b32.xlu0 %v711, 96
  %v3669 = vpop.permute.xlu0 %3668
  %3670 = vrot.lane.b32.xlu0 %v713, 96
  %v3671 = vpop.permute.xlu0 %3670
  %3672 = vrot.lane.b32.xlu0 %v715, 96
  %v3673 = vpop.permute.xlu0 %3672
  %3674 = vrot.lane.b32.xlu0 %v717, 96
  %v3675 = vpop.permute.xlu0 %3674
  %3676 = vrot.lane.b32.xlu0 %v719, 96
  %v3677 = vpop.permute.xlu0 %3676
  %3678 = vrot.lane.b32.xlu0 %v721, 96
  %v3679 = vpop.permute.xlu0 %3678
  %3680 = vrot.lane.b32.xlu0 %v723, 96
  %v3681 = vpop.permute.xlu0 %3680
  %3682 = vrot.lane.b32.xlu0 %v725, 96
  %v3683 = vpop.permute.xlu0 %3682
  %3684 = vrot.lane.b32.xlu0 %v727, 96
  %v3685 = vpop.permute.xlu0 %3684
  %3686 = vrot.lane.b32.xlu0 %v729, 96
  %v3687 = vpop.permute.xlu0 %3686
  %3688 = vrot.lane.b32.xlu0 %v731, 96
  %v3689 = vpop.permute.xlu0 %3688
  %3690 = vrot.lane.b32.xlu0 %v733, 96
  %v3691 = vpop.permute.xlu0 %3690
  %3692 = vrot.lane.b32.xlu0 %v751, 96
  %v3693 = vpop.permute.xlu0 %3692
  %3694 = vrot.lane.b32.xlu0 %v753, 96
  %v3695 = vpop.permute.xlu0 %3694
  %3696 = vrot.lane.b32.xlu0 %v755, 96
  %v3697 = vpop.permute.xlu0 %3696
  %3698 = vrot.lane.b32.xlu0 %v757, 96
  %v3699 = vpop.permute.xlu0 %3698
  %3700 = vrot.lane.b32.xlu0 %v759, 96
  %v3701 = vpop.permute.xlu0 %3700
  %3702 = vrot.lane.b32.xlu0 %v761, 96
  %v3703 = vpop.permute.xlu0 %3702
  %3704 = vrot.lane.b32.xlu0 %v763, 96
  %v3705 = vpop.permute.xlu0 %3704
  %3706 = vrot.lane.b32.xlu0 %v765, 96
  %v3707 = vpop.permute.xlu0 %3706
  %3708 = vrot.lane.b32.xlu0 %v767, 96
  %v3709 = vpop.permute.xlu0 %3708
  %3710 = vrot.lane.b32.xlu0 %v769, 96
  %v3711 = vpop.permute.xlu0 %3710
  %3712 = vrot.lane.b32.xlu0 %v771, 96
  %v3713 = vpop.permute.xlu0 %3712
  %3714 = vrot.lane.b32.xlu0 %v773, 96
  %v3715 = vpop.permute.xlu0 %3714
  %3716 = vrot.lane.b32.xlu0 %v775, 96
  %v3717 = vpop.permute.xlu0 %3716
  %3718 = vrot.lane.b32.xlu0 %v777, 96
  %v3719 = vpop.permute.xlu0 %3718
  %3720 = vrot.lane.b32.xlu0 %v779, 96
  %v3721 = vpop.permute.xlu0 %3720
  %3722 = vrot.lane.b32.xlu0 %v781, 96
  %v3723 = vpop.permute.xlu0 %3722
  %3724 = vrot.lane.b32.xlu0 %v799, 96
  %v3725 = vpop.permute.xlu0 %3724
  %3726 = vrot.lane.b32.xlu0 %v801, 96
  %v3727 = vpop.permute.xlu0 %3726
  %3728 = vrot.lane.b32.xlu0 %v803, 96
  %v3729 = vpop.permute.xlu0 %3728
  %3730 = vrot.lane.b32.xlu0 %v805, 96
  %v3731 = vpop.permute.xlu0 %3730
  %3732 = vrot.lane.b32.xlu0 %v807, 96
  %v3733 = vpop.permute.xlu0 %3732
  %3734 = vrot.lane.b32.xlu0 %v809, 96
  %v3735 = vpop.permute.xlu0 %3734
  %3736 = vrot.lane.b32.xlu0 %v811, 96
  %v3737 = vpop.permute.xlu0 %3736
  %3738 = vrot.lane.b32.xlu0 %v813, 96
  %v3739 = vpop.permute.xlu0 %3738
  %3740 = vrot.lane.b32.xlu0 %v815, 96
  %v3741 = vpop.permute.xlu0 %3740
  %3742 = vrot.lane.b32.xlu0 %v817, 96
  %v3743 = vpop.permute.xlu0 %3742
  %3744 = vrot.lane.b32.xlu0 %v819, 96
  %v3745 = vpop.permute.xlu0 %3744
  %3746 = vrot.lane.b32.xlu0 %v821, 96
  %v3747 = vpop.permute.xlu0 %3746
  %3748 = vrot.lane.b32.xlu0 %v823, 96
  %v3749 = vpop.permute.xlu0 %3748
  %3750 = vrot.lane.b32.xlu0 %v825, 96
  %v3751 = vpop.permute.xlu0 %3750
  %3752 = vrot.lane.b32.xlu0 %v827, 96
  %v3753 = vpop.permute.xlu0 %3752
  %3754 = vrot.lane.b32.xlu0 %v829, 96
  %v3755 = vpop.permute.xlu0 %3754
  %3820 = vxpose.xlu0.c.b16.start [1/8] %v3629, 128
  %3821 = vxpose.xlu0.c.b16.cont [2/8] %v3631, 128
  %3822 = vxpose.xlu0.c.b16.cont [3/8] %v3633, 128
  %3823 = vxpose.xlu0.c.b16.cont [4/8] %v3635, 128
  %3824 = vxpose.xlu0.c.b16.cont [5/8] %v3637, 128
  %3825 = vxpose.xlu0.c.b16.cont [6/8] %v3639, 128
  %3826 = vxpose.xlu0.c.b16.cont [7/8] %v3641, 128
  %3827 = vxpose.xlu0.c.b16.end [8/8] %v3643, 128
  %v3828 = vpop.trf.xlu0
  %v3829 = vpop.trf.xlu0
  %v3830 = vpop.trf.xlu0
  %v3831 = vpop.trf.xlu0
  %v3832 = vpop.trf.xlu0
  %v3833 = vpop.trf.xlu0
  %v3834 = vpop.trf.xlu0
  %v3835 = vpop.trf.xlu0
  %3836 = vxpose.xlu0.c.b16.start [1/8] %v3645, 128
  %3837 = vxpose.xlu0.c.b16.cont [2/8] %v3647, 128
  %3838 = vxpose.xlu0.c.b16.cont [3/8] %v3649, 128
  %3839 = vxpose.xlu0.c.b16.cont [4/8] %v3651, 128
  %3840 = vxpose.xlu0.c.b16.cont [5/8] %v3653, 128
  %3841 = vxpose.xlu0.c.b16.cont [6/8] %v3655, 128
  %3842 = vxpose.xlu0.c.b16.cont [7/8] %v3657, 128
  %3843 = vxpose.xlu0.c.b16.end [8/8] %v3659, 128
  %v3844 = vpop.trf.xlu0
  %v3845 = vpop.trf.xlu0
  %v3846 = vpop.trf.xlu0
  %v3847 = vpop.trf.xlu0
  %v3848 = vpop.trf.xlu0
  %v3849 = vpop.trf.xlu0
  %v3850 = vpop.trf.xlu0
  %v3851 = vpop.trf.xlu0
  %3852 = vxpose.xlu0.c.b16.start [1/8] %v3661, 128
  %3853 = vxpose.xlu0.c.b16.cont [2/8] %v3663, 128
  %3854 = vxpose.xlu0.c.b16.cont [3/8] %v3665, 128
  %3855 = vxpose.xlu0.c.b16.cont [4/8] %v3667, 128
  %3856 = vxpose.xlu0.c.b16.cont [5/8] %v3669, 128
  %3857 = vxpose.xlu0.c.b16.cont [6/8] %v3671, 128
  %3858 = vxpose.xlu0.c.b16.cont [7/8] %v3673, 128
  %3859 = vxpose.xlu0.c.b16.end [8/8] %v3675, 128
  %v3860 = vpop.trf.xlu0
  %v3861 = vpop.trf.xlu0
  %v3862 = vpop.trf.xlu0
  %v3863 = vpop.trf.xlu0
  %v3864 = vpop.trf.xlu0
  %v3865 = vpop.trf.xlu0
  %v3866 = vpop.trf.xlu0
  %v3867 = vpop.trf.xlu0
  %3868 = vxpose.xlu0.c.b16.start [1/8] %v3677, 128
  %3869 = vxpose.xlu0.c.b16.cont [2/8] %v3679, 128
  %3870 = vxpose.xlu0.c.b16.cont [3/8] %v3681, 128
  %3871 = vxpose.xlu0.c.b16.cont [4/8] %v3683, 128
  %3872 = vxpose.xlu0.c.b16.cont [5/8] %v3685, 128
  %3873 = vxpose.xlu0.c.b16.cont [6/8] %v3687, 128
  %3874 = vxpose.xlu0.c.b16.cont [7/8] %v3689, 128
  %3875 = vxpose.xlu0.c.b16.end [8/8] %v3691, 128
  %v3876 = vpop.trf.xlu0
  %v3877 = vpop.trf.xlu0
  %v3878 = vpop.trf.xlu0
  %v3879 = vpop.trf.xlu0
  %v3880 = vpop.trf.xlu0
  %v3881 = vpop.trf.xlu0
  %v3882 = vpop.trf.xlu0
  %v3883 = vpop.trf.xlu0
  %3884 = vxpose.xlu0.c.b16.start [1/8] %v3693, 128
  %3885 = vxpose.xlu0.c.b16.cont [2/8] %v3695, 128
  %3886 = vxpose.xlu0.c.b16.cont [3/8] %v3697, 128
  %3887 = vxpose.xlu0.c.b16.cont [4/8] %v3699, 128
  %3888 = vxpose.xlu0.c.b16.cont [5/8] %v3701, 128
  %3889 = vxpose.xlu0.c.b16.cont [6/8] %v3703, 128
  %3890 = vxpose.xlu0.c.b16.cont [7/8] %v3705, 128
  %3891 = vxpose.xlu0.c.b16.end [8/8] %v3707, 128
  %v3892 = vpop.trf.xlu0
  %v3893 = vpop.trf.xlu0
  %v3894 = vpop.trf.xlu0
  %v3895 = vpop.trf.xlu0
  %v3896 = vpop.trf.xlu0
  %v3897 = vpop.trf.xlu0
  %v3898 = vpop.trf.xlu0
  %v3899 = vpop.trf.xlu0
  %3900 = vxpose.xlu0.c.b16.start [1/8] %v3709, 128
  %3901 = vxpose.xlu0.c.b16.cont [2/8] %v3711, 128
  %3902 = vxpose.xlu0.c.b16.cont [3/8] %v3713, 128
  %3903 = vxpose.xlu0.c.b16.cont [4/8] %v3715, 128
  %3904 = vxpose.xlu0.c.b16.cont [5/8] %v3717, 128
  %3905 = vxpose.xlu0.c.b16.cont [6/8] %v3719, 128
  %3906 = vxpose.xlu0.c.b16.cont [7/8] %v3721, 128
  %3907 = vxpose.xlu0.c.b16.end [8/8] %v3723, 128
  %v3908 = vpop.trf.xlu0
  %v3909 = vpop.trf.xlu0
  %v3910 = vpop.trf.xlu0
  %v3911 = vpop.trf.xlu0
  %v3912 = vpop.trf.xlu0
  %v3913 = vpop.trf.xlu0
  %v3914 = vpop.trf.xlu0
  %v3915 = vpop.trf.xlu0
  %3916 = vxpose.xlu0.c.b16.start [1/8] %v3725, 128
  %3917 = vxpose.xlu0.c.b16.cont [2/8] %v3727, 128
  %3918 = vxpose.xlu0.c.b16.cont [3/8] %v3729, 128
  %3919 = vxpose.xlu0.c.b16.cont [4/8] %v3731, 128
  %3920 = vxpose.xlu0.c.b16.cont [5/8] %v3733, 128
  %3921 = vxpose.xlu0.c.b16.cont [6/8] %v3735, 128
  %3922 = vxpose.xlu0.c.b16.cont [7/8] %v3737, 128
  %3923 = vxpose.xlu0.c.b16.end [8/8] %v3739, 128
  %v3924 = vpop.trf.xlu0
  %v3925 = vpop.trf.xlu0
  %v3926 = vpop.trf.xlu0
  %v3927 = vpop.trf.xlu0
  %v3928 = vpop.trf.xlu0
  %v3929 = vpop.trf.xlu0
  %v3930 = vpop.trf.xlu0
  %v3931 = vpop.trf.xlu0
  %3932 = vxpose.xlu0.c.b16.start [1/8] %v3741, 128
  %3933 = vxpose.xlu0.c.b16.cont [2/8] %v3743, 128
  %3934 = vxpose.xlu0.c.b16.cont [3/8] %v3745, 128
  %3935 = vxpose.xlu0.c.b16.cont [4/8] %v3747, 128
  %3936 = vxpose.xlu0.c.b16.cont [5/8] %v3749, 128
  %3937 = vxpose.xlu0.c.b16.cont [6/8] %v3751, 128
  %3938 = vxpose.xlu0.c.b16.cont [7/8] %v3753, 128
  %3939 = vxpose.xlu0.c.b16.end [8/8] %v3755, 128
  %v3940 = vpop.trf.xlu0
  %v3941 = vpop.trf.xlu0
  %v3942 = vpop.trf.xlu0
  %v3943 = vpop.trf.xlu0
  %v3944 = vpop.trf.xlu0
  %v3945 = vpop.trf.xlu0
  %v3946 = vpop.trf.xlu0
  %v3947 = vpop.trf.xlu0
  %3948 = vmatprep.subr.bf16.mxu0 %v3515
  %3949 = vmatpush1.bf16.xpose.msra.mxu0 %v3514
  %3950 = vmatprep.subr.bf16.mxu0 %v3513
  %3951 = vmatpush1.bf16.xpose.msra.mxu0 %v3512
  %3952 = vmatprep.subr.bf16.mxu0 %v3511
  %3953 = vmatpush1.bf16.xpose.msra.mxu0 %v3510
  %3954 = vmatprep.subr.bf16.mxu0 %v3509
  %3955 = vmatpush1.bf16.xpose.msra.mxu0 %v3508
  %3956 = vmatprep.subr.bf16.mxu0 %v3507
  %3957 = vmatpush1.bf16.xpose.msra.mxu0 %v3506
  %3958 = vmatprep.subr.bf16.mxu0 %v3505
  %3959 = vmatpush1.bf16.xpose.msra.mxu0 %v3504
  %3960 = vmatprep.subr.bf16.mxu0 %v3503
  %3961 = vmatpush1.bf16.xpose.msra.mxu0 %v3502
  %3962 = vmatprep.subr.bf16.mxu0 %v3501
  %3963 = vmatpush1.bf16.xpose.msra.mxu0 %v3500
  %3964 = vmatprep.subr.bf16.mxu0 %v3531
  %3965 = vmatpush2.bf16.xpose.msra.mxu0 %v3530
  %3966 = vmatprep.subr.bf16.mxu0 %v3529
  %3967 = vmatpush2.bf16.xpose.msra.mxu0 %v3528
  %3968 = vmatprep.subr.bf16.mxu0 %v3527
  %3969 = vmatpush2.bf16.xpose.msra.mxu0 %v3526
  %3970 = vmatprep.subr.bf16.mxu0 %v3525
  %3971 = vmatpush2.bf16.xpose.msra.mxu0 %v3524
  %3972 = vmatprep.subr.bf16.mxu0 %v3523
  %3973 = vmatpush2.bf16.xpose.msra.mxu0 %v3522
  %3974 = vmatprep.subr.bf16.mxu0 %v3521
  %3975 = vmatpush2.bf16.xpose.msra.mxu0 %v3520
  %3976 = vmatprep.subr.bf16.mxu0 %v3519
  %3977 = vmatpush2.bf16.xpose.msra.mxu0 %v3518
  %3978 = vmatprep.subr.bf16.mxu0 %v3517
  %3979 = vmatpush2.bf16.xpose.msra.mxu0 %v3516
  %3980 = vmatprep.mubr.bf16.mxu0 %v3844
  %3981 = vmatmul.mubr.bf16.gmra.mxu0 %v3828
  %v3982 = vpop.f32.mrf.mxu0
  %v3983 = vadd.f32 0.0, %v3982
  %v3984 = vpop.f32.mrf.mxu0
  %v3985 = vadd.f32 0.0, %v3984
  %v3986 = vpop.f32.mrf.mxu0
  %v3987 = vpop.f32.mrf.mxu0
  %3988 = vdwg.mxu0
  %3989 = vmatprep.subr.bf16.mxu0 %v3547
  %3990 = vmatpush1.bf16.xpose.msra.mxu0 %v3546
  %3991 = vmatprep.subr.bf16.mxu0 %v3545
  %3992 = vmatpush1.bf16.xpose.msra.mxu0 %v3544
  %3993 = vmatprep.subr.bf16.mxu0 %v3543
  %3994 = vmatpush1.bf16.xpose.msra.mxu0 %v3542
  %3995 = vmatprep.subr.bf16.mxu0 %v3541
  %3996 = vmatpush1.bf16.xpose.msra.mxu0 %v3540
  %3997 = vmatprep.subr.bf16.mxu0 %v3539
  %3998 = vmatpush1.bf16.xpose.msra.mxu0 %v3538
  %3999 = vmatprep.subr.bf16.mxu0 %v3537
  %4000 = vmatpush1.bf16.xpose.msra.mxu0 %v3536
  %4001 = vmatprep.subr.bf16.mxu0 %v3535
  %4002 = vmatpush1.bf16.xpose.msra.mxu0 %v3534
  %4003 = vmatprep.subr.bf16.mxu0 %v3533
  %4004 = vmatpush1.bf16.xpose.msra.mxu0 %v3532
  %4005 = vmatprep.subr.bf16.mxu0 %v3563
  %4006 = vmatpush2.bf16.xpose.msra.mxu0 %v3562
  %4007 = vmatprep.subr.bf16.mxu0 %v3561
  %4008 = vmatpush2.bf16.xpose.msra.mxu0 %v3560
  %4009 = vmatprep.subr.bf16.mxu0 %v3559
  %4010 = vmatpush2.bf16.xpose.msra.mxu0 %v3558
  %4011 = vmatprep.subr.bf16.mxu0 %v3557
  %4012 = vmatpush2.bf16.xpose.msra.mxu0 %v3556
  %4013 = vmatprep.subr.bf16.mxu0 %v3555
  %4014 = vmatpush2.bf16.xpose.msra.mxu0 %v3554
  %4015 = vmatprep.subr.bf16.mxu0 %v3553
  %4016 = vmatpush2.bf16.xpose.msra.mxu0 %v3552
  %4017 = vmatprep.subr.bf16.mxu0 %v3551
  %4018 = vmatpush2.bf16.xpose.msra.mxu0 %v3550
  %4019 = vmatprep.subr.bf16.mxu0 %v3549
  %4020 = vmatpush2.bf16.xpose.msra.mxu0 %v3548
  %4021 = vmatprep.mubr.bf16.mxu0 %v3876
  %4022 = vmatmul.mubr.bf16.gmra.mxu0 %v3860
  %v4023 = vpop.f32.mrf.mxu0
  %v4024 = vadd.f32 0.0, %v4023
  %v4025 = vpop.f32.mrf.mxu0
  %v4026 = vadd.f32 0.0, %v4025
  %v4027 = vpop.f32.mrf.mxu0
  %v4028 = vpop.f32.mrf.mxu0
  %4029 = vdwg.mxu0
  %4030 = vmatprep.subr.bf16.mxu0 %v3579
  %4031 = vmatpush1.bf16.xpose.msra.mxu0 %v3578
  %4032 = vmatprep.subr.bf16.mxu0 %v3577
  %4033 = vmatpush1.bf16.xpose.msra.mxu0 %v3576
  %4034 = vmatprep.subr.bf16.mxu0 %v3575
  %4035 = vmatpush1.bf16.xpose.msra.mxu0 %v3574
  %4036 = vmatprep.subr.bf16.mxu0 %v3573
  %4037 = vmatpush1.bf16.xpose.msra.mxu0 %v3572
  %4038 = vmatprep.subr.bf16.mxu0 %v3571
  %4039 = vmatpush1.bf16.xpose.msra.mxu0 %v3570
  %4040 = vmatprep.subr.bf16.mxu0 %v3569
  %4041 = vmatpush1.bf16.xpose.msra.mxu0 %v3568
  %4042 = vmatprep.subr.bf16.mxu0 %v3567
  %4043 = vmatpush1.bf16.xpose.msra.mxu0 %v3566
  %4044 = vmatprep.subr.bf16.mxu0 %v3565
  %4045 = vmatpush1.bf16.xpose.msra.mxu0 %v3564
  %4046 = vmatprep.subr.bf16.mxu0 %v3595
  %4047 = vmatpush2.bf16.xpose.msra.mxu0 %v3594
  %4048 = vmatprep.subr.bf16.mxu0 %v3593
  %4049 = vmatpush2.bf16.xpose.msra.mxu0 %v3592
  %4050 = vmatprep.subr.bf16.mxu0 %v3591
  %4051 = vmatpush2.bf16.xpose.msra.mxu0 %v3590
  %4052 = vmatprep.subr.bf16.mxu0 %v3589
  %4053 = vmatpush2.bf16.xpose.msra.mxu0 %v3588
  %4054 = vmatprep.subr.bf16.mxu0 %v3587
  %4055 = vmatpush2.bf16.xpose.msra.mxu0 %v3586
  %4056 = vmatprep.subr.bf16.mxu0 %v3585
  %4057 = vmatpush2.bf16.xpose.msra.mxu0 %v3584
  %4058 = vmatprep.subr.bf16.mxu0 %v3583
  %4059 = vmatpush2.bf16.xpose.msra.mxu0 %v3582
  %4060 = vmatprep.subr.bf16.mxu0 %v3581
  %4061 = vmatpush2.bf16.xpose.msra.mxu0 %v3580
  %4062 = vmatprep.mubr.bf16.mxu0 %v3908
  %4063 = vmatmul.mubr.bf16.gmra.mxu0 %v3892
  %v4064 = vpop.f32.mrf.mxu0
  %v4065 = vadd.f32 0.0, %v4064
  %v4066 = vpop.f32.mrf.mxu0
  %v4067 = vadd.f32 0.0, %v4066
  %v4068 = vpop.f32.mrf.mxu0
  %v4069 = vpop.f32.mrf.mxu0
  %4070 = vdwg.mxu0
  %4071 = vmatprep.subr.bf16.mxu0 %v3611
  %4072 = vmatpush1.bf16.xpose.msra.mxu0 %v3610
  %4073 = vmatprep.subr.bf16.mxu0 %v3609
  %4074 = vmatpush1.bf16.xpose.msra.mxu0 %v3608
  %4075 = vmatprep.subr.bf16.mxu0 %v3607
  %4076 = vmatpush1.bf16.xpose.msra.mxu0 %v3606
  %4077 = vmatprep.subr.bf16.mxu0 %v3605
  %4078 = vmatpush1.bf16.xpose.msra.mxu0 %v3604
  %4079 = vmatprep.subr.bf16.mxu0 %v3603
  %4080 = vmatpush1.bf16.xpose.msra.mxu0 %v3602
  %4081 = vmatprep.subr.bf16.mxu0 %v3601
  %4082 = vmatpush1.bf16.xpose.msra.mxu0 %v3600
  %4083 = vmatprep.subr.bf16.mxu0 %v3599
  %4084 = vmatpush1.bf16.xpose.msra.mxu0 %v3598
  %4085 = vmatprep.subr.bf16.mxu0 %v3597
  %4086 = vmatpush1.bf16.xpose.msra.mxu0 %v3596
  %4087 = vmatprep.subr.bf16.mxu0 %v3627
  %4088 = vmatpush2.bf16.xpose.msra.mxu0 %v3626
  %4089 = vmatprep.subr.bf16.mxu0 %v3625
  %4090 = vmatpush2.bf16.xpose.msra.mxu0 %v3624
  %4091 = vmatprep.subr.bf16.mxu0 %v3623
  %4092 = vmatpush2.bf16.xpose.msra.mxu0 %v3622
  %4093 = vmatprep.subr.bf16.mxu0 %v3621
  %4094 = vmatpush2.bf16.xpose.msra.mxu0 %v3620
  %4095 = vmatprep.subr.bf16.mxu0 %v3619
  %4096 = vmatpush2.bf16.xpose.msra.mxu0 %v3618
  %4097 = vmatprep.subr.bf16.mxu0 %v3617
  %4098 = vmatpush2.bf16.xpose.msra.mxu0 %v3616
  %4099 = vmatprep.subr.bf16.mxu0 %v3615
  %4100 = vmatpush2.bf16.xpose.msra.mxu0 %v3614
  %4101 = vmatprep.subr.bf16.mxu0 %v3613
  %4102 = vmatpush2.bf16.xpose.msra.mxu0 %v3612
  %4103 = vmatprep.mubr.bf16.mxu0 %v3940
  %4104 = vmatmul.mubr.bf16.gmra.mxu0 %v3924
  %v4105 = vpop.f32.mrf.mxu0
  %v4106 = vadd.f32 0.0, %v4105
  %v4107 = vpop.f32.mrf.mxu0
  %v4108 = vadd.f32 0.0, %v4107
  %v4109 = vpop.f32.mrf.mxu0
  %v4110 = vpop.f32.mrf.mxu0
  %4111 = vdwg.mxu0
  %4112 = vxpose.xlu0.b32.start [1/16] %v3983, 128
  %4113 = vxpose.xlu0.b32.cont [2/16] 0.0, 128
  %4114 = vxpose.xlu0.b32.cont [3/16] 0.0, 128
  %4115 = vxpose.xlu0.b32.cont [4/16] 0.0, 128
  %4116 = vxpose.xlu0.b32.cont [5/16] 0.0, 128
  %4117 = vxpose.xlu0.b32.cont [6/16] 0.0, 128
  %4118 = vxpose.xlu0.b32.cont [7/16] 0.0, 128
  %4119 = vxpose.xlu0.b32.cont [8/16] 0.0, 128
  %4120 = vxpose.xlu0.b32.cont [9/16] 0.0, 128
  %4121 = vxpose.xlu0.b32.cont [10/16] 0.0, 128
  %4122 = vxpose.xlu0.b32.cont [11/16] 0.0, 128
  %4123 = vxpose.xlu0.b32.cont [12/16] 0.0, 128
  %4124 = vxpose.xlu0.b32.cont [13/16] 0.0, 128
  %4125 = vxpose.xlu0.b32.cont [14/16] 0.0, 128
  %4126 = vxpose.xlu0.b32.cont [15/16] 0.0, 128
  %4127 = vxpose.xlu0.b32.end [16/16] 0.0, 128
  %v4128 = vpop.trf.xlu0
  %v4129 = vpop.trf.xlu0
  %v4130 = vpop.trf.xlu0
  %v4131 = vpop.trf.xlu0
  %v4132 = vpop.trf.xlu0
  %v4133 = vpop.trf.xlu0
  %v4134 = vpop.trf.xlu0
  %v4135 = vpop.trf.xlu0
  %v4136 = vpop.trf.xlu0
  %v4137 = vpop.trf.xlu0
  %v4138 = vpop.trf.xlu0
  %v4139 = vpop.trf.xlu0
  %v4140 = vpop.trf.xlu0
  %v4141 = vpop.trf.xlu0
  %v4142 = vpop.trf.xlu0
  %v4143 = vpop.trf.xlu0
  %4144 = vxpose.xlu0.b32.start [1/16] %v3985, 128
  %4145 = vxpose.xlu0.b32.cont [2/16] 0.0, 128
  %4146 = vxpose.xlu0.b32.cont [3/16] 0.0, 128
  %4147 = vxpose.xlu0.b32.cont [4/16] 0.0, 128
  %4148 = vxpose.xlu0.b32.cont [5/16] 0.0, 128
  %4149 = vxpose.xlu0.b32.cont [6/16] 0.0, 128
  %4150 = vxpose.xlu0.b32.cont [7/16] 0.0, 128
  %4151 = vxpose.xlu0.b32.cont [8/16] 0.0, 128
  %4152 = vxpose.xlu0.b32.cont [9/16] 0.0, 128
  %4153 = vxpose.xlu0.b32.cont [10/16] 0.0, 128
  %4154 = vxpose.xlu0.b32.cont [11/16] 0.0, 128
  %4155 = vxpose.xlu0.b32.cont [12/16] 0.0, 128
  %4156 = vxpose.xlu0.b32.cont [13/16] 0.0, 128
  %4157 = vxpose.xlu0.b32.cont [14/16] 0.0, 128
  %4158 = vxpose.xlu0.b32.cont [15/16] 0.0, 128
  %4159 = vxpose.xlu0.b32.end [16/16] 0.0, 128
  %v4160 = vpop.trf.xlu0
  %v4161 = vpop.trf.xlu0
  %v4162 = vpop.trf.xlu0
  %v4163 = vpop.trf.xlu0
  %v4164 = vpop.trf.xlu0
  %v4165 = vpop.trf.xlu0
  %v4166 = vpop.trf.xlu0
  %v4167 = vpop.trf.xlu0
  %v4168 = vpop.trf.xlu0
  %v4169 = vpop.trf.xlu0
  %v4170 = vpop.trf.xlu0
  %v4171 = vpop.trf.xlu0
  %v4172 = vpop.trf.xlu0
  %v4173 = vpop.trf.xlu0
  %v4174 = vpop.trf.xlu0
  %v4175 = vpop.trf.xlu0
  %4176 = vxpose.xlu0.b32.start [1/16] %v4024, 128
  %4177 = vxpose.xlu0.b32.cont [2/16] 0.0, 128
  %4178 = vxpose.xlu0.b32.cont [3/16] 0.0, 128
  %4179 = vxpose.xlu0.b32.cont [4/16] 0.0, 128
  %4180 = vxpose.xlu0.b32.cont [5/16] 0.0, 128
  %4181 = vxpose.xlu0.b32.cont [6/16] 0.0, 128
  %4182 = vxpose.xlu0.b32.cont [7/16] 0.0, 128
  %4183 = vxpose.xlu0.b32.cont [8/16] 0.0, 128
  %4184 = vxpose.xlu0.b32.cont [9/16] 0.0, 128
  %4185 = vxpose.xlu0.b32.cont [10/16] 0.0, 128
  %4186 = vxpose.xlu0.b32.cont [11/16] 0.0, 128
  %4187 = vxpose.xlu0.b32.cont [12/16] 0.0, 128
  %4188 = vxpose.xlu0.b32.cont [13/16] 0.0, 128
  %4189 = vxpose.xlu0.b32.cont [14/16] 0.0, 128
  %4190 = vxpose.xlu0.b32.cont [15/16] 0.0, 128
  %4191 = vxpose.xlu0.b32.end [16/16] 0.0, 128
  %v4192 = vpop.trf.xlu0
  %v4193 = vpop.trf.xlu0
  %v4194 = vpop.trf.xlu0
  %v4195 = vpop.trf.xlu0
  %v4196 = vpop.trf.xlu0
  %v4197 = vpop.trf.xlu0
  %v4198 = vpop.trf.xlu0
  %v4199 = vpop.trf.xlu0
  %v4200 = vpop.trf.xlu0
  %v4201 = vpop.trf.xlu0
  %v4202 = vpop.trf.xlu0
  %v4203 = vpop.trf.xlu0
  %v4204 = vpop.trf.xlu0
  %v4205 = vpop.trf.xlu0
  %v4206 = vpop.trf.xlu0
  %v4207 = vpop.trf.xlu0
  %4208 = vxpose.xlu0.b32.start [1/16] %v4026, 128
  %4209 = vxpose.xlu0.b32.cont [2/16] 0.0, 128
  %4210 = vxpose.xlu0.b32.cont [3/16] 0.0, 128
  %4211 = vxpose.xlu0.b32.cont [4/16] 0.0, 128
  %4212 = vxpose.xlu0.b32.cont [5/16] 0.0, 128
  %4213 = vxpose.xlu0.b32.cont [6/16] 0.0, 128
  %4214 = vxpose.xlu0.b32.cont [7/16] 0.0, 128
  %4215 = vxpose.xlu0.b32.cont [8/16] 0.0, 128
  %4216 = vxpose.xlu0.b32.cont [9/16] 0.0, 128
  %4217 = vxpose.xlu0.b32.cont [10/16] 0.0, 128
  %4218 = vxpose.xlu0.b32.cont [11/16] 0.0, 128
  %4219 = vxpose.xlu0.b32.cont [12/16] 0.0, 128
  %4220 = vxpose.xlu0.b32.cont [13/16] 0.0, 128
  %4221 = vxpose.xlu0.b32.cont [14/16] 0.0, 128
  %4222 = vxpose.xlu0.b32.cont [15/16] 0.0, 128
  %4223 = vxpose.xlu0.b32.end [16/16] 0.0, 128
  %v4224 = vpop.trf.xlu0
  %v4225 = vpop.trf.xlu0
  %v4226 = vpop.trf.xlu0
  %v4227 = vpop.trf.xlu0
  %v4228 = vpop.trf.xlu0
  %v4229 = vpop.trf.xlu0
  %v4230 = vpop.trf.xlu0
  %v4231 = vpop.trf.xlu0
  %v4232 = vpop.trf.xlu0
  %v4233 = vpop.trf.xlu0
  %v4234 = vpop.trf.xlu0
  %v4235 = vpop.trf.xlu0
  %v4236 = vpop.trf.xlu0
  %v4237 = vpop.trf.xlu0
  %v4238 = vpop.trf.xlu0
  %v4239 = vpop.trf.xlu0
  %4240 = vxpose.xlu0.b32.start [1/16] %v4065, 128
  %4241 = vxpose.xlu0.b32.cont [2/16] 0.0, 128
  %4242 = vxpose.xlu0.b32.cont [3/16] 0.0, 128
  %4243 = vxpose.xlu0.b32.cont [4/16] 0.0, 128
  %4244 = vxpose.xlu0.b32.cont [5/16] 0.0, 128
  %4245 = vxpose.xlu0.b32.cont [6/16] 0.0, 128
  %4246 = vxpose.xlu0.b32.cont [7/16] 0.0, 128
  %4247 = vxpose.xlu0.b32.cont [8/16] 0.0, 128
  %4248 = vxpose.xlu0.b32.cont [9/16] 0.0, 128
  %4249 = vxpose.xlu0.b32.cont [10/16] 0.0, 128
  %4250 = vxpose.xlu0.b32.cont [11/16] 0.0, 128
  %4251 = vxpose.xlu0.b32.cont [12/16] 0.0, 128
  %4252 = vxpose.xlu0.b32.cont [13/16] 0.0, 128
  %4253 = vxpose.xlu0.b32.cont [14/16] 0.0, 128
  %4254 = vxpose.xlu0.b32.cont [15/16] 0.0, 128
  %4255 = vxpose.xlu0.b32.end [16/16] 0.0, 128
  %v4256 = vpop.trf.xlu0
  %v4257 = vpop.trf.xlu0
  %v4258 = vpop.trf.xlu0
  %v4259 = vpop.trf.xlu0
  %v4260 = vpop.trf.xlu0
  %v4261 = vpop.trf.xlu0
  %v4262 = vpop.trf.xlu0
  %v4263 = vpop.trf.xlu0
  %v4264 = vpop.trf.xlu0
  %v4265 = vpop.trf.xlu0
  %v4266 = vpop.trf.xlu0
  %v4267 = vpop.trf.xlu0
  %v4268 = vpop.trf.xlu0
  %v4269 = vpop.trf.xlu0
  %v4270 = vpop.trf.xlu0
  %v4271 = vpop.trf.xlu0
  %4272 = vxpose.xlu0.b32.start [1/16] %v4067, 128
  %4273 = vxpose.xlu0.b32.cont [2/16] 0.0, 128
  %4274 = vxpose.xlu0.b32.cont [3/16] 0.0, 128
  %4275 = vxpose.xlu0.b32.cont [4/16] 0.0, 128
  %4276 = vxpose.xlu0.b32.cont [5/16] 0.0, 128
  %4277 = vxpose.xlu0.b32.cont [6/16] 0.0, 128
  %4278 = vxpose.xlu0.b32.cont [7/16] 0.0, 128
  %4279 = vxpose.xlu0.b32.cont [8/16] 0.0, 128
  %4280 = vxpose.xlu0.b32.cont [9/16] 0.0, 128
  %4281 = vxpose.xlu0.b32.cont [10/16] 0.0, 128
  %4282 = vxpose.xlu0.b32.cont [11/16] 0.0, 128
  %4283 = vxpose.xlu0.b32.cont [12/16] 0.0, 128
  %4284 = vxpose.xlu0.b32.cont [13/16] 0.0, 128
  %4285 = vxpose.xlu0.b32.cont [14/16] 0.0, 128
  %4286 = vxpose.xlu0.b32.cont [15/16] 0.0, 128
  %4287 = vxpose.xlu0.b32.end [16/16] 0.0, 128
  %v4288 = vpop.trf.xlu0
  %v4289 = vpop.trf.xlu0
  %v4290 = vpop.trf.xlu0
  %v4291 = vpop.trf.xlu0
  %v4292 = vpop.trf.xlu0
  %v4293 = vpop.trf.xlu0
  %v4294 = vpop.trf.xlu0
  %v4295 = vpop.trf.xlu0
  %v4296 = vpop.trf.xlu0
  %v4297 = vpop.trf.xlu0
  %v4298 = vpop.trf.xlu0
  %v4299 = vpop.trf.xlu0
  %v4300 = vpop.trf.xlu0
  %v4301 = vpop.trf.xlu0
  %v4302 = vpop.trf.xlu0
  %v4303 = vpop.trf.xlu0
  %4304 = vxpose.xlu0.b32.start [1/16] %v4106, 128
  %4305 = vxpose.xlu0.b32.cont [2/16] 0.0, 128
  %4306 = vxpose.xlu0.b32.cont [3/16] 0.0, 128
  %4307 = vxpose.xlu0.b32.cont [4/16] 0.0, 128
  %4308 = vxpose.xlu0.b32.cont [5/16] 0.0, 128
  %4309 = vxpose.xlu0.b32.cont [6/16] 0.0, 128
  %4310 = vxpose.xlu0.b32.cont [7/16] 0.0, 128
  %4311 = vxpose.xlu0.b32.cont [8/16] 0.0, 128
  %4312 = vxpose.xlu0.b32.cont [9/16] 0.0, 128
  %4313 = vxpose.xlu0.b32.cont [10/16] 0.0, 128
  %4314 = vxpose.xlu0.b32.cont [11/16] 0.0, 128
  %4315 = vxpose.xlu0.b32.cont [12/16] 0.0, 128
  %4316 = vxpose.xlu0.b32.cont [13/16] 0.0, 128
  %4317 = vxpose.xlu0.b32.cont [14/16] 0.0, 128
  %4318 = vxpose.xlu0.b32.cont [15/16] 0.0, 128
  %4319 = vxpose.xlu0.b32.end [16/16] 0.0, 128
  %v4320 = vpop.trf.xlu0
  %v4321 = vpop.trf.xlu0
  %v4322 = vpop.trf.xlu0
  %v4323 = vpop.trf.xlu0
  %v4324 = vpop.trf.xlu0
  %v4325 = vpop.trf.xlu0
  %v4326 = vpop.trf.xlu0
  %v4327 = vpop.trf.xlu0
  %v4328 = vpop.trf.xlu0
  %v4329 = vpop.trf.xlu0
  %v4330 = vpop.trf.xlu0
  %v4331 = vpop.trf.xlu0
  %v4332 = vpop.trf.xlu0
  %v4333 = vpop.trf.xlu0
  %v4334 = vpop.trf.xlu0
  %v4335 = vpop.trf.xlu0
  %4336 = vxpose.xlu0.b32.start [1/16] %v4108, 128
  %4337 = vxpose.xlu0.b32.cont [2/16] 0.0, 128
  %4338 = vxpose.xlu0.b32.cont [3/16] 0.0, 128
  %4339 = vxpose.xlu0.b32.cont [4/16] 0.0, 128
  %4340 = vxpose.xlu0.b32.cont [5/16] 0.0, 128
  %4341 = vxpose.xlu0.b32.cont [6/16] 0.0, 128
  %4342 = vxpose.xlu0.b32.cont [7/16] 0.0, 128
  %4343 = vxpose.xlu0.b32.cont [8/16] 0.0, 128
  %4344 = vxpose.xlu0.b32.cont [9/16] 0.0, 128
  %4345 = vxpose.xlu0.b32.cont [10/16] 0.0, 128
  %4346 = vxpose.xlu0.b32.cont [11/16] 0.0, 128
  %4347 = vxpose.xlu0.b32.cont [12/16] 0.0, 128
  %4348 = vxpose.xlu0.b32.cont [13/16] 0.0, 128
  %4349 = vxpose.xlu0.b32.cont [14/16] 0.0, 128
  %4350 = vxpose.xlu0.b32.cont [15/16] 0.0, 128
  %4351 = vxpose.xlu0.b32.end [16/16] 0.0, 128
  %v4352 = vpop.trf.xlu0
  %v4353 = vpop.trf.xlu0
  %v4354 = vpop.trf.xlu0
  %v4355 = vpop.trf.xlu0
  %v4356 = vpop.trf.xlu0
  %v4357 = vpop.trf.xlu0
  %v4358 = vpop.trf.xlu0
  %v4359 = vpop.trf.xlu0
  %v4360 = vpop.trf.xlu0
  %v4361 = vpop.trf.xlu0
  %v4362 = vpop.trf.xlu0
  %v4363 = vpop.trf.xlu0
  %v4364 = vpop.trf.xlu0
  %v4365 = vpop.trf.xlu0
  %v4366 = vpop.trf.xlu0
  %v4367 = vpop.trf.xlu0
  %v4368 = vcombine.low %v4128, %v4256
  %v4369 = vcombine.high %v4128, %v4256
  %v4371 = vunpack.c.l.s4 1983009808
  %v4372 = vunpack.c.0.s8 %v4371
  %v4373 = vlaneseq
  %v4374 = vshrl.u32 %v4373, 7
  %v4375 = vsub.s32 %v4372, %v4374
  %v4376 = vrot.slane %v4368, %v4375
  %v4378 = vunpack.c.l.s4 1983009808
  %v4379 = vunpack.c.0.s8 %v4378
  %v4380 = vlaneseq
  %v4381 = vshrl.u32 %v4380, 7
  %v4382 = vsub.s32 %v4379, %v4381
  %v4383 = vrot.slane %v4369, %v4382
  %v4384 = vcombine.low %v4192, %v4320
  %v4385 = vcombine.high %v4192, %v4320
  %v4387 = vunpack.c.l.s4 1983009808
  %v4388 = vunpack.c.0.s8 %v4387
  %v4389 = vlaneseq
  %v4390 = vshrl.u32 %v4389, 7
  %v4391 = vsub.s32 %v4388, %v4390
  %v4392 = vrot.slane %v4384, %v4391
  %v4394 = vunpack.c.l.s4 1983009808
  %v4395 = vunpack.c.0.s8 %v4394
  %v4396 = vlaneseq
  %v4397 = vshrl.u32 %v4396, 7
  %v4398 = vsub.s32 %v4395, %v4397
  %v4399 = vrot.slane %v4385, %v4398
  %v4400 = vcombine.low %v4376, %v4392
  %v4401 = vcombine.high %v4376, %v4392
  %v4403 = vunpack.c.l.s4 1934713408
  %v4404 = vunpack.c.0.s8 %v4403
  %v4405 = vlaneseq
  %v4406 = vshrl.u32 %v4405, 7
  %v4407 = vsub.s32 %v4404, %v4406
  %v4408 = vrot.slane %v4400, %v4407
  %v4410 = vunpack.c.l.s4 1934713408
  %v4411 = vunpack.c.0.s8 %v4410
  %v4412 = vlaneseq
  %v4413 = vshrl.u32 %v4412, 7
  %v4414 = vsub.s32 %v4411, %v4413
  %v4415 = vrot.slane %v4401, %v4414
  %v4416 = vcombine.low %v4383, %v4399
  %v4417 = vcombine.high %v4383, %v4399
  %v4419 = vunpack.c.l.s4 1934713408
  %v4420 = vunpack.c.0.s8 %v4419
  %v4421 = vlaneseq
  %v4422 = vshrl.u32 %v4421, 7
  %v4423 = vsub.s32 %v4420, %v4422
  %v4424 = vrot.slane %v4416, %v4423
  %v4426 = vunpack.c.l.s4 1934713408
  %v4427 = vunpack.c.0.s8 %v4426
  %v4428 = vlaneseq
  %v4429 = vshrl.u32 %v4428, 7
  %v4430 = vsub.s32 %v4427, %v4429
  %v4431 = vrot.slane %v4417, %v4430
  %v4432 = vcombine.high %v4408, 0.0
  %v4433 = vcombine.high %v4415, 0.0
  %v4434 = vcombine.high %v4424, 0.0
  %v4435 = vcombine.high %v4431, 0.0
  %v4436 = vcombine.low %v4129, %v4257
  %v4437 = vcombine.high %v4129, %v4257
  %v4439 = vunpack.c.l.s4 1983009808
  %v4440 = vunpack.c.0.s8 %v4439
  %v4441 = vlaneseq
  %v4442 = vshrl.u32 %v4441, 7
  %v4443 = vsub.s32 %v4440, %v4442
  %v4444 = vrot.slane %v4436, %v4443
  %v4446 = vunpack.c.l.s4 1983009808
  %v4447 = vunpack.c.0.s8 %v4446
  %v4448 = vlaneseq
  %v4449 = vshrl.u32 %v4448, 7
  %v4450 = vsub.s32 %v4447, %v4449
  %v4451 = vrot.slane %v4437, %v4450
  %v4452 = vcombine.low %v4193, %v4321
  %v4453 = vcombine.high %v4193, %v4321
  %v4455 = vunpack.c.l.s4 1983009808
  %v4456 = vunpack.c.0.s8 %v4455
  %v4457 = vlaneseq
  %v4458 = vshrl.u32 %v4457, 7
  %v4459 = vsub.s32 %v4456, %v4458
  %v4460 = vrot.slane %v4452, %v4459
  %v4462 = vunpack.c.l.s4 1983009808
  %v4463 = vunpack.c.0.s8 %v4462
  %v4464 = vlaneseq
  %v4465 = vshrl.u32 %v4464, 7
  %v4466 = vsub.s32 %v4463, %v4465
  %v4467 = vrot.slane %v4453, %v4466
  %v4468 = vcombine.low %v4444, %v4460
  %v4469 = vcombine.high %v4444, %v4460
  %v4471 = vunpack.c.l.s4 1934713408
  %v4472 = vunpack.c.0.s8 %v4471
  %v4473 = vlaneseq
  %v4474 = vshrl.u32 %v4473, 7
  %v4475 = vsub.s32 %v4472, %v4474
  %v4476 = vrot.slane %v4468, %v4475
  %v4478 = vunpack.c.l.s4 1934713408
  %v4479 = vunpack.c.0.s8 %v4478
  %v4480 = vlaneseq
  %v4481 = vshrl.u32 %v4480, 7
  %v4482 = vsub.s32 %v4479, %v4481
  %v4483 = vrot.slane %v4469, %v4482
  %v4484 = vcombine.low %v4451, %v4467
  %v4485 = vcombine.high %v4451, %v4467
  %v4487 = vunpack.c.l.s4 1934713408
  %v4488 = vunpack.c.0.s8 %v4487
  %v4489 = vlaneseq
  %v4490 = vshrl.u32 %v4489, 7
  %v4491 = vsub.s32 %v4488, %v4490
  %v4492 = vrot.slane %v4484, %v4491
  %v4494 = vunpack.c.l.s4 1934713408
  %v4495 = vunpack.c.0.s8 %v4494
  %v4496 = vlaneseq
  %v4497 = vshrl.u32 %v4496, 7
  %v4498 = vsub.s32 %v4495, %v4497
  %v4499 = vrot.slane %v4485, %v4498
  %v4500 = vcombine.high %v4476, 0.0
  %v4501 = vcombine.high %v4483, 0.0
  %v4502 = vcombine.high %v4492, 0.0
  %v4503 = vcombine.high %v4499, 0.0
  %v4504 = vcombine.low %v4130, %v4258
  %v4505 = vcombine.high %v4130, %v4258
  %v4507 = vunpack.c.l.s4 1983009808
  %v4508 = vunpack.c.0.s8 %v4507
  %v4509 = vlaneseq
  %v4510 = vshrl.u32 %v4509, 7
  %v4511 = vsub.s32 %v4508, %v4510
  %v4512 = vrot.slane %v4504, %v4511
  %v4514 = vunpack.c.l.s4 1983009808
  %v4515 = vunpack.c.0.s8 %v4514
  %v4516 = vlaneseq
  %v4517 = vshrl.u32 %v4516, 7
  %v4518 = vsub.s32 %v4515, %v4517
  %v4519 = vrot.slane %v4505, %v4518
  %v4520 = vcombine.low %v4194, %v4322
  %v4521 = vcombine.high %v4194, %v4322
  %v4523 = vunpack.c.l.s4 1983009808
  %v4524 = vunpack.c.0.s8 %v4523
  %v4525 = vlaneseq
  %v4526 = vshrl.u32 %v4525, 7
  %v4527 = vsub.s32 %v4524, %v4526
  %v4528 = vrot.slane %v4520, %v4527
  %v4530 = vunpack.c.l.s4 1983009808
  %v4531 = vunpack.c.0.s8 %v4530
  %v4532 = vlaneseq
  %v4533 = vshrl.u32 %v4532, 7
  %v4534 = vsub.s32 %v4531, %v4533
  %v4535 = vrot.slane %v4521, %v4534
  %v4536 = vcombine.low %v4512, %v4528
  %v4537 = vcombine.high %v4512, %v4528
  %v4539 = vunpack.c.l.s4 1934713408
  %v4540 = vunpack.c.0.s8 %v4539
  %v4541 = vlaneseq
  %v4542 = vshrl.u32 %v4541, 7
  %v4543 = vsub.s32 %v4540, %v4542
  %v4544 = vrot.slane %v4536, %v4543
  %v4546 = vunpack.c.l.s4 1934713408
  %v4547 = vunpack.c.0.s8 %v4546
  %v4548 = vlaneseq
  %v4549 = vshrl.u32 %v4548, 7
  %v4550 = vsub.s32 %v4547, %v4549
  %v4551 = vrot.slane %v4537, %v4550
  %v4552 = vcombine.low %v4519, %v4535
  %v4553 = vcombine.high %v4519, %v4535
  %v4555 = vunpack.c.l.s4 1934713408
  %v4556 = vunpack.c.0.s8 %v4555
  %v4557 = vlaneseq
  %v4558 = vshrl.u32 %v4557, 7
  %v4559 = vsub.s32 %v4556, %v4558
  %v4560 = vrot.slane %v4552, %v4559
  %v4562 = vunpack.c.l.s4 1934713408
  %v4563 = vunpack.c.0.s8 %v4562
  %v4564 = vlaneseq
  %v4565 = vshrl.u32 %v4564, 7
  %v4566 = vsub.s32 %v4563, %v4565
  %v4567 = vrot.slane %v4553, %v4566
  %v4568 = vcombine.high %v4544, 0.0
  %v4569 = vcombine.high %v4551, 0.0
  %v4570 = vcombine.high %v4560, 0.0
  %v4571 = vcombine.high %v4567, 0.0
  %v4572 = vcombine.low %v4131, %v4259
  %v4573 = vcombine.high %v4131, %v4259
  %v4575 = vunpack.c.l.s4 1983009808
  %v4576 = vunpack.c.0.s8 %v4575
  %v4577 = vlaneseq
  %v4578 = vshrl.u32 %v4577, 7
  %v4579 = vsub.s32 %v4576, %v4578
  %v4580 = vrot.slane %v4572, %v4579
  %v4582 = vunpack.c.l.s4 1983009808
  %v4583 = vunpack.c.0.s8 %v4582
  %v4584 = vlaneseq
  %v4585 = vshrl.u32 %v4584, 7
  %v4586 = vsub.s32 %v4583, %v4585
  %v4587 = vrot.slane %v4573, %v4586
  %v4588 = vcombine.low %v4195, %v4323
  %v4589 = vcombine.high %v4195, %v4323
  %v4591 = vunpack.c.l.s4 1983009808
  %v4592 = vunpack.c.0.s8 %v4591
  %v4593 = vlaneseq
  %v4594 = vshrl.u32 %v4593, 7
  %v4595 = vsub.s32 %v4592, %v4594
  %v4596 = vrot.slane %v4588, %v4595
  %v4598 = vunpack.c.l.s4 1983009808
  %v4599 = vunpack.c.0.s8 %v4598
  %v4600 = vlaneseq
  %v4601 = vshrl.u32 %v4600, 7
  %v4602 = vsub.s32 %v4599, %v4601
  %v4603 = vrot.slane %v4589, %v4602
  %v4604 = vcombine.low %v4580, %v4596
  %v4605 = vcombine.high %v4580, %v4596
  %v4607 = vunpack.c.l.s4 1934713408
  %v4608 = vunpack.c.0.s8 %v4607
  %v4609 = vlaneseq
  %v4610 = vshrl.u32 %v4609, 7
  %v4611 = vsub.s32 %v4608, %v4610
  %v4612 = vrot.slane %v4604, %v4611
  %v4614 = vunpack.c.l.s4 1934713408
  %v4615 = vunpack.c.0.s8 %v4614
  %v4616 = vlaneseq
  %v4617 = vshrl.u32 %v4616, 7
  %v4618 = vsub.s32 %v4615, %v4617
  %v4619 = vrot.slane %v4605, %v4618
  %v4620 = vcombine.low %v4587, %v4603
  %v4621 = vcombine.high %v4587, %v4603
  %v4623 = vunpack.c.l.s4 1934713408
  %v4624 = vunpack.c.0.s8 %v4623
  %v4625 = vlaneseq
  %v4626 = vshrl.u32 %v4625, 7
  %v4627 = vsub.s32 %v4624, %v4626
  %v4628 = vrot.slane %v4620, %v4627
  %v4630 = vunpack.c.l.s4 1934713408
  %v4631 = vunpack.c.0.s8 %v4630
  %v4632 = vlaneseq
  %v4633 = vshrl.u32 %v4632, 7
  %v4634 = vsub.s32 %v4631, %v4633
  %v4635 = vrot.slane %v4621, %v4634
  %v4636 = vcombine.high %v4612, 0.0
  %v4637 = vcombine.high %v4619, 0.0
  %v4638 = vcombine.high %v4628, 0.0
  %v4639 = vcombine.high %v4635, 0.0
  %v4640 = vcombine.low %v4132, %v4260
  %v4641 = vcombine.high %v4132, %v4260
  %v4643 = vunpack.c.l.s4 1983009808
  %v4644 = vunpack.c.0.s8 %v4643
  %v4645 = vlaneseq
  %v4646 = vshrl.u32 %v4645, 7
  %v4647 = vsub.s32 %v4644, %v4646
  %v4648 = vrot.slane %v4640, %v4647
  %v4650 = vunpack.c.l.s4 1983009808
  %v4651 = vunpack.c.0.s8 %v4650
  %v4652 = vlaneseq
  %v4653 = vshrl.u32 %v4652, 7
  %v4654 = vsub.s32 %v4651, %v4653
  %v4655 = vrot.slane %v4641, %v4654
  %v4656 = vcombine.low %v4196, %v4324
  %v4657 = vcombine.high %v4196, %v4324
  %v4659 = vunpack.c.l.s4 1983009808
  %v4660 = vunpack.c.0.s8 %v4659
  %v4661 = vlaneseq
  %v4662 = vshrl.u32 %v4661, 7
  %v4663 = vsub.s32 %v4660, %v4662
  %v4664 = vrot.slane %v4656, %v4663
  %v4666 = vunpack.c.l.s4 1983009808
  %v4667 = vunpack.c.0.s8 %v4666
  %v4668 = vlaneseq
  %v4669 = vshrl.u32 %v4668, 7
  %v4670 = vsub.s32 %v4667, %v4669
  %v4671 = vrot.slane %v4657, %v4670
  %v4672 = vcombine.low %v4648, %v4664
  %v4673 = vcombine.high %v4648, %v4664
  %v4675 = vunpack.c.l.s4 1934713408
  %v4676 = vunpack.c.0.s8 %v4675
  %v4677 = vlaneseq
  %v4678 = vshrl.u32 %v4677, 7
  %v4679 = vsub.s32 %v4676, %v4678
  %v4680 = vrot.slane %v4672, %v4679
  %v4682 = vunpack.c.l.s4 1934713408
  %v4683 = vunpack.c.0.s8 %v4682
  %v4684 = vlaneseq
  %v4685 = vshrl.u32 %v4684, 7
  %v4686 = vsub.s32 %v4683, %v4685
  %v4687 = vrot.slane %v4673, %v4686
  %v4688 = vcombine.low %v4655, %v4671
  %v4689 = vcombine.high %v4655, %v4671
  %v4691 = vunpack.c.l.s4 1934713408
  %v4692 = vunpack.c.0.s8 %v4691
  %v4693 = vlaneseq
  %v4694 = vshrl.u32 %v4693, 7
  %v4695 = vsub.s32 %v4692, %v4694
  %v4696 = vrot.slane %v4688, %v4695
  %v4698 = vunpack.c.l.s4 1934713408
  %v4699 = vunpack.c.0.s8 %v4698
  %v4700 = vlaneseq
  %v4701 = vshrl.u32 %v4700, 7
  %v4702 = vsub.s32 %v4699, %v4701
  %v4703 = vrot.slane %v4689, %v4702
  %v4704 = vcombine.high %v4680, 0.0
  %v4705 = vcombine.high %v4687, 0.0
  %v4706 = vcombine.high %v4696, 0.0
  %v4707 = vcombine.high %v4703, 0.0
  %v4708 = vcombine.low %v4133, %v4261
  %v4709 = vcombine.high %v4133, %v4261
  %v4711 = vunpack.c.l.s4 1983009808
  %v4712 = vunpack.c.0.s8 %v4711
  %v4713 = vlaneseq
  %v4714 = vshrl.u32 %v4713, 7
  %v4715 = vsub.s32 %v4712, %v4714
  %v4716 = vrot.slane %v4708, %v4715
  %v4718 = vunpack.c.l.s4 1983009808
  %v4719 = vunpack.c.0.s8 %v4718
  %v4720 = vlaneseq
  %v4721 = vshrl.u32 %v4720, 7
  %v4722 = vsub.s32 %v4719, %v4721
  %v4723 = vrot.slane %v4709, %v4722
  %v4724 = vcombine.low %v4197, %v4325
  %v4725 = vcombine.high %v4197, %v4325
  %v4727 = vunpack.c.l.s4 1983009808
  %v4728 = vunpack.c.0.s8 %v4727
  %v4729 = vlaneseq
  %v4730 = vshrl.u32 %v4729, 7
  %v4731 = vsub.s32 %v4728, %v4730
  %v4732 = vrot.slane %v4724, %v4731
  %v4734 = vunpack.c.l.s4 1983009808
  %v4735 = vunpack.c.0.s8 %v4734
  %v4736 = vlaneseq
  %v4737 = vshrl.u32 %v4736, 7
  %v4738 = vsub.s32 %v4735, %v4737
  %v4739 = vrot.slane %v4725, %v4738
  %v4740 = vcombine.low %v4716, %v4732
  %v4741 = vcombine.high %v4716, %v4732
  %v4743 = vunpack.c.l.s4 1934713408
  %v4744 = vunpack.c.0.s8 %v4743
  %v4745 = vlaneseq
  %v4746 = vshrl.u32 %v4745, 7
  %v4747 = vsub.s32 %v4744, %v4746
  %v4748 = vrot.slane %v4740, %v4747
  %v4750 = vunpack.c.l.s4 1934713408
  %v4751 = vunpack.c.0.s8 %v4750
  %v4752 = vlaneseq
  %v4753 = vshrl.u32 %v4752, 7
  %v4754 = vsub.s32 %v4751, %v4753
  %v4755 = vrot.slane %v4741, %v4754
  %v4756 = vcombine.low %v4723, %v4739
  %v4757 = vcombine.high %v4723, %v4739
  %v4759 = vunpack.c.l.s4 1934713408
  %v4760 = vunpack.c.0.s8 %v4759
  %v4761 = vlaneseq
  %v4762 = vshrl.u32 %v4761, 7
  %v4763 = vsub.s32 %v4760, %v4762
  %v4764 = vrot.slane %v4756, %v4763
  %v4766 = vunpack.c.l.s4 1934713408
  %v4767 = vunpack.c.0.s8 %v4766
  %v4768 = vlaneseq
  %v4769 = vshrl.u32 %v4768, 7
  %v4770 = vsub.s32 %v4767, %v4769
  %v4771 = vrot.slane %v4757, %v4770
  %v4772 = vcombine.high %v4748, 0.0
  %v4773 = vcombine.high %v4755, 0.0
  %v4774 = vcombine.high %v4764, 0.0
  %v4775 = vcombine.high %v4771, 0.0
  %v4776 = vcombine.low %v4134, %v4262
  %v4777 = vcombine.high %v4134, %v4262
  %v4779 = vunpack.c.l.s4 1983009808
  %v4780 = vunpack.c.0.s8 %v4779
  %v4781 = vlaneseq
  %v4782 = vshrl.u32 %v4781, 7
  %v4783 = vsub.s32 %v4780, %v4782
  %v4784 = vrot.slane %v4776, %v4783
  %v4786 = vunpack.c.l.s4 1983009808
  %v4787 = vunpack.c.0.s8 %v4786
  %v4788 = vlaneseq
  %v4789 = vshrl.u32 %v4788, 7
  %v4790 = vsub.s32 %v4787, %v4789
  %v4791 = vrot.slane %v4777, %v4790
  %v4792 = vcombine.low %v4198, %v4326
  %v4793 = vcombine.high %v4198, %v4326
  %v4795 = vunpack.c.l.s4 1983009808
  %v4796 = vunpack.c.0.s8 %v4795
  %v4797 = vlaneseq
  %v4798 = vshrl.u32 %v4797, 7
  %v4799 = vsub.s32 %v4796, %v4798
  %v4800 = vrot.slane %v4792, %v4799
  %v4802 = vunpack.c.l.s4 1983009808
  %v4803 = vunpack.c.0.s8 %v4802
  %v4804 = vlaneseq
  %v4805 = vshrl.u32 %v4804, 7
  %v4806 = vsub.s32 %v4803, %v4805
  %v4807 = vrot.slane %v4793, %v4806
  %v4808 = vcombine.low %v4784, %v4800
  %v4809 = vcombine.high %v4784, %v4800
  %v4811 = vunpack.c.l.s4 1934713408
  %v4812 = vunpack.c.0.s8 %v4811
  %v4813 = vlaneseq
  %v4814 = vshrl.u32 %v4813, 7
  %v4815 = vsub.s32 %v4812, %v4814
  %v4816 = vrot.slane %v4808, %v4815
  %v4818 = vunpack.c.l.s4 1934713408
  %v4819 = vunpack.c.0.s8 %v4818
  %v4820 = vlaneseq
  %v4821 = vshrl.u32 %v4820, 7
  %v4822 = vsub.s32 %v4819, %v4821
  %v4823 = vrot.slane %v4809, %v4822
  %v4824 = vcombine.low %v4791, %v4807
  %v4825 = vcombine.high %v4791, %v4807
  %v4827 = vunpack.c.l.s4 1934713408
  %v4828 = vunpack.c.0.s8 %v4827
  %v4829 = vlaneseq
  %v4830 = vshrl.u32 %v4829, 7
  %v4831 = vsub.s32 %v4828, %v4830
  %v4832 = vrot.slane %v4824, %v4831
  %v4834 = vunpack.c.l.s4 1934713408
  %v4835 = vunpack.c.0.s8 %v4834
  %v4836 = vlaneseq
  %v4837 = vshrl.u32 %v4836, 7
  %v4838 = vsub.s32 %v4835, %v4837
  %v4839 = vrot.slane %v4825, %v4838
  %v4840 = vcombine.high %v4816, 0.0
  %v4841 = vcombine.high %v4823, 0.0
  %v4842 = vcombine.high %v4832, 0.0
  %v4843 = vcombine.high %v4839, 0.0
  %v4844 = vcombine.low %v4135, %v4263
  %v4845 = vcombine.high %v4135, %v4263
  %v4847 = vunpack.c.l.s4 1983009808
  %v4848 = vunpack.c.0.s8 %v4847
  %v4849 = vlaneseq
  %v4850 = vshrl.u32 %v4849, 7
  %v4851 = vsub.s32 %v4848, %v4850
  %v4852 = vrot.slane %v4844, %v4851
  %v4854 = vunpack.c.l.s4 1983009808
  %v4855 = vunpack.c.0.s8 %v4854
  %v4856 = vlaneseq
  %v4857 = vshrl.u32 %v4856, 7
  %v4858 = vsub.s32 %v4855, %v4857
  %v4859 = vrot.slane %v4845, %v4858
  %v4860 = vcombine.low %v4199, %v4327
  %v4861 = vcombine.high %v4199, %v4327
  %v4863 = vunpack.c.l.s4 1983009808
  %v4864 = vunpack.c.0.s8 %v4863
  %v4865 = vlaneseq
  %v4866 = vshrl.u32 %v4865, 7
  %v4867 = vsub.s32 %v4864, %v4866
  %v4868 = vrot.slane %v4860, %v4867
  %v4870 = vunpack.c.l.s4 1983009808
  %v4871 = vunpack.c.0.s8 %v4870
  %v4872 = vlaneseq
  %v4873 = vshrl.u32 %v4872, 7
  %v4874 = vsub.s32 %v4871, %v4873
  %v4875 = vrot.slane %v4861, %v4874
  %v4876 = vcombine.low %v4852, %v4868
  %v4877 = vcombine.high %v4852, %v4868
  %v4879 = vunpack.c.l.s4 1934713408
  %v4880 = vunpack.c.0.s8 %v4879
  %v4881 = vlaneseq
  %v4882 = vshrl.u32 %v4881, 7
  %v4883 = vsub.s32 %v4880, %v4882
  %v4884 = vrot.slane %v4876, %v4883
  %v4886 = vunpack.c.l.s4 1934713408
  %v4887 = vunpack.c.0.s8 %v4886
  %v4888 = vlaneseq
  %v4889 = vshrl.u32 %v4888, 7
  %v4890 = vsub.s32 %v4887, %v4889
  %v4891 = vrot.slane %v4877, %v4890
  %v4892 = vcombine.low %v4859, %v4875
  %v4893 = vcombine.high %v4859, %v4875
  %v4895 = vunpack.c.l.s4 1934713408
  %v4896 = vunpack.c.0.s8 %v4895
  %v4897 = vlaneseq
  %v4898 = vshrl.u32 %v4897, 7
  %v4899 = vsub.s32 %v4896, %v4898
  %v4900 = vrot.slane %v4892, %v4899
  %v4902 = vunpack.c.l.s4 1934713408
  %v4903 = vunpack.c.0.s8 %v4902
  %v4904 = vlaneseq
  %v4905 = vshrl.u32 %v4904, 7
  %v4906 = vsub.s32 %v4903, %v4905
  %v4907 = vrot.slane %v4893, %v4906
  %v4908 = vcombine.high %v4884, 0.0
  %v4909 = vcombine.high %v4891, 0.0
  %v4910 = vcombine.high %v4900, 0.0
  %v4911 = vcombine.high %v4907, 0.0
  %v4912 = vcombine.low %v4136, %v4264
  %v4913 = vcombine.high %v4136, %v4264
  %v4915 = vunpack.c.l.s4 1983009808
  %v4916 = vunpack.c.0.s8 %v4915
  %v4917 = vlaneseq
  %v4918 = vshrl.u32 %v4917, 7
  %v4919 = vsub.s32 %v4916, %v4918
  %v4920 = vrot.slane %v4912, %v4919
  %v4922 = vunpack.c.l.s4 1983009808
  %v4923 = vunpack.c.0.s8 %v4922
  %v4924 = vlaneseq
  %v4925 = vshrl.u32 %v4924, 7
  %v4926 = vsub.s32 %v4923, %v4925
  %v4927 = vrot.slane %v4913, %v4926
  %v4928 = vcombine.low %v4200, %v4328
  %v4929 = vcombine.high %v4200, %v4328
  %v4931 = vunpack.c.l.s4 1983009808
  %v4932 = vunpack.c.0.s8 %v4931
  %v4933 = vlaneseq
  %v4934 = vshrl.u32 %v4933, 7
  %v4935 = vsub.s32 %v4932, %v4934
  %v4936 = vrot.slane %v4928, %v4935
  %v4938 = vunpack.c.l.s4 1983009808
  %v4939 = vunpack.c.0.s8 %v4938
  %v4940 = vlaneseq
  %v4941 = vshrl.u32 %v4940, 7
  %v4942 = vsub.s32 %v4939, %v4941
  %v4943 = vrot.slane %v4929, %v4942
  %v4944 = vcombine.low %v4920, %v4936
  %v4945 = vcombine.high %v4920, %v4936
  %v4947 = vunpack.c.l.s4 1934713408
  %v4948 = vunpack.c.0.s8 %v4947
  %v4949 = vlaneseq
  %v4950 = vshrl.u32 %v4949, 7
  %v4951 = vsub.s32 %v4948, %v4950
  %v4952 = vrot.slane %v4944, %v4951
  %v4954 = vunpack.c.l.s4 1934713408
  %v4955 = vunpack.c.0.s8 %v4954
  %v4956 = vlaneseq
  %v4957 = vshrl.u32 %v4956, 7
  %v4958 = vsub.s32 %v4955, %v4957
  %v4959 = vrot.slane %v4945, %v4958
  %v4960 = vcombine.low %v4927, %v4943
  %v4961 = vcombine.high %v4927, %v4943
  %v4963 = vunpack.c.l.s4 1934713408
  %v4964 = vunpack.c.0.s8 %v4963
  %v4965 = vlaneseq
  %v4966 = vshrl.u32 %v4965, 7
  %v4967 = vsub.s32 %v4964, %v4966
  %v4968 = vrot.slane %v4960, %v4967
  %v4970 = vunpack.c.l.s4 1934713408
  %v4971 = vunpack.c.0.s8 %v4970
  %v4972 = vlaneseq
  %v4973 = vshrl.u32 %v4972, 7
  %v4974 = vsub.s32 %v4971, %v4973
  %v4975 = vrot.slane %v4961, %v4974
  %v4976 = vcombine.high %v4952, 0.0
  %v4977 = vcombine.high %v4959, 0.0
  %v4978 = vcombine.high %v4968, 0.0
  %v4979 = vcombine.high %v4975, 0.0
  %v4980 = vcombine.low %v4137, %v4265
  %v4981 = vcombine.high %v4137, %v4265
  %v4983 = vunpack.c.l.s4 1983009808
  %v4984 = vunpack.c.0.s8 %v4983
  %v4985 = vlaneseq
  %v4986 = vshrl.u32 %v4985, 7
  %v4987 = vsub.s32 %v4984, %v4986
  %v4988 = vrot.slane %v4980, %v4987
  %v4990 = vunpack.c.l.s4 1983009808
  %v4991 = vunpack.c.0.s8 %v4990
  %v4992 = vlaneseq
  %v4993 = vshrl.u32 %v4992, 7
  %v4994 = vsub.s32 %v4991, %v4993
  %v4995 = vrot.slane %v4981, %v4994
  %v4996 = vcombine.low %v4201, %v4329
  %v4997 = vcombine.high %v4201, %v4329
  %v4999 = vunpack.c.l.s4 1983009808
  %v5000 = vunpack.c.0.s8 %v4999
  %v5001 = vlaneseq
  %v5002 = vshrl.u32 %v5001, 7
  %v5003 = vsub.s32 %v5000, %v5002
  %v5004 = vrot.slane %v4996, %v5003
  %v5006 = vunpack.c.l.s4 1983009808
  %v5007 = vunpack.c.0.s8 %v5006
  %v5008 = vlaneseq
  %v5009 = vshrl.u32 %v5008, 7
  %v5010 = vsub.s32 %v5007, %v5009
  %v5011 = vrot.slane %v4997, %v5010
  %v5012 = vcombine.low %v4988, %v5004
  %v5013 = vcombine.high %v4988, %v5004
  %v5015 = vunpack.c.l.s4 1934713408
  %v5016 = vunpack.c.0.s8 %v5015
  %v5017 = vlaneseq
  %v5018 = vshrl.u32 %v5017, 7
  %v5019 = vsub.s32 %v5016, %v5018
  %v5020 = vrot.slane %v5012, %v5019
  %v5022 = vunpack.c.l.s4 1934713408
  %v5023 = vunpack.c.0.s8 %v5022
  %v5024 = vlaneseq
  %v5025 = vshrl.u32 %v5024, 7
  %v5026 = vsub.s32 %v5023, %v5025
  %v5027 = vrot.slane %v5013, %v5026
  %v5028 = vcombine.low %v4995, %v5011
  %v5029 = vcombine.high %v4995, %v5011
  %v5031 = vunpack.c.l.s4 1934713408
  %v5032 = vunpack.c.0.s8 %v5031
  %v5033 = vlaneseq
  %v5034 = vshrl.u32 %v5033, 7
  %v5035 = vsub.s32 %v5032, %v5034
  %v5036 = vrot.slane %v5028, %v5035
  %v5038 = vunpack.c.l.s4 1934713408
  %v5039 = vunpack.c.0.s8 %v5038
  %v5040 = vlaneseq
  %v5041 = vshrl.u32 %v5040, 7
  %v5042 = vsub.s32 %v5039, %v5041
  %v5043 = vrot.slane %v5029, %v5042
  %v5044 = vcombine.high %v5020, 0.0
  %v5045 = vcombine.high %v5027, 0.0
  %v5046 = vcombine.high %v5036, 0.0
  %v5047 = vcombine.high %v5043, 0.0
  %v5048 = vcombine.low %v4138, %v4266
  %v5049 = vcombine.high %v4138, %v4266
  %v5051 = vunpack.c.l.s4 1983009808
  %v5052 = vunpack.c.0.s8 %v5051
  %v5053 = vlaneseq
  %v5054 = vshrl.u32 %v5053, 7
  %v5055 = vsub.s32 %v5052, %v5054
  %v5056 = vrot.slane %v5048, %v5055
  %v5058 = vunpack.c.l.s4 1983009808
  %v5059 = vunpack.c.0.s8 %v5058
  %v5060 = vlaneseq
  %v5061 = vshrl.u32 %v5060, 7
  %v5062 = vsub.s32 %v5059, %v5061
  %v5063 = vrot.slane %v5049, %v5062
  %v5064 = vcombine.low %v4202, %v4330
  %v5065 = vcombine.high %v4202, %v4330
  %v5067 = vunpack.c.l.s4 1983009808
  %v5068 = vunpack.c.0.s8 %v5067
  %v5069 = vlaneseq
  %v5070 = vshrl.u32 %v5069, 7
  %v5071 = vsub.s32 %v5068, %v5070
  %v5072 = vrot.slane %v5064, %v5071
  %v5074 = vunpack.c.l.s4 1983009808
  %v5075 = vunpack.c.0.s8 %v5074
  %v5076 = vlaneseq
  %v5077 = vshrl.u32 %v5076, 7
  %v5078 = vsub.s32 %v5075, %v5077
  %v5079 = vrot.slane %v5065, %v5078
  %v5080 = vcombine.low %v5056, %v5072
  %v5081 = vcombine.high %v5056, %v5072
  %v5083 = vunpack.c.l.s4 1934713408
  %v5084 = vunpack.c.0.s8 %v5083
  %v5085 = vlaneseq
  %v5086 = vshrl.u32 %v5085, 7
  %v5087 = vsub.s32 %v5084, %v5086
  %v5088 = vrot.slane %v5080, %v5087
  %v5090 = vunpack.c.l.s4 1934713408
  %v5091 = vunpack.c.0.s8 %v5090
  %v5092 = vlaneseq
  %v5093 = vshrl.u32 %v5092, 7
  %v5094 = vsub.s32 %v5091, %v5093
  %v5095 = vrot.slane %v5081, %v5094
  %v5096 = vcombine.low %v5063, %v5079
  %v5097 = vcombine.high %v5063, %v5079
  %v5099 = vunpack.c.l.s4 1934713408
  %v5100 = vunpack.c.0.s8 %v5099
  %v5101 = vlaneseq
  %v5102 = vshrl.u32 %v5101, 7
  %v5103 = vsub.s32 %v5100, %v5102
  %v5104 = vrot.slane %v5096, %v5103
  %v5106 = vunpack.c.l.s4 1934713408
  %v5107 = vunpack.c.0.s8 %v5106
  %v5108 = vlaneseq
  %v5109 = vshrl.u32 %v5108, 7
  %v5110 = vsub.s32 %v5107, %v5109
  %v5111 = vrot.slane %v5097, %v5110
  %v5112 = vcombine.high %v5088, 0.0
  %v5113 = vcombine.high %v5095, 0.0
  %v5114 = vcombine.high %v5104, 0.0
  %v5115 = vcombine.high %v5111, 0.0
  %v5116 = vcombine.low %v4139, %v4267
  %v5117 = vcombine.high %v4139, %v4267
  %v5119 = vunpack.c.l.s4 1983009808
  %v5120 = vunpack.c.0.s8 %v5119
  %v5121 = vlaneseq
  %v5122 = vshrl.u32 %v5121, 7
  %v5123 = vsub.s32 %v5120, %v5122
  %v5124 = vrot.slane %v5116, %v5123
  %v5126 = vunpack.c.l.s4 1983009808
  %v5127 = vunpack.c.0.s8 %v5126
  %v5128 = vlaneseq
  %v5129 = vshrl.u32 %v5128, 7
  %v5130 = vsub.s32 %v5127, %v5129
  %v5131 = vrot.slane %v5117, %v5130
  %v5132 = vcombine.low %v4203, %v4331
  %v5133 = vcombine.high %v4203, %v4331
  %v5135 = vunpack.c.l.s4 1983009808
  %v5136 = vunpack.c.0.s8 %v5135
  %v5137 = vlaneseq
  %v5138 = vshrl.u32 %v5137, 7
  %v5139 = vsub.s32 %v5136, %v5138
  %v5140 = vrot.slane %v5132, %v5139
  %v5142 = vunpack.c.l.s4 1983009808
  %v5143 = vunpack.c.0.s8 %v5142
  %v5144 = vlaneseq
  %v5145 = vshrl.u32 %v5144, 7
  %v5146 = vsub.s32 %v5143, %v5145
  %v5147 = vrot.slane %v5133, %v5146
  %v5148 = vcombine.low %v5124, %v5140
  %v5149 = vcombine.high %v5124, %v5140
  %v5151 = vunpack.c.l.s4 1934713408
  %v5152 = vunpack.c.0.s8 %v5151
  %v5153 = vlaneseq
  %v5154 = vshrl.u32 %v5153, 7
  %v5155 = vsub.s32 %v5152, %v5154
  %v5156 = vrot.slane %v5148, %v5155
  %v5158 = vunpack.c.l.s4 1934713408
  %v5159 = vunpack.c.0.s8 %v5158
  %v5160 = vlaneseq
  %v5161 = vshrl.u32 %v5160, 7
  %v5162 = vsub.s32 %v5159, %v5161
  %v5163 = vrot.slane %v5149, %v5162
  %v5164 = vcombine.low %v5131, %v5147
  %v5165 = vcombine.high %v5131, %v5147
  %v5167 = vunpack.c.l.s4 1934713408
  %v5168 = vunpack.c.0.s8 %v5167
  %v5169 = vlaneseq
  %v5170 = vshrl.u32 %v5169, 7
  %v5171 = vsub.s32 %v5168, %v5170
  %v5172 = vrot.slane %v5164, %v5171
  %v5174 = vunpack.c.l.s4 1934713408
  %v5175 = vunpack.c.0.s8 %v5174
  %v5176 = vlaneseq
  %v5177 = vshrl.u32 %v5176, 7
  %v5178 = vsub.s32 %v5175, %v5177
  %v5179 = vrot.slane %v5165, %v5178
  %v5180 = vcombine.high %v5156, 0.0
  %v5181 = vcombine.high %v5163, 0.0
  %v5182 = vcombine.high %v5172, 0.0
  %v5183 = vcombine.high %v5179, 0.0
  %v5184 = vcombine.low %v4140, %v4268
  %v5185 = vcombine.high %v4140, %v4268
  %v5187 = vunpack.c.l.s4 1983009808
  %v5188 = vunpack.c.0.s8 %v5187
  %v5189 = vlaneseq
  %v5190 = vshrl.u32 %v5189, 7
  %v5191 = vsub.s32 %v5188, %v5190
  %v5192 = vrot.slane %v5184, %v5191
  %v5194 = vunpack.c.l.s4 1983009808
  %v5195 = vunpack.c.0.s8 %v5194
  %v5196 = vlaneseq
  %v5197 = vshrl.u32 %v5196, 7
  %v5198 = vsub.s32 %v5195, %v5197
  %v5199 = vrot.slane %v5185, %v5198
  %v5200 = vcombine.low %v4204, %v4332
  %v5201 = vcombine.high %v4204, %v4332
  %v5203 = vunpack.c.l.s4 1983009808
  %v5204 = vunpack.c.0.s8 %v5203
  %v5205 = vlaneseq
  %v5206 = vshrl.u32 %v5205, 7
  %v5207 = vsub.s32 %v5204, %v5206
  %v5208 = vrot.slane %v5200, %v5207
  %v5210 = vunpack.c.l.s4 1983009808
  %v5211 = vunpack.c.0.s8 %v5210
  %v5212 = vlaneseq
  %v5213 = vshrl.u32 %v5212, 7
  %v5214 = vsub.s32 %v5211, %v5213
  %v5215 = vrot.slane %v5201, %v5214
  %v5216 = vcombine.low %v5192, %v5208
  %v5217 = vcombine.high %v5192, %v5208
  %v5219 = vunpack.c.l.s4 1934713408
  %v5220 = vunpack.c.0.s8 %v5219
  %v5221 = vlaneseq
  %v5222 = vshrl.u32 %v5221, 7
  %v5223 = vsub.s32 %v5220, %v5222
  %v5224 = vrot.slane %v5216, %v5223
  %v5226 = vunpack.c.l.s4 1934713408
  %v5227 = vunpack.c.0.s8 %v5226
  %v5228 = vlaneseq
  %v5229 = vshrl.u32 %v5228, 7
  %v5230 = vsub.s32 %v5227, %v5229
  %v5231 = vrot.slane %v5217, %v5230
  %v5232 = vcombine.low %v5199, %v5215
  %v5233 = vcombine.high %v5199, %v5215
  %v5235 = vunpack.c.l.s4 1934713408
  %v5236 = vunpack.c.0.s8 %v5235
  %v5237 = vlaneseq
  %v5238 = vshrl.u32 %v5237, 7
  %v5239 = vsub.s32 %v5236, %v5238
  %v5240 = vrot.slane %v5232, %v5239
  %v5242 = vunpack.c.l.s4 1934713408
  %v5243 = vunpack.c.0.s8 %v5242
  %v5244 = vlaneseq
  %v5245 = vshrl.u32 %v5244, 7
  %v5246 = vsub.s32 %v5243, %v5245
  %v5247 = vrot.slane %v5233, %v5246
  %v5248 = vcombine.high %v5224, 0.0
  %v5249 = vcombine.high %v5231, 0.0
  %v5250 = vcombine.high %v5240, 0.0
  %v5251 = vcombine.high %v5247, 0.0
  %v5252 = vcombine.low %v4141, %v4269
  %v5253 = vcombine.high %v4141, %v4269
  %v5255 = vunpack.c.l.s4 1983009808
  %v5256 = vunpack.c.0.s8 %v5255
  %v5257 = vlaneseq
  %v5258 = vshrl.u32 %v5257, 7
  %v5259 = vsub.s32 %v5256, %v5258
  %v5260 = vrot.slane %v5252, %v5259
  %v5262 = vunpack.c.l.s4 1983009808
  %v5263 = vunpack.c.0.s8 %v5262
  %v5264 = vlaneseq
  %v5265 = vshrl.u32 %v5264, 7
  %v5266 = vsub.s32 %v5263, %v5265
  %v5267 = vrot.slane %v5253, %v5266
  %v5268 = vcombine.low %v4205, %v4333
  %v5269 = vcombine.high %v4205, %v4333
  %v5271 = vunpack.c.l.s4 1983009808
  %v5272 = vunpack.c.0.s8 %v5271
  %v5273 = vlaneseq
  %v5274 = vshrl.u32 %v5273, 7
  %v5275 = vsub.s32 %v5272, %v5274
  %v5276 = vrot.slane %v5268, %v5275
  %v5278 = vunpack.c.l.s4 1983009808
  %v5279 = vunpack.c.0.s8 %v5278
  %v5280 = vlaneseq
  %v5281 = vshrl.u32 %v5280, 7
  %v5282 = vsub.s32 %v5279, %v5281
  %v5283 = vrot.slane %v5269, %v5282
  %v5284 = vcombine.low %v5260, %v5276
  %v5285 = vcombine.high %v5260, %v5276
  %v5287 = vunpack.c.l.s4 1934713408
  %v5288 = vunpack.c.0.s8 %v5287
  %v5289 = vlaneseq
  %v5290 = vshrl.u32 %v5289, 7
  %v5291 = vsub.s32 %v5288, %v5290
  %v5292 = vrot.slane %v5284, %v5291
  %v5294 = vunpack.c.l.s4 1934713408
  %v5295 = vunpack.c.0.s8 %v5294
  %v5296 = vlaneseq
  %v5297 = vshrl.u32 %v5296, 7
  %v5298 = vsub.s32 %v5295, %v5297
  %v5299 = vrot.slane %v5285, %v5298
  %v5300 = vcombine.low %v5267, %v5283
  %v5301 = vcombine.high %v5267, %v5283
  %v5303 = vunpack.c.l.s4 1934713408
  %v5304 = vunpack.c.0.s8 %v5303
  %v5305 = vlaneseq
  %v5306 = vshrl.u32 %v5305, 7
  %v5307 = vsub.s32 %v5304, %v5306
  %v5308 = vrot.slane %v5300, %v5307
  %v5310 = vunpack.c.l.s4 1934713408
  %v5311 = vunpack.c.0.s8 %v5310
  %v5312 = vlaneseq
  %v5313 = vshrl.u32 %v5312, 7
  %v5314 = vsub.s32 %v5311, %v5313
  %v5315 = vrot.slane %v5301, %v5314
  %v5316 = vcombine.high %v5292, 0.0
  %v5317 = vcombine.high %v5299, 0.0
  %v5318 = vcombine.high %v5308, 0.0
  %v5319 = vcombine.high %v5315, 0.0
  %v5320 = vcombine.low %v4142, %v4270
  %v5321 = vcombine.high %v4142, %v4270
  %v5323 = vunpack.c.l.s4 1983009808
  %v5324 = vunpack.c.0.s8 %v5323
  %v5325 = vlaneseq
  %v5326 = vshrl.u32 %v5325, 7
  %v5327 = vsub.s32 %v5324, %v5326
  %v5328 = vrot.slane %v5320, %v5327
  %v5330 = vunpack.c.l.s4 1983009808
  %v5331 = vunpack.c.0.s8 %v5330
  %v5332 = vlaneseq
  %v5333 = vshrl.u32 %v5332, 7
  %v5334 = vsub.s32 %v5331, %v5333
  %v5335 = vrot.slane %v5321, %v5334
  %v5336 = vcombine.low %v4206, %v4334
  %v5337 = vcombine.high %v4206, %v4334
  %v5339 = vunpack.c.l.s4 1983009808
  %v5340 = vunpack.c.0.s8 %v5339
  %v5341 = vlaneseq
  %v5342 = vshrl.u32 %v5341, 7
  %v5343 = vsub.s32 %v5340, %v5342
  %v5344 = vrot.slane %v5336, %v5343
  %v5346 = vunpack.c.l.s4 1983009808
  %v5347 = vunpack.c.0.s8 %v5346
  %v5348 = vlaneseq
  %v5349 = vshrl.u32 %v5348, 7
  %v5350 = vsub.s32 %v5347, %v5349
  %v5351 = vrot.slane %v5337, %v5350
  %v5352 = vcombine.low %v5328, %v5344
  %v5353 = vcombine.high %v5328, %v5344
  %v5355 = vunpack.c.l.s4 1934713408
  %v5356 = vunpack.c.0.s8 %v5355
  %v5357 = vlaneseq
  %v5358 = vshrl.u32 %v5357, 7
  %v5359 = vsub.s32 %v5356, %v5358
  %v5360 = vrot.slane %v5352, %v5359
  %v5362 = vunpack.c.l.s4 1934713408
  %v5363 = vunpack.c.0.s8 %v5362
  %v5364 = vlaneseq
  %v5365 = vshrl.u32 %v5364, 7
  %v5366 = vsub.s32 %v5363, %v5365
  %v5367 = vrot.slane %v5353, %v5366
  %v5368 = vcombine.low %v5335, %v5351
  %v5369 = vcombine.high %v5335, %v5351
  %v5371 = vunpack.c.l.s4 1934713408
  %v5372 = vunpack.c.0.s8 %v5371
  %v5373 = vlaneseq
  %v5374 = vshrl.u32 %v5373, 7
  %v5375 = vsub.s32 %v5372, %v5374
  %v5376 = vrot.slane %v5368, %v5375
  %v5378 = vunpack.c.l.s4 1934713408
  %v5379 = vunpack.c.0.s8 %v5378
  %v5380 = vlaneseq
  %v5381 = vshrl.u32 %v5380, 7
  %v5382 = vsub.s32 %v5379, %v5381
  %v5383 = vrot.slane %v5369, %v5382
  %v5384 = vcombine.high %v5360, 0.0
  %v5385 = vcombine.high %v5367, 0.0
  %v5386 = vcombine.high %v5376, 0.0
  %v5387 = vcombine.high %v5383, 0.0
  %v5388 = vcombine.low %v4143, %v4271
  %v5389 = vcombine.high %v4143, %v4271
  %v5391 = vunpack.c.l.s4 1983009808
  %v5392 = vunpack.c.0.s8 %v5391
  %v5393 = vlaneseq
  %v5394 = vshrl.u32 %v5393, 7
  %v5395 = vsub.s32 %v5392, %v5394
  %v5396 = vrot.slane %v5388, %v5395
  %v5398 = vunpack.c.l.s4 1983009808
  %v5399 = vunpack.c.0.s8 %v5398
  %v5400 = vlaneseq
  %v5401 = vshrl.u32 %v5400, 7
  %v5402 = vsub.s32 %v5399, %v5401
  %v5403 = vrot.slane %v5389, %v5402
  %v5404 = vcombine.low %v4207, %v4335
  %v5405 = vcombine.high %v4207, %v4335
  %v5407 = vunpack.c.l.s4 1983009808
  %v5408 = vunpack.c.0.s8 %v5407
  %v5409 = vlaneseq
  %v5410 = vshrl.u32 %v5409, 7
  %v5411 = vsub.s32 %v5408, %v5410
  %v5412 = vrot.slane %v5404, %v5411
  %v5414 = vunpack.c.l.s4 1983009808
  %v5415 = vunpack.c.0.s8 %v5414
  %v5416 = vlaneseq
  %v5417 = vshrl.u32 %v5416, 7
  %v5418 = vsub.s32 %v5415, %v5417
  %v5419 = vrot.slane %v5405, %v5418
  %v5420 = vcombine.low %v5396, %v5412
  %v5421 = vcombine.high %v5396, %v5412
  %v5423 = vunpack.c.l.s4 1934713408
  %v5424 = vunpack.c.0.s8 %v5423
  %v5425 = vlaneseq
  %v5426 = vshrl.u32 %v5425, 7
  %v5427 = vsub.s32 %v5424, %v5426
  %v5428 = vrot.slane %v5420, %v5427
  %v5430 = vunpack.c.l.s4 1934713408
  %v5431 = vunpack.c.0.s8 %v5430
  %v5432 = vlaneseq
  %v5433 = vshrl.u32 %v5432, 7
  %v5434 = vsub.s32 %v5431, %v5433
  %v5435 = vrot.slane %v5421, %v5434
  %v5436 = vcombine.low %v5403, %v5419
  %v5437 = vcombine.high %v5403, %v5419
  %v5439 = vunpack.c.l.s4 1934713408
  %v5440 = vunpack.c.0.s8 %v5439
  %v5441 = vlaneseq
  %v5442 = vshrl.u32 %v5441, 7
  %v5443 = vsub.s32 %v5440, %v5442
  %v5444 = vrot.slane %v5436, %v5443
  %v5446 = vunpack.c.l.s4 1934713408
  %v5447 = vunpack.c.0.s8 %v5446
  %v5448 = vlaneseq
  %v5449 = vshrl.u32 %v5448, 7
  %v5450 = vsub.s32 %v5447, %v5449
  %v5451 = vrot.slane %v5437, %v5450
  %v5452 = vcombine.high %v5428, 0.0
  %v5453 = vcombine.high %v5435, 0.0
  %v5454 = vcombine.high %v5444, 0.0
  %v5455 = vcombine.high %v5451, 0.0
  %v5456 = vcombine.low %v4160, %v4288
  %v5457 = vcombine.high %v4160, %v4288
  %v5459 = vunpack.c.l.s4 1983009808
  %v5460 = vunpack.c.0.s8 %v5459
  %v5461 = vlaneseq
  %v5462 = vshrl.u32 %v5461, 7
  %v5463 = vsub.s32 %v5460, %v5462
  %v5464 = vrot.slane %v5456, %v5463
  %v5466 = vunpack.c.l.s4 1983009808
  %v5467 = vunpack.c.0.s8 %v5466
  %v5468 = vlaneseq
  %v5469 = vshrl.u32 %v5468, 7
  %v5470 = vsub.s32 %v5467, %v5469
  %v5471 = vrot.slane %v5457, %v5470
  %v5472 = vcombine.low %v4224, %v4352
  %v5473 = vcombine.high %v4224, %v4352
  %v5475 = vunpack.c.l.s4 1983009808
  %v5476 = vunpack.c.0.s8 %v5475
  %v5477 = vlaneseq
  %v5478 = vshrl.u32 %v5477, 7
  %v5479 = vsub.s32 %v5476, %v5478
  %v5480 = vrot.slane %v5472, %v5479
  %v5482 = vunpack.c.l.s4 1983009808
  %v5483 = vunpack.c.0.s8 %v5482
  %v5484 = vlaneseq
  %v5485 = vshrl.u32 %v5484, 7
  %v5486 = vsub.s32 %v5483, %v5485
  %v5487 = vrot.slane %v5473, %v5486
  %v5488 = vcombine.low %v5464, %v5480
  %v5489 = vcombine.high %v5464, %v5480
  %v5491 = vunpack.c.l.s4 1934713408
  %v5492 = vunpack.c.0.s8 %v5491
  %v5493 = vlaneseq
  %v5494 = vshrl.u32 %v5493, 7
  %v5495 = vsub.s32 %v5492, %v5494
  %v5496 = vrot.slane %v5488, %v5495
  %v5498 = vunpack.c.l.s4 1934713408
  %v5499 = vunpack.c.0.s8 %v5498
  %v5500 = vlaneseq
  %v5501 = vshrl.u32 %v5500, 7
  %v5502 = vsub.s32 %v5499, %v5501
  %v5503 = vrot.slane %v5489, %v5502
  %v5504 = vcombine.low %v5471, %v5487
  %v5505 = vcombine.high %v5471, %v5487
  %v5507 = vunpack.c.l.s4 1934713408
  %v5508 = vunpack.c.0.s8 %v5507
  %v5509 = vlaneseq
  %v5510 = vshrl.u32 %v5509, 7
  %v5511 = vsub.s32 %v5508, %v5510
  %v5512 = vrot.slane %v5504, %v5511
  %v5514 = vunpack.c.l.s4 1934713408
  %v5515 = vunpack.c.0.s8 %v5514
  %v5516 = vlaneseq
  %v5517 = vshrl.u32 %v5516, 7
  %v5518 = vsub.s32 %v5515, %v5517
  %v5519 = vrot.slane %v5505, %v5518
  %v5520 = vcombine.high %v5496, 0.0
  %v5521 = vcombine.high %v5503, 0.0
  %v5522 = vcombine.high %v5512, 0.0
  %v5523 = vcombine.high %v5519, 0.0
  %v5524 = vcombine.low %v4161, %v4289
  %v5525 = vcombine.high %v4161, %v4289
  %v5527 = vunpack.c.l.s4 1983009808
  %v5528 = vunpack.c.0.s8 %v5527
  %v5529 = vlaneseq
  %v5530 = vshrl.u32 %v5529, 7
  %v5531 = vsub.s32 %v5528, %v5530
  %v5532 = vrot.slane %v5524, %v5531
  %v5534 = vunpack.c.l.s4 1983009808
  %v5535 = vunpack.c.0.s8 %v5534
  %v5536 = vlaneseq
  %v5537 = vshrl.u32 %v5536, 7
  %v5538 = vsub.s32 %v5535, %v5537
  %v5539 = vrot.slane %v5525, %v5538
  %v5540 = vcombine.low %v4225, %v4353
  %v5541 = vcombine.high %v4225, %v4353
  %v5543 = vunpack.c.l.s4 1983009808
  %v5544 = vunpack.c.0.s8 %v5543
  %v5545 = vlaneseq
  %v5546 = vshrl.u32 %v5545, 7
  %v5547 = vsub.s32 %v5544, %v5546
  %v5548 = vrot.slane %v5540, %v5547
  %v5550 = vunpack.c.l.s4 1983009808
  %v5551 = vunpack.c.0.s8 %v5550
  %v5552 = vlaneseq
  %v5553 = vshrl.u32 %v5552, 7
  %v5554 = vsub.s32 %v5551, %v5553
  %v5555 = vrot.slane %v5541, %v5554
  %v5556 = vcombine.low %v5532, %v5548
  %v5557 = vcombine.high %v5532, %v5548
  %v5559 = vunpack.c.l.s4 1934713408
  %v5560 = vunpack.c.0.s8 %v5559
  %v5561 = vlaneseq
  %v5562 = vshrl.u32 %v5561, 7
  %v5563 = vsub.s32 %v5560, %v5562
  %v5564 = vrot.slane %v5556, %v5563
  %v5566 = vunpack.c.l.s4 1934713408
  %v5567 = vunpack.c.0.s8 %v5566
  %v5568 = vlaneseq
  %v5569 = vshrl.u32 %v5568, 7
  %v5570 = vsub.s32 %v5567, %v5569
  %v5571 = vrot.slane %v5557, %v5570
  %v5572 = vcombine.low %v5539, %v5555
  %v5573 = vcombine.high %v5539, %v5555
  %v5575 = vunpack.c.l.s4 1934713408
  %v5576 = vunpack.c.0.s8 %v5575
  %v5577 = vlaneseq
  %v5578 = vshrl.u32 %v5577, 7
  %v5579 = vsub.s32 %v5576, %v5578
  %v5580 = vrot.slane %v5572, %v5579
  %v5582 = vunpack.c.l.s4 1934713408
  %v5583 = vunpack.c.0.s8 %v5582
  %v5584 = vlaneseq
  %v5585 = vshrl.u32 %v5584, 7
  %v5586 = vsub.s32 %v5583, %v5585
  %v5587 = vrot.slane %v5573, %v5586
  %v5588 = vcombine.high %v5564, 0.0
  %v5589 = vcombine.high %v5571, 0.0
  %v5590 = vcombine.high %v5580, 0.0
  %v5591 = vcombine.high %v5587, 0.0
  %v5592 = vcombine.low %v4162, %v4290
  %v5593 = vcombine.high %v4162, %v4290
  %v5595 = vunpack.c.l.s4 1983009808
  %v5596 = vunpack.c.0.s8 %v5595
  %v5597 = vlaneseq
  %v5598 = vshrl.u32 %v5597, 7
  %v5599 = vsub.s32 %v5596, %v5598
  %v5600 = vrot.slane %v5592, %v5599
  %v5602 = vunpack.c.l.s4 1983009808
  %v5603 = vunpack.c.0.s8 %v5602
  %v5604 = vlaneseq
  %v5605 = vshrl.u32 %v5604, 7
  %v5606 = vsub.s32 %v5603, %v5605
  %v5607 = vrot.slane %v5593, %v5606
  %v5608 = vcombine.low %v4226, %v4354
  %v5609 = vcombine.high %v4226, %v4354
  %v5611 = vunpack.c.l.s4 1983009808
  %v5612 = vunpack.c.0.s8 %v5611
  %v5613 = vlaneseq
  %v5614 = vshrl.u32 %v5613, 7
  %v5615 = vsub.s32 %v5612, %v5614
  %v5616 = vrot.slane %v5608, %v5615
  %v5618 = vunpack.c.l.s4 1983009808
  %v5619 = vunpack.c.0.s8 %v5618
  %v5620 = vlaneseq
  %v5621 = vshrl.u32 %v5620, 7
  %v5622 = vsub.s32 %v5619, %v5621
  %v5623 = vrot.slane %v5609, %v5622
  %v5624 = vcombine.low %v5600, %v5616
  %v5625 = vcombine.high %v5600, %v5616
  %v5627 = vunpack.c.l.s4 1934713408
  %v5628 = vunpack.c.0.s8 %v5627
  %v5629 = vlaneseq
  %v5630 = vshrl.u32 %v5629, 7
  %v5631 = vsub.s32 %v5628, %v5630
  %v5632 = vrot.slane %v5624, %v5631
  %v5634 = vunpack.c.l.s4 1934713408
  %v5635 = vunpack.c.0.s8 %v5634
  %v5636 = vlaneseq
  %v5637 = vshrl.u32 %v5636, 7
  %v5638 = vsub.s32 %v5635, %v5637
  %v5639 = vrot.slane %v5625, %v5638
  %v5640 = vcombine.low %v5607, %v5623
  %v5641 = vcombine.high %v5607, %v5623
  %v5643 = vunpack.c.l.s4 1934713408
  %v5644 = vunpack.c.0.s8 %v5643
  %v5645 = vlaneseq
  %v5646 = vshrl.u32 %v5645, 7
  %v5647 = vsub.s32 %v5644, %v5646
  %v5648 = vrot.slane %v5640, %v5647
  %v5650 = vunpack.c.l.s4 1934713408
  %v5651 = vunpack.c.0.s8 %v5650
  %v5652 = vlaneseq
  %v5653 = vshrl.u32 %v5652, 7
  %v5654 = vsub.s32 %v5651, %v5653
  %v5655 = vrot.slane %v5641, %v5654
  %v5656 = vcombine.high %v5632, 0.0
  %v5657 = vcombine.high %v5639, 0.0
  %v5658 = vcombine.high %v5648, 0.0
  %v5659 = vcombine.high %v5655, 0.0
  %v5660 = vcombine.low %v4163, %v4291
  %v5661 = vcombine.high %v4163, %v4291
  %v5663 = vunpack.c.l.s4 1983009808
  %v5664 = vunpack.c.0.s8 %v5663
  %v5665 = vlaneseq
  %v5666 = vshrl.u32 %v5665, 7
  %v5667 = vsub.s32 %v5664, %v5666
  %v5668 = vrot.slane %v5660, %v5667
  %v5670 = vunpack.c.l.s4 1983009808
  %v5671 = vunpack.c.0.s8 %v5670
  %v5672 = vlaneseq
  %v5673 = vshrl.u32 %v5672, 7
  %v5674 = vsub.s32 %v5671, %v5673
  %v5675 = vrot.slane %v5661, %v5674
  %v5676 = vcombine.low %v4227, %v4355
  %v5677 = vcombine.high %v4227, %v4355
  %v5679 = vunpack.c.l.s4 1983009808
  %v5680 = vunpack.c.0.s8 %v5679
  %v5681 = vlaneseq
  %v5682 = vshrl.u32 %v5681, 7
  %v5683 = vsub.s32 %v5680, %v5682
  %v5684 = vrot.slane %v5676, %v5683
  %v5686 = vunpack.c.l.s4 1983009808
  %v5687 = vunpack.c.0.s8 %v5686
  %v5688 = vlaneseq
  %v5689 = vshrl.u32 %v5688, 7
  %v5690 = vsub.s32 %v5687, %v5689
  %v5691 = vrot.slane %v5677, %v5690
  %v5692 = vcombine.low %v5668, %v5684
  %v5693 = vcombine.high %v5668, %v5684
  %v5695 = vunpack.c.l.s4 1934713408
  %v5696 = vunpack.c.0.s8 %v5695
  %v5697 = vlaneseq
  %v5698 = vshrl.u32 %v5697, 7
  %v5699 = vsub.s32 %v5696, %v5698
  %v5700 = vrot.slane %v5692, %v5699
  %v5702 = vunpack.c.l.s4 1934713408
  %v5703 = vunpack.c.0.s8 %v5702
  %v5704 = vlaneseq
  %v5705 = vshrl.u32 %v5704, 7
  %v5706 = vsub.s32 %v5703, %v5705
  %v5707 = vrot.slane %v5693, %v5706
  %v5708 = vcombine.low %v5675, %v5691
  %v5709 = vcombine.high %v5675, %v5691
  %v5711 = vunpack.c.l.s4 1934713408
  %v5712 = vunpack.c.0.s8 %v5711
  %v5713 = vlaneseq
  %v5714 = vshrl.u32 %v5713, 7
  %v5715 = vsub.s32 %v5712, %v5714
  %v5716 = vrot.slane %v5708, %v5715
  %v5718 = vunpack.c.l.s4 1934713408
  %v5719 = vunpack.c.0.s8 %v5718
  %v5720 = vlaneseq
  %v5721 = vshrl.u32 %v5720, 7
  %v5722 = vsub.s32 %v5719, %v5721
  %v5723 = vrot.slane %v5709, %v5722
  %v5724 = vcombine.high %v5700, 0.0
  %v5725 = vcombine.high %v5707, 0.0
  %v5726 = vcombine.high %v5716, 0.0
  %v5727 = vcombine.high %v5723, 0.0
  %v5728 = vcombine.low %v4164, %v4292
  %v5729 = vcombine.high %v4164, %v4292
  %v5731 = vunpack.c.l.s4 1983009808
  %v5732 = vunpack.c.0.s8 %v5731
  %v5733 = vlaneseq
  %v5734 = vshrl.u32 %v5733, 7
  %v5735 = vsub.s32 %v5732, %v5734
  %v5736 = vrot.slane %v5728, %v5735
  %v5738 = vunpack.c.l.s4 1983009808
  %v5739 = vunpack.c.0.s8 %v5738
  %v5740 = vlaneseq
  %v5741 = vshrl.u32 %v5740, 7
  %v5742 = vsub.s32 %v5739, %v5741
  %v5743 = vrot.slane %v5729, %v5742
  %v5744 = vcombine.low %v4228, %v4356
  %v5745 = vcombine.high %v4228, %v4356
  %v5747 = vunpack.c.l.s4 1983009808
  %v5748 = vunpack.c.0.s8 %v5747
  %v5749 = vlaneseq
  %v5750 = vshrl.u32 %v5749, 7
  %v5751 = vsub.s32 %v5748, %v5750
  %v5752 = vrot.slane %v5744, %v5751
  %v5754 = vunpack.c.l.s4 1983009808
  %v5755 = vunpack.c.0.s8 %v5754
  %v5756 = vlaneseq
  %v5757 = vshrl.u32 %v5756, 7
  %v5758 = vsub.s32 %v5755, %v5757
  %v5759 = vrot.slane %v5745, %v5758
  %v5760 = vcombine.low %v5736, %v5752
  %v5761 = vcombine.high %v5736, %v5752
  %v5763 = vunpack.c.l.s4 1934713408
  %v5764 = vunpack.c.0.s8 %v5763
  %v5765 = vlaneseq
  %v5766 = vshrl.u32 %v5765, 7
  %v5767 = vsub.s32 %v5764, %v5766
  %v5768 = vrot.slane %v5760, %v5767
  %v5770 = vunpack.c.l.s4 1934713408
  %v5771 = vunpack.c.0.s8 %v5770
  %v5772 = vlaneseq
  %v5773 = vshrl.u32 %v5772, 7
  %v5774 = vsub.s32 %v5771, %v5773
  %v5775 = vrot.slane %v5761, %v5774
  %v5776 = vcombine.low %v5743, %v5759
  %v5777 = vcombine.high %v5743, %v5759
  %v5779 = vunpack.c.l.s4 1934713408
  %v5780 = vunpack.c.0.s8 %v5779
  %v5781 = vlaneseq
  %v5782 = vshrl.u32 %v5781, 7
  %v5783 = vsub.s32 %v5780, %v5782
  %v5784 = vrot.slane %v5776, %v5783
  %v5786 = vunpack.c.l.s4 1934713408
  %v5787 = vunpack.c.0.s8 %v5786
  %v5788 = vlaneseq
  %v5789 = vshrl.u32 %v5788, 7
  %v5790 = vsub.s32 %v5787, %v5789
  %v5791 = vrot.slane %v5777, %v5790
  %v5792 = vcombine.high %v5768, 0.0
  %v5793 = vcombine.high %v5775, 0.0
  %v5794 = vcombine.high %v5784, 0.0
  %v5795 = vcombine.high %v5791, 0.0
  %v5796 = vcombine.low %v4165, %v4293
  %v5797 = vcombine.high %v4165, %v4293
  %v5799 = vunpack.c.l.s4 1983009808
  %v5800 = vunpack.c.0.s8 %v5799
  %v5801 = vlaneseq
  %v5802 = vshrl.u32 %v5801, 7
  %v5803 = vsub.s32 %v5800, %v5802
  %v5804 = vrot.slane %v5796, %v5803
  %v5806 = vunpack.c.l.s4 1983009808
  %v5807 = vunpack.c.0.s8 %v5806
  %v5808 = vlaneseq
  %v5809 = vshrl.u32 %v5808, 7
  %v5810 = vsub.s32 %v5807, %v5809
  %v5811 = vrot.slane %v5797, %v5810
  %v5812 = vcombine.low %v4229, %v4357
  %v5813 = vcombine.high %v4229, %v4357
  %v5815 = vunpack.c.l.s4 1983009808
  %v5816 = vunpack.c.0.s8 %v5815
  %v5817 = vlaneseq
  %v5818 = vshrl.u32 %v5817, 7
  %v5819 = vsub.s32 %v5816, %v5818
  %v5820 = vrot.slane %v5812, %v5819
  %v5822 = vunpack.c.l.s4 1983009808
  %v5823 = vunpack.c.0.s8 %v5822
  %v5824 = vlaneseq
  %v5825 = vshrl.u32 %v5824, 7
  %v5826 = vsub.s32 %v5823, %v5825
  %v5827 = vrot.slane %v5813, %v5826
  %v5828 = vcombine.low %v5804, %v5820
  %v5829 = vcombine.high %v5804, %v5820
  %v5831 = vunpack.c.l.s4 1934713408
  %v5832 = vunpack.c.0.s8 %v5831
  %v5833 = vlaneseq
  %v5834 = vshrl.u32 %v5833, 7
  %v5835 = vsub.s32 %v5832, %v5834
  %v5836 = vrot.slane %v5828, %v5835
  %v5838 = vunpack.c.l.s4 1934713408
  %v5839 = vunpack.c.0.s8 %v5838
  %v5840 = vlaneseq
  %v5841 = vshrl.u32 %v5840, 7
  %v5842 = vsub.s32 %v5839, %v5841
  %v5843 = vrot.slane %v5829, %v5842
  %v5844 = vcombine.low %v5811, %v5827
  %v5845 = vcombine.high %v5811, %v5827
  %v5847 = vunpack.c.l.s4 1934713408
  %v5848 = vunpack.c.0.s8 %v5847
  %v5849 = vlaneseq
  %v5850 = vshrl.u32 %v5849, 7
  %v5851 = vsub.s32 %v5848, %v5850
  %v5852 = vrot.slane %v5844, %v5851
  %v5854 = vunpack.c.l.s4 1934713408
  %v5855 = vunpack.c.0.s8 %v5854
  %v5856 = vlaneseq
  %v5857 = vshrl.u32 %v5856, 7
  %v5858 = vsub.s32 %v5855, %v5857
  %v5859 = vrot.slane %v5845, %v5858
  %v5860 = vcombine.high %v5836, 0.0
  %v5861 = vcombine.high %v5843, 0.0
  %v5862 = vcombine.high %v5852, 0.0
  %v5863 = vcombine.high %v5859, 0.0
  %v5864 = vcombine.low %v4166, %v4294
  %v5865 = vcombine.high %v4166, %v4294
  %v5867 = vunpack.c.l.s4 1983009808
  %v5868 = vunpack.c.0.s8 %v5867
  %v5869 = vlaneseq
  %v5870 = vshrl.u32 %v5869, 7
  %v5871 = vsub.s32 %v5868, %v5870
  %v5872 = vrot.slane %v5864, %v5871
  %v5874 = vunpack.c.l.s4 1983009808
  %v5875 = vunpack.c.0.s8 %v5874
  %v5876 = vlaneseq
  %v5877 = vshrl.u32 %v5876, 7
  %v5878 = vsub.s32 %v5875, %v5877
  %v5879 = vrot.slane %v5865, %v5878
  %v5880 = vcombine.low %v4230, %v4358
  %v5881 = vcombine.high %v4230, %v4358
  %v5883 = vunpack.c.l.s4 1983009808
  %v5884 = vunpack.c.0.s8 %v5883
  %v5885 = vlaneseq
  %v5886 = vshrl.u32 %v5885, 7
  %v5887 = vsub.s32 %v5884, %v5886
  %v5888 = vrot.slane %v5880, %v5887
  %v5890 = vunpack.c.l.s4 1983009808
  %v5891 = vunpack.c.0.s8 %v5890
  %v5892 = vlaneseq
  %v5893 = vshrl.u32 %v5892, 7
  %v5894 = vsub.s32 %v5891, %v5893
  %v5895 = vrot.slane %v5881, %v5894
  %v5896 = vcombine.low %v5872, %v5888
  %v5897 = vcombine.high %v5872, %v5888
  %v5899 = vunpack.c.l.s4 1934713408
  %v5900 = vunpack.c.0.s8 %v5899
  %v5901 = vlaneseq
  %v5902 = vshrl.u32 %v5901, 7
  %v5903 = vsub.s32 %v5900, %v5902
  %v5904 = vrot.slane %v5896, %v5903
  %v5906 = vunpack.c.l.s4 1934713408
  %v5907 = vunpack.c.0.s8 %v5906
  %v5908 = vlaneseq
  %v5909 = vshrl.u32 %v5908, 7
  %v5910 = vsub.s32 %v5907, %v5909
  %v5911 = vrot.slane %v5897, %v5910
  %v5912 = vcombine.low %v5879, %v5895
  %v5913 = vcombine.high %v5879, %v5895
  %v5915 = vunpack.c.l.s4 1934713408
  %v5916 = vunpack.c.0.s8 %v5915
  %v5917 = vlaneseq
  %v5918 = vshrl.u32 %v5917, 7
  %v5919 = vsub.s32 %v5916, %v5918
  %v5920 = vrot.slane %v5912, %v5919
  %v5922 = vunpack.c.l.s4 1934713408
  %v5923 = vunpack.c.0.s8 %v5922
  %v5924 = vlaneseq
  %v5925 = vshrl.u32 %v5924, 7
  %v5926 = vsub.s32 %v5923, %v5925
  %v5927 = vrot.slane %v5913, %v5926
  %v5928 = vcombine.high %v5904, 0.0
  %v5929 = vcombine.high %v5911, 0.0
  %v5930 = vcombine.high %v5920, 0.0
  %v5931 = vcombine.high %v5927, 0.0
  %v5932 = vcombine.low %v4167, %v4295
  %v5933 = vcombine.high %v4167, %v4295
  %v5935 = vunpack.c.l.s4 1983009808
  %v5936 = vunpack.c.0.s8 %v5935
  %v5937 = vlaneseq
  %v5938 = vshrl.u32 %v5937, 7
  %v5939 = vsub.s32 %v5936, %v5938
  %v5940 = vrot.slane %v5932, %v5939
  %v5942 = vunpack.c.l.s4 1983009808
  %v5943 = vunpack.c.0.s8 %v5942
  %v5944 = vlaneseq
  %v5945 = vshrl.u32 %v5944, 7
  %v5946 = vsub.s32 %v5943, %v5945
  %v5947 = vrot.slane %v5933, %v5946
  %v5948 = vcombine.low %v4231, %v4359
  %v5949 = vcombine.high %v4231, %v4359
  %v5951 = vunpack.c.l.s4 1983009808
  %v5952 = vunpack.c.0.s8 %v5951
  %v5953 = vlaneseq
  %v5954 = vshrl.u32 %v5953, 7
  %v5955 = vsub.s32 %v5952, %v5954
  %v5956 = vrot.slane %v5948, %v5955
  %v5958 = vunpack.c.l.s4 1983009808
  %v5959 = vunpack.c.0.s8 %v5958
  %v5960 = vlaneseq
  %v5961 = vshrl.u32 %v5960, 7
  %v5962 = vsub.s32 %v5959, %v5961
  %v5963 = vrot.slane %v5949, %v5962
  %v5964 = vcombine.low %v5940, %v5956
  %v5965 = vcombine.high %v5940, %v5956
  %v5967 = vunpack.c.l.s4 1934713408
  %v5968 = vunpack.c.0.s8 %v5967
  %v5969 = vlaneseq
  %v5970 = vshrl.u32 %v5969, 7
  %v5971 = vsub.s32 %v5968, %v5970
  %v5972 = vrot.slane %v5964, %v5971
  %v5974 = vunpack.c.l.s4 1934713408
  %v5975 = vunpack.c.0.s8 %v5974
  %v5976 = vlaneseq
  %v5977 = vshrl.u32 %v5976, 7
  %v5978 = vsub.s32 %v5975, %v5977
  %v5979 = vrot.slane %v5965, %v5978
  %v5980 = vcombine.low %v5947, %v5963
  %v5981 = vcombine.high %v5947, %v5963
  %v5983 = vunpack.c.l.s4 1934713408
  %v5984 = vunpack.c.0.s8 %v5983
  %v5985 = vlaneseq
  %v5986 = vshrl.u32 %v5985, 7
  %v5987 = vsub.s32 %v5984, %v5986
  %v5988 = vrot.slane %v5980, %v5987
  %v5990 = vunpack.c.l.s4 1934713408
  %v5991 = vunpack.c.0.s8 %v5990
  %v5992 = vlaneseq
  %v5993 = vshrl.u32 %v5992, 7
  %v5994 = vsub.s32 %v5991, %v5993
  %v5995 = vrot.slane %v5981, %v5994
  %v5996 = vcombine.high %v5972, 0.0
  %v5997 = vcombine.high %v5979, 0.0
  %v5998 = vcombine.high %v5988, 0.0
  %v5999 = vcombine.high %v5995, 0.0
  %v6000 = vcombine.low %v4168, %v4296
  %v6001 = vcombine.high %v4168, %v4296
  %v6003 = vunpack.c.l.s4 1983009808
  %v6004 = vunpack.c.0.s8 %v6003
  %v6005 = vlaneseq
  %v6006 = vshrl.u32 %v6005, 7
  %v6007 = vsub.s32 %v6004, %v6006
  %v6008 = vrot.slane %v6000, %v6007
  %v6010 = vunpack.c.l.s4 1983009808
  %v6011 = vunpack.c.0.s8 %v6010
  %v6012 = vlaneseq
  %v6013 = vshrl.u32 %v6012, 7
  %v6014 = vsub.s32 %v6011, %v6013
  %v6015 = vrot.slane %v6001, %v6014
  %v6016 = vcombine.low %v4232, %v4360
  %v6017 = vcombine.high %v4232, %v4360
  %v6019 = vunpack.c.l.s4 1983009808
  %v6020 = vunpack.c.0.s8 %v6019
  %v6021 = vlaneseq
  %v6022 = vshrl.u32 %v6021, 7
  %v6023 = vsub.s32 %v6020, %v6022
  %v6024 = vrot.slane %v6016, %v6023
  %v6026 = vunpack.c.l.s4 1983009808
  %v6027 = vunpack.c.0.s8 %v6026
  %v6028 = vlaneseq
  %v6029 = vshrl.u32 %v6028, 7
  %v6030 = vsub.s32 %v6027, %v6029
  %v6031 = vrot.slane %v6017, %v6030
  %v6032 = vcombine.low %v6008, %v6024
  %v6033 = vcombine.high %v6008, %v6024
  %v6035 = vunpack.c.l.s4 1934713408
  %v6036 = vunpack.c.0.s8 %v6035
  %v6037 = vlaneseq
  %v6038 = vshrl.u32 %v6037, 7
  %v6039 = vsub.s32 %v6036, %v6038
  %v6040 = vrot.slane %v6032, %v6039
  %v6042 = vunpack.c.l.s4 1934713408
  %v6043 = vunpack.c.0.s8 %v6042
  %v6044 = vlaneseq
  %v6045 = vshrl.u32 %v6044, 7
  %v6046 = vsub.s32 %v6043, %v6045
  %v6047 = vrot.slane %v6033, %v6046
  %v6048 = vcombine.low %v6015, %v6031
  %v6049 = vcombine.high %v6015, %v6031
  %v6051 = vunpack.c.l.s4 1934713408
  %v6052 = vunpack.c.0.s8 %v6051
  %v6053 = vlaneseq
  %v6054 = vshrl.u32 %v6053, 7
  %v6055 = vsub.s32 %v6052, %v6054
  %v6056 = vrot.slane %v6048, %v6055
  %v6058 = vunpack.c.l.s4 1934713408
  %v6059 = vunpack.c.0.s8 %v6058
  %v6060 = vlaneseq
  %v6061 = vshrl.u32 %v6060, 7
  %v6062 = vsub.s32 %v6059, %v6061
  %v6063 = vrot.slane %v6049, %v6062
  %v6064 = vcombine.high %v6040, 0.0
  %v6065 = vcombine.high %v6047, 0.0
  %v6066 = vcombine.high %v6056, 0.0
  %v6067 = vcombine.high %v6063, 0.0
  %v6068 = vcombine.low %v4169, %v4297
  %v6069 = vcombine.high %v4169, %v4297
  %v6071 = vunpack.c.l.s4 1983009808
  %v6072 = vunpack.c.0.s8 %v6071
  %v6073 = vlaneseq
  %v6074 = vshrl.u32 %v6073, 7
  %v6075 = vsub.s32 %v6072, %v6074
  %v6076 = vrot.slane %v6068, %v6075
  %v6078 = vunpack.c.l.s4 1983009808
  %v6079 = vunpack.c.0.s8 %v6078
  %v6080 = vlaneseq
  %v6081 = vshrl.u32 %v6080, 7
  %v6082 = vsub.s32 %v6079, %v6081
  %v6083 = vrot.slane %v6069, %v6082
  %v6084 = vcombine.low %v4233, %v4361
  %v6085 = vcombine.high %v4233, %v4361
  %v6087 = vunpack.c.l.s4 1983009808
  %v6088 = vunpack.c.0.s8 %v6087
  %v6089 = vlaneseq
  %v6090 = vshrl.u32 %v6089, 7
  %v6091 = vsub.s32 %v6088, %v6090
  %v6092 = vrot.slane %v6084, %v6091
  %v6094 = vunpack.c.l.s4 1983009808
  %v6095 = vunpack.c.0.s8 %v6094
  %v6096 = vlaneseq
  %v6097 = vshrl.u32 %v6096, 7
  %v6098 = vsub.s32 %v6095, %v6097
  %v6099 = vrot.slane %v6085, %v6098
  %v6100 = vcombine.low %v6076, %v6092
  %v6101 = vcombine.high %v6076, %v6092
  %v6103 = vunpack.c.l.s4 1934713408
  %v6104 = vunpack.c.0.s8 %v6103
  %v6105 = vlaneseq
  %v6106 = vshrl.u32 %v6105, 7
  %v6107 = vsub.s32 %v6104, %v6106
  %v6108 = vrot.slane %v6100, %v6107
  %v6110 = vunpack.c.l.s4 1934713408
  %v6111 = vunpack.c.0.s8 %v6110
  %v6112 = vlaneseq
  %v6113 = vshrl.u32 %v6112, 7
  %v6114 = vsub.s32 %v6111, %v6113
  %v6115 = vrot.slane %v6101, %v6114
  %v6116 = vcombine.low %v6083, %v6099
  %v6117 = vcombine.high %v6083, %v6099
  %v6119 = vunpack.c.l.s4 1934713408
  %v6120 = vunpack.c.0.s8 %v6119
  %v6121 = vlaneseq
  %v6122 = vshrl.u32 %v6121, 7
  %v6123 = vsub.s32 %v6120, %v6122
  %v6124 = vrot.slane %v6116, %v6123
  %v6126 = vunpack.c.l.s4 1934713408
  %v6127 = vunpack.c.0.s8 %v6126
  %v6128 = vlaneseq
  %v6129 = vshrl.u32 %v6128, 7
  %v6130 = vsub.s32 %v6127, %v6129
  %v6131 = vrot.slane %v6117, %v6130
  %v6132 = vcombine.high %v6108, 0.0
  %v6133 = vcombine.high %v6115, 0.0
  %v6134 = vcombine.high %v6124, 0.0
  %v6135 = vcombine.high %v6131, 0.0
  %v6136 = vcombine.low %v4170, %v4298
  %v6137 = vcombine.high %v4170, %v4298
  %v6139 = vunpack.c.l.s4 1983009808
  %v6140 = vunpack.c.0.s8 %v6139
  %v6141 = vlaneseq
  %v6142 = vshrl.u32 %v6141, 7
  %v6143 = vsub.s32 %v6140, %v6142
  %v6144 = vrot.slane %v6136, %v6143
  %v6146 = vunpack.c.l.s4 1983009808
  %v6147 = vunpack.c.0.s8 %v6146
  %v6148 = vlaneseq
  %v6149 = vshrl.u32 %v6148, 7
  %v6150 = vsub.s32 %v6147, %v6149
  %v6151 = vrot.slane %v6137, %v6150
  %v6152 = vcombine.low %v4234, %v4362
  %v6153 = vcombine.high %v4234, %v4362
  %v6155 = vunpack.c.l.s4 1983009808
  %v6156 = vunpack.c.0.s8 %v6155
  %v6157 = vlaneseq
  %v6158 = vshrl.u32 %v6157, 7
  %v6159 = vsub.s32 %v6156, %v6158
  %v6160 = vrot.slane %v6152, %v6159
  %v6162 = vunpack.c.l.s4 1983009808
  %v6163 = vunpack.c.0.s8 %v6162
  %v6164 = vlaneseq
  %v6165 = vshrl.u32 %v6164, 7
  %v6166 = vsub.s32 %v6163, %v6165
  %v6167 = vrot.slane %v6153, %v6166
  %v6168 = vcombine.low %v6144, %v6160
  %v6169 = vcombine.high %v6144, %v6160
  %v6171 = vunpack.c.l.s4 1934713408
  %v6172 = vunpack.c.0.s8 %v6171
  %v6173 = vlaneseq
  %v6174 = vshrl.u32 %v6173, 7
  %v6175 = vsub.s32 %v6172, %v6174
  %v6176 = vrot.slane %v6168, %v6175
  %v6178 = vunpack.c.l.s4 1934713408
  %v6179 = vunpack.c.0.s8 %v6178
  %v6180 = vlaneseq
  %v6181 = vshrl.u32 %v6180, 7
  %v6182 = vsub.s32 %v6179, %v6181
  %v6183 = vrot.slane %v6169, %v6182
  %v6184 = vcombine.low %v6151, %v6167
  %v6185 = vcombine.high %v6151, %v6167
  %v6187 = vunpack.c.l.s4 1934713408
  %v6188 = vunpack.c.0.s8 %v6187
  %v6189 = vlaneseq
  %v6190 = vshrl.u32 %v6189, 7
  %v6191 = vsub.s32 %v6188, %v6190
  %v6192 = vrot.slane %v6184, %v6191
  %v6194 = vunpack.c.l.s4 1934713408
  %v6195 = vunpack.c.0.s8 %v6194
  %v6196 = vlaneseq
  %v6197 = vshrl.u32 %v6196, 7
  %v6198 = vsub.s32 %v6195, %v6197
  %v6199 = vrot.slane %v6185, %v6198
  %v6200 = vcombine.high %v6176, 0.0
  %v6201 = vcombine.high %v6183, 0.0
  %v6202 = vcombine.high %v6192, 0.0
  %v6203 = vcombine.high %v6199, 0.0
  %v6204 = vcombine.low %v4171, %v4299
  %v6205 = vcombine.high %v4171, %v4299
  %v6207 = vunpack.c.l.s4 1983009808
  %v6208 = vunpack.c.0.s8 %v6207
  %v6209 = vlaneseq
  %v6210 = vshrl.u32 %v6209, 7
  %v6211 = vsub.s32 %v6208, %v6210
  %v6212 = vrot.slane %v6204, %v6211
  %v6214 = vunpack.c.l.s4 1983009808
  %v6215 = vunpack.c.0.s8 %v6214
  %v6216 = vlaneseq
  %v6217 = vshrl.u32 %v6216, 7
  %v6218 = vsub.s32 %v6215, %v6217
  %v6219 = vrot.slane %v6205, %v6218
  %v6220 = vcombine.low %v4235, %v4363
  %v6221 = vcombine.high %v4235, %v4363
  %v6223 = vunpack.c.l.s4 1983009808
  %v6224 = vunpack.c.0.s8 %v6223
  %v6225 = vlaneseq
  %v6226 = vshrl.u32 %v6225, 7
  %v6227 = vsub.s32 %v6224, %v6226
  %v6228 = vrot.slane %v6220, %v6227
  %v6230 = vunpack.c.l.s4 1983009808
  %v6231 = vunpack.c.0.s8 %v6230
  %v6232 = vlaneseq
  %v6233 = vshrl.u32 %v6232, 7
  %v6234 = vsub.s32 %v6231, %v6233
  %v6235 = vrot.slane %v6221, %v6234
  %v6236 = vcombine.low %v6212, %v6228
  %v6237 = vcombine.high %v6212, %v6228
  %v6239 = vunpack.c.l.s4 1934713408
  %v6240 = vunpack.c.0.s8 %v6239
  %v6241 = vlaneseq
  %v6242 = vshrl.u32 %v6241, 7
  %v6243 = vsub.s32 %v6240, %v6242
  %v6244 = vrot.slane %v6236, %v6243
  %v6246 = vunpack.c.l.s4 1934713408
  %v6247 = vunpack.c.0.s8 %v6246
  %v6248 = vlaneseq
  %v6249 = vshrl.u32 %v6248, 7
  %v6250 = vsub.s32 %v6247, %v6249
  %v6251 = vrot.slane %v6237, %v6250
  %v6252 = vcombine.low %v6219, %v6235
  %v6253 = vcombine.high %v6219, %v6235
  %v6255 = vunpack.c.l.s4 1934713408
  %v6256 = vunpack.c.0.s8 %v6255
  %v6257 = vlaneseq
  %v6258 = vshrl.u32 %v6257, 7
  %v6259 = vsub.s32 %v6256, %v6258
  %v6260 = vrot.slane %v6252, %v6259
  %v6262 = vunpack.c.l.s4 1934713408
  %v6263 = vunpack.c.0.s8 %v6262
  %v6264 = vlaneseq
  %v6265 = vshrl.u32 %v6264, 7
  %v6266 = vsub.s32 %v6263, %v6265
  %v6267 = vrot.slane %v6253, %v6266
  %v6268 = vcombine.high %v6244, 0.0
  %v6269 = vcombine.high %v6251, 0.0
  %v6270 = vcombine.high %v6260, 0.0
  %v6271 = vcombine.high %v6267, 0.0
  %v6272 = vcombine.low %v4172, %v4300
  %v6273 = vcombine.high %v4172, %v4300
  %v6275 = vunpack.c.l.s4 1983009808
  %v6276 = vunpack.c.0.s8 %v6275
  %v6277 = vlaneseq
  %v6278 = vshrl.u32 %v6277, 7
  %v6279 = vsub.s32 %v6276, %v6278
  %v6280 = vrot.slane %v6272, %v6279
  %v6282 = vunpack.c.l.s4 1983009808
  %v6283 = vunpack.c.0.s8 %v6282
  %v6284 = vlaneseq
  %v6285 = vshrl.u32 %v6284, 7
  %v6286 = vsub.s32 %v6283, %v6285
  %v6287 = vrot.slane %v6273, %v6286
  %v6288 = vcombine.low %v4236, %v4364
  %v6289 = vcombine.high %v4236, %v4364
  %v6291 = vunpack.c.l.s4 1983009808
  %v6292 = vunpack.c.0.s8 %v6291
  %v6293 = vlaneseq
  %v6294 = vshrl.u32 %v6293, 7
  %v6295 = vsub.s32 %v6292, %v6294
  %v6296 = vrot.slane %v6288, %v6295
  %v6298 = vunpack.c.l.s4 1983009808
  %v6299 = vunpack.c.0.s8 %v6298
  %v6300 = vlaneseq
  %v6301 = vshrl.u32 %v6300, 7
  %v6302 = vsub.s32 %v6299, %v6301
  %v6303 = vrot.slane %v6289, %v6302
  %v6304 = vcombine.low %v6280, %v6296
  %v6305 = vcombine.high %v6280, %v6296
  %v6307 = vunpack.c.l.s4 1934713408
  %v6308 = vunpack.c.0.s8 %v6307
  %v6309 = vlaneseq
  %v6310 = vshrl.u32 %v6309, 7
  %v6311 = vsub.s32 %v6308, %v6310
  %v6312 = vrot.slane %v6304, %v6311
  %v6314 = vunpack.c.l.s4 1934713408
  %v6315 = vunpack.c.0.s8 %v6314
  %v6316 = vlaneseq
  %v6317 = vshrl.u32 %v6316, 7
  %v6318 = vsub.s32 %v6315, %v6317
  %v6319 = vrot.slane %v6305, %v6318
  %v6320 = vcombine.low %v6287, %v6303
  %v6321 = vcombine.high %v6287, %v6303
  %v6323 = vunpack.c.l.s4 1934713408
  %v6324 = vunpack.c.0.s8 %v6323
  %v6325 = vlaneseq
  %v6326 = vshrl.u32 %v6325, 7
  %v6327 = vsub.s32 %v6324, %v6326
  %v6328 = vrot.slane %v6320, %v6327
  %v6330 = vunpack.c.l.s4 1934713408
  %v6331 = vunpack.c.0.s8 %v6330
  %v6332 = vlaneseq
  %v6333 = vshrl.u32 %v6332, 7
  %v6334 = vsub.s32 %v6331, %v6333
  %v6335 = vrot.slane %v6321, %v6334
  %v6336 = vcombine.high %v6312, 0.0
  %v6337 = vcombine.high %v6319, 0.0
  %v6338 = vcombine.high %v6328, 0.0
  %v6339 = vcombine.high %v6335, 0.0
  %v6340 = vcombine.low %v4173, %v4301
  %v6341 = vcombine.high %v4173, %v4301
  %v6343 = vunpack.c.l.s4 1983009808
  %v6344 = vunpack.c.0.s8 %v6343
  %v6345 = vlaneseq
  %v6346 = vshrl.u32 %v6345, 7
  %v6347 = vsub.s32 %v6344, %v6346
  %v6348 = vrot.slane %v6340, %v6347
  %v6350 = vunpack.c.l.s4 1983009808
  %v6351 = vunpack.c.0.s8 %v6350
  %v6352 = vlaneseq
  %v6353 = vshrl.u32 %v6352, 7
  %v6354 = vsub.s32 %v6351, %v6353
  %v6355 = vrot.slane %v6341, %v6354
  %v6356 = vcombine.low %v4237, %v4365
  %v6357 = vcombine.high %v4237, %v4365
  %v6359 = vunpack.c.l.s4 1983009808
  %v6360 = vunpack.c.0.s8 %v6359
  %v6361 = vlaneseq
  %v6362 = vshrl.u32 %v6361, 7
  %v6363 = vsub.s32 %v6360, %v6362
  %v6364 = vrot.slane %v6356, %v6363
  %v6366 = vunpack.c.l.s4 1983009808
  %v6367 = vunpack.c.0.s8 %v6366
  %v6368 = vlaneseq
  %v6369 = vshrl.u32 %v6368, 7
  %v6370 = vsub.s32 %v6367, %v6369
  %v6371 = vrot.slane %v6357, %v6370
  %v6372 = vcombine.low %v6348, %v6364
  %v6373 = vcombine.high %v6348, %v6364
  %v6375 = vunpack.c.l.s4 1934713408
  %v6376 = vunpack.c.0.s8 %v6375
  %v6377 = vlaneseq
  %v6378 = vshrl.u32 %v6377, 7
  %v6379 = vsub.s32 %v6376, %v6378
  %v6380 = vrot.slane %v6372, %v6379
  %v6382 = vunpack.c.l.s4 1934713408
  %v6383 = vunpack.c.0.s8 %v6382
  %v6384 = vlaneseq
  %v6385 = vshrl.u32 %v6384, 7
  %v6386 = vsub.s32 %v6383, %v6385
  %v6387 = vrot.slane %v6373, %v6386
  %v6388 = vcombine.low %v6355, %v6371
  %v6389 = vcombine.high %v6355, %v6371
  %v6391 = vunpack.c.l.s4 1934713408
  %v6392 = vunpack.c.0.s8 %v6391
  %v6393 = vlaneseq
  %v6394 = vshrl.u32 %v6393, 7
  %v6395 = vsub.s32 %v6392, %v6394
  %v6396 = vrot.slane %v6388, %v6395
  %v6398 = vunpack.c.l.s4 1934713408
  %v6399 = vunpack.c.0.s8 %v6398
  %v6400 = vlaneseq
  %v6401 = vshrl.u32 %v6400, 7
  %v6402 = vsub.s32 %v6399, %v6401
  %v6403 = vrot.slane %v6389, %v6402
  %v6404 = vcombine.high %v6380, 0.0
  %v6405 = vcombine.high %v6387, 0.0
  %v6406 = vcombine.high %v6396, 0.0
  %v6407 = vcombine.high %v6403, 0.0
  %v6408 = vcombine.low %v4174, %v4302
  %v6409 = vcombine.high %v4174, %v4302
  %v6411 = vunpack.c.l.s4 1983009808
  %v6412 = vunpack.c.0.s8 %v6411
  %v6413 = vlaneseq
  %v6414 = vshrl.u32 %v6413, 7
  %v6415 = vsub.s32 %v6412, %v6414
  %v6416 = vrot.slane %v6408, %v6415
  %v6418 = vunpack.c.l.s4 1983009808
  %v6419 = vunpack.c.0.s8 %v6418
  %v6420 = vlaneseq
  %v6421 = vshrl.u32 %v6420, 7
  %v6422 = vsub.s32 %v6419, %v6421
  %v6423 = vrot.slane %v6409, %v6422
  %v6424 = vcombine.low %v4238, %v4366
  %v6425 = vcombine.high %v4238, %v4366
  %v6427 = vunpack.c.l.s4 1983009808
  %v6428 = vunpack.c.0.s8 %v6427
  %v6429 = vlaneseq
  %v6430 = vshrl.u32 %v6429, 7
  %v6431 = vsub.s32 %v6428, %v6430
  %v6432 = vrot.slane %v6424, %v6431
  %v6434 = vunpack.c.l.s4 1983009808
  %v6435 = vunpack.c.0.s8 %v6434
  %v6436 = vlaneseq
  %v6437 = vshrl.u32 %v6436, 7
  %v6438 = vsub.s32 %v6435, %v6437
  %v6439 = vrot.slane %v6425, %v6438
  %v6440 = vcombine.low %v6416, %v6432
  %v6441 = vcombine.high %v6416, %v6432
  %v6443 = vunpack.c.l.s4 1934713408
  %v6444 = vunpack.c.0.s8 %v6443
  %v6445 = vlaneseq
  %v6446 = vshrl.u32 %v6445, 7
  %v6447 = vsub.s32 %v6444, %v6446
  %v6448 = vrot.slane %v6440, %v6447
  %v6450 = vunpack.c.l.s4 1934713408
  %v6451 = vunpack.c.0.s8 %v6450
  %v6452 = vlaneseq
  %v6453 = vshrl.u32 %v6452, 7
  %v6454 = vsub.s32 %v6451, %v6453
  %v6455 = vrot.slane %v6441, %v6454
  %v6456 = vcombine.low %v6423, %v6439
  %v6457 = vcombine.high %v6423, %v6439
  %v6459 = vunpack.c.l.s4 1934713408
  %v6460 = vunpack.c.0.s8 %v6459
  %v6461 = vlaneseq
  %v6462 = vshrl.u32 %v6461, 7
  %v6463 = vsub.s32 %v6460, %v6462
  %v6464 = vrot.slane %v6456, %v6463
  %v6466 = vunpack.c.l.s4 1934713408
  %v6467 = vunpack.c.0.s8 %v6466
  %v6468 = vlaneseq
  %v6469 = vshrl.u32 %v6468, 7
  %v6470 = vsub.s32 %v6467, %v6469
  %v6471 = vrot.slane %v6457, %v6470
  %v6472 = vcombine.high %v6448, 0.0
  %v6473 = vcombine.high %v6455, 0.0
  %v6474 = vcombine.high %v6464, 0.0
  %v6475 = vcombine.high %v6471, 0.0
  %v6476 = vcombine.low %v4175, %v4303
  %v6477 = vcombine.high %v4175, %v4303
  %v6479 = vunpack.c.l.s4 1983009808
  %v6480 = vunpack.c.0.s8 %v6479
  %v6481 = vlaneseq
  %v6482 = vshrl.u32 %v6481, 7
  %v6483 = vsub.s32 %v6480, %v6482
  %v6484 = vrot.slane %v6476, %v6483
  %v6486 = vunpack.c.l.s4 1983009808
  %v6487 = vunpack.c.0.s8 %v6486
  %v6488 = vlaneseq
  %v6489 = vshrl.u32 %v6488, 7
  %v6490 = vsub.s32 %v6487, %v6489
  %v6491 = vrot.slane %v6477, %v6490
  %v6492 = vcombine.low %v4239, %v4367
  %v6493 = vcombine.high %v4239, %v4367
  %v6495 = vunpack.c.l.s4 1983009808
  %v6496 = vunpack.c.0.s8 %v6495
  %v6497 = vlaneseq
  %v6498 = vshrl.u32 %v6497, 7
  %v6499 = vsub.s32 %v6496, %v6498
  %v6500 = vrot.slane %v6492, %v6499
  %v6502 = vunpack.c.l.s4 1983009808
  %v6503 = vunpack.c.0.s8 %v6502
  %v6504 = vlaneseq
  %v6505 = vshrl.u32 %v6504, 7
  %v6506 = vsub.s32 %v6503, %v6505
  %v6507 = vrot.slane %v6493, %v6506
  %v6508 = vcombine.low %v6484, %v6500
  %v6509 = vcombine.high %v6484, %v6500
  %v6511 = vunpack.c.l.s4 1934713408
  %v6512 = vunpack.c.0.s8 %v6511
  %v6513 = vlaneseq
  %v6514 = vshrl.u32 %v6513, 7
  %v6515 = vsub.s32 %v6512, %v6514
  %v6516 = vrot.slane %v6508, %v6515
  %v6518 = vunpack.c.l.s4 1934713408
  %v6519 = vunpack.c.0.s8 %v6518
  %v6520 = vlaneseq
  %v6521 = vshrl.u32 %v6520, 7
  %v6522 = vsub.s32 %v6519, %v6521
  %v6523 = vrot.slane %v6509, %v6522
  %v6524 = vcombine.low %v6491, %v6507
  %v6525 = vcombine.high %v6491, %v6507
  %v6527 = vunpack.c.l.s4 1934713408
  %v6528 = vunpack.c.0.s8 %v6527
  %v6529 = vlaneseq
  %v6530 = vshrl.u32 %v6529, 7
  %v6531 = vsub.s32 %v6528, %v6530
  %v6532 = vrot.slane %v6524, %v6531
  %v6534 = vunpack.c.l.s4 1934713408
  %v6535 = vunpack.c.0.s8 %v6534
  %v6536 = vlaneseq
  %v6537 = vshrl.u32 %v6536, 7
  %v6538 = vsub.s32 %v6535, %v6537
  %v6539 = vrot.slane %v6525, %v6538
  %v6540 = vcombine.high %v6516, 0.0
  %v6541 = vcombine.high %v6523, 0.0
  %v6542 = vcombine.high %v6532, 0.0
  %v6543 = vcombine.high %v6539, 0.0
  %v6544 = vrcp.pop %v3118
  %v6545 = vrcp.pop %v3121
  %v6546 = vrcp.pop %v3124
  %v6547 = vrcp.pop %v3127
  %v6548 = vrcp.pop %v3130
  %v6549 = vrcp.pop %v3133
  %v6550 = vrcp.pop %v3136
  %v6551 = vrcp.pop %v3139
  %v6552 = vrcp.pop %v3142
  %v6553 = vrcp.pop %v3145
  %v6554 = vrcp.pop %v3148
  %v6555 = vrcp.pop %v3151
  %v6556 = vrcp.pop %v3154
  %v6557 = vrcp.pop %v3157
  %v6558 = vrcp.pop %v3160
  %v6559 = vrcp.pop %v3163
  %v6560 = vrcp.pop %v3166
  %v6561 = vrcp.pop %v3169
  %v6562 = vrcp.pop %v3172
  %v6563 = vrcp.pop %v3175
  %v6564 = vrcp.pop %v3178
  %v6565 = vrcp.pop %v3181
  %v6566 = vrcp.pop %v3184
  %v6567 = vrcp.pop %v3187
  %v6568 = vrcp.pop %v3190
  %v6569 = vrcp.pop %v3193
  %v6570 = vrcp.pop %v3196
  %v6571 = vrcp.pop %v3199
  %v6572 = vrcp.pop %v3202
  %v6573 = vrcp.pop %v3205
  %v6574 = vrcp.pop %v3208
  %v6575 = vrcp.pop %v3211
  %v6576 = vrcp.pop %v3214
  %v6577 = vrcp.pop %v3217
  %v6578 = vrcp.pop %v3220
  %v6579 = vrcp.pop %v3223
  %v6580 = vrcp.pop %v3226
  %v6581 = vrcp.pop %v3229
  %v6582 = vrcp.pop %v3232
  %v6583 = vrcp.pop %v3235
  %v6584 = vrcp.pop %v3238
  %v6585 = vrcp.pop %v3241
  %v6586 = vrcp.pop %v3244
  %v6587 = vrcp.pop %v3247
  %v6588 = vrcp.pop %v3250
  %v6589 = vrcp.pop %v3253
  %v6590 = vrcp.pop %v3256
  %v6591 = vrcp.pop %v3259
  %v6592 = vrcp.pop %v3262
  %v6593 = vrcp.pop %v3265
  %v6594 = vrcp.pop %v3268
  %v6595 = vrcp.pop %v3271
  %v6596 = vrcp.pop %v3274
  %v6597 = vrcp.pop %v3277
  %v6598 = vrcp.pop %v3280
  %v6599 = vrcp.pop %v3283
  %v6600 = vrcp.pop %v3286
  %v6601 = vrcp.pop %v3289
  %v6602 = vrcp.pop %v3292
  %v6603 = vrcp.pop %v3295
  %v6604 = vrcp.pop %v3298
  %v6605 = vrcp.pop %v3301
  %v6606 = vrcp.pop %v3304
  %v6607 = vrcp.pop %v3307
  %v6608 = vrcp.pop %v3310
  %v6609 = vrcp.pop %v3313
  %v6610 = vrcp.pop %v3316
  %v6611 = vrcp.pop %v3319
  %v6612 = vrcp.pop %v3322
  %v6613 = vrcp.pop %v3325
  %v6614 = vrcp.pop %v3328
  %v6615 = vrcp.pop %v3331
  %v6616 = vrcp.pop %v3334
  %v6617 = vrcp.pop %v3337
  %v6618 = vrcp.pop %v3340
  %v6619 = vrcp.pop %v3343
  %v6620 = vrcp.pop %v3346
  %v6621 = vrcp.pop %v3349
  %v6622 = vrcp.pop %v3352
  %v6623 = vrcp.pop %v3355
  %v6624 = vrcp.pop %v3358
  %v6625 = vrcp.pop %v3361
  %v6626 = vrcp.pop %v3364
  %v6627 = vrcp.pop %v3367
  %v6628 = vrcp.pop %v3370
  %v6629 = vrcp.pop %v3373
  %v6630 = vrcp.pop %v3376
  %v6631 = vrcp.pop %v3379
  %v6632 = vrcp.pop %v3382
  %v6633 = vrcp.pop %v3385
  %v6634 = vrcp.pop %v3388
  %v6635 = vrcp.pop %v3391
  %v6636 = vrcp.pop %v3394
  %v6637 = vrcp.pop %v3397
  %v6638 = vrcp.pop %v3400
  %v6639 = vrcp.pop %v3403
  %v6640 = vrcp.pop %v3406
  %v6641 = vrcp.pop %v3409
  %v6642 = vrcp.pop %v3412
  %v6643 = vrcp.pop %v3415
  %v6644 = vrcp.pop %v3418
  %v6645 = vrcp.pop %v3421
  %v6646 = vrcp.pop %v3424
  %v6647 = vrcp.pop %v3427
  %v6648 = vrcp.pop %v3430
  %v6649 = vrcp.pop %v3433
  %v6650 = vrcp.pop %v3436
  %v6651 = vrcp.pop %v3439
  %v6652 = vrcp.pop %v3442
  %v6653 = vrcp.pop %v3445
  %v6654 = vrcp.pop %v3448
  %v6655 = vrcp.pop %v3451
  %v6656 = vrcp.pop %v3454
  %v6657 = vrcp.pop %v3457
  %v6658 = vrcp.pop %v3460
  %v6659 = vrcp.pop %v3463
  %v6660 = vrcp.pop %v3466
  %v6661 = vrcp.pop %v3469
  %v6662 = vrcp.pop %v3472
  %v6663 = vrcp.pop %v3475
  %v6664 = vrcp.pop %v3478
  %v6665 = vrcp.pop %v3481
  %v6666 = vrcp.pop %v3484
  %v6667 = vrcp.pop %v3487
  %v6668 = vrcp.pop %v3490
  %v6669 = vrcp.pop %v3493
  %v6670 = vrcp.pop %v3496
  %v6671 = vrcp.pop %v3499
  %v6800 = vlaneseq
  %v6801 = vand.u32 %v6800, 127
  %v6802 = vlaneseq
  %v6803 = vshrl.u32 %v6802, 7
  %v6804 = vsub.s32 %v6801, %v6803
  %v6805 = vrot.slane %v6544, %v6804
  %v6806 = vadd.s32 %v6801, 4294967288
  %v6807 = vlaneseq
  %v6808 = vshrl.u32 %v6807, 7
  %v6809 = vsub.s32 %v6806, %v6808
  %v6810 = vrot.slane %v6545, %v6809
  %vm6811 = vcmask 130112
  %v6812 = vsel %vm6811, %v6810, %v6805
  %v6813 = vadd.s32 %v6801, 4294967280
  %v6814 = vlaneseq
  %v6815 = vshrl.u32 %v6814, 7
  %v6816 = vsub.s32 %v6813, %v6815
  %v6817 = vrot.slane %v6546, %v6816
  %vm6818 = vcmask 195712
  %v6819 = vsel %vm6818, %v6817, %v6812
  %v6820 = vadd.s32 %v6801, 4294967272
  %v6821 = vlaneseq
  %v6822 = vshrl.u32 %v6821, 7
  %v6823 = vsub.s32 %v6820, %v6822
  %v6824 = vrot.slane %v6547, %v6823
  %vm6825 = vcmask 261312
  %v6826 = vsel %vm6825, %v6824, %v6819
  %v6827 = vadd.s32 %v6801, 4294967264
  %v6828 = vlaneseq
  %v6829 = vshrl.u32 %v6828, 7
  %v6830 = vsub.s32 %v6827, %v6829
  %v6831 = vrot.slane %v6548, %v6830
  %vm6832 = vcmask 326912
  %v6833 = vsel %vm6832, %v6831, %v6826
  %v6834 = vadd.s32 %v6801, 4294967256
  %v6835 = vlaneseq
  %v6836 = vshrl.u32 %v6835, 7
  %v6837 = vsub.s32 %v6834, %v6836
  %v6838 = vrot.slane %v6549, %v6837
  %vm6839 = vcmask 392512
  %v6840 = vsel %vm6839, %v6838, %v6833
  %v6841 = vadd.s32 %v6801, 4294967248
  %v6842 = vlaneseq
  %v6843 = vshrl.u32 %v6842, 7
  %v6844 = vsub.s32 %v6841, %v6843
  %v6845 = vrot.slane %v6550, %v6844
  %vm6846 = vcmask 458112
  %v6847 = vsel %vm6846, %v6845, %v6840
  %v6848 = vadd.s32 %v6801, 4294967240
  %v6849 = vlaneseq
  %v6850 = vshrl.u32 %v6849, 7
  %v6851 = vsub.s32 %v6848, %v6850
  %v6852 = vrot.slane %v6551, %v6851
  %vm6853 = vcmask 523712
  %v6854 = vsel %vm6853, %v6852, %v6847
  %v6855 = vadd.s32 %v6801, 4294967232
  %v6856 = vlaneseq
  %v6857 = vshrl.u32 %v6856, 7
  %v6858 = vsub.s32 %v6855, %v6857
  %v6859 = vrot.slane %v6552, %v6858
  %vm6860 = vcmask 589312
  %v6861 = vsel %vm6860, %v6859, %v6854
  %v6862 = vadd.s32 %v6801, 4294967224
  %v6863 = vlaneseq
  %v6864 = vshrl.u32 %v6863, 7
  %v6865 = vsub.s32 %v6862, %v6864
  %v6866 = vrot.slane %v6553, %v6865
  %vm6867 = vcmask 654912
  %v6868 = vsel %vm6867, %v6866, %v6861
  %v6869 = vadd.s32 %v6801, 4294967216
  %v6870 = vlaneseq
  %v6871 = vshrl.u32 %v6870, 7
  %v6872 = vsub.s32 %v6869, %v6871
  %v6873 = vrot.slane %v6554, %v6872
  %vm6874 = vcmask 720512
  %v6875 = vsel %vm6874, %v6873, %v6868
  %v6876 = vadd.s32 %v6801, 4294967208
  %v6877 = vlaneseq
  %v6878 = vshrl.u32 %v6877, 7
  %v6879 = vsub.s32 %v6876, %v6878
  %v6880 = vrot.slane %v6555, %v6879
  %vm6881 = vcmask 786112
  %v6882 = vsel %vm6881, %v6880, %v6875
  %v6883 = vadd.s32 %v6801, 4294967200
  %v6884 = vlaneseq
  %v6885 = vshrl.u32 %v6884, 7
  %v6886 = vsub.s32 %v6883, %v6885
  %v6887 = vrot.slane %v6556, %v6886
  %vm6888 = vcmask 851712
  %v6889 = vsel %vm6888, %v6887, %v6882
  %v6890 = vadd.s32 %v6801, 4294967192
  %v6891 = vlaneseq
  %v6892 = vshrl.u32 %v6891, 7
  %v6893 = vsub.s32 %v6890, %v6892
  %v6894 = vrot.slane %v6557, %v6893
  %vm6895 = vcmask 917312
  %v6896 = vsel %vm6895, %v6894, %v6889
  %v6897 = vadd.s32 %v6801, 4294967184
  %v6898 = vlaneseq
  %v6899 = vshrl.u32 %v6898, 7
  %v6900 = vsub.s32 %v6897, %v6899
  %v6901 = vrot.slane %v6558, %v6900
  %vm6902 = vcmask 982912
  %v6903 = vsel %vm6902, %v6901, %v6896
  %v6904 = vadd.s32 %v6801, 4294967176
  %v6905 = vlaneseq
  %v6906 = vshrl.u32 %v6905, 7
  %v6907 = vsub.s32 %v6904, %v6906
  %v6908 = vrot.slane %v6559, %v6907
  %vm6909 = vcmask 1048512
  %v6910 = vsel %vm6909, %v6908, %v6903
  %v6911 = vlaneseq
  %v6912 = vshrl.u32 %v6911, 7
  %v6913 = vsub.s32 %v6801, %v6912
  %v6914 = vrot.slane %v6560, %v6913
  %v6915 = vlaneseq
  %v6916 = vshrl.u32 %v6915, 7
  %v6917 = vsub.s32 %v6806, %v6916
  %v6918 = vrot.slane %v6561, %v6917
  %v6919 = vsel %vm6811, %v6918, %v6914
  %v6920 = vlaneseq
  %v6921 = vshrl.u32 %v6920, 7
  %v6922 = vsub.s32 %v6813, %v6921
  %v6923 = vrot.slane %v6562, %v6922
  %v6924 = vsel %vm6818, %v6923, %v6919
  %v6925 = vlaneseq
  %v6926 = vshrl.u32 %v6925, 7
  %v6927 = vsub.s32 %v6820, %v6926
  %v6928 = vrot.slane %v6563, %v6927
  %v6929 = vsel %vm6825, %v6928, %v6924
  %v6930 = vlaneseq
  %v6931 = vshrl.u32 %v6930, 7
  %v6932 = vsub.s32 %v6827, %v6931
  %v6933 = vrot.slane %v6564, %v6932
  %v6934 = vsel %vm6832, %v6933, %v6929
  %v6935 = vlaneseq
  %v6936 = vshrl.u32 %v6935, 7
  %v6937 = vsub.s32 %v6834, %v6936
  %v6938 = vrot.slane %v6565, %v6937
  %v6939 = vsel %vm6839, %v6938, %v6934
  %v6940 = vlaneseq
  %v6941 = vshrl.u32 %v6940, 7
  %v6942 = vsub.s32 %v6841, %v6941
  %v6943 = vrot.slane %v6566, %v6942
  %v6944 = vsel %vm6846, %v6943, %v6939
  %v6945 = vlaneseq
  %v6946 = vshrl.u32 %v6945, 7
  %v6947 = vsub.s32 %v6848, %v6946
  %v6948 = vrot.slane %v6567, %v6947
  %v6949 = vsel %vm6853, %v6948, %v6944
  %v6950 = vlaneseq
  %v6951 = vshrl.u32 %v6950, 7
  %v6952 = vsub.s32 %v6855, %v6951
  %v6953 = vrot.slane %v6568, %v6952
  %v6954 = vsel %vm6860, %v6953, %v6949
  %v6955 = vlaneseq
  %v6956 = vshrl.u32 %v6955, 7
  %v6957 = vsub.s32 %v6862, %v6956
  %v6958 = vrot.slane %v6569, %v6957
  %v6959 = vsel %vm6867, %v6958, %v6954
  %v6960 = vlaneseq
  %v6961 = vshrl.u32 %v6960, 7
  %v6962 = vsub.s32 %v6869, %v6961
  %v6963 = vrot.slane %v6570, %v6962
  %v6964 = vsel %vm6874, %v6963, %v6959
  %v6965 = vlaneseq
  %v6966 = vshrl.u32 %v6965, 7
  %v6967 = vsub.s32 %v6876, %v6966
  %v6968 = vrot.slane %v6571, %v6967
  %v6969 = vsel %vm6881, %v6968, %v6964
  %v6970 = vlaneseq
  %v6971 = vshrl.u32 %v6970, 7
  %v6972 = vsub.s32 %v6883, %v6971
  %v6973 = vrot.slane %v6572, %v6972
  %v6974 = vsel %vm6888, %v6973, %v6969
  %v6975 = vlaneseq
  %v6976 = vshrl.u32 %v6975, 7
  %v6977 = vsub.s32 %v6890, %v6976
  %v6978 = vrot.slane %v6573, %v6977
  %v6979 = vsel %vm6895, %v6978, %v6974
  %v6980 = vlaneseq
  %v6981 = vshrl.u32 %v6980, 7
  %v6982 = vsub.s32 %v6897, %v6981
  %v6983 = vrot.slane %v6574, %v6982
  %v6984 = vsel %vm6902, %v6983, %v6979
  %v6985 = vlaneseq
  %v6986 = vshrl.u32 %v6985, 7
  %v6987 = vsub.s32 %v6904, %v6986
  %v6988 = vrot.slane %v6575, %v6987
  %v6989 = vsel %vm6909, %v6988, %v6984
  %v6990 = vlaneseq
  %v6991 = vshrl.u32 %v6990, 7
  %v6992 = vsub.s32 %v6801, %v6991
  %v6993 = vrot.slane %v6576, %v6992
  %v6994 = vlaneseq
  %v6995 = vshrl.u32 %v6994, 7
  %v6996 = vsub.s32 %v6806, %v6995
  %v6997 = vrot.slane %v6577, %v6996
  %v6998 = vsel %vm6811, %v6997, %v6993
  %v6999 = vlaneseq
  %v7000 = vshrl.u32 %v6999, 7
  %v7001 = vsub.s32 %v6813, %v7000
  %v7002 = vrot.slane %v6578, %v7001
  %v7003 = vsel %vm6818, %v7002, %v6998
  %v7004 = vlaneseq
  %v7005 = vshrl.u32 %v7004, 7
  %v7006 = vsub.s32 %v6820, %v7005
  %v7007 = vrot.slane %v6579, %v7006
  %v7008 = vsel %vm6825, %v7007, %v7003
  %v7009 = vlaneseq
  %v7010 = vshrl.u32 %v7009, 7
  %v7011 = vsub.s32 %v6827, %v7010
  %v7012 = vrot.slane %v6580, %v7011
  %v7013 = vsel %vm6832, %v7012, %v7008
  %v7014 = vlaneseq
  %v7015 = vshrl.u32 %v7014, 7
  %v7016 = vsub.s32 %v6834, %v7015
  %v7017 = vrot.slane %v6581, %v7016
  %v7018 = vsel %vm6839, %v7017, %v7013
  %v7019 = vlaneseq
  %v7020 = vshrl.u32 %v7019, 7
  %v7021 = vsub.s32 %v6841, %v7020
  %v7022 = vrot.slane %v6582, %v7021
  %v7023 = vsel %vm6846, %v7022, %v7018
  %v7024 = vlaneseq
  %v7025 = vshrl.u32 %v7024, 7
  %v7026 = vsub.s32 %v6848, %v7025
  %v7027 = vrot.slane %v6583, %v7026
  %v7028 = vsel %vm6853, %v7027, %v7023
  %v7029 = vlaneseq
  %v7030 = vshrl.u32 %v7029, 7
  %v7031 = vsub.s32 %v6855, %v7030
  %v7032 = vrot.slane %v6584, %v7031
  %v7033 = vsel %vm6860, %v7032, %v7028
  %v7034 = vlaneseq
  %v7035 = vshrl.u32 %v7034, 7
  %v7036 = vsub.s32 %v6862, %v7035
  %v7037 = vrot.slane %v6585, %v7036
  %v7038 = vsel %vm6867, %v7037, %v7033
  %v7039 = vlaneseq
  %v7040 = vshrl.u32 %v7039, 7
  %v7041 = vsub.s32 %v6869, %v7040
  %v7042 = vrot.slane %v6586, %v7041
  %v7043 = vsel %vm6874, %v7042, %v7038
  %v7044 = vlaneseq
  %v7045 = vshrl.u32 %v7044, 7
  %v7046 = vsub.s32 %v6876, %v7045
  %v7047 = vrot.slane %v6587, %v7046
  %v7048 = vsel %vm6881, %v7047, %v7043
  %v7049 = vlaneseq
  %v7050 = vshrl.u32 %v7049, 7
  %v7051 = vsub.s32 %v6883, %v7050
  %v7052 = vrot.slane %v6588, %v7051
  %v7053 = vsel %vm6888, %v7052, %v7048
  %v7054 = vlaneseq
  %v7055 = vshrl.u32 %v7054, 7
  %v7056 = vsub.s32 %v6890, %v7055
  %v7057 = vrot.slane %v6589, %v7056
  %v7058 = vsel %vm6895, %v7057, %v7053
  %v7059 = vlaneseq
  %v7060 = vshrl.u32 %v7059, 7
  %v7061 = vsub.s32 %v6897, %v7060
  %v7062 = vrot.slane %v6590, %v7061
  %v7063 = vsel %vm6902, %v7062, %v7058
  %v7064 = vlaneseq
  %v7065 = vshrl.u32 %v7064, 7
  %v7066 = vsub.s32 %v6904, %v7065
  %v7067 = vrot.slane %v6591, %v7066
  %v7068 = vsel %vm6909, %v7067, %v7063
  %v7069 = vlaneseq
  %v7070 = vshrl.u32 %v7069, 7
  %v7071 = vsub.s32 %v6801, %v7070
  %v7072 = vrot.slane %v6592, %v7071
  %v7073 = vlaneseq
  %v7074 = vshrl.u32 %v7073, 7
  %v7075 = vsub.s32 %v6806, %v7074
  %v7076 = vrot.slane %v6593, %v7075
  %v7077 = vsel %vm6811, %v7076, %v7072
  %v7078 = vlaneseq
  %v7079 = vshrl.u32 %v7078, 7
  %v7080 = vsub.s32 %v6813, %v7079
  %v7081 = vrot.slane %v6594, %v7080
  %v7082 = vsel %vm6818, %v7081, %v7077
  %v7083 = vlaneseq
  %v7084 = vshrl.u32 %v7083, 7
  %v7085 = vsub.s32 %v6820, %v7084
  %v7086 = vrot.slane %v6595, %v7085
  %v7087 = vsel %vm6825, %v7086, %v7082
  %v7088 = vlaneseq
  %v7089 = vshrl.u32 %v7088, 7
  %v7090 = vsub.s32 %v6827, %v7089
  %v7091 = vrot.slane %v6596, %v7090
  %v7092 = vsel %vm6832, %v7091, %v7087
  %v7093 = vlaneseq
  %v7094 = vshrl.u32 %v7093, 7
  %v7095 = vsub.s32 %v6834, %v7094
  %v7096 = vrot.slane %v6597, %v7095
  %v7097 = vsel %vm6839, %v7096, %v7092
  %v7098 = vlaneseq
  %v7099 = vshrl.u32 %v7098, 7
  %v7100 = vsub.s32 %v6841, %v7099
  %v7101 = vrot.slane %v6598, %v7100
  %v7102 = vsel %vm6846, %v7101, %v7097
  %v7103 = vlaneseq
  %v7104 = vshrl.u32 %v7103, 7
  %v7105 = vsub.s32 %v6848, %v7104
  %v7106 = vrot.slane %v6599, %v7105
  %v7107 = vsel %vm6853, %v7106, %v7102
  %v7108 = vlaneseq
  %v7109 = vshrl.u32 %v7108, 7
  %v7110 = vsub.s32 %v6855, %v7109
  %v7111 = vrot.slane %v6600, %v7110
  %v7112 = vsel %vm6860, %v7111, %v7107
  %v7113 = vlaneseq
  %v7114 = vshrl.u32 %v7113, 7
  %v7115 = vsub.s32 %v6862, %v7114
  %v7116 = vrot.slane %v6601, %v7115
  %v7117 = vsel %vm6867, %v7116, %v7112
  %v7118 = vlaneseq
  %v7119 = vshrl.u32 %v7118, 7
  %v7120 = vsub.s32 %v6869, %v7119
  %v7121 = vrot.slane %v6602, %v7120
  %v7122 = vsel %vm6874, %v7121, %v7117
  %v7123 = vlaneseq
  %v7124 = vshrl.u32 %v7123, 7
  %v7125 = vsub.s32 %v6876, %v7124
  %v7126 = vrot.slane %v6603, %v7125
  %v7127 = vsel %vm6881, %v7126, %v7122
  %v7128 = vlaneseq
  %v7129 = vshrl.u32 %v7128, 7
  %v7130 = vsub.s32 %v6883, %v7129
  %v7131 = vrot.slane %v6604, %v7130
  %v7132 = vsel %vm6888, %v7131, %v7127
  %v7133 = vlaneseq
  %v7134 = vshrl.u32 %v7133, 7
  %v7135 = vsub.s32 %v6890, %v7134
  %v7136 = vrot.slane %v6605, %v7135
  %v7137 = vsel %vm6895, %v7136, %v7132
  %v7138 = vlaneseq
  %v7139 = vshrl.u32 %v7138, 7
  %v7140 = vsub.s32 %v6897, %v7139
  %v7141 = vrot.slane %v6606, %v7140
  %v7142 = vsel %vm6902, %v7141, %v7137
  %v7143 = vlaneseq
  %v7144 = vshrl.u32 %v7143, 7
  %v7145 = vsub.s32 %v6904, %v7144
  %v7146 = vrot.slane %v6607, %v7145
  %v7147 = vsel %vm6909, %v7146, %v7142
  %v7148 = vlaneseq
  %v7149 = vshrl.u32 %v7148, 7
  %v7150 = vsub.s32 %v6801, %v7149
  %v7151 = vrot.slane %v6608, %v7150
  %v7152 = vlaneseq
  %v7153 = vshrl.u32 %v7152, 7
  %v7154 = vsub.s32 %v6806, %v7153
  %v7155 = vrot.slane %v6609, %v7154
  %v7156 = vsel %vm6811, %v7155, %v7151
  %v7157 = vlaneseq
  %v7158 = vshrl.u32 %v7157, 7
  %v7159 = vsub.s32 %v6813, %v7158
  %v7160 = vrot.slane %v6610, %v7159
  %v7161 = vsel %vm6818, %v7160, %v7156
  %v7162 = vlaneseq
  %v7163 = vshrl.u32 %v7162, 7
  %v7164 = vsub.s32 %v6820, %v7163
  %v7165 = vrot.slane %v6611, %v7164
  %v7166 = vsel %vm6825, %v7165, %v7161
  %v7167 = vlaneseq
  %v7168 = vshrl.u32 %v7167, 7
  %v7169 = vsub.s32 %v6827, %v7168
  %v7170 = vrot.slane %v6612, %v7169
  %v7171 = vsel %vm6832, %v7170, %v7166
  %v7172 = vlaneseq
  %v7173 = vshrl.u32 %v7172, 7
  %v7174 = vsub.s32 %v6834, %v7173
  %v7175 = vrot.slane %v6613, %v7174
  %v7176 = vsel %vm6839, %v7175, %v7171
  %v7177 = vlaneseq
  %v7178 = vshrl.u32 %v7177, 7
  %v7179 = vsub.s32 %v6841, %v7178
  %v7180 = vrot.slane %v6614, %v7179
  %v7181 = vsel %vm6846, %v7180, %v7176
  %v7182 = vlaneseq
  %v7183 = vshrl.u32 %v7182, 7
  %v7184 = vsub.s32 %v6848, %v7183
  %v7185 = vrot.slane %v6615, %v7184
  %v7186 = vsel %vm6853, %v7185, %v7181
  %v7187 = vlaneseq
  %v7188 = vshrl.u32 %v7187, 7
  %v7189 = vsub.s32 %v6855, %v7188
  %v7190 = vrot.slane %v6616, %v7189
  %v7191 = vsel %vm6860, %v7190, %v7186
  %v7192 = vlaneseq
  %v7193 = vshrl.u32 %v7192, 7
  %v7194 = vsub.s32 %v6862, %v7193
  %v7195 = vrot.slane %v6617, %v7194
  %v7196 = vsel %vm6867, %v7195, %v7191
  %v7197 = vlaneseq
  %v7198 = vshrl.u32 %v7197, 7
  %v7199 = vsub.s32 %v6869, %v7198
  %v7200 = vrot.slane %v6618, %v7199
  %v7201 = vsel %vm6874, %v7200, %v7196
  %v7202 = vlaneseq
  %v7203 = vshrl.u32 %v7202, 7
  %v7204 = vsub.s32 %v6876, %v7203
  %v7205 = vrot.slane %v6619, %v7204
  %v7206 = vsel %vm6881, %v7205, %v7201
  %v7207 = vlaneseq
  %v7208 = vshrl.u32 %v7207, 7
  %v7209 = vsub.s32 %v6883, %v7208
  %v7210 = vrot.slane %v6620, %v7209
  %v7211 = vsel %vm6888, %v7210, %v7206
  %v7212 = vlaneseq
  %v7213 = vshrl.u32 %v7212, 7
  %v7214 = vsub.s32 %v6890, %v7213
  %v7215 = vrot.slane %v6621, %v7214
  %v7216 = vsel %vm6895, %v7215, %v7211
  %v7217 = vlaneseq
  %v7218 = vshrl.u32 %v7217, 7
  %v7219 = vsub.s32 %v6897, %v7218
  %v7220 = vrot.slane %v6622, %v7219
  %v7221 = vsel %vm6902, %v7220, %v7216
  %v7222 = vlaneseq
  %v7223 = vshrl.u32 %v7222, 7
  %v7224 = vsub.s32 %v6904, %v7223
  %v7225 = vrot.slane %v6623, %v7224
  %v7226 = vsel %vm6909, %v7225, %v7221
  %v7227 = vlaneseq
  %v7228 = vshrl.u32 %v7227, 7
  %v7229 = vsub.s32 %v6801, %v7228
  %v7230 = vrot.slane %v6624, %v7229
  %v7231 = vlaneseq
  %v7232 = vshrl.u32 %v7231, 7
  %v7233 = vsub.s32 %v6806, %v7232
  %v7234 = vrot.slane %v6625, %v7233
  %v7235 = vsel %vm6811, %v7234, %v7230
  %v7236 = vlaneseq
  %v7237 = vshrl.u32 %v7236, 7
  %v7238 = vsub.s32 %v6813, %v7237
  %v7239 = vrot.slane %v6626, %v7238
  %v7240 = vsel %vm6818, %v7239, %v7235
  %v7241 = vlaneseq
  %v7242 = vshrl.u32 %v7241, 7
  %v7243 = vsub.s32 %v6820, %v7242
  %v7244 = vrot.slane %v6627, %v7243
  %v7245 = vsel %vm6825, %v7244, %v7240
  %v7246 = vlaneseq
  %v7247 = vshrl.u32 %v7246, 7
  %v7248 = vsub.s32 %v6827, %v7247
  %v7249 = vrot.slane %v6628, %v7248
  %v7250 = vsel %vm6832, %v7249, %v7245
  %v7251 = vlaneseq
  %v7252 = vshrl.u32 %v7251, 7
  %v7253 = vsub.s32 %v6834, %v7252
  %v7254 = vrot.slane %v6629, %v7253
  %v7255 = vsel %vm6839, %v7254, %v7250
  %v7256 = vlaneseq
  %v7257 = vshrl.u32 %v7256, 7
  %v7258 = vsub.s32 %v6841, %v7257
  %v7259 = vrot.slane %v6630, %v7258
  %v7260 = vsel %vm6846, %v7259, %v7255
  %v7261 = vlaneseq
  %v7262 = vshrl.u32 %v7261, 7
  %v7263 = vsub.s32 %v6848, %v7262
  %v7264 = vrot.slane %v6631, %v7263
  %v7265 = vsel %vm6853, %v7264, %v7260
  %v7266 = vlaneseq
  %v7267 = vshrl.u32 %v7266, 7
  %v7268 = vsub.s32 %v6855, %v7267
  %v7269 = vrot.slane %v6632, %v7268
  %v7270 = vsel %vm6860, %v7269, %v7265
  %v7271 = vlaneseq
  %v7272 = vshrl.u32 %v7271, 7
  %v7273 = vsub.s32 %v6862, %v7272
  %v7274 = vrot.slane %v6633, %v7273
  %v7275 = vsel %vm6867, %v7274, %v7270
  %v7276 = vlaneseq
  %v7277 = vshrl.u32 %v7276, 7
  %v7278 = vsub.s32 %v6869, %v7277
  %v7279 = vrot.slane %v6634, %v7278
  %v7280 = vsel %vm6874, %v7279, %v7275
  %v7281 = vlaneseq
  %v7282 = vshrl.u32 %v7281, 7
  %v7283 = vsub.s32 %v6876, %v7282
  %v7284 = vrot.slane %v6635, %v7283
  %v7285 = vsel %vm6881, %v7284, %v7280
  %v7286 = vlaneseq
  %v7287 = vshrl.u32 %v7286, 7
  %v7288 = vsub.s32 %v6883, %v7287
  %v7289 = vrot.slane %v6636, %v7288
  %v7290 = vsel %vm6888, %v7289, %v7285
  %v7291 = vlaneseq
  %v7292 = vshrl.u32 %v7291, 7
  %v7293 = vsub.s32 %v6890, %v7292
  %v7294 = vrot.slane %v6637, %v7293
  %v7295 = vsel %vm6895, %v7294, %v7290
  %v7296 = vlaneseq
  %v7297 = vshrl.u32 %v7296, 7
  %v7298 = vsub.s32 %v6897, %v7297
  %v7299 = vrot.slane %v6638, %v7298
  %v7300 = vsel %vm6902, %v7299, %v7295
  %v7301 = vlaneseq
  %v7302 = vshrl.u32 %v7301, 7
  %v7303 = vsub.s32 %v6904, %v7302
  %v7304 = vrot.slane %v6639, %v7303
  %v7305 = vsel %vm6909, %v7304, %v7300
  %v7306 = vlaneseq
  %v7307 = vshrl.u32 %v7306, 7
  %v7308 = vsub.s32 %v6801, %v7307
  %v7309 = vrot.slane %v6640, %v7308
  %v7310 = vlaneseq
  %v7311 = vshrl.u32 %v7310, 7
  %v7312 = vsub.s32 %v6806, %v7311
  %v7313 = vrot.slane %v6641, %v7312
  %v7314 = vsel %vm6811, %v7313, %v7309
  %v7315 = vlaneseq
  %v7316 = vshrl.u32 %v7315, 7
  %v7317 = vsub.s32 %v6813, %v7316
  %v7318 = vrot.slane %v6642, %v7317
  %v7319 = vsel %vm6818, %v7318, %v7314
  %v7320 = vlaneseq
  %v7321 = vshrl.u32 %v7320, 7
  %v7322 = vsub.s32 %v6820, %v7321
  %v7323 = vrot.slane %v6643, %v7322
  %v7324 = vsel %vm6825, %v7323, %v7319
  %v7325 = vlaneseq
  %v7326 = vshrl.u32 %v7325, 7
  %v7327 = vsub.s32 %v6827, %v7326
  %v7328 = vrot.slane %v6644, %v7327
  %v7329 = vsel %vm6832, %v7328, %v7324
  %v7330 = vlaneseq
  %v7331 = vshrl.u32 %v7330, 7
  %v7332 = vsub.s32 %v6834, %v7331
  %v7333 = vrot.slane %v6645, %v7332
  %v7334 = vsel %vm6839, %v7333, %v7329
  %v7335 = vlaneseq
  %v7336 = vshrl.u32 %v7335, 7
  %v7337 = vsub.s32 %v6841, %v7336
  %v7338 = vrot.slane %v6646, %v7337
  %v7339 = vsel %vm6846, %v7338, %v7334
  %v7340 = vlaneseq
  %v7341 = vshrl.u32 %v7340, 7
  %v7342 = vsub.s32 %v6848, %v7341
  %v7343 = vrot.slane %v6647, %v7342
  %v7344 = vsel %vm6853, %v7343, %v7339
  %v7345 = vlaneseq
  %v7346 = vshrl.u32 %v7345, 7
  %v7347 = vsub.s32 %v6855, %v7346
  %v7348 = vrot.slane %v6648, %v7347
  %v7349 = vsel %vm6860, %v7348, %v7344
  %v7350 = vlaneseq
  %v7351 = vshrl.u32 %v7350, 7
  %v7352 = vsub.s32 %v6862, %v7351
  %v7353 = vrot.slane %v6649, %v7352
  %v7354 = vsel %vm6867, %v7353, %v7349
  %v7355 = vlaneseq
  %v7356 = vshrl.u32 %v7355, 7
  %v7357 = vsub.s32 %v6869, %v7356
  %v7358 = vrot.slane %v6650, %v7357
  %v7359 = vsel %vm6874, %v7358, %v7354
  %v7360 = vlaneseq
  %v7361 = vshrl.u32 %v7360, 7
  %v7362 = vsub.s32 %v6876, %v7361
  %v7363 = vrot.slane %v6651, %v7362
  %v7364 = vsel %vm6881, %v7363, %v7359
  %v7365 = vlaneseq
  %v7366 = vshrl.u32 %v7365, 7
  %v7367 = vsub.s32 %v6883, %v7366
  %v7368 = vrot.slane %v6652, %v7367
  %v7369 = vsel %vm6888, %v7368, %v7364
  %v7370 = vlaneseq
  %v7371 = vshrl.u32 %v7370, 7
  %v7372 = vsub.s32 %v6890, %v7371
  %v7373 = vrot.slane %v6653, %v7372
  %v7374 = vsel %vm6895, %v7373, %v7369
  %v7375 = vlaneseq
  %v7376 = vshrl.u32 %v7375, 7
  %v7377 = vsub.s32 %v6897, %v7376
  %v7378 = vrot.slane %v6654, %v7377
  %v7379 = vsel %vm6902, %v7378, %v7374
  %v7380 = vlaneseq
  %v7381 = vshrl.u32 %v7380, 7
  %v7382 = vsub.s32 %v6904, %v7381
  %v7383 = vrot.slane %v6655, %v7382
  %v7384 = vsel %vm6909, %v7383, %v7379
  %v7385 = vlaneseq
  %v7386 = vshrl.u32 %v7385, 7
  %v7387 = vsub.s32 %v6801, %v7386
  %v7388 = vrot.slane %v6656, %v7387
  %v7389 = vlaneseq
  %v7390 = vshrl.u32 %v7389, 7
  %v7391 = vsub.s32 %v6806, %v7390
  %v7392 = vrot.slane %v6657, %v7391
  %v7393 = vsel %vm6811, %v7392, %v7388
  %v7394 = vlaneseq
  %v7395 = vshrl.u32 %v7394, 7
  %v7396 = vsub.s32 %v6813, %v7395
  %v7397 = vrot.slane %v6658, %v7396
  %v7398 = vsel %vm6818, %v7397, %v7393
  %v7399 = vlaneseq
  %v7400 = vshrl.u32 %v7399, 7
  %v7401 = vsub.s32 %v6820, %v7400
  %v7402 = vrot.slane %v6659, %v7401
  %v7403 = vsel %vm6825, %v7402, %v7398
  %v7404 = vlaneseq
  %v7405 = vshrl.u32 %v7404, 7
  %v7406 = vsub.s32 %v6827, %v7405
  %v7407 = vrot.slane %v6660, %v7406
  %v7408 = vsel %vm6832, %v7407, %v7403
  %v7409 = vlaneseq
  %v7410 = vshrl.u32 %v7409, 7
  %v7411 = vsub.s32 %v6834, %v7410
  %v7412 = vrot.slane %v6661, %v7411
  %v7413 = vsel %vm6839, %v7412, %v7408
  %v7414 = vlaneseq
  %v7415 = vshrl.u32 %v7414, 7
  %v7416 = vsub.s32 %v6841, %v7415
  %v7417 = vrot.slane %v6662, %v7416
  %v7418 = vsel %vm6846, %v7417, %v7413
  %v7419 = vlaneseq
  %v7420 = vshrl.u32 %v7419, 7
  %v7421 = vsub.s32 %v6848, %v7420
  %v7422 = vrot.slane %v6663, %v7421
  %v7423 = vsel %vm6853, %v7422, %v7418
  %v7424 = vlaneseq
  %v7425 = vshrl.u32 %v7424, 7
  %v7426 = vsub.s32 %v6855, %v7425
  %v7427 = vrot.slane %v6664, %v7426
  %v7428 = vsel %vm6860, %v7427, %v7423
  %v7429 = vlaneseq
  %v7430 = vshrl.u32 %v7429, 7
  %v7431 = vsub.s32 %v6862, %v7430
  %v7432 = vrot.slane %v6665, %v7431
  %v7433 = vsel %vm6867, %v7432, %v7428
  %v7434 = vlaneseq
  %v7435 = vshrl.u32 %v7434, 7
  %v7436 = vsub.s32 %v6869, %v7435
  %v7437 = vrot.slane %v6666, %v7436
  %v7438 = vsel %vm6874, %v7437, %v7433
  %v7439 = vlaneseq
  %v7440 = vshrl.u32 %v7439, 7
  %v7441 = vsub.s32 %v6876, %v7440
  %v7442 = vrot.slane %v6667, %v7441
  %v7443 = vsel %vm6881, %v7442, %v7438
  %v7444 = vlaneseq
  %v7445 = vshrl.u32 %v7444, 7
  %v7446 = vsub.s32 %v6883, %v7445
  %v7447 = vrot.slane %v6668, %v7446
  %v7448 = vsel %vm6888, %v7447, %v7443
  %v7449 = vlaneseq
  %v7450 = vshrl.u32 %v7449, 7
  %v7451 = vsub.s32 %v6890, %v7450
  %v7452 = vrot.slane %v6669, %v7451
  %v7453 = vsel %vm6895, %v7452, %v7448
  %v7454 = vlaneseq
  %v7455 = vshrl.u32 %v7454, 7
  %v7456 = vsub.s32 %v6897, %v7455
  %v7457 = vrot.slane %v6670, %v7456
  %v7458 = vsel %vm6902, %v7457, %v7453
  %v7459 = vlaneseq
  %v7460 = vshrl.u32 %v7459, 7
  %v7461 = vsub.s32 %v6904, %v7460
  %v7462 = vrot.slane %v6671, %v7461
  %v7463 = vsel %vm6909, %v7462, %v7458
  %vm7464 = vcmask 1041409
  %v7465 = vsel %vm7464, %v7068, %v6910
  %vm7466 = vcmask 1042434
  %v7467 = vsel %vm7466, %v7226, %v7465
  %vm7468 = vcmask 1043459
  %v7469 = vsel %vm7468, %v7384, %v7467
  %v7470 = vsel %vm7464, %v7147, %v6989
  %v7471 = vsel %vm7466, %v7305, %v7470
  %v7472 = vsel %vm7468, %v7463, %v7471
  %7475 = vxpose.xlu0.b32.start [1/16] %v7469, 128
  %7476 = vxpose.xlu0.b32.cont [2/16] 0.0, 128
  %7477 = vxpose.xlu0.b32.cont [3/16] 0.0, 128
  %7478 = vxpose.xlu0.b32.cont [4/16] 0.0, 128
  %7479 = vxpose.xlu0.b32.cont [5/16] 0.0, 128
  %7480 = vxpose.xlu0.b32.cont [6/16] 0.0, 128
  %7481 = vxpose.xlu0.b32.cont [7/16] 0.0, 128
  %7482 = vxpose.xlu0.b32.cont [8/16] 0.0, 128
  %7483 = vxpose.xlu0.b32.cont [9/16] 0.0, 128
  %7484 = vxpose.xlu0.b32.cont [10/16] 0.0, 128
  %7485 = vxpose.xlu0.b32.cont [11/16] 0.0, 128
  %7486 = vxpose.xlu0.b32.cont [12/16] 0.0, 128
  %7487 = vxpose.xlu0.b32.cont [13/16] 0.0, 128
  %7488 = vxpose.xlu0.b32.cont [14/16] 0.0, 128
  %7489 = vxpose.xlu0.b32.cont [15/16] 0.0, 128
  %7490 = vxpose.xlu0.b32.end [16/16] 0.0, 128
  %v7491 = vpop.trf.xlu0
  %v7492 = vpop.trf.xlu0
  %v7493 = vpop.trf.xlu0
  %v7494 = vpop.trf.xlu0
  %v7495 = vpop.trf.xlu0
  %v7496 = vpop.trf.xlu0
  %v7497 = vpop.trf.xlu0
  %v7498 = vpop.trf.xlu0
  %v7499 = vpop.trf.xlu0
  %v7500 = vpop.trf.xlu0
  %v7501 = vpop.trf.xlu0
  %v7502 = vpop.trf.xlu0
  %v7503 = vpop.trf.xlu0
  %v7504 = vpop.trf.xlu0
  %v7505 = vpop.trf.xlu0
  %v7506 = vpop.trf.xlu0
  %7507 = vxpose.xlu0.b32.start [1/16] %v7472, 128
  %7508 = vxpose.xlu0.b32.cont [2/16] 0.0, 128
  %7509 = vxpose.xlu0.b32.cont [3/16] 0.0, 128
  %7510 = vxpose.xlu0.b32.cont [4/16] 0.0, 128
  %7511 = vxpose.xlu0.b32.cont [5/16] 0.0, 128
  %7512 = vxpose.xlu0.b32.cont [6/16] 0.0, 128
  %7513 = vxpose.xlu0.b32.cont [7/16] 0.0, 128
  %7514 = vxpose.xlu0.b32.cont [8/16] 0.0, 128
  %7515 = vxpose.xlu0.b32.cont [9/16] 0.0, 128
  %7516 = vxpose.xlu0.b32.cont [10/16] 0.0, 128
  %7517 = vxpose.xlu0.b32.cont [11/16] 0.0, 128
  %7518 = vxpose.xlu0.b32.cont [12/16] 0.0, 128
  %7519 = vxpose.xlu0.b32.cont [13/16] 0.0, 128
  %7520 = vxpose.xlu0.b32.cont [14/16] 0.0, 128
  %7521 = vxpose.xlu0.b32.cont [15/16] 0.0, 128
  %7522 = vxpose.xlu0.b32.end [16/16] 0.0, 128
  %v7523 = vpop.trf.xlu0
  %v7524 = vpop.trf.xlu0
  %v7525 = vpop.trf.xlu0
  %v7526 = vpop.trf.xlu0
  %v7527 = vpop.trf.xlu0
  %v7528 = vpop.trf.xlu0
  %v7529 = vpop.trf.xlu0
  %v7530 = vpop.trf.xlu0
  %v7531 = vpop.trf.xlu0
  %v7532 = vpop.trf.xlu0
  %v7533 = vpop.trf.xlu0
  %v7534 = vpop.trf.xlu0
  %v7535 = vpop.trf.xlu0
  %v7536 = vpop.trf.xlu0
  %v7537 = vpop.trf.xlu0
  %v7538 = vpop.trf.xlu0
  %v7539 = vlaneseq
  %v7540 = vshrl.u32 %v7539, 7
  %v7541 = vsub.s32 0, %v7540
  %v7542 = vrot.slane %v7491, %v7541
  %7544 = vbcast.lane.b32.xlu0 %v7542, 256
  %v7545 = vpop.permute.xlu0 %7544
  %v7546 = vlaneseq
  %v7547 = vshrl.u32 %v7546, 7
  %v7548 = vsub.s32 1, %v7547
  %v7549 = vrot.slane %v7491, %v7548
  %7551 = vbcast.lane.b32.xlu0 %v7549, 256
  %v7552 = vpop.permute.xlu0 %7551
  %v7553 = vlaneseq
  %v7554 = vshrl.u32 %v7553, 7
  %v7555 = vsub.s32 2, %v7554
  %v7556 = vrot.slane %v7491, %v7555
  %7558 = vbcast.lane.b32.xlu0 %v7556, 256
  %v7559 = vpop.permute.xlu0 %7558
  %v7560 = vlaneseq
  %v7561 = vshrl.u32 %v7560, 7
  %v7562 = vsub.s32 3, %v7561
  %v7563 = vrot.slane %v7491, %v7562
  %7565 = vbcast.lane.b32.xlu0 %v7563, 256
  %v7566 = vpop.permute.xlu0 %7565
  %v7567 = vlaneseq
  %v7568 = vshrl.u32 %v7567, 7
  %v7569 = vsub.s32 4, %v7568
  %v7570 = vrot.slane %v7491, %v7569
  %7572 = vbcast.lane.b32.xlu0 %v7570, 256
  %v7573 = vpop.permute.xlu0 %7572
  %v7574 = vlaneseq
  %v7575 = vshrl.u32 %v7574, 7
  %v7576 = vsub.s32 5, %v7575
  %v7577 = vrot.slane %v7491, %v7576
  %7579 = vbcast.lane.b32.xlu0 %v7577, 256
  %v7580 = vpop.permute.xlu0 %7579
  %v7581 = vlaneseq
  %v7582 = vshrl.u32 %v7581, 7
  %v7583 = vsub.s32 6, %v7582
  %v7584 = vrot.slane %v7491, %v7583
  %7586 = vbcast.lane.b32.xlu0 %v7584, 256
  %v7587 = vpop.permute.xlu0 %7586
  %v7588 = vlaneseq
  %v7589 = vshrl.u32 %v7588, 7
  %v7590 = vsub.s32 7, %v7589
  %v7591 = vrot.slane %v7491, %v7590
  %7593 = vbcast.lane.b32.xlu0 %v7591, 256
  %v7594 = vpop.permute.xlu0 %7593
  %v7595 = vlaneseq
  %v7596 = vshrl.u32 %v7595, 7
  %v7597 = vsub.s32 0, %v7596
  %v7598 = vrot.slane %v7492, %v7597
  %7600 = vbcast.lane.b32.xlu0 %v7598, 256
  %v7601 = vpop.permute.xlu0 %7600
  %v7602 = vlaneseq
  %v7603 = vshrl.u32 %v7602, 7
  %v7604 = vsub.s32 1, %v7603
  %v7605 = vrot.slane %v7492, %v7604
  %7607 = vbcast.lane.b32.xlu0 %v7605, 256
  %v7608 = vpop.permute.xlu0 %7607
  %v7609 = vlaneseq
  %v7610 = vshrl.u32 %v7609, 7
  %v7611 = vsub.s32 2, %v7610
  %v7612 = vrot.slane %v7492, %v7611
  %7614 = vbcast.lane.b32.xlu0 %v7612, 256
  %v7615 = vpop.permute.xlu0 %7614
  %v7616 = vlaneseq
  %v7617 = vshrl.u32 %v7616, 7
  %v7618 = vsub.s32 3, %v7617
  %v7619 = vrot.slane %v7492, %v7618
  %7621 = vbcast.lane.b32.xlu0 %v7619, 256
  %v7622 = vpop.permute.xlu0 %7621
  %v7623 = vlaneseq
  %v7624 = vshrl.u32 %v7623, 7
  %v7625 = vsub.s32 4, %v7624
  %v7626 = vrot.slane %v7492, %v7625
  %7628 = vbcast.lane.b32.xlu0 %v7626, 256
  %v7629 = vpop.permute.xlu0 %7628
  %v7630 = vlaneseq
  %v7631 = vshrl.u32 %v7630, 7
  %v7632 = vsub.s32 5, %v7631
  %v7633 = vrot.slane %v7492, %v7632
  %7635 = vbcast.lane.b32.xlu0 %v7633, 256
  %v7636 = vpop.permute.xlu0 %7635
  %v7637 = vlaneseq
  %v7638 = vshrl.u32 %v7637, 7
  %v7639 = vsub.s32 6, %v7638
  %v7640 = vrot.slane %v7492, %v7639
  %7642 = vbcast.lane.b32.xlu0 %v7640, 256
  %v7643 = vpop.permute.xlu0 %7642
  %v7644 = vlaneseq
  %v7645 = vshrl.u32 %v7644, 7
  %v7646 = vsub.s32 7, %v7645
  %v7647 = vrot.slane %v7492, %v7646
  %7649 = vbcast.lane.b32.xlu0 %v7647, 256
  %v7650 = vpop.permute.xlu0 %7649
  %v7651 = vlaneseq
  %v7652 = vshrl.u32 %v7651, 7
  %v7653 = vsub.s32 0, %v7652
  %v7654 = vrot.slane %v7493, %v7653
  %7656 = vbcast.lane.b32.xlu0 %v7654, 256
  %v7657 = vpop.permute.xlu0 %7656
  %v7658 = vlaneseq
  %v7659 = vshrl.u32 %v7658, 7
  %v7660 = vsub.s32 1, %v7659
  %v7661 = vrot.slane %v7493, %v7660
  %7663 = vbcast.lane.b32.xlu0 %v7661, 256
  %v7664 = vpop.permute.xlu0 %7663
  %v7665 = vlaneseq
  %v7666 = vshrl.u32 %v7665, 7
  %v7667 = vsub.s32 2, %v7666
  %v7668 = vrot.slane %v7493, %v7667
  %7670 = vbcast.lane.b32.xlu0 %v7668, 256
  %v7671 = vpop.permute.xlu0 %7670
  %v7672 = vlaneseq
  %v7673 = vshrl.u32 %v7672, 7
  %v7674 = vsub.s32 3, %v7673
  %v7675 = vrot.slane %v7493, %v7674
  %7677 = vbcast.lane.b32.xlu0 %v7675, 256
  %v7678 = vpop.permute.xlu0 %7677
  %v7679 = vlaneseq
  %v7680 = vshrl.u32 %v7679, 7
  %v7681 = vsub.s32 4, %v7680
  %v7682 = vrot.slane %v7493, %v7681
  %7684 = vbcast.lane.b32.xlu0 %v7682, 256
  %v7685 = vpop.permute.xlu0 %7684
  %v7686 = vlaneseq
  %v7687 = vshrl.u32 %v7686, 7
  %v7688 = vsub.s32 5, %v7687
  %v7689 = vrot.slane %v7493, %v7688
  %7691 = vbcast.lane.b32.xlu0 %v7689, 256
  %v7692 = vpop.permute.xlu0 %7691
  %v7693 = vlaneseq
  %v7694 = vshrl.u32 %v7693, 7
  %v7695 = vsub.s32 6, %v7694
  %v7696 = vrot.slane %v7493, %v7695
  %7698 = vbcast.lane.b32.xlu0 %v7696, 256
  %v7699 = vpop.permute.xlu0 %7698
  %v7700 = vlaneseq
  %v7701 = vshrl.u32 %v7700, 7
  %v7702 = vsub.s32 7, %v7701
  %v7703 = vrot.slane %v7493, %v7702
  %7705 = vbcast.lane.b32.xlu0 %v7703, 256
  %v7706 = vpop.permute.xlu0 %7705
  %v7707 = vlaneseq
  %v7708 = vshrl.u32 %v7707, 7
  %v7709 = vsub.s32 0, %v7708
  %v7710 = vrot.slane %v7494, %v7709
  %7712 = vbcast.lane.b32.xlu0 %v7710, 256
  %v7713 = vpop.permute.xlu0 %7712
  %v7714 = vlaneseq
  %v7715 = vshrl.u32 %v7714, 7
  %v7716 = vsub.s32 1, %v7715
  %v7717 = vrot.slane %v7494, %v7716
  %7719 = vbcast.lane.b32.xlu0 %v7717, 256
  %v7720 = vpop.permute.xlu0 %7719
  %v7721 = vlaneseq
  %v7722 = vshrl.u32 %v7721, 7
  %v7723 = vsub.s32 2, %v7722
  %v7724 = vrot.slane %v7494, %v7723
  %7726 = vbcast.lane.b32.xlu0 %v7724, 256
  %v7727 = vpop.permute.xlu0 %7726
  %v7728 = vlaneseq
  %v7729 = vshrl.u32 %v7728, 7
  %v7730 = vsub.s32 3, %v7729
  %v7731 = vrot.slane %v7494, %v7730
  %7733 = vbcast.lane.b32.xlu0 %v7731, 256
  %v7734 = vpop.permute.xlu0 %7733
  %v7735 = vlaneseq
  %v7736 = vshrl.u32 %v7735, 7
  %v7737 = vsub.s32 4, %v7736
  %v7738 = vrot.slane %v7494, %v7737
  %7740 = vbcast.lane.b32.xlu0 %v7738, 256
  %v7741 = vpop.permute.xlu0 %7740
  %v7742 = vlaneseq
  %v7743 = vshrl.u32 %v7742, 7
  %v7744 = vsub.s32 5, %v7743
  %v7745 = vrot.slane %v7494, %v7744
  %7747 = vbcast.lane.b32.xlu0 %v7745, 256
  %v7748 = vpop.permute.xlu0 %7747
  %v7749 = vlaneseq
  %v7750 = vshrl.u32 %v7749, 7
  %v7751 = vsub.s32 6, %v7750
  %v7752 = vrot.slane %v7494, %v7751
  %7754 = vbcast.lane.b32.xlu0 %v7752, 256
  %v7755 = vpop.permute.xlu0 %7754
  %v7756 = vlaneseq
  %v7757 = vshrl.u32 %v7756, 7
  %v7758 = vsub.s32 7, %v7757
  %v7759 = vrot.slane %v7494, %v7758
  %7761 = vbcast.lane.b32.xlu0 %v7759, 256
  %v7762 = vpop.permute.xlu0 %7761
  %v7763 = vlaneseq
  %v7764 = vshrl.u32 %v7763, 7
  %v7765 = vsub.s32 0, %v7764
  %v7766 = vrot.slane %v7495, %v7765
  %7768 = vbcast.lane.b32.xlu0 %v7766, 256
  %v7769 = vpop.permute.xlu0 %7768
  %v7770 = vlaneseq
  %v7771 = vshrl.u32 %v7770, 7
  %v7772 = vsub.s32 1, %v7771
  %v7773 = vrot.slane %v7495, %v7772
  %7775 = vbcast.lane.b32.xlu0 %v7773, 256
  %v7776 = vpop.permute.xlu0 %7775
  %v7777 = vlaneseq
  %v7778 = vshrl.u32 %v7777, 7
  %v7779 = vsub.s32 2, %v7778
  %v7780 = vrot.slane %v7495, %v7779
  %7782 = vbcast.lane.b32.xlu0 %v7780, 256
  %v7783 = vpop.permute.xlu0 %7782
  %v7784 = vlaneseq
  %v7785 = vshrl.u32 %v7784, 7
  %v7786 = vsub.s32 3, %v7785
  %v7787 = vrot.slane %v7495, %v7786
  %7789 = vbcast.lane.b32.xlu0 %v7787, 256
  %v7790 = vpop.permute.xlu0 %7789
  %v7791 = vlaneseq
  %v7792 = vshrl.u32 %v7791, 7
  %v7793 = vsub.s32 4, %v7792
  %v7794 = vrot.slane %v7495, %v7793
  %7796 = vbcast.lane.b32.xlu0 %v7794, 256
  %v7797 = vpop.permute.xlu0 %7796
  %v7798 = vlaneseq
  %v7799 = vshrl.u32 %v7798, 7
  %v7800 = vsub.s32 5, %v7799
  %v7801 = vrot.slane %v7495, %v7800
  %7803 = vbcast.lane.b32.xlu0 %v7801, 256
  %v7804 = vpop.permute.xlu0 %7803
  %v7805 = vlaneseq
  %v7806 = vshrl.u32 %v7805, 7
  %v7807 = vsub.s32 6, %v7806
  %v7808 = vrot.slane %v7495, %v7807
  %7810 = vbcast.lane.b32.xlu0 %v7808, 256
  %v7811 = vpop.permute.xlu0 %7810
  %v7812 = vlaneseq
  %v7813 = vshrl.u32 %v7812, 7
  %v7814 = vsub.s32 7, %v7813
  %v7815 = vrot.slane %v7495, %v7814
  %7817 = vbcast.lane.b32.xlu0 %v7815, 256
  %v7818 = vpop.permute.xlu0 %7817
  %v7819 = vlaneseq
  %v7820 = vshrl.u32 %v7819, 7
  %v7821 = vsub.s32 0, %v7820
  %v7822 = vrot.slane %v7496, %v7821
  %7824 = vbcast.lane.b32.xlu0 %v7822, 256
  %v7825 = vpop.permute.xlu0 %7824
  %v7826 = vlaneseq
  %v7827 = vshrl.u32 %v7826, 7
  %v7828 = vsub.s32 1, %v7827
  %v7829 = vrot.slane %v7496, %v7828
  %7831 = vbcast.lane.b32.xlu0 %v7829, 256
  %v7832 = vpop.permute.xlu0 %7831
  %v7833 = vlaneseq
  %v7834 = vshrl.u32 %v7833, 7
  %v7835 = vsub.s32 2, %v7834
  %v7836 = vrot.slane %v7496, %v7835
  %7838 = vbcast.lane.b32.xlu0 %v7836, 256
  %v7839 = vpop.permute.xlu0 %7838
  %v7840 = vlaneseq
  %v7841 = vshrl.u32 %v7840, 7
  %v7842 = vsub.s32 3, %v7841
  %v7843 = vrot.slane %v7496, %v7842
  %7845 = vbcast.lane.b32.xlu0 %v7843, 256
  %v7846 = vpop.permute.xlu0 %7845
  %v7847 = vlaneseq
  %v7848 = vshrl.u32 %v7847, 7
  %v7849 = vsub.s32 4, %v7848
  %v7850 = vrot.slane %v7496, %v7849
  %7852 = vbcast.lane.b32.xlu0 %v7850, 256
  %v7853 = vpop.permute.xlu0 %7852
  %v7854 = vlaneseq
  %v7855 = vshrl.u32 %v7854, 7
  %v7856 = vsub.s32 5, %v7855
  %v7857 = vrot.slane %v7496, %v7856
  %7859 = vbcast.lane.b32.xlu0 %v7857, 256
  %v7860 = vpop.permute.xlu0 %7859
  %v7861 = vlaneseq
  %v7862 = vshrl.u32 %v7861, 7
  %v7863 = vsub.s32 6, %v7862
  %v7864 = vrot.slane %v7496, %v7863
  %7866 = vbcast.lane.b32.xlu0 %v7864, 256
  %v7867 = vpop.permute.xlu0 %7866
  %v7868 = vlaneseq
  %v7869 = vshrl.u32 %v7868, 7
  %v7870 = vsub.s32 7, %v7869
  %v7871 = vrot.slane %v7496, %v7870
  %7873 = vbcast.lane.b32.xlu0 %v7871, 256
  %v7874 = vpop.permute.xlu0 %7873
  %v7875 = vlaneseq
  %v7876 = vshrl.u32 %v7875, 7
  %v7877 = vsub.s32 0, %v7876
  %v7878 = vrot.slane %v7497, %v7877
  %7880 = vbcast.lane.b32.xlu0 %v7878, 256
  %v7881 = vpop.permute.xlu0 %7880
  %v7882 = vlaneseq
  %v7883 = vshrl.u32 %v7882, 7
  %v7884 = vsub.s32 1, %v7883
  %v7885 = vrot.slane %v7497, %v7884
  %7887 = vbcast.lane.b32.xlu0 %v7885, 256
  %v7888 = vpop.permute.xlu0 %7887
  %v7889 = vlaneseq
  %v7890 = vshrl.u32 %v7889, 7
  %v7891 = vsub.s32 2, %v7890
  %v7892 = vrot.slane %v7497, %v7891
  %7894 = vbcast.lane.b32.xlu0 %v7892, 256
  %v7895 = vpop.permute.xlu0 %7894
  %v7896 = vlaneseq
  %v7897 = vshrl.u32 %v7896, 7
  %v7898 = vsub.s32 3, %v7897
  %v7899 = vrot.slane %v7497, %v7898
  %7901 = vbcast.lane.b32.xlu0 %v7899, 256
  %v7902 = vpop.permute.xlu0 %7901
  %v7903 = vlaneseq
  %v7904 = vshrl.u32 %v7903, 7
  %v7905 = vsub.s32 4, %v7904
  %v7906 = vrot.slane %v7497, %v7905
  %7908 = vbcast.lane.b32.xlu0 %v7906, 256
  %v7909 = vpop.permute.xlu0 %7908
  %v7910 = vlaneseq
  %v7911 = vshrl.u32 %v7910, 7
  %v7912 = vsub.s32 5, %v7911
  %v7913 = vrot.slane %v7497, %v7912
  %7915 = vbcast.lane.b32.xlu0 %v7913, 256
  %v7916 = vpop.permute.xlu0 %7915
  %v7917 = vlaneseq
  %v7918 = vshrl.u32 %v7917, 7
  %v7919 = vsub.s32 6, %v7918
  %v7920 = vrot.slane %v7497, %v7919
  %7922 = vbcast.lane.b32.xlu0 %v7920, 256
  %v7923 = vpop.permute.xlu0 %7922
  %v7924 = vlaneseq
  %v7925 = vshrl.u32 %v7924, 7
  %v7926 = vsub.s32 7, %v7925
  %v7927 = vrot.slane %v7497, %v7926
  %7929 = vbcast.lane.b32.xlu0 %v7927, 256
  %v7930 = vpop.permute.xlu0 %7929
  %v7931 = vlaneseq
  %v7932 = vshrl.u32 %v7931, 7
  %v7933 = vsub.s32 0, %v7932
  %v7934 = vrot.slane %v7498, %v7933
  %7936 = vbcast.lane.b32.xlu0 %v7934, 256
  %v7937 = vpop.permute.xlu0 %7936
  %v7938 = vlaneseq
  %v7939 = vshrl.u32 %v7938, 7
  %v7940 = vsub.s32 1, %v7939
  %v7941 = vrot.slane %v7498, %v7940
  %7943 = vbcast.lane.b32.xlu0 %v7941, 256
  %v7944 = vpop.permute.xlu0 %7943
  %v7945 = vlaneseq
  %v7946 = vshrl.u32 %v7945, 7
  %v7947 = vsub.s32 2, %v7946
  %v7948 = vrot.slane %v7498, %v7947
  %7950 = vbcast.lane.b32.xlu0 %v7948, 256
  %v7951 = vpop.permute.xlu0 %7950
  %v7952 = vlaneseq
  %v7953 = vshrl.u32 %v7952, 7
  %v7954 = vsub.s32 3, %v7953
  %v7955 = vrot.slane %v7498, %v7954
  %7957 = vbcast.lane.b32.xlu0 %v7955, 256
  %v7958 = vpop.permute.xlu0 %7957
  %v7959 = vlaneseq
  %v7960 = vshrl.u32 %v7959, 7
  %v7961 = vsub.s32 4, %v7960
  %v7962 = vrot.slane %v7498, %v7961
  %7964 = vbcast.lane.b32.xlu0 %v7962, 256
  %v7965 = vpop.permute.xlu0 %7964
  %v7966 = vlaneseq
  %v7967 = vshrl.u32 %v7966, 7
  %v7968 = vsub.s32 5, %v7967
  %v7969 = vrot.slane %v7498, %v7968
  %7971 = vbcast.lane.b32.xlu0 %v7969, 256
  %v7972 = vpop.permute.xlu0 %7971
  %v7973 = vlaneseq
  %v7974 = vshrl.u32 %v7973, 7
  %v7975 = vsub.s32 6, %v7974
  %v7976 = vrot.slane %v7498, %v7975
  %7978 = vbcast.lane.b32.xlu0 %v7976, 256
  %v7979 = vpop.permute.xlu0 %7978
  %v7980 = vlaneseq
  %v7981 = vshrl.u32 %v7980, 7
  %v7982 = vsub.s32 7, %v7981
  %v7983 = vrot.slane %v7498, %v7982
  %7985 = vbcast.lane.b32.xlu0 %v7983, 256
  %v7986 = vpop.permute.xlu0 %7985
  %v7987 = vlaneseq
  %v7988 = vshrl.u32 %v7987, 7
  %v7989 = vsub.s32 0, %v7988
  %v7990 = vrot.slane %v7499, %v7989
  %7992 = vbcast.lane.b32.xlu0 %v7990, 256
  %v7993 = vpop.permute.xlu0 %7992
  %v7994 = vlaneseq
  %v7995 = vshrl.u32 %v7994, 7
  %v7996 = vsub.s32 1, %v7995
  %v7997 = vrot.slane %v7499, %v7996
  %7999 = vbcast.lane.b32.xlu0 %v7997, 256
  %v8000 = vpop.permute.xlu0 %7999
  %v8001 = vlaneseq
  %v8002 = vshrl.u32 %v8001, 7
  %v8003 = vsub.s32 2, %v8002
  %v8004 = vrot.slane %v7499, %v8003
  %8006 = vbcast.lane.b32.xlu0 %v8004, 256
  %v8007 = vpop.permute.xlu0 %8006
  %v8008 = vlaneseq
  %v8009 = vshrl.u32 %v8008, 7
  %v8010 = vsub.s32 3, %v8009
  %v8011 = vrot.slane %v7499, %v8010
  %8013 = vbcast.lane.b32.xlu0 %v8011, 256
  %v8014 = vpop.permute.xlu0 %8013
  %v8015 = vlaneseq
  %v8016 = vshrl.u32 %v8015, 7
  %v8017 = vsub.s32 4, %v8016
  %v8018 = vrot.slane %v7499, %v8017
  %8020 = vbcast.lane.b32.xlu0 %v8018, 256
  %v8021 = vpop.permute.xlu0 %8020
  %v8022 = vlaneseq
  %v8023 = vshrl.u32 %v8022, 7
  %v8024 = vsub.s32 5, %v8023
  %v8025 = vrot.slane %v7499, %v8024
  %8027 = vbcast.lane.b32.xlu0 %v8025, 256
  %v8028 = vpop.permute.xlu0 %8027
  %v8029 = vlaneseq
  %v8030 = vshrl.u32 %v8029, 7
  %v8031 = vsub.s32 6, %v8030
  %v8032 = vrot.slane %v7499, %v8031
  %8034 = vbcast.lane.b32.xlu0 %v8032, 256
  %v8035 = vpop.permute.xlu0 %8034
  %v8036 = vlaneseq
  %v8037 = vshrl.u32 %v8036, 7
  %v8038 = vsub.s32 7, %v8037
  %v8039 = vrot.slane %v7499, %v8038
  %8041 = vbcast.lane.b32.xlu0 %v8039, 256
  %v8042 = vpop.permute.xlu0 %8041
  %v8043 = vlaneseq
  %v8044 = vshrl.u32 %v8043, 7
  %v8045 = vsub.s32 0, %v8044
  %v8046 = vrot.slane %v7500, %v8045
  %8048 = vbcast.lane.b32.xlu0 %v8046, 256
  %v8049 = vpop.permute.xlu0 %8048
  %v8050 = vlaneseq
  %v8051 = vshrl.u32 %v8050, 7
  %v8052 = vsub.s32 1, %v8051
  %v8053 = vrot.slane %v7500, %v8052
  %8055 = vbcast.lane.b32.xlu0 %v8053, 256
  %v8056 = vpop.permute.xlu0 %8055
  %v8057 = vlaneseq
  %v8058 = vshrl.u32 %v8057, 7
  %v8059 = vsub.s32 2, %v8058
  %v8060 = vrot.slane %v7500, %v8059
  %8062 = vbcast.lane.b32.xlu0 %v8060, 256
  %v8063 = vpop.permute.xlu0 %8062
  %v8064 = vlaneseq
  %v8065 = vshrl.u32 %v8064, 7
  %v8066 = vsub.s32 3, %v8065
  %v8067 = vrot.slane %v7500, %v8066
  %8069 = vbcast.lane.b32.xlu0 %v8067, 256
  %v8070 = vpop.permute.xlu0 %8069
  %v8071 = vlaneseq
  %v8072 = vshrl.u32 %v8071, 7
  %v8073 = vsub.s32 4, %v8072
  %v8074 = vrot.slane %v7500, %v8073
  %8076 = vbcast.lane.b32.xlu0 %v8074, 256
  %v8077 = vpop.permute.xlu0 %8076
  %v8078 = vlaneseq
  %v8079 = vshrl.u32 %v8078, 7
  %v8080 = vsub.s32 5, %v8079
  %v8081 = vrot.slane %v7500, %v8080
  %8083 = vbcast.lane.b32.xlu0 %v8081, 256
  %v8084 = vpop.permute.xlu0 %8083
  %v8085 = vlaneseq
  %v8086 = vshrl.u32 %v8085, 7
  %v8087 = vsub.s32 6, %v8086
  %v8088 = vrot.slane %v7500, %v8087
  %8090 = vbcast.lane.b32.xlu0 %v8088, 256
  %v8091 = vpop.permute.xlu0 %8090
  %v8092 = vlaneseq
  %v8093 = vshrl.u32 %v8092, 7
  %v8094 = vsub.s32 7, %v8093
  %v8095 = vrot.slane %v7500, %v8094
  %8097 = vbcast.lane.b32.xlu0 %v8095, 256
  %v8098 = vpop.permute.xlu0 %8097
  %v8099 = vlaneseq
  %v8100 = vshrl.u32 %v8099, 7
  %v8101 = vsub.s32 0, %v8100
  %v8102 = vrot.slane %v7501, %v8101
  %8104 = vbcast.lane.b32.xlu0 %v8102, 256
  %v8105 = vpop.permute.xlu0 %8104
  %v8106 = vlaneseq
  %v8107 = vshrl.u32 %v8106, 7
  %v8108 = vsub.s32 1, %v8107
  %v8109 = vrot.slane %v7501, %v8108
  %8111 = vbcast.lane.b32.xlu0 %v8109, 256
  %v8112 = vpop.permute.xlu0 %8111
  %v8113 = vlaneseq
  %v8114 = vshrl.u32 %v8113, 7
  %v8115 = vsub.s32 2, %v8114
  %v8116 = vrot.slane %v7501, %v8115
  %8118 = vbcast.lane.b32.xlu0 %v8116, 256
  %v8119 = vpop.permute.xlu0 %8118
  %v8120 = vlaneseq
  %v8121 = vshrl.u32 %v8120, 7
  %v8122 = vsub.s32 3, %v8121
  %v8123 = vrot.slane %v7501, %v8122
  %8125 = vbcast.lane.b32.xlu0 %v8123, 256
  %v8126 = vpop.permute.xlu0 %8125
  %v8127 = vlaneseq
  %v8128 = vshrl.u32 %v8127, 7
  %v8129 = vsub.s32 4, %v8128
  %v8130 = vrot.slane %v7501, %v8129
  %8132 = vbcast.lane.b32.xlu0 %v8130, 256
  %v8133 = vpop.permute.xlu0 %8132
  %v8134 = vlaneseq
  %v8135 = vshrl.u32 %v8134, 7
  %v8136 = vsub.s32 5, %v8135
  %v8137 = vrot.slane %v7501, %v8136
  %8139 = vbcast.lane.b32.xlu0 %v8137, 256
  %v8140 = vpop.permute.xlu0 %8139
  %v8141 = vlaneseq
  %v8142 = vshrl.u32 %v8141, 7
  %v8143 = vsub.s32 6, %v8142
  %v8144 = vrot.slane %v7501, %v8143
  %8146 = vbcast.lane.b32.xlu0 %v8144, 256
  %v8147 = vpop.permute.xlu0 %8146
  %v8148 = vlaneseq
  %v8149 = vshrl.u32 %v8148, 7
  %v8150 = vsub.s32 7, %v8149
  %v8151 = vrot.slane %v7501, %v8150
  %8153 = vbcast.lane.b32.xlu0 %v8151, 256
  %v8154 = vpop.permute.xlu0 %8153
  %v8155 = vlaneseq
  %v8156 = vshrl.u32 %v8155, 7
  %v8157 = vsub.s32 0, %v8156
  %v8158 = vrot.slane %v7502, %v8157
  %8160 = vbcast.lane.b32.xlu0 %v8158, 256
  %v8161 = vpop.permute.xlu0 %8160
  %v8162 = vlaneseq
  %v8163 = vshrl.u32 %v8162, 7
  %v8164 = vsub.s32 1, %v8163
  %v8165 = vrot.slane %v7502, %v8164
  %8167 = vbcast.lane.b32.xlu0 %v8165, 256
  %v8168 = vpop.permute.xlu0 %8167
  %v8169 = vlaneseq
  %v8170 = vshrl.u32 %v8169, 7
  %v8171 = vsub.s32 2, %v8170
  %v8172 = vrot.slane %v7502, %v8171
  %8174 = vbcast.lane.b32.xlu0 %v8172, 256
  %v8175 = vpop.permute.xlu0 %8174
  %v8176 = vlaneseq
  %v8177 = vshrl.u32 %v8176, 7
  %v8178 = vsub.s32 3, %v8177
  %v8179 = vrot.slane %v7502, %v8178
  %8181 = vbcast.lane.b32.xlu0 %v8179, 256
  %v8182 = vpop.permute.xlu0 %8181
  %v8183 = vlaneseq
  %v8184 = vshrl.u32 %v8183, 7
  %v8185 = vsub.s32 4, %v8184
  %v8186 = vrot.slane %v7502, %v8185
  %8188 = vbcast.lane.b32.xlu0 %v8186, 256
  %v8189 = vpop.permute.xlu0 %8188
  %v8190 = vlaneseq
  %v8191 = vshrl.u32 %v8190, 7
  %v8192 = vsub.s32 5, %v8191
  %v8193 = vrot.slane %v7502, %v8192
  %8195 = vbcast.lane.b32.xlu0 %v8193, 256
  %v8196 = vpop.permute.xlu0 %8195
  %v8197 = vlaneseq
  %v8198 = vshrl.u32 %v8197, 7
  %v8199 = vsub.s32 6, %v8198
  %v8200 = vrot.slane %v7502, %v8199
  %8202 = vbcast.lane.b32.xlu0 %v8200, 256
  %v8203 = vpop.permute.xlu0 %8202
  %v8204 = vlaneseq
  %v8205 = vshrl.u32 %v8204, 7
  %v8206 = vsub.s32 7, %v8205
  %v8207 = vrot.slane %v7502, %v8206
  %8209 = vbcast.lane.b32.xlu0 %v8207, 256
  %v8210 = vpop.permute.xlu0 %8209
  %v8211 = vlaneseq
  %v8212 = vshrl.u32 %v8211, 7
  %v8213 = vsub.s32 0, %v8212
  %v8214 = vrot.slane %v7503, %v8213
  %8216 = vbcast.lane.b32.xlu0 %v8214, 256
  %v8217 = vpop.permute.xlu0 %8216
  %v8218 = vlaneseq
  %v8219 = vshrl.u32 %v8218, 7
  %v8220 = vsub.s32 1, %v8219
  %v8221 = vrot.slane %v7503, %v8220
  %8223 = vbcast.lane.b32.xlu0 %v8221, 256
  %v8224 = vpop.permute.xlu0 %8223
  %v8225 = vlaneseq
  %v8226 = vshrl.u32 %v8225, 7
  %v8227 = vsub.s32 2, %v8226
  %v8228 = vrot.slane %v7503, %v8227
  %8230 = vbcast.lane.b32.xlu0 %v8228, 256
  %v8231 = vpop.permute.xlu0 %8230
  %v8232 = vlaneseq
  %v8233 = vshrl.u32 %v8232, 7
  %v8234 = vsub.s32 3, %v8233
  %v8235 = vrot.slane %v7503, %v8234
  %8237 = vbcast.lane.b32.xlu0 %v8235, 256
  %v8238 = vpop.permute.xlu0 %8237
  %v8239 = vlaneseq
  %v8240 = vshrl.u32 %v8239, 7
  %v8241 = vsub.s32 4, %v8240
  %v8242 = vrot.slane %v7503, %v8241
  %8244 = vbcast.lane.b32.xlu0 %v8242, 256
  %v8245 = vpop.permute.xlu0 %8244
  %v8246 = vlaneseq
  %v8247 = vshrl.u32 %v8246, 7
  %v8248 = vsub.s32 5, %v8247
  %v8249 = vrot.slane %v7503, %v8248
  %8251 = vbcast.lane.b32.xlu0 %v8249, 256
  %v8252 = vpop.permute.xlu0 %8251
  %v8253 = vlaneseq
  %v8254 = vshrl.u32 %v8253, 7
  %v8255 = vsub.s32 6, %v8254
  %v8256 = vrot.slane %v7503, %v8255
  %8258 = vbcast.lane.b32.xlu0 %v8256, 256
  %v8259 = vpop.permute.xlu0 %8258
  %v8260 = vlaneseq
  %v8261 = vshrl.u32 %v8260, 7
  %v8262 = vsub.s32 7, %v8261
  %v8263 = vrot.slane %v7503, %v8262
  %8265 = vbcast.lane.b32.xlu0 %v8263, 256
  %v8266 = vpop.permute.xlu0 %8265
  %v8267 = vlaneseq
  %v8268 = vshrl.u32 %v8267, 7
  %v8269 = vsub.s32 0, %v8268
  %v8270 = vrot.slane %v7504, %v8269
  %8272 = vbcast.lane.b32.xlu0 %v8270, 256
  %v8273 = vpop.permute.xlu0 %8272
  %v8274 = vlaneseq
  %v8275 = vshrl.u32 %v8274, 7
  %v8276 = vsub.s32 1, %v8275
  %v8277 = vrot.slane %v7504, %v8276
  %8279 = vbcast.lane.b32.xlu0 %v8277, 256
  %v8280 = vpop.permute.xlu0 %8279
  %v8281 = vlaneseq
  %v8282 = vshrl.u32 %v8281, 7
  %v8283 = vsub.s32 2, %v8282
  %v8284 = vrot.slane %v7504, %v8283
  %8286 = vbcast.lane.b32.xlu0 %v8284, 256
  %v8287 = vpop.permute.xlu0 %8286
  %v8288 = vlaneseq
  %v8289 = vshrl.u32 %v8288, 7
  %v8290 = vsub.s32 3, %v8289
  %v8291 = vrot.slane %v7504, %v8290
  %8293 = vbcast.lane.b32.xlu0 %v8291, 256
  %v8294 = vpop.permute.xlu0 %8293
  %v8295 = vlaneseq
  %v8296 = vshrl.u32 %v8295, 7
  %v8297 = vsub.s32 4, %v8296
  %v8298 = vrot.slane %v7504, %v8297
  %8300 = vbcast.lane.b32.xlu0 %v8298, 256
  %v8301 = vpop.permute.xlu0 %8300
  %v8302 = vlaneseq
  %v8303 = vshrl.u32 %v8302, 7
  %v8304 = vsub.s32 5, %v8303
  %v8305 = vrot.slane %v7504, %v8304
  %8307 = vbcast.lane.b32.xlu0 %v8305, 256
  %v8308 = vpop.permute.xlu0 %8307
  %v8309 = vlaneseq
  %v8310 = vshrl.u32 %v8309, 7
  %v8311 = vsub.s32 6, %v8310
  %v8312 = vrot.slane %v7504, %v8311
  %8314 = vbcast.lane.b32.xlu0 %v8312, 256
  %v8315 = vpop.permute.xlu0 %8314
  %v8316 = vlaneseq
  %v8317 = vshrl.u32 %v8316, 7
  %v8318 = vsub.s32 7, %v8317
  %v8319 = vrot.slane %v7504, %v8318
  %8321 = vbcast.lane.b32.xlu0 %v8319, 256
  %v8322 = vpop.permute.xlu0 %8321
  %v8323 = vlaneseq
  %v8324 = vshrl.u32 %v8323, 7
  %v8325 = vsub.s32 0, %v8324
  %v8326 = vrot.slane %v7505, %v8325
  %8328 = vbcast.lane.b32.xlu0 %v8326, 256
  %v8329 = vpop.permute.xlu0 %8328
  %v8330 = vlaneseq
  %v8331 = vshrl.u32 %v8330, 7
  %v8332 = vsub.s32 1, %v8331
  %v8333 = vrot.slane %v7505, %v8332
  %8335 = vbcast.lane.b32.xlu0 %v8333, 256
  %v8336 = vpop.permute.xlu0 %8335
  %v8337 = vlaneseq
  %v8338 = vshrl.u32 %v8337, 7
  %v8339 = vsub.s32 2, %v8338
  %v8340 = vrot.slane %v7505, %v8339
  %8342 = vbcast.lane.b32.xlu0 %v8340, 256
  %v8343 = vpop.permute.xlu0 %8342
  %v8344 = vlaneseq
  %v8345 = vshrl.u32 %v8344, 7
  %v8346 = vsub.s32 3, %v8345
  %v8347 = vrot.slane %v7505, %v8346
  %8349 = vbcast.lane.b32.xlu0 %v8347, 256
  %v8350 = vpop.permute.xlu0 %8349
  %v8351 = vlaneseq
  %v8352 = vshrl.u32 %v8351, 7
  %v8353 = vsub.s32 4, %v8352
  %v8354 = vrot.slane %v7505, %v8353
  %8356 = vbcast.lane.b32.xlu0 %v8354, 256
  %v8357 = vpop.permute.xlu0 %8356
  %v8358 = vlaneseq
  %v8359 = vshrl.u32 %v8358, 7
  %v8360 = vsub.s32 5, %v8359
  %v8361 = vrot.slane %v7505, %v8360
  %8363 = vbcast.lane.b32.xlu0 %v8361, 256
  %v8364 = vpop.permute.xlu0 %8363
  %v8365 = vlaneseq
  %v8366 = vshrl.u32 %v8365, 7
  %v8367 = vsub.s32 6, %v8366
  %v8368 = vrot.slane %v7505, %v8367
  %8370 = vbcast.lane.b32.xlu0 %v8368, 256
  %v8371 = vpop.permute.xlu0 %8370
  %v8372 = vlaneseq
  %v8373 = vshrl.u32 %v8372, 7
  %v8374 = vsub.s32 7, %v8373
  %v8375 = vrot.slane %v7505, %v8374
  %8377 = vbcast.lane.b32.xlu0 %v8375, 256
  %v8378 = vpop.permute.xlu0 %8377
  %v8379 = vlaneseq
  %v8380 = vshrl.u32 %v8379, 7
  %v8381 = vsub.s32 0, %v8380
  %v8382 = vrot.slane %v7506, %v8381
  %8384 = vbcast.lane.b32.xlu0 %v8382, 256
  %v8385 = vpop.permute.xlu0 %8384
  %v8386 = vlaneseq
  %v8387 = vshrl.u32 %v8386, 7
  %v8388 = vsub.s32 1, %v8387
  %v8389 = vrot.slane %v7506, %v8388
  %8391 = vbcast.lane.b32.xlu0 %v8389, 256
  %v8392 = vpop.permute.xlu0 %8391
  %v8393 = vlaneseq
  %v8394 = vshrl.u32 %v8393, 7
  %v8395 = vsub.s32 2, %v8394
  %v8396 = vrot.slane %v7506, %v8395
  %8398 = vbcast.lane.b32.xlu0 %v8396, 256
  %v8399 = vpop.permute.xlu0 %8398
  %v8400 = vlaneseq
  %v8401 = vshrl.u32 %v8400, 7
  %v8402 = vsub.s32 3, %v8401
  %v8403 = vrot.slane %v7506, %v8402
  %8405 = vbcast.lane.b32.xlu0 %v8403, 256
  %v8406 = vpop.permute.xlu0 %8405
  %v8407 = vlaneseq
  %v8408 = vshrl.u32 %v8407, 7
  %v8409 = vsub.s32 4, %v8408
  %v8410 = vrot.slane %v7506, %v8409
  %8412 = vbcast.lane.b32.xlu0 %v8410, 256
  %v8413 = vpop.permute.xlu0 %8412
  %v8414 = vlaneseq
  %v8415 = vshrl.u32 %v8414, 7
  %v8416 = vsub.s32 5, %v8415
  %v8417 = vrot.slane %v7506, %v8416
  %8419 = vbcast.lane.b32.xlu0 %v8417, 256
  %v8420 = vpop.permute.xlu0 %8419
  %v8421 = vlaneseq
  %v8422 = vshrl.u32 %v8421, 7
  %v8423 = vsub.s32 6, %v8422
  %v8424 = vrot.slane %v7506, %v8423
  %8426 = vbcast.lane.b32.xlu0 %v8424, 256
  %v8427 = vpop.permute.xlu0 %8426
  %v8428 = vlaneseq
  %v8429 = vshrl.u32 %v8428, 7
  %v8430 = vsub.s32 7, %v8429
  %v8431 = vrot.slane %v7506, %v8430
  %8433 = vbcast.lane.b32.xlu0 %v8431, 256
  %v8434 = vpop.permute.xlu0 %8433
  %v8435 = vlaneseq
  %v8436 = vshrl.u32 %v8435, 7
  %v8437 = vsub.s32 0, %v8436
  %v8438 = vrot.slane %v7523, %v8437
  %8440 = vbcast.lane.b32.xlu0 %v8438, 256
  %v8441 = vpop.permute.xlu0 %8440
  %v8442 = vlaneseq
  %v8443 = vshrl.u32 %v8442, 7
  %v8444 = vsub.s32 1, %v8443
  %v8445 = vrot.slane %v7523, %v8444
  %8447 = vbcast.lane.b32.xlu0 %v8445, 256
  %v8448 = vpop.permute.xlu0 %8447
  %v8449 = vlaneseq
  %v8450 = vshrl.u32 %v8449, 7
  %v8451 = vsub.s32 2, %v8450
  %v8452 = vrot.slane %v7523, %v8451
  %8454 = vbcast.lane.b32.xlu0 %v8452, 256
  %v8455 = vpop.permute.xlu0 %8454
  %v8456 = vlaneseq
  %v8457 = vshrl.u32 %v8456, 7
  %v8458 = vsub.s32 3, %v8457
  %v8459 = vrot.slane %v7523, %v8458
  %8461 = vbcast.lane.b32.xlu0 %v8459, 256
  %v8462 = vpop.permute.xlu0 %8461
  %v8463 = vlaneseq
  %v8464 = vshrl.u32 %v8463, 7
  %v8465 = vsub.s32 4, %v8464
  %v8466 = vrot.slane %v7523, %v8465
  %8468 = vbcast.lane.b32.xlu0 %v8466, 256
  %v8469 = vpop.permute.xlu0 %8468
  %v8470 = vlaneseq
  %v8471 = vshrl.u32 %v8470, 7
  %v8472 = vsub.s32 5, %v8471
  %v8473 = vrot.slane %v7523, %v8472
  %8475 = vbcast.lane.b32.xlu0 %v8473, 256
  %v8476 = vpop.permute.xlu0 %8475
  %v8477 = vlaneseq
  %v8478 = vshrl.u32 %v8477, 7
  %v8479 = vsub.s32 6, %v8478
  %v8480 = vrot.slane %v7523, %v8479
  %8482 = vbcast.lane.b32.xlu0 %v8480, 256
  %v8483 = vpop.permute.xlu0 %8482
  %v8484 = vlaneseq
  %v8485 = vshrl.u32 %v8484, 7
  %v8486 = vsub.s32 7, %v8485
  %v8487 = vrot.slane %v7523, %v8486
  %8489 = vbcast.lane.b32.xlu0 %v8487, 256
  %v8490 = vpop.permute.xlu0 %8489
  %v8491 = vlaneseq
  %v8492 = vshrl.u32 %v8491, 7
  %v8493 = vsub.s32 0, %v8492
  %v8494 = vrot.slane %v7524, %v8493
  %8496 = vbcast.lane.b32.xlu0 %v8494, 256
  %v8497 = vpop.permute.xlu0 %8496
  %v8498 = vlaneseq
  %v8499 = vshrl.u32 %v8498, 7
  %v8500 = vsub.s32 1, %v8499
  %v8501 = vrot.slane %v7524, %v8500
  %8503 = vbcast.lane.b32.xlu0 %v8501, 256
  %v8504 = vpop.permute.xlu0 %8503
  %v8505 = vlaneseq
  %v8506 = vshrl.u32 %v8505, 7
  %v8507 = vsub.s32 2, %v8506
  %v8508 = vrot.slane %v7524, %v8507
  %8510 = vbcast.lane.b32.xlu0 %v8508, 256
  %v8511 = vpop.permute.xlu0 %8510
  %v8512 = vlaneseq
  %v8513 = vshrl.u32 %v8512, 7
  %v8514 = vsub.s32 3, %v8513
  %v8515 = vrot.slane %v7524, %v8514
  %8517 = vbcast.lane.b32.xlu0 %v8515, 256
  %v8518 = vpop.permute.xlu0 %8517
  %v8519 = vlaneseq
  %v8520 = vshrl.u32 %v8519, 7
  %v8521 = vsub.s32 4, %v8520
  %v8522 = vrot.slane %v7524, %v8521
  %8524 = vbcast.lane.b32.xlu0 %v8522, 256
  %v8525 = vpop.permute.xlu0 %8524
  %v8526 = vlaneseq
  %v8527 = vshrl.u32 %v8526, 7
  %v8528 = vsub.s32 5, %v8527
  %v8529 = vrot.slane %v7524, %v8528
  %8531 = vbcast.lane.b32.xlu0 %v8529, 256
  %v8532 = vpop.permute.xlu0 %8531
  %v8533 = vlaneseq
  %v8534 = vshrl.u32 %v8533, 7
  %v8535 = vsub.s32 6, %v8534
  %v8536 = vrot.slane %v7524, %v8535
  %8538 = vbcast.lane.b32.xlu0 %v8536, 256
  %v8539 = vpop.permute.xlu0 %8538
  %v8540 = vlaneseq
  %v8541 = vshrl.u32 %v8540, 7
  %v8542 = vsub.s32 7, %v8541
  %v8543 = vrot.slane %v7524, %v8542
  %8545 = vbcast.lane.b32.xlu0 %v8543, 256
  %v8546 = vpop.permute.xlu0 %8545
  %v8547 = vlaneseq
  %v8548 = vshrl.u32 %v8547, 7
  %v8549 = vsub.s32 0, %v8548
  %v8550 = vrot.slane %v7525, %v8549
  %8552 = vbcast.lane.b32.xlu0 %v8550, 256
  %v8553 = vpop.permute.xlu0 %8552
  %v8554 = vlaneseq
  %v8555 = vshrl.u32 %v8554, 7
  %v8556 = vsub.s32 1, %v8555
  %v8557 = vrot.slane %v7525, %v8556
  %8559 = vbcast.lane.b32.xlu0 %v8557, 256
  %v8560 = vpop.permute.xlu0 %8559
  %v8561 = vlaneseq
  %v8562 = vshrl.u32 %v8561, 7
  %v8563 = vsub.s32 2, %v8562
  %v8564 = vrot.slane %v7525, %v8563
  %8566 = vbcast.lane.b32.xlu0 %v8564, 256
  %v8567 = vpop.permute.xlu0 %8566
  %v8568 = vlaneseq
  %v8569 = vshrl.u32 %v8568, 7
  %v8570 = vsub.s32 3, %v8569
  %v8571 = vrot.slane %v7525, %v8570
  %8573 = vbcast.lane.b32.xlu0 %v8571, 256
  %v8574 = vpop.permute.xlu0 %8573
  %v8575 = vlaneseq
  %v8576 = vshrl.u32 %v8575, 7
  %v8577 = vsub.s32 4, %v8576
  %v8578 = vrot.slane %v7525, %v8577
  %8580 = vbcast.lane.b32.xlu0 %v8578, 256
  %v8581 = vpop.permute.xlu0 %8580
  %v8582 = vlaneseq
  %v8583 = vshrl.u32 %v8582, 7
  %v8584 = vsub.s32 5, %v8583
  %v8585 = vrot.slane %v7525, %v8584
  %8587 = vbcast.lane.b32.xlu0 %v8585, 256
  %v8588 = vpop.permute.xlu0 %8587
  %v8589 = vlaneseq
  %v8590 = vshrl.u32 %v8589, 7
  %v8591 = vsub.s32 6, %v8590
  %v8592 = vrot.slane %v7525, %v8591
  %8594 = vbcast.lane.b32.xlu0 %v8592, 256
  %v8595 = vpop.permute.xlu0 %8594
  %v8596 = vlaneseq
  %v8597 = vshrl.u32 %v8596, 7
  %v8598 = vsub.s32 7, %v8597
  %v8599 = vrot.slane %v7525, %v8598
  %8601 = vbcast.lane.b32.xlu0 %v8599, 256
  %v8602 = vpop.permute.xlu0 %8601
  %v8603 = vlaneseq
  %v8604 = vshrl.u32 %v8603, 7
  %v8605 = vsub.s32 0, %v8604
  %v8606 = vrot.slane %v7526, %v8605
  %8608 = vbcast.lane.b32.xlu0 %v8606, 256
  %v8609 = vpop.permute.xlu0 %8608
  %v8610 = vlaneseq
  %v8611 = vshrl.u32 %v8610, 7
  %v8612 = vsub.s32 1, %v8611
  %v8613 = vrot.slane %v7526, %v8612
  %8615 = vbcast.lane.b32.xlu0 %v8613, 256
  %v8616 = vpop.permute.xlu0 %8615
  %v8617 = vlaneseq
  %v8618 = vshrl.u32 %v8617, 7
  %v8619 = vsub.s32 2, %v8618
  %v8620 = vrot.slane %v7526, %v8619
  %8622 = vbcast.lane.b32.xlu0 %v8620, 256
  %v8623 = vpop.permute.xlu0 %8622
  %v8624 = vlaneseq
  %v8625 = vshrl.u32 %v8624, 7
  %v8626 = vsub.s32 3, %v8625
  %v8627 = vrot.slane %v7526, %v8626
  %8629 = vbcast.lane.b32.xlu0 %v8627, 256
  %v8630 = vpop.permute.xlu0 %8629
  %v8631 = vlaneseq
  %v8632 = vshrl.u32 %v8631, 7
  %v8633 = vsub.s32 4, %v8632
  %v8634 = vrot.slane %v7526, %v8633
  %8636 = vbcast.lane.b32.xlu0 %v8634, 256
  %v8637 = vpop.permute.xlu0 %8636
  %v8638 = vlaneseq
  %v8639 = vshrl.u32 %v8638, 7
  %v8640 = vsub.s32 5, %v8639
  %v8641 = vrot.slane %v7526, %v8640
  %8643 = vbcast.lane.b32.xlu0 %v8641, 256
  %v8644 = vpop.permute.xlu0 %8643
  %v8645 = vlaneseq
  %v8646 = vshrl.u32 %v8645, 7
  %v8647 = vsub.s32 6, %v8646
  %v8648 = vrot.slane %v7526, %v8647
  %8650 = vbcast.lane.b32.xlu0 %v8648, 256
  %v8651 = vpop.permute.xlu0 %8650
  %v8652 = vlaneseq
  %v8653 = vshrl.u32 %v8652, 7
  %v8654 = vsub.s32 7, %v8653
  %v8655 = vrot.slane %v7526, %v8654
  %8657 = vbcast.lane.b32.xlu0 %v8655, 256
  %v8658 = vpop.permute.xlu0 %8657
  %v8659 = vlaneseq
  %v8660 = vshrl.u32 %v8659, 7
  %v8661 = vsub.s32 0, %v8660
  %v8662 = vrot.slane %v7527, %v8661
  %8664 = vbcast.lane.b32.xlu0 %v8662, 256
  %v8665 = vpop.permute.xlu0 %8664
  %v8666 = vlaneseq
  %v8667 = vshrl.u32 %v8666, 7
  %v8668 = vsub.s32 1, %v8667
  %v8669 = vrot.slane %v7527, %v8668
  %8671 = vbcast.lane.b32.xlu0 %v8669, 256
  %v8672 = vpop.permute.xlu0 %8671
  %v8673 = vlaneseq
  %v8674 = vshrl.u32 %v8673, 7
  %v8675 = vsub.s32 2, %v8674
  %v8676 = vrot.slane %v7527, %v8675
  %8678 = vbcast.lane.b32.xlu0 %v8676, 256
  %v8679 = vpop.permute.xlu0 %8678
  %v8680 = vlaneseq
  %v8681 = vshrl.u32 %v8680, 7
  %v8682 = vsub.s32 3, %v8681
  %v8683 = vrot.slane %v7527, %v8682
  %8685 = vbcast.lane.b32.xlu0 %v8683, 256
  %v8686 = vpop.permute.xlu0 %8685
  %v8687 = vlaneseq
  %v8688 = vshrl.u32 %v8687, 7
  %v8689 = vsub.s32 4, %v8688
  %v8690 = vrot.slane %v7527, %v8689
  %8692 = vbcast.lane.b32.xlu0 %v8690, 256
  %v8693 = vpop.permute.xlu0 %8692
  %v8694 = vlaneseq
  %v8695 = vshrl.u32 %v8694, 7
  %v8696 = vsub.s32 5, %v8695
  %v8697 = vrot.slane %v7527, %v8696
  %8699 = vbcast.lane.b32.xlu0 %v8697, 256
  %v8700 = vpop.permute.xlu0 %8699
  %v8701 = vlaneseq
  %v8702 = vshrl.u32 %v8701, 7
  %v8703 = vsub.s32 6, %v8702
  %v8704 = vrot.slane %v7527, %v8703
  %8706 = vbcast.lane.b32.xlu0 %v8704, 256
  %v8707 = vpop.permute.xlu0 %8706
  %v8708 = vlaneseq
  %v8709 = vshrl.u32 %v8708, 7
  %v8710 = vsub.s32 7, %v8709
  %v8711 = vrot.slane %v7527, %v8710
  %8713 = vbcast.lane.b32.xlu0 %v8711, 256
  %v8714 = vpop.permute.xlu0 %8713
  %v8715 = vlaneseq
  %v8716 = vshrl.u32 %v8715, 7
  %v8717 = vsub.s32 0, %v8716
  %v8718 = vrot.slane %v7528, %v8717
  %8720 = vbcast.lane.b32.xlu0 %v8718, 256
  %v8721 = vpop.permute.xlu0 %8720
  %v8722 = vlaneseq
  %v8723 = vshrl.u32 %v8722, 7
  %v8724 = vsub.s32 1, %v8723
  %v8725 = vrot.slane %v7528, %v8724
  %8727 = vbcast.lane.b32.xlu0 %v8725, 256
  %v8728 = vpop.permute.xlu0 %8727
  %v8729 = vlaneseq
  %v8730 = vshrl.u32 %v8729, 7
  %v8731 = vsub.s32 2, %v8730
  %v8732 = vrot.slane %v7528, %v8731
  %8734 = vbcast.lane.b32.xlu0 %v8732, 256
  %v8735 = vpop.permute.xlu0 %8734
  %v8736 = vlaneseq
  %v8737 = vshrl.u32 %v8736, 7
  %v8738 = vsub.s32 3, %v8737
  %v8739 = vrot.slane %v7528, %v8738
  %8741 = vbcast.lane.b32.xlu0 %v8739, 256
  %v8742 = vpop.permute.xlu0 %8741
  %v8743 = vlaneseq
  %v8744 = vshrl.u32 %v8743, 7
  %v8745 = vsub.s32 4, %v8744
  %v8746 = vrot.slane %v7528, %v8745
  %8748 = vbcast.lane.b32.xlu0 %v8746, 256
  %v8749 = vpop.permute.xlu0 %8748
  %v8750 = vlaneseq
  %v8751 = vshrl.u32 %v8750, 7
  %v8752 = vsub.s32 5, %v8751
  %v8753 = vrot.slane %v7528, %v8752
  %8755 = vbcast.lane.b32.xlu0 %v8753, 256
  %v8756 = vpop.permute.xlu0 %8755
  %v8757 = vlaneseq
  %v8758 = vshrl.u32 %v8757, 7
  %v8759 = vsub.s32 6, %v8758
  %v8760 = vrot.slane %v7528, %v8759
  %8762 = vbcast.lane.b32.xlu0 %v8760, 256
  %v8763 = vpop.permute.xlu0 %8762
  %v8764 = vlaneseq
  %v8765 = vshrl.u32 %v8764, 7
  %v8766 = vsub.s32 7, %v8765
  %v8767 = vrot.slane %v7528, %v8766
  %8769 = vbcast.lane.b32.xlu0 %v8767, 256
  %v8770 = vpop.permute.xlu0 %8769
  %v8771 = vlaneseq
  %v8772 = vshrl.u32 %v8771, 7
  %v8773 = vsub.s32 0, %v8772
  %v8774 = vrot.slane %v7529, %v8773
  %8776 = vbcast.lane.b32.xlu0 %v8774, 256
  %v8777 = vpop.permute.xlu0 %8776
  %v8778 = vlaneseq
  %v8779 = vshrl.u32 %v8778, 7
  %v8780 = vsub.s32 1, %v8779
  %v8781 = vrot.slane %v7529, %v8780
  %8783 = vbcast.lane.b32.xlu0 %v8781, 256
  %v8784 = vpop.permute.xlu0 %8783
  %v8785 = vlaneseq
  %v8786 = vshrl.u32 %v8785, 7
  %v8787 = vsub.s32 2, %v8786
  %v8788 = vrot.slane %v7529, %v8787
  %8790 = vbcast.lane.b32.xlu0 %v8788, 256
  %v8791 = vpop.permute.xlu0 %8790
  %v8792 = vlaneseq
  %v8793 = vshrl.u32 %v8792, 7
  %v8794 = vsub.s32 3, %v8793
  %v8795 = vrot.slane %v7529, %v8794
  %8797 = vbcast.lane.b32.xlu0 %v8795, 256
  %v8798 = vpop.permute.xlu0 %8797
  %v8799 = vlaneseq
  %v8800 = vshrl.u32 %v8799, 7
  %v8801 = vsub.s32 4, %v8800
  %v8802 = vrot.slane %v7529, %v8801
  %8804 = vbcast.lane.b32.xlu0 %v8802, 256
  %v8805 = vpop.permute.xlu0 %8804
  %v8806 = vlaneseq
  %v8807 = vshrl.u32 %v8806, 7
  %v8808 = vsub.s32 5, %v8807
  %v8809 = vrot.slane %v7529, %v8808
  %8811 = vbcast.lane.b32.xlu0 %v8809, 256
  %v8812 = vpop.permute.xlu0 %8811
  %v8813 = vlaneseq
  %v8814 = vshrl.u32 %v8813, 7
  %v8815 = vsub.s32 6, %v8814
  %v8816 = vrot.slane %v7529, %v8815
  %8818 = vbcast.lane.b32.xlu0 %v8816, 256
  %v8819 = vpop.permute.xlu0 %8818
  %v8820 = vlaneseq
  %v8821 = vshrl.u32 %v8820, 7
  %v8822 = vsub.s32 7, %v8821
  %v8823 = vrot.slane %v7529, %v8822
  %8825 = vbcast.lane.b32.xlu0 %v8823, 256
  %v8826 = vpop.permute.xlu0 %8825
  %v8827 = vlaneseq
  %v8828 = vshrl.u32 %v8827, 7
  %v8829 = vsub.s32 0, %v8828
  %v8830 = vrot.slane %v7530, %v8829
  %8832 = vbcast.lane.b32.xlu0 %v8830, 256
  %v8833 = vpop.permute.xlu0 %8832
  %v8834 = vlaneseq
  %v8835 = vshrl.u32 %v8834, 7
  %v8836 = vsub.s32 1, %v8835
  %v8837 = vrot.slane %v7530, %v8836
  %8839 = vbcast.lane.b32.xlu0 %v8837, 256
  %v8840 = vpop.permute.xlu0 %8839
  %v8841 = vlaneseq
  %v8842 = vshrl.u32 %v8841, 7
  %v8843 = vsub.s32 2, %v8842
  %v8844 = vrot.slane %v7530, %v8843
  %8846 = vbcast.lane.b32.xlu0 %v8844, 256
  %v8847 = vpop.permute.xlu0 %8846
  %v8848 = vlaneseq
  %v8849 = vshrl.u32 %v8848, 7
  %v8850 = vsub.s32 3, %v8849
  %v8851 = vrot.slane %v7530, %v8850
  %8853 = vbcast.lane.b32.xlu0 %v8851, 256
  %v8854 = vpop.permute.xlu0 %8853
  %v8855 = vlaneseq
  %v8856 = vshrl.u32 %v8855, 7
  %v8857 = vsub.s32 4, %v8856
  %v8858 = vrot.slane %v7530, %v8857
  %8860 = vbcast.lane.b32.xlu0 %v8858, 256
  %v8861 = vpop.permute.xlu0 %8860
  %v8862 = vlaneseq
  %v8863 = vshrl.u32 %v8862, 7
  %v8864 = vsub.s32 5, %v8863
  %v8865 = vrot.slane %v7530, %v8864
  %8867 = vbcast.lane.b32.xlu0 %v8865, 256
  %v8868 = vpop.permute.xlu0 %8867
  %v8869 = vlaneseq
  %v8870 = vshrl.u32 %v8869, 7
  %v8871 = vsub.s32 6, %v8870
  %v8872 = vrot.slane %v7530, %v8871
  %8874 = vbcast.lane.b32.xlu0 %v8872, 256
  %v8875 = vpop.permute.xlu0 %8874
  %v8876 = vlaneseq
  %v8877 = vshrl.u32 %v8876, 7
  %v8878 = vsub.s32 7, %v8877
  %v8879 = vrot.slane %v7530, %v8878
  %8881 = vbcast.lane.b32.xlu0 %v8879, 256
  %v8882 = vpop.permute.xlu0 %8881
  %v8883 = vlaneseq
  %v8884 = vshrl.u32 %v8883, 7
  %v8885 = vsub.s32 0, %v8884
  %v8886 = vrot.slane %v7531, %v8885
  %8888 = vbcast.lane.b32.xlu0 %v8886, 256
  %v8889 = vpop.permute.xlu0 %8888
  %v8890 = vlaneseq
  %v8891 = vshrl.u32 %v8890, 7
  %v8892 = vsub.s32 1, %v8891
  %v8893 = vrot.slane %v7531, %v8892
  %8895 = vbcast.lane.b32.xlu0 %v8893, 256
  %v8896 = vpop.permute.xlu0 %8895
  %v8897 = vlaneseq
  %v8898 = vshrl.u32 %v8897, 7
  %v8899 = vsub.s32 2, %v8898
  %v8900 = vrot.slane %v7531, %v8899
  %8902 = vbcast.lane.b32.xlu0 %v8900, 256
  %v8903 = vpop.permute.xlu0 %8902
  %v8904 = vlaneseq
  %v8905 = vshrl.u32 %v8904, 7
  %v8906 = vsub.s32 3, %v8905
  %v8907 = vrot.slane %v7531, %v8906
  %8909 = vbcast.lane.b32.xlu0 %v8907, 256
  %v8910 = vpop.permute.xlu0 %8909
  %v8911 = vlaneseq
  %v8912 = vshrl.u32 %v8911, 7
  %v8913 = vsub.s32 4, %v8912
  %v8914 = vrot.slane %v7531, %v8913
  %8916 = vbcast.lane.b32.xlu0 %v8914, 256
  %v8917 = vpop.permute.xlu0 %8916
  %v8918 = vlaneseq
  %v8919 = vshrl.u32 %v8918, 7
  %v8920 = vsub.s32 5, %v8919
  %v8921 = vrot.slane %v7531, %v8920
  %8923 = vbcast.lane.b32.xlu0 %v8921, 256
  %v8924 = vpop.permute.xlu0 %8923
  %v8925 = vlaneseq
  %v8926 = vshrl.u32 %v8925, 7
  %v8927 = vsub.s32 6, %v8926
  %v8928 = vrot.slane %v7531, %v8927
  %8930 = vbcast.lane.b32.xlu0 %v8928, 256
  %v8931 = vpop.permute.xlu0 %8930
  %v8932 = vlaneseq
  %v8933 = vshrl.u32 %v8932, 7
  %v8934 = vsub.s32 7, %v8933
  %v8935 = vrot.slane %v7531, %v8934
  %8937 = vbcast.lane.b32.xlu0 %v8935, 256
  %v8938 = vpop.permute.xlu0 %8937
  %v8939 = vlaneseq
  %v8940 = vshrl.u32 %v8939, 7
  %v8941 = vsub.s32 0, %v8940
  %v8942 = vrot.slane %v7532, %v8941
  %8944 = vbcast.lane.b32.xlu0 %v8942, 256
  %v8945 = vpop.permute.xlu0 %8944
  %v8946 = vlaneseq
  %v8947 = vshrl.u32 %v8946, 7
  %v8948 = vsub.s32 1, %v8947
  %v8949 = vrot.slane %v7532, %v8948
  %8951 = vbcast.lane.b32.xlu0 %v8949, 256
  %v8952 = vpop.permute.xlu0 %8951
  %v8953 = vlaneseq
  %v8954 = vshrl.u32 %v8953, 7
  %v8955 = vsub.s32 2, %v8954
  %v8956 = vrot.slane %v7532, %v8955
  %8958 = vbcast.lane.b32.xlu0 %v8956, 256
  %v8959 = vpop.permute.xlu0 %8958
  %v8960 = vlaneseq
  %v8961 = vshrl.u32 %v8960, 7
  %v8962 = vsub.s32 3, %v8961
  %v8963 = vrot.slane %v7532, %v8962
  %8965 = vbcast.lane.b32.xlu0 %v8963, 256
  %v8966 = vpop.permute.xlu0 %8965
  %v8967 = vlaneseq
  %v8968 = vshrl.u32 %v8967, 7
  %v8969 = vsub.s32 4, %v8968
  %v8970 = vrot.slane %v7532, %v8969
  %8972 = vbcast.lane.b32.xlu0 %v8970, 256
  %v8973 = vpop.permute.xlu0 %8972
  %v8974 = vlaneseq
  %v8975 = vshrl.u32 %v8974, 7
  %v8976 = vsub.s32 5, %v8975
  %v8977 = vrot.slane %v7532, %v8976
  %8979 = vbcast.lane.b32.xlu0 %v8977, 256
  %v8980 = vpop.permute.xlu0 %8979
  %v8981 = vlaneseq
  %v8982 = vshrl.u32 %v8981, 7
  %v8983 = vsub.s32 6, %v8982
  %v8984 = vrot.slane %v7532, %v8983
  %8986 = vbcast.lane.b32.xlu0 %v8984, 256
  %v8987 = vpop.permute.xlu0 %8986
  %v8988 = vlaneseq
  %v8989 = vshrl.u32 %v8988, 7
  %v8990 = vsub.s32 7, %v8989
  %v8991 = vrot.slane %v7532, %v8990
  %8993 = vbcast.lane.b32.xlu0 %v8991, 256
  %v8994 = vpop.permute.xlu0 %8993
  %v8995 = vlaneseq
  %v8996 = vshrl.u32 %v8995, 7
  %v8997 = vsub.s32 0, %v8996
  %v8998 = vrot.slane %v7533, %v8997
  %9000 = vbcast.lane.b32.xlu0 %v8998, 256
  %v9001 = vpop.permute.xlu0 %9000
  %v9002 = vlaneseq
  %v9003 = vshrl.u32 %v9002, 7
  %v9004 = vsub.s32 1, %v9003
  %v9005 = vrot.slane %v7533, %v9004
  %9007 = vbcast.lane.b32.xlu0 %v9005, 256
  %v9008 = vpop.permute.xlu0 %9007
  %v9009 = vlaneseq
  %v9010 = vshrl.u32 %v9009, 7
  %v9011 = vsub.s32 2, %v9010
  %v9012 = vrot.slane %v7533, %v9011
  %9014 = vbcast.lane.b32.xlu0 %v9012, 256
  %v9015 = vpop.permute.xlu0 %9014
  %v9016 = vlaneseq
  %v9017 = vshrl.u32 %v9016, 7
  %v9018 = vsub.s32 3, %v9017
  %v9019 = vrot.slane %v7533, %v9018
  %9021 = vbcast.lane.b32.xlu0 %v9019, 256
  %v9022 = vpop.permute.xlu0 %9021
  %v9023 = vlaneseq
  %v9024 = vshrl.u32 %v9023, 7
  %v9025 = vsub.s32 4, %v9024
  %v9026 = vrot.slane %v7533, %v9025
  %9028 = vbcast.lane.b32.xlu0 %v9026, 256
  %v9029 = vpop.permute.xlu0 %9028
  %v9030 = vlaneseq
  %v9031 = vshrl.u32 %v9030, 7
  %v9032 = vsub.s32 5, %v9031
  %v9033 = vrot.slane %v7533, %v9032
  %9035 = vbcast.lane.b32.xlu0 %v9033, 256
  %v9036 = vpop.permute.xlu0 %9035
  %v9037 = vlaneseq
  %v9038 = vshrl.u32 %v9037, 7
  %v9039 = vsub.s32 6, %v9038
  %v9040 = vrot.slane %v7533, %v9039
  %9042 = vbcast.lane.b32.xlu0 %v9040, 256
  %v9043 = vpop.permute.xlu0 %9042
  %v9044 = vlaneseq
  %v9045 = vshrl.u32 %v9044, 7
  %v9046 = vsub.s32 7, %v9045
  %v9047 = vrot.slane %v7533, %v9046
  %9049 = vbcast.lane.b32.xlu0 %v9047, 256
  %v9050 = vpop.permute.xlu0 %9049
  %v9051 = vlaneseq
  %v9052 = vshrl.u32 %v9051, 7
  %v9053 = vsub.s32 0, %v9052
  %v9054 = vrot.slane %v7534, %v9053
  %9056 = vbcast.lane.b32.xlu0 %v9054, 256
  %v9057 = vpop.permute.xlu0 %9056
  %v9058 = vlaneseq
  %v9059 = vshrl.u32 %v9058, 7
  %v9060 = vsub.s32 1, %v9059
  %v9061 = vrot.slane %v7534, %v9060
  %9063 = vbcast.lane.b32.xlu0 %v9061, 256
  %v9064 = vpop.permute.xlu0 %9063
  %v9065 = vlaneseq
  %v9066 = vshrl.u32 %v9065, 7
  %v9067 = vsub.s32 2, %v9066
  %v9068 = vrot.slane %v7534, %v9067
  %9070 = vbcast.lane.b32.xlu0 %v9068, 256
  %v9071 = vpop.permute.xlu0 %9070
  %v9072 = vlaneseq
  %v9073 = vshrl.u32 %v9072, 7
  %v9074 = vsub.s32 3, %v9073
  %v9075 = vrot.slane %v7534, %v9074
  %9077 = vbcast.lane.b32.xlu0 %v9075, 256
  %v9078 = vpop.permute.xlu0 %9077
  %v9079 = vlaneseq
  %v9080 = vshrl.u32 %v9079, 7
  %v9081 = vsub.s32 4, %v9080
  %v9082 = vrot.slane %v7534, %v9081
  %9084 = vbcast.lane.b32.xlu0 %v9082, 256
  %v9085 = vpop.permute.xlu0 %9084
  %v9086 = vlaneseq
  %v9087 = vshrl.u32 %v9086, 7
  %v9088 = vsub.s32 5, %v9087
  %v9089 = vrot.slane %v7534, %v9088
  %9091 = vbcast.lane.b32.xlu0 %v9089, 256
  %v9092 = vpop.permute.xlu0 %9091
  %v9093 = vlaneseq
  %v9094 = vshrl.u32 %v9093, 7
  %v9095 = vsub.s32 6, %v9094
  %v9096 = vrot.slane %v7534, %v9095
  %9098 = vbcast.lane.b32.xlu0 %v9096, 256
  %v9099 = vpop.permute.xlu0 %9098
  %v9100 = vlaneseq
  %v9101 = vshrl.u32 %v9100, 7
  %v9102 = vsub.s32 7, %v9101
  %v9103 = vrot.slane %v7534, %v9102
  %9105 = vbcast.lane.b32.xlu0 %v9103, 256
  %v9106 = vpop.permute.xlu0 %9105
  %v9107 = vlaneseq
  %v9108 = vshrl.u32 %v9107, 7
  %v9109 = vsub.s32 0, %v9108
  %v9110 = vrot.slane %v7535, %v9109
  %9112 = vbcast.lane.b32.xlu0 %v9110, 256
  %v9113 = vpop.permute.xlu0 %9112
  %v9114 = vlaneseq
  %v9115 = vshrl.u32 %v9114, 7
  %v9116 = vsub.s32 1, %v9115
  %v9117 = vrot.slane %v7535, %v9116
  %9119 = vbcast.lane.b32.xlu0 %v9117, 256
  %v9120 = vpop.permute.xlu0 %9119
  %v9121 = vlaneseq
  %v9122 = vshrl.u32 %v9121, 7
  %v9123 = vsub.s32 2, %v9122
  %v9124 = vrot.slane %v7535, %v9123
  %9126 = vbcast.lane.b32.xlu0 %v9124, 256
  %v9127 = vpop.permute.xlu0 %9126
  %v9128 = vlaneseq
  %v9129 = vshrl.u32 %v9128, 7
  %v9130 = vsub.s32 3, %v9129
  %v9131 = vrot.slane %v7535, %v9130
  %9133 = vbcast.lane.b32.xlu0 %v9131, 256
  %v9134 = vpop.permute.xlu0 %9133
  %v9135 = vlaneseq
  %v9136 = vshrl.u32 %v9135, 7
  %v9137 = vsub.s32 4, %v9136
  %v9138 = vrot.slane %v7535, %v9137
  %9140 = vbcast.lane.b32.xlu0 %v9138, 256
  %v9141 = vpop.permute.xlu0 %9140
  %v9142 = vlaneseq
  %v9143 = vshrl.u32 %v9142, 7
  %v9144 = vsub.s32 5, %v9143
  %v9145 = vrot.slane %v7535, %v9144
  %9147 = vbcast.lane.b32.xlu0 %v9145, 256
  %v9148 = vpop.permute.xlu0 %9147
  %v9149 = vlaneseq
  %v9150 = vshrl.u32 %v9149, 7
  %v9151 = vsub.s32 6, %v9150
  %v9152 = vrot.slane %v7535, %v9151
  %9154 = vbcast.lane.b32.xlu0 %v9152, 256
  %v9155 = vpop.permute.xlu0 %9154
  %v9156 = vlaneseq
  %v9157 = vshrl.u32 %v9156, 7
  %v9158 = vsub.s32 7, %v9157
  %v9159 = vrot.slane %v7535, %v9158
  %9161 = vbcast.lane.b32.xlu0 %v9159, 256
  %v9162 = vpop.permute.xlu0 %9161
  %v9163 = vlaneseq
  %v9164 = vshrl.u32 %v9163, 7
  %v9165 = vsub.s32 0, %v9164
  %v9166 = vrot.slane %v7536, %v9165
  %9168 = vbcast.lane.b32.xlu0 %v9166, 256
  %v9169 = vpop.permute.xlu0 %9168
  %v9170 = vlaneseq
  %v9171 = vshrl.u32 %v9170, 7
  %v9172 = vsub.s32 1, %v9171
  %v9173 = vrot.slane %v7536, %v9172
  %9175 = vbcast.lane.b32.xlu0 %v9173, 256
  %v9176 = vpop.permute.xlu0 %9175
  %v9177 = vlaneseq
  %v9178 = vshrl.u32 %v9177, 7
  %v9179 = vsub.s32 2, %v9178
  %v9180 = vrot.slane %v7536, %v9179
  %9182 = vbcast.lane.b32.xlu0 %v9180, 256
  %v9183 = vpop.permute.xlu0 %9182
  %v9184 = vlaneseq
  %v9185 = vshrl.u32 %v9184, 7
  %v9186 = vsub.s32 3, %v9185
  %v9187 = vrot.slane %v7536, %v9186
  %9189 = vbcast.lane.b32.xlu0 %v9187, 256
  %v9190 = vpop.permute.xlu0 %9189
  %v9191 = vlaneseq
  %v9192 = vshrl.u32 %v9191, 7
  %v9193 = vsub.s32 4, %v9192
  %v9194 = vrot.slane %v7536, %v9193
  %9196 = vbcast.lane.b32.xlu0 %v9194, 256
  %v9197 = vpop.permute.xlu0 %9196
  %v9198 = vlaneseq
  %v9199 = vshrl.u32 %v9198, 7
  %v9200 = vsub.s32 5, %v9199
  %v9201 = vrot.slane %v7536, %v9200
  %9203 = vbcast.lane.b32.xlu0 %v9201, 256
  %v9204 = vpop.permute.xlu0 %9203
  %v9205 = vlaneseq
  %v9206 = vshrl.u32 %v9205, 7
  %v9207 = vsub.s32 6, %v9206
  %v9208 = vrot.slane %v7536, %v9207
  %9210 = vbcast.lane.b32.xlu0 %v9208, 256
  %v9211 = vpop.permute.xlu0 %9210
  %v9212 = vlaneseq
  %v9213 = vshrl.u32 %v9212, 7
  %v9214 = vsub.s32 7, %v9213
  %v9215 = vrot.slane %v7536, %v9214
  %9217 = vbcast.lane.b32.xlu0 %v9215, 256
  %v9218 = vpop.permute.xlu0 %9217
  %v9219 = vlaneseq
  %v9220 = vshrl.u32 %v9219, 7
  %v9221 = vsub.s32 0, %v9220
  %v9222 = vrot.slane %v7537, %v9221
  %9224 = vbcast.lane.b32.xlu0 %v9222, 256
  %v9225 = vpop.permute.xlu0 %9224
  %v9226 = vlaneseq
  %v9227 = vshrl.u32 %v9226, 7
  %v9228 = vsub.s32 1, %v9227
  %v9229 = vrot.slane %v7537, %v9228
  %9231 = vbcast.lane.b32.xlu0 %v9229, 256
  %v9232 = vpop.permute.xlu0 %9231
  %v9233 = vlaneseq
  %v9234 = vshrl.u32 %v9233, 7
  %v9235 = vsub.s32 2, %v9234
  %v9236 = vrot.slane %v7537, %v9235
  %9238 = vbcast.lane.b32.xlu0 %v9236, 256
  %v9239 = vpop.permute.xlu0 %9238
  %v9240 = vlaneseq
  %v9241 = vshrl.u32 %v9240, 7
  %v9242 = vsub.s32 3, %v9241
  %v9243 = vrot.slane %v7537, %v9242
  %9245 = vbcast.lane.b32.xlu0 %v9243, 256
  %v9246 = vpop.permute.xlu0 %9245
  %v9247 = vlaneseq
  %v9248 = vshrl.u32 %v9247, 7
  %v9249 = vsub.s32 4, %v9248
  %v9250 = vrot.slane %v7537, %v9249
  %9252 = vbcast.lane.b32.xlu0 %v9250, 256
  %v9253 = vpop.permute.xlu0 %9252
  %v9254 = vlaneseq
  %v9255 = vshrl.u32 %v9254, 7
  %v9256 = vsub.s32 5, %v9255
  %v9257 = vrot.slane %v7537, %v9256
  %9259 = vbcast.lane.b32.xlu0 %v9257, 256
  %v9260 = vpop.permute.xlu0 %9259
  %v9261 = vlaneseq
  %v9262 = vshrl.u32 %v9261, 7
  %v9263 = vsub.s32 6, %v9262
  %v9264 = vrot.slane %v7537, %v9263
  %9266 = vbcast.lane.b32.xlu0 %v9264, 256
  %v9267 = vpop.permute.xlu0 %9266
  %v9268 = vlaneseq
  %v9269 = vshrl.u32 %v9268, 7
  %v9270 = vsub.s32 7, %v9269
  %v9271 = vrot.slane %v7537, %v9270
  %9273 = vbcast.lane.b32.xlu0 %v9271, 256
  %v9274 = vpop.permute.xlu0 %9273
  %v9275 = vlaneseq
  %v9276 = vshrl.u32 %v9275, 7
  %v9277 = vsub.s32 0, %v9276
  %v9278 = vrot.slane %v7538, %v9277
  %9280 = vbcast.lane.b32.xlu0 %v9278, 256
  %v9281 = vpop.permute.xlu0 %9280
  %v9282 = vlaneseq
  %v9283 = vshrl.u32 %v9282, 7
  %v9284 = vsub.s32 1, %v9283
  %v9285 = vrot.slane %v7538, %v9284
  %9287 = vbcast.lane.b32.xlu0 %v9285, 256
  %v9288 = vpop.permute.xlu0 %9287
  %v9289 = vlaneseq
  %v9290 = vshrl.u32 %v9289, 7
  %v9291 = vsub.s32 2, %v9290
  %v9292 = vrot.slane %v7538, %v9291
  %9294 = vbcast.lane.b32.xlu0 %v9292, 256
  %v9295 = vpop.permute.xlu0 %9294
  %v9296 = vlaneseq
  %v9297 = vshrl.u32 %v9296, 7
  %v9298 = vsub.s32 3, %v9297
  %v9299 = vrot.slane %v7538, %v9298
  %9301 = vbcast.lane.b32.xlu0 %v9299, 256
  %v9302 = vpop.permute.xlu0 %9301
  %v9303 = vlaneseq
  %v9304 = vshrl.u32 %v9303, 7
  %v9305 = vsub.s32 4, %v9304
  %v9306 = vrot.slane %v7538, %v9305
  %9308 = vbcast.lane.b32.xlu0 %v9306, 256
  %v9309 = vpop.permute.xlu0 %9308
  %v9310 = vlaneseq
  %v9311 = vshrl.u32 %v9310, 7
  %v9312 = vsub.s32 5, %v9311
  %v9313 = vrot.slane %v7538, %v9312
  %9315 = vbcast.lane.b32.xlu0 %v9313, 256
  %v9316 = vpop.permute.xlu0 %9315
  %v9317 = vlaneseq
  %v9318 = vshrl.u32 %v9317, 7
  %v9319 = vsub.s32 6, %v9318
  %v9320 = vrot.slane %v7538, %v9319
  %9322 = vbcast.lane.b32.xlu0 %v9320, 256
  %v9323 = vpop.permute.xlu0 %9322
  %v9324 = vlaneseq
  %v9325 = vshrl.u32 %v9324, 7
  %v9326 = vsub.s32 7, %v9325
  %v9327 = vrot.slane %v7538, %v9326
  %9329 = vbcast.lane.b32.xlu0 %v9327, 256
  %v9330 = vpop.permute.xlu0 %9329
  %v9331 = vmul.f32 %v4408, %v7545
  %v9332 = vmul.f32 %v4432, %v7552
  %v9333 = vmul.f32 %v4415, %v7559
  %v9334 = vmul.f32 %v4433, %v7566
  %v9335 = vmul.f32 %v4424, %v7573
  %v9336 = vmul.f32 %v4434, %v7580
  %v9337 = vmul.f32 %v4431, %v7587
  %v9338 = vmul.f32 %v4435, %v7594
  %v9339 = vmul.f32 %v4476, %v7601
  %v9340 = vmul.f32 %v4500, %v7608
  %v9341 = vmul.f32 %v4483, %v7615
  %v9342 = vmul.f32 %v4501, %v7622
  %v9343 = vmul.f32 %v4492, %v7629
  %v9344 = vmul.f32 %v4502, %v7636
  %v9345 = vmul.f32 %v4499, %v7643
  %v9346 = vmul.f32 %v4503, %v7650
  %v9347 = vmul.f32 %v4544, %v7657
  %v9348 = vmul.f32 %v4568, %v7664
  %v9349 = vmul.f32 %v4551, %v7671
  %v9350 = vmul.f32 %v4569, %v7678
  %v9351 = vmul.f32 %v4560, %v7685
  %v9352 = vmul.f32 %v4570, %v7692
  %v9353 = vmul.f32 %v4567, %v7699
  %v9354 = vmul.f32 %v4571, %v7706
  %v9355 = vmul.f32 %v4612, %v7713
  %v9356 = vmul.f32 %v4636, %v7720
  %v9357 = vmul.f32 %v4619, %v7727
  %v9358 = vmul.f32 %v4637, %v7734
  %v9359 = vmul.f32 %v4628, %v7741
  %v9360 = vmul.f32 %v4638, %v7748
  %v9361 = vmul.f32 %v4635, %v7755
  %v9362 = vmul.f32 %v4639, %v7762
  %v9363 = vmul.f32 %v4680, %v7769
  %v9364 = vmul.f32 %v4704, %v7776
  %v9365 = vmul.f32 %v4687, %v7783
  %v9366 = vmul.f32 %v4705, %v7790
  %v9367 = vmul.f32 %v4696, %v7797
  %v9368 = vmul.f32 %v4706, %v7804
  %v9369 = vmul.f32 %v4703, %v7811
  %v9370 = vmul.f32 %v4707, %v7818
  %v9371 = vmul.f32 %v4748, %v7825
  %v9372 = vmul.f32 %v4772, %v7832
  %v9373 = vmul.f32 %v4755, %v7839
  %v9374 = vmul.f32 %v4773, %v7846
  %v9375 = vmul.f32 %v4764, %v7853
  %v9376 = vmul.f32 %v4774, %v7860
  %v9377 = vmul.f32 %v4771, %v7867
  %v9378 = vmul.f32 %v4775, %v7874
  %v9379 = vmul.f32 %v4816, %v7881
  %v9380 = vmul.f32 %v4840, %v7888
  %v9381 = vmul.f32 %v4823, %v7895
  %v9382 = vmul.f32 %v4841, %v7902
  %v9383 = vmul.f32 %v4832, %v7909
  %v9384 = vmul.f32 %v4842, %v7916
  %v9385 = vmul.f32 %v4839, %v7923
  %v9386 = vmul.f32 %v4843, %v7930
  %v9387 = vmul.f32 %v4884, %v7937
  %v9388 = vmul.f32 %v4908, %v7944
  %v9389 = vmul.f32 %v4891, %v7951
  %v9390 = vmul.f32 %v4909, %v7958
  %v9391 = vmul.f32 %v4900, %v7965
  %v9392 = vmul.f32 %v4910, %v7972
  %v9393 = vmul.f32 %v4907, %v7979
  %v9394 = vmul.f32 %v4911, %v7986
  %v9395 = vmul.f32 %v4952, %v7993
  %v9396 = vmul.f32 %v4976, %v8000
  %v9397 = vmul.f32 %v4959, %v8007
  %v9398 = vmul.f32 %v4977, %v8014
  %v9399 = vmul.f32 %v4968, %v8021
  %v9400 = vmul.f32 %v4978, %v8028
  %v9401 = vmul.f32 %v4975, %v8035
  %v9402 = vmul.f32 %v4979, %v8042
  %v9403 = vmul.f32 %v5020, %v8049
  %v9404 = vmul.f32 %v5044, %v8056
  %v9405 = vmul.f32 %v5027, %v8063
  %v9406 = vmul.f32 %v5045, %v8070
  %v9407 = vmul.f32 %v5036, %v8077
  %v9408 = vmul.f32 %v5046, %v8084
  %v9409 = vmul.f32 %v5043, %v8091
  %v9410 = vmul.f32 %v5047, %v8098
  %v9411 = vmul.f32 %v5088, %v8105
  %v9412 = vmul.f32 %v5112, %v8112
  %v9413 = vmul.f32 %v5095, %v8119
  %v9414 = vmul.f32 %v5113, %v8126
  %v9415 = vmul.f32 %v5104, %v8133
  %v9416 = vmul.f32 %v5114, %v8140
  %v9417 = vmul.f32 %v5111, %v8147
  %v9418 = vmul.f32 %v5115, %v8154
  %v9419 = vmul.f32 %v5156, %v8161
  %v9420 = vmul.f32 %v5180, %v8168
  %v9421 = vmul.f32 %v5163, %v8175
  %v9422 = vmul.f32 %v5181, %v8182
  %v9423 = vmul.f32 %v5172, %v8189
  %v9424 = vmul.f32 %v5182, %v8196
  %v9425 = vmul.f32 %v5179, %v8203
  %v9426 = vmul.f32 %v5183, %v8210
  %v9427 = vmul.f32 %v5224, %v8217
  %v9428 = vmul.f32 %v5248, %v8224
  %v9429 = vmul.f32 %v5231, %v8231
  %v9430 = vmul.f32 %v5249, %v8238
  %v9431 = vmul.f32 %v5240, %v8245
  %v9432 = vmul.f32 %v5250, %v8252
  %v9433 = vmul.f32 %v5247, %v8259
  %v9434 = vmul.f32 %v5251, %v8266
  %v9435 = vmul.f32 %v5292, %v8273
  %v9436 = vmul.f32 %v5316, %v8280
  %v9437 = vmul.f32 %v5299, %v8287
  %v9438 = vmul.f32 %v5317, %v8294
  %v9439 = vmul.f32 %v5308, %v8301
  %v9440 = vmul.f32 %v5318, %v8308
  %v9441 = vmul.f32 %v5315, %v8315
  %v9442 = vmul.f32 %v5319, %v8322
  %v9443 = vmul.f32 %v5360, %v8329
  %v9444 = vmul.f32 %v5384, %v8336
  %v9445 = vmul.f32 %v5367, %v8343
  %v9446 = vmul.f32 %v5385, %v8350
  %v9447 = vmul.f32 %v5376, %v8357
  %v9448 = vmul.f32 %v5386, %v8364
  %v9449 = vmul.f32 %v5383, %v8371
  %v9450 = vmul.f32 %v5387, %v8378
  %v9451 = vmul.f32 %v5428, %v8385
  %v9452 = vmul.f32 %v5452, %v8392
  %v9453 = vmul.f32 %v5435, %v8399
  %v9454 = vmul.f32 %v5453, %v8406
  %v9455 = vmul.f32 %v5444, %v8413
  %v9456 = vmul.f32 %v5454, %v8420
  %v9457 = vmul.f32 %v5451, %v8427
  %v9458 = vmul.f32 %v5455, %v8434
  %v9459 = vmul.f32 %v5496, %v8441
  %v9460 = vmul.f32 %v5520, %v8448
  %v9461 = vmul.f32 %v5503, %v8455
  %v9462 = vmul.f32 %v5521, %v8462
  %v9463 = vmul.f32 %v5512, %v8469
  %v9464 = vmul.f32 %v5522, %v8476
  %v9465 = vmul.f32 %v5519, %v8483
  %v9466 = vmul.f32 %v5523, %v8490
  %v9467 = vmul.f32 %v5564, %v8497
  %v9468 = vmul.f32 %v5588, %v8504
  %v9469 = vmul.f32 %v5571, %v8511
  %v9470 = vmul.f32 %v5589, %v8518
  %v9471 = vmul.f32 %v5580, %v8525
  %v9472 = vmul.f32 %v5590, %v8532
  %v9473 = vmul.f32 %v5587, %v8539
  %v9474 = vmul.f32 %v5591, %v8546
  %v9475 = vmul.f32 %v5632, %v8553
  %v9476 = vmul.f32 %v5656, %v8560
  %v9477 = vmul.f32 %v5639, %v8567
  %v9478 = vmul.f32 %v5657, %v8574
  %v9479 = vmul.f32 %v5648, %v8581
  %v9480 = vmul.f32 %v5658, %v8588
  %v9481 = vmul.f32 %v5655, %v8595
  %v9482 = vmul.f32 %v5659, %v8602
  %v9483 = vmul.f32 %v5700, %v8609
  %v9484 = vmul.f32 %v5724, %v8616
  %v9485 = vmul.f32 %v5707, %v8623
  %v9486 = vmul.f32 %v5725, %v8630
  %v9487 = vmul.f32 %v5716, %v8637
  %v9488 = vmul.f32 %v5726, %v8644
  %v9489 = vmul.f32 %v5723, %v8651
  %v9490 = vmul.f32 %v5727, %v8658
  %v9491 = vmul.f32 %v5768, %v8665
  %v9492 = vmul.f32 %v5792, %v8672
  %v9493 = vmul.f32 %v5775, %v8679
  %v9494 = vmul.f32 %v5793, %v8686
  %v9495 = vmul.f32 %v5784, %v8693
  %v9496 = vmul.f32 %v5794, %v8700
  %v9497 = vmul.f32 %v5791, %v8707
  %v9498 = vmul.f32 %v5795, %v8714
  %v9499 = vmul.f32 %v5836, %v8721
  %v9500 = vmul.f32 %v5860, %v8728
  %v9501 = vmul.f32 %v5843, %v8735
  %v9502 = vmul.f32 %v5861, %v8742
  %v9503 = vmul.f32 %v5852, %v8749
  %v9504 = vmul.f32 %v5862, %v8756
  %v9505 = vmul.f32 %v5859, %v8763
  %v9506 = vmul.f32 %v5863, %v8770
  %v9507 = vmul.f32 %v5904, %v8777
  %v9508 = vmul.f32 %v5928, %v8784
  %v9509 = vmul.f32 %v5911, %v8791
  %v9510 = vmul.f32 %v5929, %v8798
  %v9511 = vmul.f32 %v5920, %v8805
  %v9512 = vmul.f32 %v5930, %v8812
  %v9513 = vmul.f32 %v5927, %v8819
  %v9514 = vmul.f32 %v5931, %v8826
  %v9515 = vmul.f32 %v5972, %v8833
  %v9516 = vmul.f32 %v5996, %v8840
  %v9517 = vmul.f32 %v5979, %v8847
  %v9518 = vmul.f32 %v5997, %v8854
  %v9519 = vmul.f32 %v5988, %v8861
  %v9520 = vmul.f32 %v5998, %v8868
  %v9521 = vmul.f32 %v5995, %v8875
  %v9522 = vmul.f32 %v5999, %v8882
  %v9523 = vmul.f32 %v6040, %v8889
  %v9524 = vmul.f32 %v6064, %v8896
  %v9525 = vmul.f32 %v6047, %v8903
  %v9526 = vmul.f32 %v6065, %v8910
  %v9527 = vmul.f32 %v6056, %v8917
  %v9528 = vmul.f32 %v6066, %v8924
  %v9529 = vmul.f32 %v6063, %v8931
  %v9530 = vmul.f32 %v6067, %v8938
  %v9531 = vmul.f32 %v6108, %v8945
  %v9532 = vmul.f32 %v6132, %v8952
  %v9533 = vmul.f32 %v6115, %v8959
  %v9534 = vmul.f32 %v6133, %v8966
  %v9535 = vmul.f32 %v6124, %v8973
  %v9536 = vmul.f32 %v6134, %v8980
  %v9537 = vmul.f32 %v6131, %v8987
  %v9538 = vmul.f32 %v6135, %v8994
  %v9539 = vmul.f32 %v6176, %v9001
  %v9540 = vmul.f32 %v6200, %v9008
  %v9541 = vmul.f32 %v6183, %v9015
  %v9542 = vmul.f32 %v6201, %v9022
  %v9543 = vmul.f32 %v6192, %v9029
  %v9544 = vmul.f32 %v6202, %v9036
  %v9545 = vmul.f32 %v6199, %v9043
  %v9546 = vmul.f32 %v6203, %v9050
  %v9547 = vmul.f32 %v6244, %v9057
  %v9548 = vmul.f32 %v6268, %v9064
  %v9549 = vmul.f32 %v6251, %v9071
  %v9550 = vmul.f32 %v6269, %v9078
  %v9551 = vmul.f32 %v6260, %v9085
  %v9552 = vmul.f32 %v6270, %v9092
  %v9553 = vmul.f32 %v6267, %v9099
  %v9554 = vmul.f32 %v6271, %v9106
  %v9555 = vmul.f32 %v6312, %v9113
  %v9556 = vmul.f32 %v6336, %v9120
  %v9557 = vmul.f32 %v6319, %v9127
  %v9558 = vmul.f32 %v6337, %v9134
  %v9559 = vmul.f32 %v6328, %v9141
  %v9560 = vmul.f32 %v6338, %v9148
  %v9561 = vmul.f32 %v6335, %v9155
  %v9562 = vmul.f32 %v6339, %v9162
  %v9563 = vmul.f32 %v6380, %v9169
  %v9564 = vmul.f32 %v6404, %v9176
  %v9565 = vmul.f32 %v6387, %v9183
  %v9566 = vmul.f32 %v6405, %v9190
  %v9567 = vmul.f32 %v6396, %v9197
  %v9568 = vmul.f32 %v6406, %v9204
  %v9569 = vmul.f32 %v6403, %v9211
  %v9570 = vmul.f32 %v6407, %v9218
  %v9571 = vmul.f32 %v6448, %v9225
  %v9572 = vmul.f32 %v6472, %v9232
  %v9573 = vmul.f32 %v6455, %v9239
  %v9574 = vmul.f32 %v6473, %v9246
  %v9575 = vmul.f32 %v6464, %v9253
  %v9576 = vmul.f32 %v6474, %v9260
  %v9577 = vmul.f32 %v6471, %v9267
  %v9578 = vmul.f32 %v6475, %v9274
  %v9579 = vmul.f32 %v6516, %v9281
  %v9580 = vmul.f32 %v6540, %v9288
  %v9581 = vmul.f32 %v6523, %v9295
  %v9582 = vmul.f32 %v6541, %v9302
  %v9583 = vmul.f32 %v6532, %v9309
  %v9584 = vmul.f32 %v6542, %v9316
  %v9585 = vmul.f32 %v6539, %v9323
  %v9586 = vmul.f32 %v6543, %v9330
  %v9587 = vcombine.low %v9331, %v9333
  %v9589 = vunpack.c.l.s4 1983009808
  %v9590 = vunpack.c.0.s8 %v9589
  %v9591 = vlaneseq
  %v9592 = vshrl.u32 %v9591, 7
  %v9593 = vsub.s32 %v9590, %v9592
  %v9594 = vrot.slane %v9587, %v9593
  %v9595 = vcombine.low %v9332, %v9334
  %v9597 = vunpack.c.l.s4 1983009808
  %v9598 = vunpack.c.0.s8 %v9597
  %v9599 = vlaneseq
  %v9600 = vshrl.u32 %v9599, 7
  %v9601 = vsub.s32 %v9598, %v9600
  %v9602 = vrot.slane %v9595, %v9601
  %v9603 = vcombine.low %v9335, %v9337
  %v9605 = vunpack.c.l.s4 1983009808
  %v9606 = vunpack.c.0.s8 %v9605
  %v9607 = vlaneseq
  %v9608 = vshrl.u32 %v9607, 7
  %v9609 = vsub.s32 %v9606, %v9608
  %v9610 = vrot.slane %v9603, %v9609
  %v9611 = vcombine.low %v9336, %v9338
  %v9613 = vunpack.c.l.s4 1983009808
  %v9614 = vunpack.c.0.s8 %v9613
  %v9615 = vlaneseq
  %v9616 = vshrl.u32 %v9615, 7
  %v9617 = vsub.s32 %v9614, %v9616
  %v9618 = vrot.slane %v9611, %v9617
  %v9619 = vcombine.low %v9594, %v9602
  %v9620 = vcombine.high %v9594, %v9602
  %v9622 = vunpack.c.l.s4 1934713408
  %v9623 = vunpack.c.0.s8 %v9622
  %v9624 = vlaneseq
  %v9625 = vshrl.u32 %v9624, 7
  %v9626 = vsub.s32 %v9623, %v9625
  %v9627 = vrot.slane %v9619, %v9626
  %v9629 = vunpack.c.l.s4 1934713408
  %v9630 = vunpack.c.0.s8 %v9629
  %v9631 = vlaneseq
  %v9632 = vshrl.u32 %v9631, 7
  %v9633 = vsub.s32 %v9630, %v9632
  %v9634 = vrot.slane %v9620, %v9633
  %v9635 = vcombine.low %v9610, %v9618
  %v9636 = vcombine.high %v9610, %v9618
  %v9638 = vunpack.c.l.s4 1934713408
  %v9639 = vunpack.c.0.s8 %v9638
  %v9640 = vlaneseq
  %v9641 = vshrl.u32 %v9640, 7
  %v9642 = vsub.s32 %v9639, %v9641
  %v9643 = vrot.slane %v9635, %v9642
  %v9645 = vunpack.c.l.s4 1934713408
  %v9646 = vunpack.c.0.s8 %v9645
  %v9647 = vlaneseq
  %v9648 = vshrl.u32 %v9647, 7
  %v9649 = vsub.s32 %v9646, %v9648
  %v9650 = vrot.slane %v9636, %v9649
  %v9651 = vcombine.low %v9627, %v9643
  %v9652 = vcombine.high %v9627, %v9643
  %v9653 = vcombine.low %v9634, %v9650
  %v9654 = vcombine.high %v9634, %v9650
  %v9655 = vcombine.low %v9339, %v9341
  %v9657 = vunpack.c.l.s4 1983009808
  %v9658 = vunpack.c.0.s8 %v9657
  %v9659 = vlaneseq
  %v9660 = vshrl.u32 %v9659, 7
  %v9661 = vsub.s32 %v9658, %v9660
  %v9662 = vrot.slane %v9655, %v9661
  %v9663 = vcombine.low %v9340, %v9342
  %v9665 = vunpack.c.l.s4 1983009808
  %v9666 = vunpack.c.0.s8 %v9665
  %v9667 = vlaneseq
  %v9668 = vshrl.u32 %v9667, 7
  %v9669 = vsub.s32 %v9666, %v9668
  %v9670 = vrot.slane %v9663, %v9669
  %v9671 = vcombine.low %v9343, %v9345
  %v9673 = vunpack.c.l.s4 1983009808
  %v9674 = vunpack.c.0.s8 %v9673
  %v9675 = vlaneseq
  %v9676 = vshrl.u32 %v9675, 7
  %v9677 = vsub.s32 %v9674, %v9676
  %v9678 = vrot.slane %v9671, %v9677
  %v9679 = vcombine.low %v9344, %v9346
  %v9681 = vunpack.c.l.s4 1983009808
  %v9682 = vunpack.c.0.s8 %v9681
  %v9683 = vlaneseq
  %v9684 = vshrl.u32 %v9683, 7
  %v9685 = vsub.s32 %v9682, %v9684
  %v9686 = vrot.slane %v9679, %v9685
  %v9687 = vcombine.low %v9662, %v9670
  %v9688 = vcombine.high %v9662, %v9670
  %v9690 = vunpack.c.l.s4 1934713408
  %v9691 = vunpack.c.0.s8 %v9690
  %v9692 = vlaneseq
  %v9693 = vshrl.u32 %v9692, 7
  %v9694 = vsub.s32 %v9691, %v9693
  %v9695 = vrot.slane %v9687, %v9694
  %v9697 = vunpack.c.l.s4 1934713408
  %v9698 = vunpack.c.0.s8 %v9697
  %v9699 = vlaneseq
  %v9700 = vshrl.u32 %v9699, 7
  %v9701 = vsub.s32 %v9698, %v9700
  %v9702 = vrot.slane %v9688, %v9701
  %v9703 = vcombine.low %v9678, %v9686
  %v9704 = vcombine.high %v9678, %v9686
  %v9706 = vunpack.c.l.s4 1934713408
  %v9707 = vunpack.c.0.s8 %v9706
  %v9708 = vlaneseq
  %v9709 = vshrl.u32 %v9708, 7
  %v9710 = vsub.s32 %v9707, %v9709
  %v9711 = vrot.slane %v9703, %v9710
  %v9713 = vunpack.c.l.s4 1934713408
  %v9714 = vunpack.c.0.s8 %v9713
  %v9715 = vlaneseq
  %v9716 = vshrl.u32 %v9715, 7
  %v9717 = vsub.s32 %v9714, %v9716
  %v9718 = vrot.slane %v9704, %v9717
  %v9719 = vcombine.low %v9695, %v9711
  %v9720 = vcombine.high %v9695, %v9711
  %v9721 = vcombine.low %v9702, %v9718
  %v9722 = vcombine.high %v9702, %v9718
  %v9723 = vcombine.low %v9347, %v9349
  %v9725 = vunpack.c.l.s4 1983009808
  %v9726 = vunpack.c.0.s8 %v9725
  %v9727 = vlaneseq
  %v9728 = vshrl.u32 %v9727, 7
  %v9729 = vsub.s32 %v9726, %v9728
  %v9730 = vrot.slane %v9723, %v9729
  %v9731 = vcombine.low %v9348, %v9350
  %v9733 = vunpack.c.l.s4 1983009808
  %v9734 = vunpack.c.0.s8 %v9733
  %v9735 = vlaneseq
  %v9736 = vshrl.u32 %v9735, 7
  %v9737 = vsub.s32 %v9734, %v9736
  %v9738 = vrot.slane %v9731, %v9737
  %v9739 = vcombine.low %v9351, %v9353
  %v9741 = vunpack.c.l.s4 1983009808
  %v9742 = vunpack.c.0.s8 %v9741
  %v9743 = vlaneseq
  %v9744 = vshrl.u32 %v9743, 7
  %v9745 = vsub.s32 %v9742, %v9744
  %v9746 = vrot.slane %v9739, %v9745
  %v9747 = vcombine.low %v9352, %v9354
  %v9749 = vunpack.c.l.s4 1983009808
  %v9750 = vunpack.c.0.s8 %v9749
  %v9751 = vlaneseq
  %v9752 = vshrl.u32 %v9751, 7
  %v9753 = vsub.s32 %v9750, %v9752
  %v9754 = vrot.slane %v9747, %v9753
  %v9755 = vcombine.low %v9730, %v9738
  %v9756 = vcombine.high %v9730, %v9738
  %v9758 = vunpack.c.l.s4 1934713408
  %v9759 = vunpack.c.0.s8 %v9758
  %v9760 = vlaneseq
  %v9761 = vshrl.u32 %v9760, 7
  %v9762 = vsub.s32 %v9759, %v9761
  %v9763 = vrot.slane %v9755, %v9762
  %v9765 = vunpack.c.l.s4 1934713408
  %v9766 = vunpack.c.0.s8 %v9765
  %v9767 = vlaneseq
  %v9768 = vshrl.u32 %v9767, 7
  %v9769 = vsub.s32 %v9766, %v9768
  %v9770 = vrot.slane %v9756, %v9769
  %v9771 = vcombine.low %v9746, %v9754
  %v9772 = vcombine.high %v9746, %v9754
  %v9774 = vunpack.c.l.s4 1934713408
  %v9775 = vunpack.c.0.s8 %v9774
  %v9776 = vlaneseq
  %v9777 = vshrl.u32 %v9776, 7
  %v9778 = vsub.s32 %v9775, %v9777
  %v9779 = vrot.slane %v9771, %v9778
  %v9781 = vunpack.c.l.s4 1934713408
  %v9782 = vunpack.c.0.s8 %v9781
  %v9783 = vlaneseq
  %v9784 = vshrl.u32 %v9783, 7
  %v9785 = vsub.s32 %v9782, %v9784
  %v9786 = vrot.slane %v9772, %v9785
  %v9787 = vcombine.low %v9763, %v9779
  %v9788 = vcombine.high %v9763, %v9779
  %v9789 = vcombine.low %v9770, %v9786
  %v9790 = vcombine.high %v9770, %v9786
  %v9791 = vcombine.low %v9355, %v9357
  %v9793 = vunpack.c.l.s4 1983009808
  %v9794 = vunpack.c.0.s8 %v9793
  %v9795 = vlaneseq
  %v9796 = vshrl.u32 %v9795, 7
  %v9797 = vsub.s32 %v9794, %v9796
  %v9798 = vrot.slane %v9791, %v9797
  %v9799 = vcombine.low %v9356, %v9358
  %v9801 = vunpack.c.l.s4 1983009808
  %v9802 = vunpack.c.0.s8 %v9801
  %v9803 = vlaneseq
  %v9804 = vshrl.u32 %v9803, 7
  %v9805 = vsub.s32 %v9802, %v9804
  %v9806 = vrot.slane %v9799, %v9805
  %v9807 = vcombine.low %v9359, %v9361
  %v9809 = vunpack.c.l.s4 1983009808
  %v9810 = vunpack.c.0.s8 %v9809
  %v9811 = vlaneseq
  %v9812 = vshrl.u32 %v9811, 7
  %v9813 = vsub.s32 %v9810, %v9812
  %v9814 = vrot.slane %v9807, %v9813
  %v9815 = vcombine.low %v9360, %v9362
  %v9817 = vunpack.c.l.s4 1983009808
  %v9818 = vunpack.c.0.s8 %v9817
  %v9819 = vlaneseq
  %v9820 = vshrl.u32 %v9819, 7
  %v9821 = vsub.s32 %v9818, %v9820
  %v9822 = vrot.slane %v9815, %v9821
  %v9823 = vcombine.low %v9798, %v9806
  %v9824 = vcombine.high %v9798, %v9806
  %v9826 = vunpack.c.l.s4 1934713408
  %v9827 = vunpack.c.0.s8 %v9826
  %v9828 = vlaneseq
  %v9829 = vshrl.u32 %v9828, 7
  %v9830 = vsub.s32 %v9827, %v9829
  %v9831 = vrot.slane %v9823, %v9830
  %v9833 = vunpack.c.l.s4 1934713408
  %v9834 = vunpack.c.0.s8 %v9833
  %v9835 = vlaneseq
  %v9836 = vshrl.u32 %v9835, 7
  %v9837 = vsub.s32 %v9834, %v9836
  %v9838 = vrot.slane %v9824, %v9837
  %v9839 = vcombine.low %v9814, %v9822
  %v9840 = vcombine.high %v9814, %v9822
  %v9842 = vunpack.c.l.s4 1934713408
  %v9843 = vunpack.c.0.s8 %v9842
  %v9844 = vlaneseq
  %v9845 = vshrl.u32 %v9844, 7
  %v9846 = vsub.s32 %v9843, %v9845
  %v9847 = vrot.slane %v9839, %v9846
  %v9849 = vunpack.c.l.s4 1934713408
  %v9850 = vunpack.c.0.s8 %v9849
  %v9851 = vlaneseq
  %v9852 = vshrl.u32 %v9851, 7
  %v9853 = vsub.s32 %v9850, %v9852
  %v9854 = vrot.slane %v9840, %v9853
  %v9855 = vcombine.low %v9831, %v9847
  %v9856 = vcombine.high %v9831, %v9847
  %v9857 = vcombine.low %v9838, %v9854
  %v9858 = vcombine.high %v9838, %v9854
  %v9859 = vcombine.low %v9363, %v9365
  %v9861 = vunpack.c.l.s4 1983009808
  %v9862 = vunpack.c.0.s8 %v9861
  %v9863 = vlaneseq
  %v9864 = vshrl.u32 %v9863, 7
  %v9865 = vsub.s32 %v9862, %v9864
  %v9866 = vrot.slane %v9859, %v9865
  %v9867 = vcombine.low %v9364, %v9366
  %v9869 = vunpack.c.l.s4 1983009808
  %v9870 = vunpack.c.0.s8 %v9869
  %v9871 = vlaneseq
  %v9872 = vshrl.u32 %v9871, 7
  %v9873 = vsub.s32 %v9870, %v9872
  %v9874 = vrot.slane %v9867, %v9873
  %v9875 = vcombine.low %v9367, %v9369
  %v9877 = vunpack.c.l.s4 1983009808
  %v9878 = vunpack.c.0.s8 %v9877
  %v9879 = vlaneseq
  %v9880 = vshrl.u32 %v9879, 7
  %v9881 = vsub.s32 %v9878, %v9880
  %v9882 = vrot.slane %v9875, %v9881
  %v9883 = vcombine.low %v9368, %v9370
  %v9885 = vunpack.c.l.s4 1983009808
  %v9886 = vunpack.c.0.s8 %v9885
  %v9887 = vlaneseq
  %v9888 = vshrl.u32 %v9887, 7
  %v9889 = vsub.s32 %v9886, %v9888
  %v9890 = vrot.slane %v9883, %v9889
  %v9891 = vcombine.low %v9866, %v9874
  %v9892 = vcombine.high %v9866, %v9874
  %v9894 = vunpack.c.l.s4 1934713408
  %v9895 = vunpack.c.0.s8 %v9894
  %v9896 = vlaneseq
  %v9897 = vshrl.u32 %v9896, 7
  %v9898 = vsub.s32 %v9895, %v9897
  %v9899 = vrot.slane %v9891, %v9898
  %v9901 = vunpack.c.l.s4 1934713408
  %v9902 = vunpack.c.0.s8 %v9901
  %v9903 = vlaneseq
  %v9904 = vshrl.u32 %v9903, 7
  %v9905 = vsub.s32 %v9902, %v9904
  %v9906 = vrot.slane %v9892, %v9905
  %v9907 = vcombine.low %v9882, %v9890
  %v9908 = vcombine.high %v9882, %v9890
  %v9910 = vunpack.c.l.s4 1934713408
  %v9911 = vunpack.c.0.s8 %v9910
  %v9912 = vlaneseq
  %v9913 = vshrl.u32 %v9912, 7
  %v9914 = vsub.s32 %v9911, %v9913
  %v9915 = vrot.slane %v9907, %v9914
  %v9917 = vunpack.c.l.s4 1934713408
  %v9918 = vunpack.c.0.s8 %v9917
  %v9919 = vlaneseq
  %v9920 = vshrl.u32 %v9919, 7
  %v9921 = vsub.s32 %v9918, %v9920
  %v9922 = vrot.slane %v9908, %v9921
  %v9923 = vcombine.low %v9899, %v9915
  %v9924 = vcombine.high %v9899, %v9915
  %v9925 = vcombine.low %v9906, %v9922
  %v9926 = vcombine.high %v9906, %v9922
  %v9927 = vcombine.low %v9371, %v9373
  %v9929 = vunpack.c.l.s4 1983009808
  %v9930 = vunpack.c.0.s8 %v9929
  %v9931 = vlaneseq
  %v9932 = vshrl.u32 %v9931, 7
  %v9933 = vsub.s32 %v9930, %v9932
  %v9934 = vrot.slane %v9927, %v9933
  %v9935 = vcombine.low %v9372, %v9374
  %v9937 = vunpack.c.l.s4 1983009808
  %v9938 = vunpack.c.0.s8 %v9937
  %v9939 = vlaneseq
  %v9940 = vshrl.u32 %v9939, 7
  %v9941 = vsub.s32 %v9938, %v9940
  %v9942 = vrot.slane %v9935, %v9941
  %v9943 = vcombine.low %v9375, %v9377
  %v9945 = vunpack.c.l.s4 1983009808
  %v9946 = vunpack.c.0.s8 %v9945
  %v9947 = vlaneseq
  %v9948 = vshrl.u32 %v9947, 7
  %v9949 = vsub.s32 %v9946, %v9948
  %v9950 = vrot.slane %v9943, %v9949
  %v9951 = vcombine.low %v9376, %v9378
  %v9953 = vunpack.c.l.s4 1983009808
  %v9954 = vunpack.c.0.s8 %v9953
  %v9955 = vlaneseq
  %v9956 = vshrl.u32 %v9955, 7
  %v9957 = vsub.s32 %v9954, %v9956
  %v9958 = vrot.slane %v9951, %v9957
  %v9959 = vcombine.low %v9934, %v9942
  %v9960 = vcombine.high %v9934, %v9942
  %v9962 = vunpack.c.l.s4 1934713408
  %v9963 = vunpack.c.0.s8 %v9962
  %v9964 = vlaneseq
  %v9965 = vshrl.u32 %v9964, 7
  %v9966 = vsub.s32 %v9963, %v9965
  %v9967 = vrot.slane %v9959, %v9966
  %v9969 = vunpack.c.l.s4 1934713408
  %v9970 = vunpack.c.0.s8 %v9969
  %v9971 = vlaneseq
  %v9972 = vshrl.u32 %v9971, 7
  %v9973 = vsub.s32 %v9970, %v9972
  %v9974 = vrot.slane %v9960, %v9973
  %v9975 = vcombine.low %v9950, %v9958
  %v9976 = vcombine.high %v9950, %v9958
  %v9978 = vunpack.c.l.s4 1934713408
  %v9979 = vunpack.c.0.s8 %v9978
  %v9980 = vlaneseq
  %v9981 = vshrl.u32 %v9980, 7
  %v9982 = vsub.s32 %v9979, %v9981
  %v9983 = vrot.slane %v9975, %v9982
  %v9985 = vunpack.c.l.s4 1934713408
  %v9986 = vunpack.c.0.s8 %v9985
  %v9987 = vlaneseq
  %v9988 = vshrl.u32 %v9987, 7
  %v9989 = vsub.s32 %v9986, %v9988
  %v9990 = vrot.slane %v9976, %v9989
  %v9991 = vcombine.low %v9967, %v9983
  %v9992 = vcombine.high %v9967, %v9983
  %v9993 = vcombine.low %v9974, %v9990
  %v9994 = vcombine.high %v9974, %v9990
  %v9995 = vcombine.low %v9379, %v9381
  %v9997 = vunpack.c.l.s4 1983009808
  %v9998 = vunpack.c.0.s8 %v9997
  %v9999 = vlaneseq
  %v10000 = vshrl.u32 %v9999, 7
  %v10001 = vsub.s32 %v9998, %v10000
  %v10002 = vrot.slane %v9995, %v10001
  %v10003 = vcombine.low %v9380, %v9382
  %v10005 = vunpack.c.l.s4 1983009808
  %v10006 = vunpack.c.0.s8 %v10005
  %v10007 = vlaneseq
  %v10008 = vshrl.u32 %v10007, 7
  %v10009 = vsub.s32 %v10006, %v10008
  %v10010 = vrot.slane %v10003, %v10009
  %v10011 = vcombine.low %v9383, %v9385
  %v10013 = vunpack.c.l.s4 1983009808
  %v10014 = vunpack.c.0.s8 %v10013
  %v10015 = vlaneseq
  %v10016 = vshrl.u32 %v10015, 7
  %v10017 = vsub.s32 %v10014, %v10016
  %v10018 = vrot.slane %v10011, %v10017
  %v10019 = vcombine.low %v9384, %v9386
  %v10021 = vunpack.c.l.s4 1983009808
  %v10022 = vunpack.c.0.s8 %v10021
  %v10023 = vlaneseq
  %v10024 = vshrl.u32 %v10023, 7
  %v10025 = vsub.s32 %v10022, %v10024
  %v10026 = vrot.slane %v10019, %v10025
  %v10027 = vcombine.low %v10002, %v10010
  %v10028 = vcombine.high %v10002, %v10010
  %v10030 = vunpack.c.l.s4 1934713408
  %v10031 = vunpack.c.0.s8 %v10030
  %v10032 = vlaneseq
  %v10033 = vshrl.u32 %v10032, 7
  %v10034 = vsub.s32 %v10031, %v10033
  %v10035 = vrot.slane %v10027, %v10034
  %v10037 = vunpack.c.l.s4 1934713408
  %v10038 = vunpack.c.0.s8 %v10037
  %v10039 = vlaneseq
  %v10040 = vshrl.u32 %v10039, 7
  %v10041 = vsub.s32 %v10038, %v10040
  %v10042 = vrot.slane %v10028, %v10041
  %v10043 = vcombine.low %v10018, %v10026
  %v10044 = vcombine.high %v10018, %v10026
  %v10046 = vunpack.c.l.s4 1934713408
  %v10047 = vunpack.c.0.s8 %v10046
  %v10048 = vlaneseq
  %v10049 = vshrl.u32 %v10048, 7
  %v10050 = vsub.s32 %v10047, %v10049
  %v10051 = vrot.slane %v10043, %v10050
  %v10053 = vunpack.c.l.s4 1934713408
  %v10054 = vunpack.c.0.s8 %v10053
  %v10055 = vlaneseq
  %v10056 = vshrl.u32 %v10055, 7
  %v10057 = vsub.s32 %v10054, %v10056
  %v10058 = vrot.slane %v10044, %v10057
  %v10059 = vcombine.low %v10035, %v10051
  %v10060 = vcombine.high %v10035, %v10051
  %v10061 = vcombine.low %v10042, %v10058
  %v10062 = vcombine.high %v10042, %v10058
  %v10063 = vcombine.low %v9387, %v9389
  %v10065 = vunpack.c.l.s4 1983009808
  %v10066 = vunpack.c.0.s8 %v10065
  %v10067 = vlaneseq
  %v10068 = vshrl.u32 %v10067, 7
  %v10069 = vsub.s32 %v10066, %v10068
  %v10070 = vrot.slane %v10063, %v10069
  %v10071 = vcombine.low %v9388, %v9390
  %v10073 = vunpack.c.l.s4 1983009808
  %v10074 = vunpack.c.0.s8 %v10073
  %v10075 = vlaneseq
  %v10076 = vshrl.u32 %v10075, 7
  %v10077 = vsub.s32 %v10074, %v10076
  %v10078 = vrot.slane %v10071, %v10077
  %v10079 = vcombine.low %v9391, %v9393
  %v10081 = vunpack.c.l.s4 1983009808
  %v10082 = vunpack.c.0.s8 %v10081
  %v10083 = vlaneseq
  %v10084 = vshrl.u32 %v10083, 7
  %v10085 = vsub.s32 %v10082, %v10084
  %v10086 = vrot.slane %v10079, %v10085
  %v10087 = vcombine.low %v9392, %v9394
  %v10089 = vunpack.c.l.s4 1983009808
  %v10090 = vunpack.c.0.s8 %v10089
  %v10091 = vlaneseq
  %v10092 = vshrl.u32 %v10091, 7
  %v10093 = vsub.s32 %v10090, %v10092
  %v10094 = vrot.slane %v10087, %v10093
  %v10095 = vcombine.low %v10070, %v10078
  %v10096 = vcombine.high %v10070, %v10078
  %v10098 = vunpack.c.l.s4 1934713408
  %v10099 = vunpack.c.0.s8 %v10098
  %v10100 = vlaneseq
  %v10101 = vshrl.u32 %v10100, 7
  %v10102 = vsub.s32 %v10099, %v10101
  %v10103 = vrot.slane %v10095, %v10102
  %v10105 = vunpack.c.l.s4 1934713408
  %v10106 = vunpack.c.0.s8 %v10105
  %v10107 = vlaneseq
  %v10108 = vshrl.u32 %v10107, 7
  %v10109 = vsub.s32 %v10106, %v10108
  %v10110 = vrot.slane %v10096, %v10109
  %v10111 = vcombine.low %v10086, %v10094
  %v10112 = vcombine.high %v10086, %v10094
  %v10114 = vunpack.c.l.s4 1934713408
  %v10115 = vunpack.c.0.s8 %v10114
  %v10116 = vlaneseq
  %v10117 = vshrl.u32 %v10116, 7
  %v10118 = vsub.s32 %v10115, %v10117
  %v10119 = vrot.slane %v10111, %v10118
  %v10121 = vunpack.c.l.s4 1934713408
  %v10122 = vunpack.c.0.s8 %v10121
  %v10123 = vlaneseq
  %v10124 = vshrl.u32 %v10123, 7
  %v10125 = vsub.s32 %v10122, %v10124
  %v10126 = vrot.slane %v10112, %v10125
  %v10127 = vcombine.low %v10103, %v10119
  %v10128 = vcombine.high %v10103, %v10119
  %v10129 = vcombine.low %v10110, %v10126
  %v10130 = vcombine.high %v10110, %v10126
  %v10131 = vcombine.low %v9395, %v9397
  %v10133 = vunpack.c.l.s4 1983009808
  %v10134 = vunpack.c.0.s8 %v10133
  %v10135 = vlaneseq
  %v10136 = vshrl.u32 %v10135, 7
  %v10137 = vsub.s32 %v10134, %v10136
  %v10138 = vrot.slane %v10131, %v10137
  %v10139 = vcombine.low %v9396, %v9398
  %v10141 = vunpack.c.l.s4 1983009808
  %v10142 = vunpack.c.0.s8 %v10141
  %v10143 = vlaneseq
  %v10144 = vshrl.u32 %v10143, 7
  %v10145 = vsub.s32 %v10142, %v10144
  %v10146 = vrot.slane %v10139, %v10145
  %v10147 = vcombine.low %v9399, %v9401
  %v10149 = vunpack.c.l.s4 1983009808
  %v10150 = vunpack.c.0.s8 %v10149
  %v10151 = vlaneseq
  %v10152 = vshrl.u32 %v10151, 7
  %v10153 = vsub.s32 %v10150, %v10152
  %v10154 = vrot.slane %v10147, %v10153
  %v10155 = vcombine.low %v9400, %v9402
  %v10157 = vunpack.c.l.s4 1983009808
  %v10158 = vunpack.c.0.s8 %v10157
  %v10159 = vlaneseq
  %v10160 = vshrl.u32 %v10159, 7
  %v10161 = vsub.s32 %v10158, %v10160
  %v10162 = vrot.slane %v10155, %v10161
  %v10163 = vcombine.low %v10138, %v10146
  %v10164 = vcombine.high %v10138, %v10146
  %v10166 = vunpack.c.l.s4 1934713408
  %v10167 = vunpack.c.0.s8 %v10166
  %v10168 = vlaneseq
  %v10169 = vshrl.u32 %v10168, 7
  %v10170 = vsub.s32 %v10167, %v10169
  %v10171 = vrot.slane %v10163, %v10170
  %v10173 = vunpack.c.l.s4 1934713408
  %v10174 = vunpack.c.0.s8 %v10173
  %v10175 = vlaneseq
  %v10176 = vshrl.u32 %v10175, 7
  %v10177 = vsub.s32 %v10174, %v10176
  %v10178 = vrot.slane %v10164, %v10177
  %v10179 = vcombine.low %v10154, %v10162
  %v10180 = vcombine.high %v10154, %v10162
  %v10182 = vunpack.c.l.s4 1934713408
  %v10183 = vunpack.c.0.s8 %v10182
  %v10184 = vlaneseq
  %v10185 = vshrl.u32 %v10184, 7
  %v10186 = vsub.s32 %v10183, %v10185
  %v10187 = vrot.slane %v10179, %v10186
  %v10189 = vunpack.c.l.s4 1934713408
  %v10190 = vunpack.c.0.s8 %v10189
  %v10191 = vlaneseq
  %v10192 = vshrl.u32 %v10191, 7
  %v10193 = vsub.s32 %v10190, %v10192
  %v10194 = vrot.slane %v10180, %v10193
  %v10195 = vcombine.low %v10171, %v10187
  %v10196 = vcombine.high %v10171, %v10187
  %v10197 = vcombine.low %v10178, %v10194
  %v10198 = vcombine.high %v10178, %v10194
  %v10199 = vcombine.low %v9403, %v9405
  %v10201 = vunpack.c.l.s4 1983009808
  %v10202 = vunpack.c.0.s8 %v10201
  %v10203 = vlaneseq
  %v10204 = vshrl.u32 %v10203, 7
  %v10205 = vsub.s32 %v10202, %v10204
  %v10206 = vrot.slane %v10199, %v10205
  %v10207 = vcombine.low %v9404, %v9406
  %v10209 = vunpack.c.l.s4 1983009808
  %v10210 = vunpack.c.0.s8 %v10209
  %v10211 = vlaneseq
  %v10212 = vshrl.u32 %v10211, 7
  %v10213 = vsub.s32 %v10210, %v10212
  %v10214 = vrot.slane %v10207, %v10213
  %v10215 = vcombine.low %v9407, %v9409
  %v10217 = vunpack.c.l.s4 1983009808
  %v10218 = vunpack.c.0.s8 %v10217
  %v10219 = vlaneseq
  %v10220 = vshrl.u32 %v10219, 7
  %v10221 = vsub.s32 %v10218, %v10220
  %v10222 = vrot.slane %v10215, %v10221
  %v10223 = vcombine.low %v9408, %v9410
  %v10225 = vunpack.c.l.s4 1983009808
  %v10226 = vunpack.c.0.s8 %v10225
  %v10227 = vlaneseq
  %v10228 = vshrl.u32 %v10227, 7
  %v10229 = vsub.s32 %v10226, %v10228
  %v10230 = vrot.slane %v10223, %v10229
  %v10231 = vcombine.low %v10206, %v10214
  %v10232 = vcombine.high %v10206, %v10214
  %v10234 = vunpack.c.l.s4 1934713408
  %v10235 = vunpack.c.0.s8 %v10234
  %v10236 = vlaneseq
  %v10237 = vshrl.u32 %v10236, 7
  %v10238 = vsub.s32 %v10235, %v10237
  %v10239 = vrot.slane %v10231, %v10238
  %v10241 = vunpack.c.l.s4 1934713408
  %v10242 = vunpack.c.0.s8 %v10241
  %v10243 = vlaneseq
  %v10244 = vshrl.u32 %v10243, 7
  %v10245 = vsub.s32 %v10242, %v10244
  %v10246 = vrot.slane %v10232, %v10245
  %v10247 = vcombine.low %v10222, %v10230
  %v10248 = vcombine.high %v10222, %v10230
  %v10250 = vunpack.c.l.s4 1934713408
  %v10251 = vunpack.c.0.s8 %v10250
  %v10252 = vlaneseq
  %v10253 = vshrl.u32 %v10252, 7
  %v10254 = vsub.s32 %v10251, %v10253
  %v10255 = vrot.slane %v10247, %v10254
  %v10257 = vunpack.c.l.s4 1934713408
  %v10258 = vunpack.c.0.s8 %v10257
  %v10259 = vlaneseq
  %v10260 = vshrl.u32 %v10259, 7
  %v10261 = vsub.s32 %v10258, %v10260
  %v10262 = vrot.slane %v10248, %v10261
  %v10263 = vcombine.low %v10239, %v10255
  %v10264 = vcombine.high %v10239, %v10255
  %v10265 = vcombine.low %v10246, %v10262
  %v10266 = vcombine.high %v10246, %v10262
  %v10267 = vcombine.low %v9411, %v9413
  %v10269 = vunpack.c.l.s4 1983009808
  %v10270 = vunpack.c.0.s8 %v10269
  %v10271 = vlaneseq
  %v10272 = vshrl.u32 %v10271, 7
  %v10273 = vsub.s32 %v10270, %v10272
  %v10274 = vrot.slane %v10267, %v10273
  %v10275 = vcombine.low %v9412, %v9414
  %v10277 = vunpack.c.l.s4 1983009808
  %v10278 = vunpack.c.0.s8 %v10277
  %v10279 = vlaneseq
  %v10280 = vshrl.u32 %v10279, 7
  %v10281 = vsub.s32 %v10278, %v10280
  %v10282 = vrot.slane %v10275, %v10281
  %v10283 = vcombine.low %v9415, %v9417
  %v10285 = vunpack.c.l.s4 1983009808
  %v10286 = vunpack.c.0.s8 %v10285
  %v10287 = vlaneseq
  %v10288 = vshrl.u32 %v10287, 7
  %v10289 = vsub.s32 %v10286, %v10288
  %v10290 = vrot.slane %v10283, %v10289
  %v10291 = vcombine.low %v9416, %v9418
  %v10293 = vunpack.c.l.s4 1983009808
  %v10294 = vunpack.c.0.s8 %v10293
  %v10295 = vlaneseq
  %v10296 = vshrl.u32 %v10295, 7
  %v10297 = vsub.s32 %v10294, %v10296
  %v10298 = vrot.slane %v10291, %v10297
  %v10299 = vcombine.low %v10274, %v10282
  %v10300 = vcombine.high %v10274, %v10282
  %v10302 = vunpack.c.l.s4 1934713408
  %v10303 = vunpack.c.0.s8 %v10302
  %v10304 = vlaneseq
  %v10305 = vshrl.u32 %v10304, 7
  %v10306 = vsub.s32 %v10303, %v10305
  %v10307 = vrot.slane %v10299, %v10306
  %v10309 = vunpack.c.l.s4 1934713408
  %v10310 = vunpack.c.0.s8 %v10309
  %v10311 = vlaneseq
  %v10312 = vshrl.u32 %v10311, 7
  %v10313 = vsub.s32 %v10310, %v10312
  %v10314 = vrot.slane %v10300, %v10313
  %v10315 = vcombine.low %v10290, %v10298
  %v10316 = vcombine.high %v10290, %v10298
  %v10318 = vunpack.c.l.s4 1934713408
  %v10319 = vunpack.c.0.s8 %v10318
  %v10320 = vlaneseq
  %v10321 = vshrl.u32 %v10320, 7
  %v10322 = vsub.s32 %v10319, %v10321
  %v10323 = vrot.slane %v10315, %v10322
  %v10325 = vunpack.c.l.s4 1934713408
  %v10326 = vunpack.c.0.s8 %v10325
  %v10327 = vlaneseq
  %v10328 = vshrl.u32 %v10327, 7
  %v10329 = vsub.s32 %v10326, %v10328
  %v10330 = vrot.slane %v10316, %v10329
  %v10331 = vcombine.low %v10307, %v10323
  %v10332 = vcombine.high %v10307, %v10323
  %v10333 = vcombine.low %v10314, %v10330
  %v10334 = vcombine.high %v10314, %v10330
  %v10335 = vcombine.low %v9419, %v9421
  %v10337 = vunpack.c.l.s4 1983009808
  %v10338 = vunpack.c.0.s8 %v10337
  %v10339 = vlaneseq
  %v10340 = vshrl.u32 %v10339, 7
  %v10341 = vsub.s32 %v10338, %v10340
  %v10342 = vrot.slane %v10335, %v10341
  %v10343 = vcombine.low %v9420, %v9422
  %v10345 = vunpack.c.l.s4 1983009808
  %v10346 = vunpack.c.0.s8 %v10345
  %v10347 = vlaneseq
  %v10348 = vshrl.u32 %v10347, 7
  %v10349 = vsub.s32 %v10346, %v10348
  %v10350 = vrot.slane %v10343, %v10349
  %v10351 = vcombine.low %v9423, %v9425
  %v10353 = vunpack.c.l.s4 1983009808
  %v10354 = vunpack.c.0.s8 %v10353
  %v10355 = vlaneseq
  %v10356 = vshrl.u32 %v10355, 7
  %v10357 = vsub.s32 %v10354, %v10356
  %v10358 = vrot.slane %v10351, %v10357
  %v10359 = vcombine.low %v9424, %v9426
  %v10361 = vunpack.c.l.s4 1983009808
  %v10362 = vunpack.c.0.s8 %v10361
  %v10363 = vlaneseq
  %v10364 = vshrl.u32 %v10363, 7
  %v10365 = vsub.s32 %v10362, %v10364
  %v10366 = vrot.slane %v10359, %v10365
  %v10367 = vcombine.low %v10342, %v10350
  %v10368 = vcombine.high %v10342, %v10350
  %v10370 = vunpack.c.l.s4 1934713408
  %v10371 = vunpack.c.0.s8 %v10370
  %v10372 = vlaneseq
  %v10373 = vshrl.u32 %v10372, 7
  %v10374 = vsub.s32 %v10371, %v10373
  %v10375 = vrot.slane %v10367, %v10374
  %v10377 = vunpack.c.l.s4 1934713408
  %v10378 = vunpack.c.0.s8 %v10377
  %v10379 = vlaneseq
  %v10380 = vshrl.u32 %v10379, 7
  %v10381 = vsub.s32 %v10378, %v10380
  %v10382 = vrot.slane %v10368, %v10381
  %v10383 = vcombine.low %v10358, %v10366
  %v10384 = vcombine.high %v10358, %v10366
  %v10386 = vunpack.c.l.s4 1934713408
  %v10387 = vunpack.c.0.s8 %v10386
  %v10388 = vlaneseq
  %v10389 = vshrl.u32 %v10388, 7
  %v10390 = vsub.s32 %v10387, %v10389
  %v10391 = vrot.slane %v10383, %v10390
  %v10393 = vunpack.c.l.s4 1934713408
  %v10394 = vunpack.c.0.s8 %v10393
  %v10395 = vlaneseq
  %v10396 = vshrl.u32 %v10395, 7
  %v10397 = vsub.s32 %v10394, %v10396
  %v10398 = vrot.slane %v10384, %v10397
  %v10399 = vcombine.low %v10375, %v10391
  %v10400 = vcombine.high %v10375, %v10391
  %v10401 = vcombine.low %v10382, %v10398
  %v10402 = vcombine.high %v10382, %v10398
  %v10403 = vcombine.low %v9427, %v9429
  %v10405 = vunpack.c.l.s4 1983009808
  %v10406 = vunpack.c.0.s8 %v10405
  %v10407 = vlaneseq
  %v10408 = vshrl.u32 %v10407, 7
  %v10409 = vsub.s32 %v10406, %v10408
  %v10410 = vrot.slane %v10403, %v10409
  %v10411 = vcombine.low %v9428, %v9430
  %v10413 = vunpack.c.l.s4 1983009808
  %v10414 = vunpack.c.0.s8 %v10413
  %v10415 = vlaneseq
  %v10416 = vshrl.u32 %v10415, 7
  %v10417 = vsub.s32 %v10414, %v10416
  %v10418 = vrot.slane %v10411, %v10417
  %v10419 = vcombine.low %v9431, %v9433
  %v10421 = vunpack.c.l.s4 1983009808
  %v10422 = vunpack.c.0.s8 %v10421
  %v10423 = vlaneseq
  %v10424 = vshrl.u32 %v10423, 7
  %v10425 = vsub.s32 %v10422, %v10424
  %v10426 = vrot.slane %v10419, %v10425
  %v10427 = vcombine.low %v9432, %v9434
  %v10429 = vunpack.c.l.s4 1983009808
  %v10430 = vunpack.c.0.s8 %v10429
  %v10431 = vlaneseq
  %v10432 = vshrl.u32 %v10431, 7
  %v10433 = vsub.s32 %v10430, %v10432
  %v10434 = vrot.slane %v10427, %v10433
  %v10435 = vcombine.low %v10410, %v10418
  %v10436 = vcombine.high %v10410, %v10418
  %v10438 = vunpack.c.l.s4 1934713408
  %v10439 = vunpack.c.0.s8 %v10438
  %v10440 = vlaneseq
  %v10441 = vshrl.u32 %v10440, 7
  %v10442 = vsub.s32 %v10439, %v10441
  %v10443 = vrot.slane %v10435, %v10442
  %v10445 = vunpack.c.l.s4 1934713408
  %v10446 = vunpack.c.0.s8 %v10445
  %v10447 = vlaneseq
  %v10448 = vshrl.u32 %v10447, 7
  %v10449 = vsub.s32 %v10446, %v10448
  %v10450 = vrot.slane %v10436, %v10449
  %v10451 = vcombine.low %v10426, %v10434
  %v10452 = vcombine.high %v10426, %v10434
  %v10454 = vunpack.c.l.s4 1934713408
  %v10455 = vunpack.c.0.s8 %v10454
  %v10456 = vlaneseq
  %v10457 = vshrl.u32 %v10456, 7
  %v10458 = vsub.s32 %v10455, %v10457
  %v10459 = vrot.slane %v10451, %v10458
  %v10461 = vunpack.c.l.s4 1934713408
  %v10462 = vunpack.c.0.s8 %v10461
  %v10463 = vlaneseq
  %v10464 = vshrl.u32 %v10463, 7
  %v10465 = vsub.s32 %v10462, %v10464
  %v10466 = vrot.slane %v10452, %v10465
  %v10467 = vcombine.low %v10443, %v10459
  %v10468 = vcombine.high %v10443, %v10459
  %v10469 = vcombine.low %v10450, %v10466
  %v10470 = vcombine.high %v10450, %v10466
  %v10471 = vcombine.low %v9435, %v9437
  %v10473 = vunpack.c.l.s4 1983009808
  %v10474 = vunpack.c.0.s8 %v10473
  %v10475 = vlaneseq
  %v10476 = vshrl.u32 %v10475, 7
  %v10477 = vsub.s32 %v10474, %v10476
  %v10478 = vrot.slane %v10471, %v10477
  %v10479 = vcombine.low %v9436, %v9438
  %v10481 = vunpack.c.l.s4 1983009808
  %v10482 = vunpack.c.0.s8 %v10481
  %v10483 = vlaneseq
  %v10484 = vshrl.u32 %v10483, 7
  %v10485 = vsub.s32 %v10482, %v10484
  %v10486 = vrot.slane %v10479, %v10485
  %v10487 = vcombine.low %v9439, %v9441
  %v10489 = vunpack.c.l.s4 1983009808
  %v10490 = vunpack.c.0.s8 %v10489
  %v10491 = vlaneseq
  %v10492 = vshrl.u32 %v10491, 7
  %v10493 = vsub.s32 %v10490, %v10492
  %v10494 = vrot.slane %v10487, %v10493
  %v10495 = vcombine.low %v9440, %v9442
  %v10497 = vunpack.c.l.s4 1983009808
  %v10498 = vunpack.c.0.s8 %v10497
  %v10499 = vlaneseq
  %v10500 = vshrl.u32 %v10499, 7
  %v10501 = vsub.s32 %v10498, %v10500
  %v10502 = vrot.slane %v10495, %v10501
  %v10503 = vcombine.low %v10478, %v10486
  %v10504 = vcombine.high %v10478, %v10486
  %v10506 = vunpack.c.l.s4 1934713408
  %v10507 = vunpack.c.0.s8 %v10506
  %v10508 = vlaneseq
  %v10509 = vshrl.u32 %v10508, 7
  %v10510 = vsub.s32 %v10507, %v10509
  %v10511 = vrot.slane %v10503, %v10510
  %v10513 = vunpack.c.l.s4 1934713408
  %v10514 = vunpack.c.0.s8 %v10513
  %v10515 = vlaneseq
  %v10516 = vshrl.u32 %v10515, 7
  %v10517 = vsub.s32 %v10514, %v10516
  %v10518 = vrot.slane %v10504, %v10517
  %v10519 = vcombine.low %v10494, %v10502
  %v10520 = vcombine.high %v10494, %v10502
  %v10522 = vunpack.c.l.s4 1934713408
  %v10523 = vunpack.c.0.s8 %v10522
  %v10524 = vlaneseq
  %v10525 = vshrl.u32 %v10524, 7
  %v10526 = vsub.s32 %v10523, %v10525
  %v10527 = vrot.slane %v10519, %v10526
  %v10529 = vunpack.c.l.s4 1934713408
  %v10530 = vunpack.c.0.s8 %v10529
  %v10531 = vlaneseq
  %v10532 = vshrl.u32 %v10531, 7
  %v10533 = vsub.s32 %v10530, %v10532
  %v10534 = vrot.slane %v10520, %v10533
  %v10535 = vcombine.low %v10511, %v10527
  %v10536 = vcombine.high %v10511, %v10527
  %v10537 = vcombine.low %v10518, %v10534
  %v10538 = vcombine.high %v10518, %v10534
  %v10539 = vcombine.low %v9443, %v9445
  %v10541 = vunpack.c.l.s4 1983009808
  %v10542 = vunpack.c.0.s8 %v10541
  %v10543 = vlaneseq
  %v10544 = vshrl.u32 %v10543, 7
  %v10545 = vsub.s32 %v10542, %v10544
  %v10546 = vrot.slane %v10539, %v10545
  %v10547 = vcombine.low %v9444, %v9446
  %v10549 = vunpack.c.l.s4 1983009808
  %v10550 = vunpack.c.0.s8 %v10549
  %v10551 = vlaneseq
  %v10552 = vshrl.u32 %v10551, 7
  %v10553 = vsub.s32 %v10550, %v10552
  %v10554 = vrot.slane %v10547, %v10553
  %v10555 = vcombine.low %v9447, %v9449
  %v10557 = vunpack.c.l.s4 1983009808
  %v10558 = vunpack.c.0.s8 %v10557
  %v10559 = vlaneseq
  %v10560 = vshrl.u32 %v10559, 7
  %v10561 = vsub.s32 %v10558, %v10560
  %v10562 = vrot.slane %v10555, %v10561
  %v10563 = vcombine.low %v9448, %v9450
  %v10565 = vunpack.c.l.s4 1983009808
  %v10566 = vunpack.c.0.s8 %v10565
  %v10567 = vlaneseq
  %v10568 = vshrl.u32 %v10567, 7
  %v10569 = vsub.s32 %v10566, %v10568
  %v10570 = vrot.slane %v10563, %v10569
  %v10571 = vcombine.low %v10546, %v10554
  %v10572 = vcombine.high %v10546, %v10554
  %v10574 = vunpack.c.l.s4 1934713408
  %v10575 = vunpack.c.0.s8 %v10574
  %v10576 = vlaneseq
  %v10577 = vshrl.u32 %v10576, 7
  %v10578 = vsub.s32 %v10575, %v10577
  %v10579 = vrot.slane %v10571, %v10578
  %v10581 = vunpack.c.l.s4 1934713408
  %v10582 = vunpack.c.0.s8 %v10581
  %v10583 = vlaneseq
  %v10584 = vshrl.u32 %v10583, 7
  %v10585 = vsub.s32 %v10582, %v10584
  %v10586 = vrot.slane %v10572, %v10585
  %v10587 = vcombine.low %v10562, %v10570
  %v10588 = vcombine.high %v10562, %v10570
  %v10590 = vunpack.c.l.s4 1934713408
  %v10591 = vunpack.c.0.s8 %v10590
  %v10592 = vlaneseq
  %v10593 = vshrl.u32 %v10592, 7
  %v10594 = vsub.s32 %v10591, %v10593
  %v10595 = vrot.slane %v10587, %v10594
  %v10597 = vunpack.c.l.s4 1934713408
  %v10598 = vunpack.c.0.s8 %v10597
  %v10599 = vlaneseq
  %v10600 = vshrl.u32 %v10599, 7
  %v10601 = vsub.s32 %v10598, %v10600
  %v10602 = vrot.slane %v10588, %v10601
  %v10603 = vcombine.low %v10579, %v10595
  %v10604 = vcombine.high %v10579, %v10595
  %v10605 = vcombine.low %v10586, %v10602
  %v10606 = vcombine.high %v10586, %v10602
  %v10607 = vcombine.low %v9451, %v9453
  %v10609 = vunpack.c.l.s4 1983009808
  %v10610 = vunpack.c.0.s8 %v10609
  %v10611 = vlaneseq
  %v10612 = vshrl.u32 %v10611, 7
  %v10613 = vsub.s32 %v10610, %v10612
  %v10614 = vrot.slane %v10607, %v10613
  %v10615 = vcombine.low %v9452, %v9454
  %v10617 = vunpack.c.l.s4 1983009808
  %v10618 = vunpack.c.0.s8 %v10617
  %v10619 = vlaneseq
  %v10620 = vshrl.u32 %v10619, 7
  %v10621 = vsub.s32 %v10618, %v10620
  %v10622 = vrot.slane %v10615, %v10621
  %v10623 = vcombine.low %v9455, %v9457
  %v10625 = vunpack.c.l.s4 1983009808
  %v10626 = vunpack.c.0.s8 %v10625
  %v10627 = vlaneseq
  %v10628 = vshrl.u32 %v10627, 7
  %v10629 = vsub.s32 %v10626, %v10628
  %v10630 = vrot.slane %v10623, %v10629
  %v10631 = vcombine.low %v9456, %v9458
  %v10633 = vunpack.c.l.s4 1983009808
  %v10634 = vunpack.c.0.s8 %v10633
  %v10635 = vlaneseq
  %v10636 = vshrl.u32 %v10635, 7
  %v10637 = vsub.s32 %v10634, %v10636
  %v10638 = vrot.slane %v10631, %v10637
  %v10639 = vcombine.low %v10614, %v10622
  %v10640 = vcombine.high %v10614, %v10622
  %v10642 = vunpack.c.l.s4 1934713408
  %v10643 = vunpack.c.0.s8 %v10642
  %v10644 = vlaneseq
  %v10645 = vshrl.u32 %v10644, 7
  %v10646 = vsub.s32 %v10643, %v10645
  %v10647 = vrot.slane %v10639, %v10646
  %v10649 = vunpack.c.l.s4 1934713408
  %v10650 = vunpack.c.0.s8 %v10649
  %v10651 = vlaneseq
  %v10652 = vshrl.u32 %v10651, 7
  %v10653 = vsub.s32 %v10650, %v10652
  %v10654 = vrot.slane %v10640, %v10653
  %v10655 = vcombine.low %v10630, %v10638
  %v10656 = vcombine.high %v10630, %v10638
  %v10658 = vunpack.c.l.s4 1934713408
  %v10659 = vunpack.c.0.s8 %v10658
  %v10660 = vlaneseq
  %v10661 = vshrl.u32 %v10660, 7
  %v10662 = vsub.s32 %v10659, %v10661
  %v10663 = vrot.slane %v10655, %v10662
  %v10665 = vunpack.c.l.s4 1934713408
  %v10666 = vunpack.c.0.s8 %v10665
  %v10667 = vlaneseq
  %v10668 = vshrl.u32 %v10667, 7
  %v10669 = vsub.s32 %v10666, %v10668
  %v10670 = vrot.slane %v10656, %v10669
  %v10671 = vcombine.low %v10647, %v10663
  %v10672 = vcombine.high %v10647, %v10663
  %v10673 = vcombine.low %v10654, %v10670
  %v10674 = vcombine.high %v10654, %v10670
  %v10675 = vcombine.low %v9459, %v9461
  %v10677 = vunpack.c.l.s4 1983009808
  %v10678 = vunpack.c.0.s8 %v10677
  %v10679 = vlaneseq
  %v10680 = vshrl.u32 %v10679, 7
  %v10681 = vsub.s32 %v10678, %v10680
  %v10682 = vrot.slane %v10675, %v10681
  %v10683 = vcombine.low %v9460, %v9462
  %v10685 = vunpack.c.l.s4 1983009808
  %v10686 = vunpack.c.0.s8 %v10685
  %v10687 = vlaneseq
  %v10688 = vshrl.u32 %v10687, 7
  %v10689 = vsub.s32 %v10686, %v10688
  %v10690 = vrot.slane %v10683, %v10689
  %v10691 = vcombine.low %v9463, %v9465
  %v10693 = vunpack.c.l.s4 1983009808
  %v10694 = vunpack.c.0.s8 %v10693
  %v10695 = vlaneseq
  %v10696 = vshrl.u32 %v10695, 7
  %v10697 = vsub.s32 %v10694, %v10696
  %v10698 = vrot.slane %v10691, %v10697
  %v10699 = vcombine.low %v9464, %v9466
  %v10701 = vunpack.c.l.s4 1983009808
  %v10702 = vunpack.c.0.s8 %v10701
  %v10703 = vlaneseq
  %v10704 = vshrl.u32 %v10703, 7
  %v10705 = vsub.s32 %v10702, %v10704
  %v10706 = vrot.slane %v10699, %v10705
  %v10707 = vcombine.low %v10682, %v10690
  %v10708 = vcombine.high %v10682, %v10690
  %v10710 = vunpack.c.l.s4 1934713408
  %v10711 = vunpack.c.0.s8 %v10710
  %v10712 = vlaneseq
  %v10713 = vshrl.u32 %v10712, 7
  %v10714 = vsub.s32 %v10711, %v10713
  %v10715 = vrot.slane %v10707, %v10714
  %v10717 = vunpack.c.l.s4 1934713408
  %v10718 = vunpack.c.0.s8 %v10717
  %v10719 = vlaneseq
  %v10720 = vshrl.u32 %v10719, 7
  %v10721 = vsub.s32 %v10718, %v10720
  %v10722 = vrot.slane %v10708, %v10721
  %v10723 = vcombine.low %v10698, %v10706
  %v10724 = vcombine.high %v10698, %v10706
  %v10726 = vunpack.c.l.s4 1934713408
  %v10727 = vunpack.c.0.s8 %v10726
  %v10728 = vlaneseq
  %v10729 = vshrl.u32 %v10728, 7
  %v10730 = vsub.s32 %v10727, %v10729
  %v10731 = vrot.slane %v10723, %v10730
  %v10733 = vunpack.c.l.s4 1934713408
  %v10734 = vunpack.c.0.s8 %v10733
  %v10735 = vlaneseq
  %v10736 = vshrl.u32 %v10735, 7
  %v10737 = vsub.s32 %v10734, %v10736
  %v10738 = vrot.slane %v10724, %v10737
  %v10739 = vcombine.low %v10715, %v10731
  %v10740 = vcombine.high %v10715, %v10731
  %v10741 = vcombine.low %v10722, %v10738
  %v10742 = vcombine.high %v10722, %v10738
  %v10743 = vcombine.low %v9467, %v9469
  %v10745 = vunpack.c.l.s4 1983009808
  %v10746 = vunpack.c.0.s8 %v10745
  %v10747 = vlaneseq
  %v10748 = vshrl.u32 %v10747, 7
  %v10749 = vsub.s32 %v10746, %v10748
  %v10750 = vrot.slane %v10743, %v10749
  %v10751 = vcombine.low %v9468, %v9470
  %v10753 = vunpack.c.l.s4 1983009808
  %v10754 = vunpack.c.0.s8 %v10753
  %v10755 = vlaneseq
  %v10756 = vshrl.u32 %v10755, 7
  %v10757 = vsub.s32 %v10754, %v10756
  %v10758 = vrot.slane %v10751, %v10757
  %v10759 = vcombine.low %v9471, %v9473
  %v10761 = vunpack.c.l.s4 1983009808
  %v10762 = vunpack.c.0.s8 %v10761
  %v10763 = vlaneseq
  %v10764 = vshrl.u32 %v10763, 7
  %v10765 = vsub.s32 %v10762, %v10764
  %v10766 = vrot.slane %v10759, %v10765
  %v10767 = vcombine.low %v9472, %v9474
  %v10769 = vunpack.c.l.s4 1983009808
  %v10770 = vunpack.c.0.s8 %v10769
  %v10771 = vlaneseq
  %v10772 = vshrl.u32 %v10771, 7
  %v10773 = vsub.s32 %v10770, %v10772
  %v10774 = vrot.slane %v10767, %v10773
  %v10775 = vcombine.low %v10750, %v10758
  %v10776 = vcombine.high %v10750, %v10758
  %v10778 = vunpack.c.l.s4 1934713408
  %v10779 = vunpack.c.0.s8 %v10778
  %v10780 = vlaneseq
  %v10781 = vshrl.u32 %v10780, 7
  %v10782 = vsub.s32 %v10779, %v10781
  %v10783 = vrot.slane %v10775, %v10782
  %v10785 = vunpack.c.l.s4 1934713408
  %v10786 = vunpack.c.0.s8 %v10785
  %v10787 = vlaneseq
  %v10788 = vshrl.u32 %v10787, 7
  %v10789 = vsub.s32 %v10786, %v10788
  %v10790 = vrot.slane %v10776, %v10789
  %v10791 = vcombine.low %v10766, %v10774
  %v10792 = vcombine.high %v10766, %v10774
  %v10794 = vunpack.c.l.s4 1934713408
  %v10795 = vunpack.c.0.s8 %v10794
  %v10796 = vlaneseq
  %v10797 = vshrl.u32 %v10796, 7
  %v10798 = vsub.s32 %v10795, %v10797
  %v10799 = vrot.slane %v10791, %v10798
  %v10801 = vunpack.c.l.s4 1934713408
  %v10802 = vunpack.c.0.s8 %v10801
  %v10803 = vlaneseq
  %v10804 = vshrl.u32 %v10803, 7
  %v10805 = vsub.s32 %v10802, %v10804
  %v10806 = vrot.slane %v10792, %v10805
  %v10807 = vcombine.low %v10783, %v10799
  %v10808 = vcombine.high %v10783, %v10799
  %v10809 = vcombine.low %v10790, %v10806
  %v10810 = vcombine.high %v10790, %v10806
  %v10811 = vcombine.low %v9475, %v9477
  %v10813 = vunpack.c.l.s4 1983009808
  %v10814 = vunpack.c.0.s8 %v10813
  %v10815 = vlaneseq
  %v10816 = vshrl.u32 %v10815, 7
  %v10817 = vsub.s32 %v10814, %v10816
  %v10818 = vrot.slane %v10811, %v10817
  %v10819 = vcombine.low %v9476, %v9478
  %v10821 = vunpack.c.l.s4 1983009808
  %v10822 = vunpack.c.0.s8 %v10821
  %v10823 = vlaneseq
  %v10824 = vshrl.u32 %v10823, 7
  %v10825 = vsub.s32 %v10822, %v10824
  %v10826 = vrot.slane %v10819, %v10825
  %v10827 = vcombine.low %v9479, %v9481
  %v10829 = vunpack.c.l.s4 1983009808
  %v10830 = vunpack.c.0.s8 %v10829
  %v10831 = vlaneseq
  %v10832 = vshrl.u32 %v10831, 7
  %v10833 = vsub.s32 %v10830, %v10832
  %v10834 = vrot.slane %v10827, %v10833
  %v10835 = vcombine.low %v9480, %v9482
  %v10837 = vunpack.c.l.s4 1983009808
  %v10838 = vunpack.c.0.s8 %v10837
  %v10839 = vlaneseq
  %v10840 = vshrl.u32 %v10839, 7
  %v10841 = vsub.s32 %v10838, %v10840
  %v10842 = vrot.slane %v10835, %v10841
  %v10843 = vcombine.low %v10818, %v10826
  %v10844 = vcombine.high %v10818, %v10826
  %v10846 = vunpack.c.l.s4 1934713408
  %v10847 = vunpack.c.0.s8 %v10846
  %v10848 = vlaneseq
  %v10849 = vshrl.u32 %v10848, 7
  %v10850 = vsub.s32 %v10847, %v10849
  %v10851 = vrot.slane %v10843, %v10850
  %v10853 = vunpack.c.l.s4 1934713408
  %v10854 = vunpack.c.0.s8 %v10853
  %v10855 = vlaneseq
  %v10856 = vshrl.u32 %v10855, 7
  %v10857 = vsub.s32 %v10854, %v10856
  %v10858 = vrot.slane %v10844, %v10857
  %v10859 = vcombine.low %v10834, %v10842
  %v10860 = vcombine.high %v10834, %v10842
  %v10862 = vunpack.c.l.s4 1934713408
  %v10863 = vunpack.c.0.s8 %v10862
  %v10864 = vlaneseq
  %v10865 = vshrl.u32 %v10864, 7
  %v10866 = vsub.s32 %v10863, %v10865
  %v10867 = vrot.slane %v10859, %v10866
  %v10869 = vunpack.c.l.s4 1934713408
  %v10870 = vunpack.c.0.s8 %v10869
  %v10871 = vlaneseq
  %v10872 = vshrl.u32 %v10871, 7
  %v10873 = vsub.s32 %v10870, %v10872
  %v10874 = vrot.slane %v10860, %v10873
  %v10875 = vcombine.low %v10851, %v10867
  %v10876 = vcombine.high %v10851, %v10867
  %v10877 = vcombine.low %v10858, %v10874
  %v10878 = vcombine.high %v10858, %v10874
  %v10879 = vcombine.low %v9483, %v9485
  %v10881 = vunpack.c.l.s4 1983009808
  %v10882 = vunpack.c.0.s8 %v10881
  %v10883 = vlaneseq
  %v10884 = vshrl.u32 %v10883, 7
  %v10885 = vsub.s32 %v10882, %v10884
  %v10886 = vrot.slane %v10879, %v10885
  %v10887 = vcombine.low %v9484, %v9486
  %v10889 = vunpack.c.l.s4 1983009808
  %v10890 = vunpack.c.0.s8 %v10889
  %v10891 = vlaneseq
  %v10892 = vshrl.u32 %v10891, 7
  %v10893 = vsub.s32 %v10890, %v10892
  %v10894 = vrot.slane %v10887, %v10893
  %v10895 = vcombine.low %v9487, %v9489
  %v10897 = vunpack.c.l.s4 1983009808
  %v10898 = vunpack.c.0.s8 %v10897
  %v10899 = vlaneseq
  %v10900 = vshrl.u32 %v10899, 7
  %v10901 = vsub.s32 %v10898, %v10900
  %v10902 = vrot.slane %v10895, %v10901
  %v10903 = vcombine.low %v9488, %v9490
  %v10905 = vunpack.c.l.s4 1983009808
  %v10906 = vunpack.c.0.s8 %v10905
  %v10907 = vlaneseq
  %v10908 = vshrl.u32 %v10907, 7
  %v10909 = vsub.s32 %v10906, %v10908
  %v10910 = vrot.slane %v10903, %v10909
  %v10911 = vcombine.low %v10886, %v10894
  %v10912 = vcombine.high %v10886, %v10894
  %v10914 = vunpack.c.l.s4 1934713408
  %v10915 = vunpack.c.0.s8 %v10914
  %v10916 = vlaneseq
  %v10917 = vshrl.u32 %v10916, 7
  %v10918 = vsub.s32 %v10915, %v10917
  %v10919 = vrot.slane %v10911, %v10918
  %v10921 = vunpack.c.l.s4 1934713408
  %v10922 = vunpack.c.0.s8 %v10921
  %v10923 = vlaneseq
  %v10924 = vshrl.u32 %v10923, 7
  %v10925 = vsub.s32 %v10922, %v10924
  %v10926 = vrot.slane %v10912, %v10925
  %v10927 = vcombine.low %v10902, %v10910
  %v10928 = vcombine.high %v10902, %v10910
  %v10930 = vunpack.c.l.s4 1934713408
  %v10931 = vunpack.c.0.s8 %v10930
  %v10932 = vlaneseq
  %v10933 = vshrl.u32 %v10932, 7
  %v10934 = vsub.s32 %v10931, %v10933
  %v10935 = vrot.slane %v10927, %v10934
  %v10937 = vunpack.c.l.s4 1934713408
  %v10938 = vunpack.c.0.s8 %v10937
  %v10939 = vlaneseq
  %v10940 = vshrl.u32 %v10939, 7
  %v10941 = vsub.s32 %v10938, %v10940
  %v10942 = vrot.slane %v10928, %v10941
  %v10943 = vcombine.low %v10919, %v10935
  %v10944 = vcombine.high %v10919, %v10935
  %v10945 = vcombine.low %v10926, %v10942
  %v10946 = vcombine.high %v10926, %v10942
  %v10947 = vcombine.low %v9491, %v9493
  %v10949 = vunpack.c.l.s4 1983009808
  %v10950 = vunpack.c.0.s8 %v10949
  %v10951 = vlaneseq
  %v10952 = vshrl.u32 %v10951, 7
  %v10953 = vsub.s32 %v10950, %v10952
  %v10954 = vrot.slane %v10947, %v10953
  %v10955 = vcombine.low %v9492, %v9494
  %v10957 = vunpack.c.l.s4 1983009808
  %v10958 = vunpack.c.0.s8 %v10957
  %v10959 = vlaneseq
  %v10960 = vshrl.u32 %v10959, 7
  %v10961 = vsub.s32 %v10958, %v10960
  %v10962 = vrot.slane %v10955, %v10961
  %v10963 = vcombine.low %v9495, %v9497
  %v10965 = vunpack.c.l.s4 1983009808
  %v10966 = vunpack.c.0.s8 %v10965
  %v10967 = vlaneseq
  %v10968 = vshrl.u32 %v10967, 7
  %v10969 = vsub.s32 %v10966, %v10968
  %v10970 = vrot.slane %v10963, %v10969
  %v10971 = vcombine.low %v9496, %v9498
  %v10973 = vunpack.c.l.s4 1983009808
  %v10974 = vunpack.c.0.s8 %v10973
  %v10975 = vlaneseq
  %v10976 = vshrl.u32 %v10975, 7
  %v10977 = vsub.s32 %v10974, %v10976
  %v10978 = vrot.slane %v10971, %v10977
  %v10979 = vcombine.low %v10954, %v10962
  %v10980 = vcombine.high %v10954, %v10962
  %v10982 = vunpack.c.l.s4 1934713408
  %v10983 = vunpack.c.0.s8 %v10982
  %v10984 = vlaneseq
  %v10985 = vshrl.u32 %v10984, 7
  %v10986 = vsub.s32 %v10983, %v10985
  %v10987 = vrot.slane %v10979, %v10986
  %v10989 = vunpack.c.l.s4 1934713408
  %v10990 = vunpack.c.0.s8 %v10989
  %v10991 = vlaneseq
  %v10992 = vshrl.u32 %v10991, 7
  %v10993 = vsub.s32 %v10990, %v10992
  %v10994 = vrot.slane %v10980, %v10993
  %v10995 = vcombine.low %v10970, %v10978
  %v10996 = vcombine.high %v10970, %v10978
  %v10998 = vunpack.c.l.s4 1934713408
  %v10999 = vunpack.c.0.s8 %v10998
  %v11000 = vlaneseq
  %v11001 = vshrl.u32 %v11000, 7
  %v11002 = vsub.s32 %v10999, %v11001
  %v11003 = vrot.slane %v10995, %v11002
  %v11005 = vunpack.c.l.s4 1934713408
  %v11006 = vunpack.c.0.s8 %v11005
  %v11007 = vlaneseq
  %v11008 = vshrl.u32 %v11007, 7
  %v11009 = vsub.s32 %v11006, %v11008
  %v11010 = vrot.slane %v10996, %v11009
  %v11011 = vcombine.low %v10987, %v11003
  %v11012 = vcombine.high %v10987, %v11003
  %v11013 = vcombine.low %v10994, %v11010
  %v11014 = vcombine.high %v10994, %v11010
  %v11015 = vcombine.low %v9499, %v9501
  %v11017 = vunpack.c.l.s4 1983009808
  %v11018 = vunpack.c.0.s8 %v11017
  %v11019 = vlaneseq
  %v11020 = vshrl.u32 %v11019, 7
  %v11021 = vsub.s32 %v11018, %v11020
  %v11022 = vrot.slane %v11015, %v11021
  %v11023 = vcombine.low %v9500, %v9502
  %v11025 = vunpack.c.l.s4 1983009808
  %v11026 = vunpack.c.0.s8 %v11025
  %v11027 = vlaneseq
  %v11028 = vshrl.u32 %v11027, 7
  %v11029 = vsub.s32 %v11026, %v11028
  %v11030 = vrot.slane %v11023, %v11029
  %v11031 = vcombine.low %v9503, %v9505
  %v11033 = vunpack.c.l.s4 1983009808
  %v11034 = vunpack.c.0.s8 %v11033
  %v11035 = vlaneseq
  %v11036 = vshrl.u32 %v11035, 7
  %v11037 = vsub.s32 %v11034, %v11036
  %v11038 = vrot.slane %v11031, %v11037
  %v11039 = vcombine.low %v9504, %v9506
  %v11041 = vunpack.c.l.s4 1983009808
  %v11042 = vunpack.c.0.s8 %v11041
  %v11043 = vlaneseq
  %v11044 = vshrl.u32 %v11043, 7
  %v11045 = vsub.s32 %v11042, %v11044
  %v11046 = vrot.slane %v11039, %v11045
  %v11047 = vcombine.low %v11022, %v11030
  %v11048 = vcombine.high %v11022, %v11030
  %v11050 = vunpack.c.l.s4 1934713408
  %v11051 = vunpack.c.0.s8 %v11050
  %v11052 = vlaneseq
  %v11053 = vshrl.u32 %v11052, 7
  %v11054 = vsub.s32 %v11051, %v11053
  %v11055 = vrot.slane %v11047, %v11054
  %v11057 = vunpack.c.l.s4 1934713408
  %v11058 = vunpack.c.0.s8 %v11057
  %v11059 = vlaneseq
  %v11060 = vshrl.u32 %v11059, 7
  %v11061 = vsub.s32 %v11058, %v11060
  %v11062 = vrot.slane %v11048, %v11061
  %v11063 = vcombine.low %v11038, %v11046
  %v11064 = vcombine.high %v11038, %v11046
  %v11066 = vunpack.c.l.s4 1934713408
  %v11067 = vunpack.c.0.s8 %v11066
  %v11068 = vlaneseq
  %v11069 = vshrl.u32 %v11068, 7
  %v11070 = vsub.s32 %v11067, %v11069
  %v11071 = vrot.slane %v11063, %v11070
  %v11073 = vunpack.c.l.s4 1934713408
  %v11074 = vunpack.c.0.s8 %v11073
  %v11075 = vlaneseq
  %v11076 = vshrl.u32 %v11075, 7
  %v11077 = vsub.s32 %v11074, %v11076
  %v11078 = vrot.slane %v11064, %v11077
  %v11079 = vcombine.low %v11055, %v11071
  %v11080 = vcombine.high %v11055, %v11071
  %v11081 = vcombine.low %v11062, %v11078
  %v11082 = vcombine.high %v11062, %v11078
  %v11083 = vcombine.low %v9507, %v9509
  %v11085 = vunpack.c.l.s4 1983009808
  %v11086 = vunpack.c.0.s8 %v11085
  %v11087 = vlaneseq
  %v11088 = vshrl.u32 %v11087, 7
  %v11089 = vsub.s32 %v11086, %v11088
  %v11090 = vrot.slane %v11083, %v11089
  %v11091 = vcombine.low %v9508, %v9510
  %v11093 = vunpack.c.l.s4 1983009808
  %v11094 = vunpack.c.0.s8 %v11093
  %v11095 = vlaneseq
  %v11096 = vshrl.u32 %v11095, 7
  %v11097 = vsub.s32 %v11094, %v11096
  %v11098 = vrot.slane %v11091, %v11097
  %v11099 = vcombine.low %v9511, %v9513
  %v11101 = vunpack.c.l.s4 1983009808
  %v11102 = vunpack.c.0.s8 %v11101
  %v11103 = vlaneseq
  %v11104 = vshrl.u32 %v11103, 7
  %v11105 = vsub.s32 %v11102, %v11104
  %v11106 = vrot.slane %v11099, %v11105
  %v11107 = vcombine.low %v9512, %v9514
  %v11109 = vunpack.c.l.s4 1983009808
  %v11110 = vunpack.c.0.s8 %v11109
  %v11111 = vlaneseq
  %v11112 = vshrl.u32 %v11111, 7
  %v11113 = vsub.s32 %v11110, %v11112
  %v11114 = vrot.slane %v11107, %v11113
  %v11115 = vcombine.low %v11090, %v11098
  %v11116 = vcombine.high %v11090, %v11098
  %v11118 = vunpack.c.l.s4 1934713408
  %v11119 = vunpack.c.0.s8 %v11118
  %v11120 = vlaneseq
  %v11121 = vshrl.u32 %v11120, 7
  %v11122 = vsub.s32 %v11119, %v11121
  %v11123 = vrot.slane %v11115, %v11122
  %v11125 = vunpack.c.l.s4 1934713408
  %v11126 = vunpack.c.0.s8 %v11125
  %v11127 = vlaneseq
  %v11128 = vshrl.u32 %v11127, 7
  %v11129 = vsub.s32 %v11126, %v11128
  %v11130 = vrot.slane %v11116, %v11129
  %v11131 = vcombine.low %v11106, %v11114
  %v11132 = vcombine.high %v11106, %v11114
  %v11134 = vunpack.c.l.s4 1934713408
  %v11135 = vunpack.c.0.s8 %v11134
  %v11136 = vlaneseq
  %v11137 = vshrl.u32 %v11136, 7
  %v11138 = vsub.s32 %v11135, %v11137
  %v11139 = vrot.slane %v11131, %v11138
  %v11141 = vunpack.c.l.s4 1934713408
  %v11142 = vunpack.c.0.s8 %v11141
  %v11143 = vlaneseq
  %v11144 = vshrl.u32 %v11143, 7
  %v11145 = vsub.s32 %v11142, %v11144
  %v11146 = vrot.slane %v11132, %v11145
  %v11147 = vcombine.low %v11123, %v11139
  %v11148 = vcombine.high %v11123, %v11139
  %v11149 = vcombine.low %v11130, %v11146
  %v11150 = vcombine.high %v11130, %v11146
  %v11151 = vcombine.low %v9515, %v9517
  %v11153 = vunpack.c.l.s4 1983009808
  %v11154 = vunpack.c.0.s8 %v11153
  %v11155 = vlaneseq
  %v11156 = vshrl.u32 %v11155, 7
  %v11157 = vsub.s32 %v11154, %v11156
  %v11158 = vrot.slane %v11151, %v11157
  %v11159 = vcombine.low %v9516, %v9518
  %v11161 = vunpack.c.l.s4 1983009808
  %v11162 = vunpack.c.0.s8 %v11161
  %v11163 = vlaneseq
  %v11164 = vshrl.u32 %v11163, 7
  %v11165 = vsub.s32 %v11162, %v11164
  %v11166 = vrot.slane %v11159, %v11165
  %v11167 = vcombine.low %v9519, %v9521
  %v11169 = vunpack.c.l.s4 1983009808
  %v11170 = vunpack.c.0.s8 %v11169
  %v11171 = vlaneseq
  %v11172 = vshrl.u32 %v11171, 7
  %v11173 = vsub.s32 %v11170, %v11172
  %v11174 = vrot.slane %v11167, %v11173
  %v11175 = vcombine.low %v9520, %v9522
  %v11177 = vunpack.c.l.s4 1983009808
  %v11178 = vunpack.c.0.s8 %v11177
  %v11179 = vlaneseq
  %v11180 = vshrl.u32 %v11179, 7
  %v11181 = vsub.s32 %v11178, %v11180
  %v11182 = vrot.slane %v11175, %v11181
  %v11183 = vcombine.low %v11158, %v11166
  %v11184 = vcombine.high %v11158, %v11166
  %v11186 = vunpack.c.l.s4 1934713408
  %v11187 = vunpack.c.0.s8 %v11186
  %v11188 = vlaneseq
  %v11189 = vshrl.u32 %v11188, 7
  %v11190 = vsub.s32 %v11187, %v11189
  %v11191 = vrot.slane %v11183, %v11190
  %v11193 = vunpack.c.l.s4 1934713408
  %v11194 = vunpack.c.0.s8 %v11193
  %v11195 = vlaneseq
  %v11196 = vshrl.u32 %v11195, 7
  %v11197 = vsub.s32 %v11194, %v11196
  %v11198 = vrot.slane %v11184, %v11197
  %v11199 = vcombine.low %v11174, %v11182
  %v11200 = vcombine.high %v11174, %v11182
  %v11202 = vunpack.c.l.s4 1934713408
  %v11203 = vunpack.c.0.s8 %v11202
  %v11204 = vlaneseq
  %v11205 = vshrl.u32 %v11204, 7
  %v11206 = vsub.s32 %v11203, %v11205
  %v11207 = vrot.slane %v11199, %v11206
  %v11209 = vunpack.c.l.s4 1934713408
  %v11210 = vunpack.c.0.s8 %v11209
  %v11211 = vlaneseq
  %v11212 = vshrl.u32 %v11211, 7
  %v11213 = vsub.s32 %v11210, %v11212
  %v11214 = vrot.slane %v11200, %v11213
  %v11215 = vcombine.low %v11191, %v11207
  %v11216 = vcombine.high %v11191, %v11207
  %v11217 = vcombine.low %v11198, %v11214
  %v11218 = vcombine.high %v11198, %v11214
  %v11219 = vcombine.low %v9523, %v9525
  %v11221 = vunpack.c.l.s4 1983009808
  %v11222 = vunpack.c.0.s8 %v11221
  %v11223 = vlaneseq
  %v11224 = vshrl.u32 %v11223, 7
  %v11225 = vsub.s32 %v11222, %v11224
  %v11226 = vrot.slane %v11219, %v11225
  %v11227 = vcombine.low %v9524, %v9526
  %v11229 = vunpack.c.l.s4 1983009808
  %v11230 = vunpack.c.0.s8 %v11229
  %v11231 = vlaneseq
  %v11232 = vshrl.u32 %v11231, 7
  %v11233 = vsub.s32 %v11230, %v11232
  %v11234 = vrot.slane %v11227, %v11233
  %v11235 = vcombine.low %v9527, %v9529
  %v11237 = vunpack.c.l.s4 1983009808
  %v11238 = vunpack.c.0.s8 %v11237
  %v11239 = vlaneseq
  %v11240 = vshrl.u32 %v11239, 7
  %v11241 = vsub.s32 %v11238, %v11240
  %v11242 = vrot.slane %v11235, %v11241
  %v11243 = vcombine.low %v9528, %v9530
  %v11245 = vunpack.c.l.s4 1983009808
  %v11246 = vunpack.c.0.s8 %v11245
  %v11247 = vlaneseq
  %v11248 = vshrl.u32 %v11247, 7
  %v11249 = vsub.s32 %v11246, %v11248
  %v11250 = vrot.slane %v11243, %v11249
  %v11251 = vcombine.low %v11226, %v11234
  %v11252 = vcombine.high %v11226, %v11234
  %v11254 = vunpack.c.l.s4 1934713408
  %v11255 = vunpack.c.0.s8 %v11254
  %v11256 = vlaneseq
  %v11257 = vshrl.u32 %v11256, 7
  %v11258 = vsub.s32 %v11255, %v11257
  %v11259 = vrot.slane %v11251, %v11258
  %v11261 = vunpack.c.l.s4 1934713408
  %v11262 = vunpack.c.0.s8 %v11261
  %v11263 = vlaneseq
  %v11264 = vshrl.u32 %v11263, 7
  %v11265 = vsub.s32 %v11262, %v11264
  %v11266 = vrot.slane %v11252, %v11265
  %v11267 = vcombine.low %v11242, %v11250
  %v11268 = vcombine.high %v11242, %v11250
  %v11270 = vunpack.c.l.s4 1934713408
  %v11271 = vunpack.c.0.s8 %v11270
  %v11272 = vlaneseq
  %v11273 = vshrl.u32 %v11272, 7
  %v11274 = vsub.s32 %v11271, %v11273
  %v11275 = vrot.slane %v11267, %v11274
  %v11277 = vunpack.c.l.s4 1934713408
  %v11278 = vunpack.c.0.s8 %v11277
  %v11279 = vlaneseq
  %v11280 = vshrl.u32 %v11279, 7
  %v11281 = vsub.s32 %v11278, %v11280
  %v11282 = vrot.slane %v11268, %v11281
  %v11283 = vcombine.low %v11259, %v11275
  %v11284 = vcombine.high %v11259, %v11275
  %v11285 = vcombine.low %v11266, %v11282
  %v11286 = vcombine.high %v11266, %v11282
  %v11287 = vcombine.low %v9531, %v9533
  %v11289 = vunpack.c.l.s4 1983009808
  %v11290 = vunpack.c.0.s8 %v11289
  %v11291 = vlaneseq
  %v11292 = vshrl.u32 %v11291, 7
  %v11293 = vsub.s32 %v11290, %v11292
  %v11294 = vrot.slane %v11287, %v11293
  %v11295 = vcombine.low %v9532, %v9534
  %v11297 = vunpack.c.l.s4 1983009808
  %v11298 = vunpack.c.0.s8 %v11297
  %v11299 = vlaneseq
  %v11300 = vshrl.u32 %v11299, 7
  %v11301 = vsub.s32 %v11298, %v11300
  %v11302 = vrot.slane %v11295, %v11301
  %v11303 = vcombine.low %v9535, %v9537
  %v11305 = vunpack.c.l.s4 1983009808
  %v11306 = vunpack.c.0.s8 %v11305
  %v11307 = vlaneseq
  %v11308 = vshrl.u32 %v11307, 7
  %v11309 = vsub.s32 %v11306, %v11308
  %v11310 = vrot.slane %v11303, %v11309
  %v11311 = vcombine.low %v9536, %v9538
  %v11313 = vunpack.c.l.s4 1983009808
  %v11314 = vunpack.c.0.s8 %v11313
  %v11315 = vlaneseq
  %v11316 = vshrl.u32 %v11315, 7
  %v11317 = vsub.s32 %v11314, %v11316
  %v11318 = vrot.slane %v11311, %v11317
  %v11319 = vcombine.low %v11294, %v11302
  %v11320 = vcombine.high %v11294, %v11302
  %v11322 = vunpack.c.l.s4 1934713408
  %v11323 = vunpack.c.0.s8 %v11322
  %v11324 = vlaneseq
  %v11325 = vshrl.u32 %v11324, 7
  %v11326 = vsub.s32 %v11323, %v11325
  %v11327 = vrot.slane %v11319, %v11326
  %v11329 = vunpack.c.l.s4 1934713408
  %v11330 = vunpack.c.0.s8 %v11329
  %v11331 = vlaneseq
  %v11332 = vshrl.u32 %v11331, 7
  %v11333 = vsub.s32 %v11330, %v11332
  %v11334 = vrot.slane %v11320, %v11333
  %v11335 = vcombine.low %v11310, %v11318
  %v11336 = vcombine.high %v11310, %v11318
  %v11338 = vunpack.c.l.s4 1934713408
  %v11339 = vunpack.c.0.s8 %v11338
  %v11340 = vlaneseq
  %v11341 = vshrl.u32 %v11340, 7
  %v11342 = vsub.s32 %v11339, %v11341
  %v11343 = vrot.slane %v11335, %v11342
  %v11345 = vunpack.c.l.s4 1934713408
  %v11346 = vunpack.c.0.s8 %v11345
  %v11347 = vlaneseq
  %v11348 = vshrl.u32 %v11347, 7
  %v11349 = vsub.s32 %v11346, %v11348
  %v11350 = vrot.slane %v11336, %v11349
  %v11351 = vcombine.low %v11327, %v11343
  %v11352 = vcombine.high %v11327, %v11343
  %v11353 = vcombine.low %v11334, %v11350
  %v11354 = vcombine.high %v11334, %v11350
  %v11355 = vcombine.low %v9539, %v9541
  %v11357 = vunpack.c.l.s4 1983009808
  %v11358 = vunpack.c.0.s8 %v11357
  %v11359 = vlaneseq
  %v11360 = vshrl.u32 %v11359, 7
  %v11361 = vsub.s32 %v11358, %v11360
  %v11362 = vrot.slane %v11355, %v11361
  %v11363 = vcombine.low %v9540, %v9542
  %v11365 = vunpack.c.l.s4 1983009808
  %v11366 = vunpack.c.0.s8 %v11365
  %v11367 = vlaneseq
  %v11368 = vshrl.u32 %v11367, 7
  %v11369 = vsub.s32 %v11366, %v11368
  %v11370 = vrot.slane %v11363, %v11369
  %v11371 = vcombine.low %v9543, %v9545
  %v11373 = vunpack.c.l.s4 1983009808
  %v11374 = vunpack.c.0.s8 %v11373
  %v11375 = vlaneseq
  %v11376 = vshrl.u32 %v11375, 7
  %v11377 = vsub.s32 %v11374, %v11376
  %v11378 = vrot.slane %v11371, %v11377
  %v11379 = vcombine.low %v9544, %v9546
  %v11381 = vunpack.c.l.s4 1983009808
  %v11382 = vunpack.c.0.s8 %v11381
  %v11383 = vlaneseq
  %v11384 = vshrl.u32 %v11383, 7
  %v11385 = vsub.s32 %v11382, %v11384
  %v11386 = vrot.slane %v11379, %v11385
  %v11387 = vcombine.low %v11362, %v11370
  %v11388 = vcombine.high %v11362, %v11370
  %v11390 = vunpack.c.l.s4 1934713408
  %v11391 = vunpack.c.0.s8 %v11390
  %v11392 = vlaneseq
  %v11393 = vshrl.u32 %v11392, 7
  %v11394 = vsub.s32 %v11391, %v11393
  %v11395 = vrot.slane %v11387, %v11394
  %v11397 = vunpack.c.l.s4 1934713408
  %v11398 = vunpack.c.0.s8 %v11397
  %v11399 = vlaneseq
  %v11400 = vshrl.u32 %v11399, 7
  %v11401 = vsub.s32 %v11398, %v11400
  %v11402 = vrot.slane %v11388, %v11401
  %v11403 = vcombine.low %v11378, %v11386
  %v11404 = vcombine.high %v11378, %v11386
  %v11406 = vunpack.c.l.s4 1934713408
  %v11407 = vunpack.c.0.s8 %v11406
  %v11408 = vlaneseq
  %v11409 = vshrl.u32 %v11408, 7
  %v11410 = vsub.s32 %v11407, %v11409
  %v11411 = vrot.slane %v11403, %v11410
  %v11413 = vunpack.c.l.s4 1934713408
  %v11414 = vunpack.c.0.s8 %v11413
  %v11415 = vlaneseq
  %v11416 = vshrl.u32 %v11415, 7
  %v11417 = vsub.s32 %v11414, %v11416
  %v11418 = vrot.slane %v11404, %v11417
  %v11419 = vcombine.low %v11395, %v11411
  %v11420 = vcombine.high %v11395, %v11411
  %v11421 = vcombine.low %v11402, %v11418
  %v11422 = vcombine.high %v11402, %v11418
  %v11423 = vcombine.low %v9547, %v9549
  %v11425 = vunpack.c.l.s4 1983009808
  %v11426 = vunpack.c.0.s8 %v11425
  %v11427 = vlaneseq
  %v11428 = vshrl.u32 %v11427, 7
  %v11429 = vsub.s32 %v11426, %v11428
  %v11430 = vrot.slane %v11423, %v11429
  %v11431 = vcombine.low %v9548, %v9550
  %v11433 = vunpack.c.l.s4 1983009808
  %v11434 = vunpack.c.0.s8 %v11433
  %v11435 = vlaneseq
  %v11436 = vshrl.u32 %v11435, 7
  %v11437 = vsub.s32 %v11434, %v11436
  %v11438 = vrot.slane %v11431, %v11437
  %v11439 = vcombine.low %v9551, %v9553
  %v11441 = vunpack.c.l.s4 1983009808
  %v11442 = vunpack.c.0.s8 %v11441
  %v11443 = vlaneseq
  %v11444 = vshrl.u32 %v11443, 7
  %v11445 = vsub.s32 %v11442, %v11444
  %v11446 = vrot.slane %v11439, %v11445
  %v11447 = vcombine.low %v9552, %v9554
  %v11449 = vunpack.c.l.s4 1983009808
  %v11450 = vunpack.c.0.s8 %v11449
  %v11451 = vlaneseq
  %v11452 = vshrl.u32 %v11451, 7
  %v11453 = vsub.s32 %v11450, %v11452
  %v11454 = vrot.slane %v11447, %v11453
  %v11455 = vcombine.low %v11430, %v11438
  %v11456 = vcombine.high %v11430, %v11438
  %v11458 = vunpack.c.l.s4 1934713408
  %v11459 = vunpack.c.0.s8 %v11458
  %v11460 = vlaneseq
  %v11461 = vshrl.u32 %v11460, 7
  %v11462 = vsub.s32 %v11459, %v11461
  %v11463 = vrot.slane %v11455, %v11462
  %v11465 = vunpack.c.l.s4 1934713408
  %v11466 = vunpack.c.0.s8 %v11465
  %v11467 = vlaneseq
  %v11468 = vshrl.u32 %v11467, 7
  %v11469 = vsub.s32 %v11466, %v11468
  %v11470 = vrot.slane %v11456, %v11469
  %v11471 = vcombine.low %v11446, %v11454
  %v11472 = vcombine.high %v11446, %v11454
  %v11474 = vunpack.c.l.s4 1934713408
  %v11475 = vunpack.c.0.s8 %v11474
  %v11476 = vlaneseq
  %v11477 = vshrl.u32 %v11476, 7
  %v11478 = vsub.s32 %v11475, %v11477
  %v11479 = vrot.slane %v11471, %v11478
  %v11481 = vunpack.c.l.s4 1934713408
  %v11482 = vunpack.c.0.s8 %v11481
  %v11483 = vlaneseq
  %v11484 = vshrl.u32 %v11483, 7
  %v11485 = vsub.s32 %v11482, %v11484
  %v11486 = vrot.slane %v11472, %v11485
  %v11487 = vcombine.low %v11463, %v11479
  %v11488 = vcombine.high %v11463, %v11479
  %v11489 = vcombine.low %v11470, %v11486
  %v11490 = vcombine.high %v11470, %v11486
  %v11491 = vcombine.low %v9555, %v9557
  %v11493 = vunpack.c.l.s4 1983009808
  %v11494 = vunpack.c.0.s8 %v11493
  %v11495 = vlaneseq
  %v11496 = vshrl.u32 %v11495, 7
  %v11497 = vsub.s32 %v11494, %v11496
  %v11498 = vrot.slane %v11491, %v11497
  %v11499 = vcombine.low %v9556, %v9558
  %v11501 = vunpack.c.l.s4 1983009808
  %v11502 = vunpack.c.0.s8 %v11501
  %v11503 = vlaneseq
  %v11504 = vshrl.u32 %v11503, 7
  %v11505 = vsub.s32 %v11502, %v11504
  %v11506 = vrot.slane %v11499, %v11505
  %v11507 = vcombine.low %v9559, %v9561
  %v11509 = vunpack.c.l.s4 1983009808
  %v11510 = vunpack.c.0.s8 %v11509
  %v11511 = vlaneseq
  %v11512 = vshrl.u32 %v11511, 7
  %v11513 = vsub.s32 %v11510, %v11512
  %v11514 = vrot.slane %v11507, %v11513
  %v11515 = vcombine.low %v9560, %v9562
  %v11517 = vunpack.c.l.s4 1983009808
  %v11518 = vunpack.c.0.s8 %v11517
  %v11519 = vlaneseq
  %v11520 = vshrl.u32 %v11519, 7
  %v11521 = vsub.s32 %v11518, %v11520
  %v11522 = vrot.slane %v11515, %v11521
  %v11523 = vcombine.low %v11498, %v11506
  %v11524 = vcombine.high %v11498, %v11506
  %v11526 = vunpack.c.l.s4 1934713408
  %v11527 = vunpack.c.0.s8 %v11526
  %v11528 = vlaneseq
  %v11529 = vshrl.u32 %v11528, 7
  %v11530 = vsub.s32 %v11527, %v11529
  %v11531 = vrot.slane %v11523, %v11530
  %v11533 = vunpack.c.l.s4 1934713408
  %v11534 = vunpack.c.0.s8 %v11533
  %v11535 = vlaneseq
  %v11536 = vshrl.u32 %v11535, 7
  %v11537 = vsub.s32 %v11534, %v11536
  %v11538 = vrot.slane %v11524, %v11537
  %v11539 = vcombine.low %v11514, %v11522
  %v11540 = vcombine.high %v11514, %v11522
  %v11542 = vunpack.c.l.s4 1934713408
  %v11543 = vunpack.c.0.s8 %v11542
  %v11544 = vlaneseq
  %v11545 = vshrl.u32 %v11544, 7
  %v11546 = vsub.s32 %v11543, %v11545
  %v11547 = vrot.slane %v11539, %v11546
  %v11549 = vunpack.c.l.s4 1934713408
  %v11550 = vunpack.c.0.s8 %v11549
  %v11551 = vlaneseq
  %v11552 = vshrl.u32 %v11551, 7
  %v11553 = vsub.s32 %v11550, %v11552
  %v11554 = vrot.slane %v11540, %v11553
  %v11555 = vcombine.low %v11531, %v11547
  %v11556 = vcombine.high %v11531, %v11547
  %v11557 = vcombine.low %v11538, %v11554
  %v11558 = vcombine.high %v11538, %v11554
  %v11559 = vcombine.low %v9563, %v9565
  %v11561 = vunpack.c.l.s4 1983009808
  %v11562 = vunpack.c.0.s8 %v11561
  %v11563 = vlaneseq
  %v11564 = vshrl.u32 %v11563, 7
  %v11565 = vsub.s32 %v11562, %v11564
  %v11566 = vrot.slane %v11559, %v11565
  %v11567 = vcombine.low %v9564, %v9566
  %v11569 = vunpack.c.l.s4 1983009808
  %v11570 = vunpack.c.0.s8 %v11569
  %v11571 = vlaneseq
  %v11572 = vshrl.u32 %v11571, 7
  %v11573 = vsub.s32 %v11570, %v11572
  %v11574 = vrot.slane %v11567, %v11573
  %v11575 = vcombine.low %v9567, %v9569
  %v11577 = vunpack.c.l.s4 1983009808
  %v11578 = vunpack.c.0.s8 %v11577
  %v11579 = vlaneseq
  %v11580 = vshrl.u32 %v11579, 7
  %v11581 = vsub.s32 %v11578, %v11580
  %v11582 = vrot.slane %v11575, %v11581
  %v11583 = vcombine.low %v9568, %v9570
  %v11585 = vunpack.c.l.s4 1983009808
  %v11586 = vunpack.c.0.s8 %v11585
  %v11587 = vlaneseq
  %v11588 = vshrl.u32 %v11587, 7
  %v11589 = vsub.s32 %v11586, %v11588
  %v11590 = vrot.slane %v11583, %v11589
  %v11591 = vcombine.low %v11566, %v11574
  %v11592 = vcombine.high %v11566, %v11574
  %v11594 = vunpack.c.l.s4 1934713408
  %v11595 = vunpack.c.0.s8 %v11594
  %v11596 = vlaneseq
  %v11597 = vshrl.u32 %v11596, 7
  %v11598 = vsub.s32 %v11595, %v11597
  %v11599 = vrot.slane %v11591, %v11598
  %v11601 = vunpack.c.l.s4 1934713408
  %v11602 = vunpack.c.0.s8 %v11601
  %v11603 = vlaneseq
  %v11604 = vshrl.u32 %v11603, 7
  %v11605 = vsub.s32 %v11602, %v11604
  %v11606 = vrot.slane %v11592, %v11605
  %v11607 = vcombine.low %v11582, %v11590
  %v11608 = vcombine.high %v11582, %v11590
  %v11610 = vunpack.c.l.s4 1934713408
  %v11611 = vunpack.c.0.s8 %v11610
  %v11612 = vlaneseq
  %v11613 = vshrl.u32 %v11612, 7
  %v11614 = vsub.s32 %v11611, %v11613
  %v11615 = vrot.slane %v11607, %v11614
  %v11617 = vunpack.c.l.s4 1934713408
  %v11618 = vunpack.c.0.s8 %v11617
  %v11619 = vlaneseq
  %v11620 = vshrl.u32 %v11619, 7
  %v11621 = vsub.s32 %v11618, %v11620
  %v11622 = vrot.slane %v11608, %v11621
  %v11623 = vcombine.low %v11599, %v11615
  %v11624 = vcombine.high %v11599, %v11615
  %v11625 = vcombine.low %v11606, %v11622
  %v11626 = vcombine.high %v11606, %v11622
  %v11627 = vcombine.low %v9571, %v9573
  %v11629 = vunpack.c.l.s4 1983009808
  %v11630 = vunpack.c.0.s8 %v11629
  %v11631 = vlaneseq
  %v11632 = vshrl.u32 %v11631, 7
  %v11633 = vsub.s32 %v11630, %v11632
  %v11634 = vrot.slane %v11627, %v11633
  %v11635 = vcombine.low %v9572, %v9574
  %v11637 = vunpack.c.l.s4 1983009808
  %v11638 = vunpack.c.0.s8 %v11637
  %v11639 = vlaneseq
  %v11640 = vshrl.u32 %v11639, 7
  %v11641 = vsub.s32 %v11638, %v11640
  %v11642 = vrot.slane %v11635, %v11641
  %v11643 = vcombine.low %v9575, %v9577
  %v11645 = vunpack.c.l.s4 1983009808
  %v11646 = vunpack.c.0.s8 %v11645
  %v11647 = vlaneseq
  %v11648 = vshrl.u32 %v11647, 7
  %v11649 = vsub.s32 %v11646, %v11648
  %v11650 = vrot.slane %v11643, %v11649
  %v11651 = vcombine.low %v9576, %v9578
  %v11653 = vunpack.c.l.s4 1983009808
  %v11654 = vunpack.c.0.s8 %v11653
  %v11655 = vlaneseq
  %v11656 = vshrl.u32 %v11655, 7
  %v11657 = vsub.s32 %v11654, %v11656
  %v11658 = vrot.slane %v11651, %v11657
  %v11659 = vcombine.low %v11634, %v11642
  %v11660 = vcombine.high %v11634, %v11642
  %v11662 = vunpack.c.l.s4 1934713408
  %v11663 = vunpack.c.0.s8 %v11662
  %v11664 = vlaneseq
  %v11665 = vshrl.u32 %v11664, 7
  %v11666 = vsub.s32 %v11663, %v11665
  %v11667 = vrot.slane %v11659, %v11666
  %v11669 = vunpack.c.l.s4 1934713408
  %v11670 = vunpack.c.0.s8 %v11669
  %v11671 = vlaneseq
  %v11672 = vshrl.u32 %v11671, 7
  %v11673 = vsub.s32 %v11670, %v11672
  %v11674 = vrot.slane %v11660, %v11673
  %v11675 = vcombine.low %v11650, %v11658
  %v11676 = vcombine.high %v11650, %v11658
  %v11678 = vunpack.c.l.s4 1934713408
  %v11679 = vunpack.c.0.s8 %v11678
  %v11680 = vlaneseq
  %v11681 = vshrl.u32 %v11680, 7
  %v11682 = vsub.s32 %v11679, %v11681
  %v11683 = vrot.slane %v11675, %v11682
  %v11685 = vunpack.c.l.s4 1934713408
  %v11686 = vunpack.c.0.s8 %v11685
  %v11687 = vlaneseq
  %v11688 = vshrl.u32 %v11687, 7
  %v11689 = vsub.s32 %v11686, %v11688
  %v11690 = vrot.slane %v11676, %v11689
  %v11691 = vcombine.low %v11667, %v11683
  %v11692 = vcombine.high %v11667, %v11683
  %v11693 = vcombine.low %v11674, %v11690
  %v11694 = vcombine.high %v11674, %v11690
  %v11695 = vcombine.low %v9579, %v9581
  %v11697 = vunpack.c.l.s4 1983009808
  %v11698 = vunpack.c.0.s8 %v11697
  %v11699 = vlaneseq
  %v11700 = vshrl.u32 %v11699, 7
  %v11701 = vsub.s32 %v11698, %v11700
  %v11702 = vrot.slane %v11695, %v11701
  %v11703 = vcombine.low %v9580, %v9582
  %v11705 = vunpack.c.l.s4 1983009808
  %v11706 = vunpack.c.0.s8 %v11705
  %v11707 = vlaneseq
  %v11708 = vshrl.u32 %v11707, 7
  %v11709 = vsub.s32 %v11706, %v11708
  %v11710 = vrot.slane %v11703, %v11709
  %v11711 = vcombine.low %v9583, %v9585
  %v11713 = vunpack.c.l.s4 1983009808
  %v11714 = vunpack.c.0.s8 %v11713
  %v11715 = vlaneseq
  %v11716 = vshrl.u32 %v11715, 7
  %v11717 = vsub.s32 %v11714, %v11716
  %v11718 = vrot.slane %v11711, %v11717
  %v11719 = vcombine.low %v9584, %v9586
  %v11721 = vunpack.c.l.s4 1983009808
  %v11722 = vunpack.c.0.s8 %v11721
  %v11723 = vlaneseq
  %v11724 = vshrl.u32 %v11723, 7
  %v11725 = vsub.s32 %v11722, %v11724
  %v11726 = vrot.slane %v11719, %v11725
  %v11727 = vcombine.low %v11702, %v11710
  %v11728 = vcombine.high %v11702, %v11710
  %v11730 = vunpack.c.l.s4 1934713408
  %v11731 = vunpack.c.0.s8 %v11730
  %v11732 = vlaneseq
  %v11733 = vshrl.u32 %v11732, 7
  %v11734 = vsub.s32 %v11731, %v11733
  %v11735 = vrot.slane %v11727, %v11734
  %v11737 = vunpack.c.l.s4 1934713408
  %v11738 = vunpack.c.0.s8 %v11737
  %v11739 = vlaneseq
  %v11740 = vshrl.u32 %v11739, 7
  %v11741 = vsub.s32 %v11738, %v11740
  %v11742 = vrot.slane %v11728, %v11741
  %v11743 = vcombine.low %v11718, %v11726
  %v11744 = vcombine.high %v11718, %v11726
  %v11746 = vunpack.c.l.s4 1934713408
  %v11747 = vunpack.c.0.s8 %v11746
  %v11748 = vlaneseq
  %v11749 = vshrl.u32 %v11748, 7
  %v11750 = vsub.s32 %v11747, %v11749
  %v11751 = vrot.slane %v11743, %v11750
  %v11753 = vunpack.c.l.s4 1934713408
  %v11754 = vunpack.c.0.s8 %v11753
  %v11755 = vlaneseq
  %v11756 = vshrl.u32 %v11755, 7
  %v11757 = vsub.s32 %v11754, %v11756
  %v11758 = vrot.slane %v11744, %v11757
  %v11759 = vcombine.low %v11735, %v11751
  %v11760 = vcombine.high %v11735, %v11751
  %v11761 = vcombine.low %v11742, %v11758
  %v11762 = vcombine.high %v11742, %v11758
  %11795 = vrot.lane.b32.xlu0 %v9652, 8
  %v11796 = vpop.permute.xlu0 %11795
  %11797 = vrot.lane.b32.xlu0 %v9720, 8
  %v11798 = vpop.permute.xlu0 %11797
  %11799 = vrot.lane.b32.xlu0 %v9788, 8
  %v11800 = vpop.permute.xlu0 %11799
  %11801 = vrot.lane.b32.xlu0 %v9856, 8
  %v11802 = vpop.permute.xlu0 %11801
  %11803 = vrot.lane.b32.xlu0 %v9924, 8
  %v11804 = vpop.permute.xlu0 %11803
  %11805 = vrot.lane.b32.xlu0 %v9992, 8
  %v11806 = vpop.permute.xlu0 %11805
  %11807 = vrot.lane.b32.xlu0 %v10060, 8
  %v11808 = vpop.permute.xlu0 %11807
  %11809 = vrot.lane.b32.xlu0 %v10128, 8
  %v11810 = vpop.permute.xlu0 %11809
  %11811 = vrot.lane.b32.xlu0 %v10196, 8
  %v11812 = vpop.permute.xlu0 %11811
  %11813 = vrot.lane.b32.xlu0 %v10264, 8
  %v11814 = vpop.permute.xlu0 %11813
  %11815 = vrot.lane.b32.xlu0 %v10332, 8
  %v11816 = vpop.permute.xlu0 %11815
  %11817 = vrot.lane.b32.xlu0 %v10400, 8
  %v11818 = vpop.permute.xlu0 %11817
  %11819 = vrot.lane.b32.xlu0 %v10468, 8
  %v11820 = vpop.permute.xlu0 %11819
  %11821 = vrot.lane.b32.xlu0 %v10536, 8
  %v11822 = vpop.permute.xlu0 %11821
  %11823 = vrot.lane.b32.xlu0 %v10604, 8
  %v11824 = vpop.permute.xlu0 %11823
  %11825 = vrot.lane.b32.xlu0 %v10672, 8
  %v11826 = vpop.permute.xlu0 %11825
  %11827 = vrot.lane.b32.xlu0 %v10740, 8
  %v11828 = vpop.permute.xlu0 %11827
  %11829 = vrot.lane.b32.xlu0 %v10808, 8
  %v11830 = vpop.permute.xlu0 %11829
  %11831 = vrot.lane.b32.xlu0 %v10876, 8
  %v11832 = vpop.permute.xlu0 %11831
  %11833 = vrot.lane.b32.xlu0 %v10944, 8
  %v11834 = vpop.permute.xlu0 %11833
  %11835 = vrot.lane.b32.xlu0 %v11012, 8
  %v11836 = vpop.permute.xlu0 %11835
  %11837 = vrot.lane.b32.xlu0 %v11080, 8
  %v11838 = vpop.permute.xlu0 %11837
  %11839 = vrot.lane.b32.xlu0 %v11148, 8
  %v11840 = vpop.permute.xlu0 %11839
  %11841 = vrot.lane.b32.xlu0 %v11216, 8
  %v11842 = vpop.permute.xlu0 %11841
  %11843 = vrot.lane.b32.xlu0 %v11284, 8
  %v11844 = vpop.permute.xlu0 %11843
  %11845 = vrot.lane.b32.xlu0 %v11352, 8
  %v11846 = vpop.permute.xlu0 %11845
  %11847 = vrot.lane.b32.xlu0 %v11420, 8
  %v11848 = vpop.permute.xlu0 %11847
  %11849 = vrot.lane.b32.xlu0 %v11488, 8
  %v11850 = vpop.permute.xlu0 %11849
  %11851 = vrot.lane.b32.xlu0 %v11556, 8
  %v11852 = vpop.permute.xlu0 %11851
  %11853 = vrot.lane.b32.xlu0 %v11624, 8
  %v11854 = vpop.permute.xlu0 %11853
  %11855 = vrot.lane.b32.xlu0 %v11692, 8
  %v11856 = vpop.permute.xlu0 %11855
  %11857 = vrot.lane.b32.xlu0 %v11760, 8
  %v11858 = vpop.permute.xlu0 %11857
  %11923 = vrot.lane.b32.xlu0 %v9653, 16
  %v11924 = vpop.permute.xlu0 %11923
  %11925 = vrot.lane.b32.xlu0 %v9721, 16
  %v11926 = vpop.permute.xlu0 %11925
  %11927 = vrot.lane.b32.xlu0 %v9789, 16
  %v11928 = vpop.permute.xlu0 %11927
  %11929 = vrot.lane.b32.xlu0 %v9857, 16
  %v11930 = vpop.permute.xlu0 %11929
  %11931 = vrot.lane.b32.xlu0 %v9925, 16
  %v11932 = vpop.permute.xlu0 %11931
  %11933 = vrot.lane.b32.xlu0 %v9993, 16
  %v11934 = vpop.permute.xlu0 %11933
  %11935 = vrot.lane.b32.xlu0 %v10061, 16
  %v11936 = vpop.permute.xlu0 %11935
  %11937 = vrot.lane.b32.xlu0 %v10129, 16
  %v11938 = vpop.permute.xlu0 %11937
  %11939 = vrot.lane.b32.xlu0 %v10197, 16
  %v11940 = vpop.permute.xlu0 %11939
  %11941 = vrot.lane.b32.xlu0 %v10265, 16
  %v11942 = vpop.permute.xlu0 %11941
  %11943 = vrot.lane.b32.xlu0 %v10333, 16
  %v11944 = vpop.permute.xlu0 %11943
  %11945 = vrot.lane.b32.xlu0 %v10401, 16
  %v11946 = vpop.permute.xlu0 %11945
  %11947 = vrot.lane.b32.xlu0 %v10469, 16
  %v11948 = vpop.permute.xlu0 %11947
  %11949 = vrot.lane.b32.xlu0 %v10537, 16
  %v11950 = vpop.permute.xlu0 %11949
  %11951 = vrot.lane.b32.xlu0 %v10605, 16
  %v11952 = vpop.permute.xlu0 %11951
  %11953 = vrot.lane.b32.xlu0 %v10673, 16
  %v11954 = vpop.permute.xlu0 %11953
  %11955 = vrot.lane.b32.xlu0 %v10741, 16
  %v11956 = vpop.permute.xlu0 %11955
  %11957 = vrot.lane.b32.xlu0 %v10809, 16
  %v11958 = vpop.permute.xlu0 %11957
  %11959 = vrot.lane.b32.xlu0 %v10877, 16
  %v11960 = vpop.permute.xlu0 %11959
  %11961 = vrot.lane.b32.xlu0 %v10945, 16
  %v11962 = vpop.permute.xlu0 %11961
  %11963 = vrot.lane.b32.xlu0 %v11013, 16
  %v11964 = vpop.permute.xlu0 %11963
  %11965 = vrot.lane.b32.xlu0 %v11081, 16
  %v11966 = vpop.permute.xlu0 %11965
  %11967 = vrot.lane.b32.xlu0 %v11149, 16
  %v11968 = vpop.permute.xlu0 %11967
  %11969 = vrot.lane.b32.xlu0 %v11217, 16
  %v11970 = vpop.permute.xlu0 %11969
  %11971 = vrot.lane.b32.xlu0 %v11285, 16
  %v11972 = vpop.permute.xlu0 %11971
  %11973 = vrot.lane.b32.xlu0 %v11353, 16
  %v11974 = vpop.permute.xlu0 %11973
  %11975 = vrot.lane.b32.xlu0 %v11421, 16
  %v11976 = vpop.permute.xlu0 %11975
  %11977 = vrot.lane.b32.xlu0 %v11489, 16
  %v11978 = vpop.permute.xlu0 %11977
  %11979 = vrot.lane.b32.xlu0 %v11557, 16
  %v11980 = vpop.permute.xlu0 %11979
  %11981 = vrot.lane.b32.xlu0 %v11625, 16
  %v11982 = vpop.permute.xlu0 %11981
  %11983 = vrot.lane.b32.xlu0 %v11693, 16
  %v11984 = vpop.permute.xlu0 %11983
  %11985 = vrot.lane.b32.xlu0 %v11761, 16
  %v11986 = vpop.permute.xlu0 %11985
  %12051 = vrot.lane.b32.xlu0 %v9654, 24
  %v12052 = vpop.permute.xlu0 %12051
  %12053 = vrot.lane.b32.xlu0 %v9722, 24
  %v12054 = vpop.permute.xlu0 %12053
  %12055 = vrot.lane.b32.xlu0 %v9790, 24
  %v12056 = vpop.permute.xlu0 %12055
  %12057 = vrot.lane.b32.xlu0 %v9858, 24
  %v12058 = vpop.permute.xlu0 %12057
  %12059 = vrot.lane.b32.xlu0 %v9926, 24
  %v12060 = vpop.permute.xlu0 %12059
  %12061 = vrot.lane.b32.xlu0 %v9994, 24
  %v12062 = vpop.permute.xlu0 %12061
  %12063 = vrot.lane.b32.xlu0 %v10062, 24
  %v12064 = vpop.permute.xlu0 %12063
  %12065 = vrot.lane.b32.xlu0 %v10130, 24
  %v12066 = vpop.permute.xlu0 %12065
  %12067 = vrot.lane.b32.xlu0 %v10198, 24
  %v12068 = vpop.permute.xlu0 %12067
  %12069 = vrot.lane.b32.xlu0 %v10266, 24
  %v12070 = vpop.permute.xlu0 %12069
  %12071 = vrot.lane.b32.xlu0 %v10334, 24
  %v12072 = vpop.permute.xlu0 %12071
  %12073 = vrot.lane.b32.xlu0 %v10402, 24
  %v12074 = vpop.permute.xlu0 %12073
  %12075 = vrot.lane.b32.xlu0 %v10470, 24
  %v12076 = vpop.permute.xlu0 %12075
  %12077 = vrot.lane.b32.xlu0 %v10538, 24
  %v12078 = vpop.permute.xlu0 %12077
  %12079 = vrot.lane.b32.xlu0 %v10606, 24
  %v12080 = vpop.permute.xlu0 %12079
  %12081 = vrot.lane.b32.xlu0 %v10674, 24
  %v12082 = vpop.permute.xlu0 %12081
  %12083 = vrot.lane.b32.xlu0 %v10742, 24
  %v12084 = vpop.permute.xlu0 %12083
  %12085 = vrot.lane.b32.xlu0 %v10810, 24
  %v12086 = vpop.permute.xlu0 %12085
  %12087 = vrot.lane.b32.xlu0 %v10878, 24
  %v12088 = vpop.permute.xlu0 %12087
  %12089 = vrot.lane.b32.xlu0 %v10946, 24
  %v12090 = vpop.permute.xlu0 %12089
  %12091 = vrot.lane.b32.xlu0 %v11014, 24
  %v12092 = vpop.permute.xlu0 %12091
  %12093 = vrot.lane.b32.xlu0 %v11082, 24
  %v12094 = vpop.permute.xlu0 %12093
  %12095 = vrot.lane.b32.xlu0 %v11150, 24
  %v12096 = vpop.permute.xlu0 %12095
  %12097 = vrot.lane.b32.xlu0 %v11218, 24
  %v12098 = vpop.permute.xlu0 %12097
  %12099 = vrot.lane.b32.xlu0 %v11286, 24
  %v12100 = vpop.permute.xlu0 %12099
  %12101 = vrot.lane.b32.xlu0 %v11354, 24
  %v12102 = vpop.permute.xlu0 %12101
  %12103 = vrot.lane.b32.xlu0 %v11422, 24
  %v12104 = vpop.permute.xlu0 %12103
  %12105 = vrot.lane.b32.xlu0 %v11490, 24
  %v12106 = vpop.permute.xlu0 %12105
  %12107 = vrot.lane.b32.xlu0 %v11558, 24
  %v12108 = vpop.permute.xlu0 %12107
  %12109 = vrot.lane.b32.xlu0 %v11626, 24
  %v12110 = vpop.permute.xlu0 %12109
  %12111 = vrot.lane.b32.xlu0 %v11694, 24
  %v12112 = vpop.permute.xlu0 %12111
  %12113 = vrot.lane.b32.xlu0 %v11762, 24
  %v12114 = vpop.permute.xlu0 %12113
  %v12147 = vsel %vm974, %v9651, %v11796
  %v12148 = vsel %vm974, %v9719, %v11798
  %v12149 = vsel %vm974, %v9787, %v11800
  %v12150 = vsel %vm974, %v9855, %v11802
  %v12151 = vsel %vm974, %v9923, %v11804
  %v12152 = vsel %vm974, %v9991, %v11806
  %v12153 = vsel %vm974, %v10059, %v11808
  %v12154 = vsel %vm974, %v10127, %v11810
  %v12155 = vsel %vm974, %v10195, %v11812
  %v12156 = vsel %vm974, %v10263, %v11814
  %v12157 = vsel %vm974, %v10331, %v11816
  %v12158 = vsel %vm974, %v10399, %v11818
  %v12159 = vsel %vm974, %v10467, %v11820
  %v12160 = vsel %vm974, %v10535, %v11822
  %v12161 = vsel %vm974, %v10603, %v11824
  %v12162 = vsel %vm974, %v10671, %v11826
  %v12163 = vsel %vm974, %v10739, %v11828
  %v12164 = vsel %vm974, %v10807, %v11830
  %v12165 = vsel %vm974, %v10875, %v11832
  %v12166 = vsel %vm974, %v10943, %v11834
  %v12167 = vsel %vm974, %v11011, %v11836
  %v12168 = vsel %vm974, %v11079, %v11838
  %v12169 = vsel %vm974, %v11147, %v11840
  %v12170 = vsel %vm974, %v11215, %v11842
  %v12171 = vsel %vm974, %v11283, %v11844
  %v12172 = vsel %vm974, %v11351, %v11846
  %v12173 = vsel %vm974, %v11419, %v11848
  %v12174 = vsel %vm974, %v11487, %v11850
  %v12175 = vsel %vm974, %v11555, %v11852
  %v12176 = vsel %vm974, %v11623, %v11854
  %v12177 = vsel %vm974, %v11691, %v11856
  %v12178 = vsel %vm974, %v11759, %v11858
  %vm12179 = vcmask 130048
  %v12180 = vsel %vm12179, %v12147, %v11924
  %v12181 = vsel %vm12179, %v12148, %v11926
  %v12182 = vsel %vm12179, %v12149, %v11928
  %v12183 = vsel %vm12179, %v12150, %v11930
  %v12184 = vsel %vm12179, %v12151, %v11932
  %v12185 = vsel %vm12179, %v12152, %v11934
  %v12186 = vsel %vm12179, %v12153, %v11936
  %v12187 = vsel %vm12179, %v12154, %v11938
  %v12188 = vsel %vm12179, %v12155, %v11940
  %v12189 = vsel %vm12179, %v12156, %v11942
  %v12190 = vsel %vm12179, %v12157, %v11944
  %v12191 = vsel %vm12179, %v12158, %v11946
  %v12192 = vsel %vm12179, %v12159, %v11948
  %v12193 = vsel %vm12179, %v12160, %v11950
  %v12194 = vsel %vm12179, %v12161, %v11952
  %v12195 = vsel %vm12179, %v12162, %v11954
  %v12196 = vsel %vm12179, %v12163, %v11956
  %v12197 = vsel %vm12179, %v12164, %v11958
  %v12198 = vsel %vm12179, %v12165, %v11960
  %v12199 = vsel %vm12179, %v12166, %v11962
  %v12200 = vsel %vm12179, %v12167, %v11964
  %v12201 = vsel %vm12179, %v12168, %v11966
  %v12202 = vsel %vm12179, %v12169, %v11968
  %v12203 = vsel %vm12179, %v12170, %v11970
  %v12204 = vsel %vm12179, %v12171, %v11972
  %v12205 = vsel %vm12179, %v12172, %v11974
  %v12206 = vsel %vm12179, %v12173, %v11976
  %v12207 = vsel %vm12179, %v12174, %v11978
  %v12208 = vsel %vm12179, %v12175, %v11980
  %v12209 = vsel %vm12179, %v12176, %v11982
  %v12210 = vsel %vm12179, %v12177, %v11984
  %v12211 = vsel %vm12179, %v12178, %v11986
  %vm12212 = vcmask 195584
  %v12213 = vsel %vm12212, %v12180, %v12052
  %v12214 = vsel %vm12212, %v12181, %v12054
  %v12215 = vsel %vm12212, %v12182, %v12056
  %v12216 = vsel %vm12212, %v12183, %v12058
  %v12217 = vsel %vm12212, %v12184, %v12060
  %v12218 = vsel %vm12212, %v12185, %v12062
  %v12219 = vsel %vm12212, %v12186, %v12064
  %v12220 = vsel %vm12212, %v12187, %v12066
  %v12221 = vsel %vm12212, %v12188, %v12068
  %v12222 = vsel %vm12212, %v12189, %v12070
  %v12223 = vsel %vm12212, %v12190, %v12072
  %v12224 = vsel %vm12212, %v12191, %v12074
  %v12225 = vsel %vm12212, %v12192, %v12076
  %v12226 = vsel %vm12212, %v12193, %v12078
  %v12227 = vsel %vm12212, %v12194, %v12080
  %v12228 = vsel %vm12212, %v12195, %v12082
  %v12229 = vsel %vm12212, %v12196, %v12084
  %v12230 = vsel %vm12212, %v12197, %v12086
  %v12231 = vsel %vm12212, %v12198, %v12088
  %v12232 = vsel %vm12212, %v12199, %v12090
  %v12233 = vsel %vm12212, %v12200, %v12092
  %v12234 = vsel %vm12212, %v12201, %v12094
  %v12235 = vsel %vm12212, %v12202, %v12096
  %v12236 = vsel %vm12212, %v12203, %v12098
  %v12237 = vsel %vm12212, %v12204, %v12100
  %v12238 = vsel %vm12212, %v12205, %v12102
  %v12239 = vsel %vm12212, %v12206, %v12104
  %v12240 = vsel %vm12212, %v12207, %v12106
  %v12241 = vsel %vm12212, %v12208, %v12108
  %v12242 = vsel %vm12212, %v12209, %v12110
  %v12243 = vsel %vm12212, %v12210, %v12112
  %v12244 = vsel %vm12212, %v12211, %v12114
  %v12245 = vadd.f32 %v45, %v12213
  %v12246 = vadd.f32 %v46, %v12214
  %v12247 = vadd.f32 %v47, %v12215
  %v12248 = vadd.f32 %v48, %v12216
  %v12249 = vadd.f32 %v49, %v12217
  %v12250 = vadd.f32 %v50, %v12218
  %v12251 = vadd.f32 %v51, %v12219
  %v12252 = vadd.f32 %v52, %v12220
  %v12253 = vadd.f32 %v53, %v12221
  %v12254 = vadd.f32 %v54, %v12222
  %v12255 = vadd.f32 %v55, %v12223
  %v12256 = vadd.f32 %v56, %v12224
  %v12257 = vadd.f32 %v57, %v12225
  %v12258 = vadd.f32 %v58, %v12226
  %v12259 = vadd.f32 %v59, %v12227
  %v12260 = vadd.f32 %v60, %v12228
  %v12261 = vadd.f32 %v61, %v12229
  %v12262 = vadd.f32 %v62, %v12230
  %v12263 = vadd.f32 %v63, %v12231
  %v12264 = vadd.f32 %v64, %v12232
  %v12265 = vadd.f32 %v65, %v12233
  %v12266 = vadd.f32 %v66, %v12234
  %v12267 = vadd.f32 %v67, %v12235
  %v12268 = vadd.f32 %v68, %v12236
  %v12269 = vadd.f32 %v69, %v12237
  %v12270 = vadd.f32 %v70, %v12238
  %v12271 = vadd.f32 %v71, %v12239
  %v12272 = vadd.f32 %v72, %v12240
  %v12273 = vadd.f32 %v73, %v12241
  %v12274 = vadd.f32 %v74, %v12242
  %v12275 = vadd.f32 %v75, %v12243
  %v12276 = vadd.f32 %v76, %v12244
  %v12277 = vsel %vm116, %v12245, 0.0
  %v12278 = vsel %vm116, %v12246, 0.0
  %v12279 = vadd.f32 %v12277, %v12278
  %v12280 = vsel %vm116, %v12247, 0.0
  %v12281 = vadd.f32 %v12279, %v12280
  %v12282 = vsel %vm116, %v12248, 0.0
  %v12283 = vadd.f32 %v12281, %v12282
  %v12284 = vsel %vm116, %v12249, 0.0
  %v12285 = vadd.f32 %v12283, %v12284
  %v12286 = vsel %vm116, %v12250, 0.0
  %v12287 = vadd.f32 %v12285, %v12286
  %v12288 = vsel %vm116, %v12251, 0.0
  %v12289 = vadd.f32 %v12287, %v12288
  %v12290 = vsel %vm116, %v12252, 0.0
  %v12291 = vadd.f32 %v12289, %v12290
  %v12292 = vsel %vm116, %v12253, 0.0
  %v12293 = vadd.f32 %v12291, %v12292
  %v12294 = vsel %vm116, %v12254, 0.0
  %v12295 = vadd.f32 %v12293, %v12294
  %v12296 = vsel %vm116, %v12255, 0.0
  %v12297 = vadd.f32 %v12295, %v12296
  %v12298 = vsel %vm116, %v12256, 0.0
  %v12299 = vadd.f32 %v12297, %v12298
  %v12300 = vsel %vm116, %v12257, 0.0
  %v12301 = vadd.f32 %v12299, %v12300
  %v12302 = vsel %vm116, %v12258, 0.0
  %v12303 = vadd.f32 %v12301, %v12302
  %v12304 = vsel %vm116, %v12259, 0.0
  %v12305 = vadd.f32 %v12303, %v12304
  %v12306 = vsel %vm116, %v12260, 0.0
  %v12307 = vadd.f32 %v12305, %v12306
  %v12308 = vsel %vm116, %v12261, 0.0
  %v12309 = vadd.f32 %v12307, %v12308
  %v12310 = vsel %vm116, %v12262, 0.0
  %v12311 = vadd.f32 %v12309, %v12310
  %v12312 = vsel %vm116, %v12263, 0.0
  %v12313 = vadd.f32 %v12311, %v12312
  %v12314 = vsel %vm116, %v12264, 0.0
  %v12315 = vadd.f32 %v12313, %v12314
  %v12316 = vsel %vm116, %v12265, 0.0
  %v12317 = vadd.f32 %v12315, %v12316
  %v12318 = vsel %vm116, %v12266, 0.0
  %v12319 = vadd.f32 %v12317, %v12318
  %v12320 = vsel %vm116, %v12267, 0.0
  %v12321 = vadd.f32 %v12319, %v12320
  %v12322 = vsel %vm116, %v12268, 0.0
  %v12323 = vadd.f32 %v12321, %v12322
  %v12324 = vsel %vm116, %v12269, 0.0
  %v12325 = vadd.f32 %v12323, %v12324
  %v12326 = vsel %vm116, %v12270, 0.0
  %v12327 = vadd.f32 %v12325, %v12326
  %v12328 = vsel %vm116, %v12271, 0.0
  %v12329 = vadd.f32 %v12327, %v12328
  %v12330 = vsel %vm116, %v12272, 0.0
  %v12331 = vadd.f32 %v12329, %v12330
  %v12332 = vsel %vm116, %v12273, 0.0
  %v12333 = vadd.f32 %v12331, %v12332
  %v12334 = vsel %vm116, %v12274, 0.0
  %v12335 = vadd.f32 %v12333, %v12334
  %v12336 = vsel %vm116, %v12275, 0.0
  %v12337 = vadd.f32 %v12335, %v12336
  %v12338 = vsel %vm116, %v12276, 0.0
  %v12339 = vadd.f32 %v12337, %v12338
  %v12340 = vrot.slane %v12339, 4
  %v12341 = vadd.f32 %v12339, %v12340
  %v12342 = vrot.slane %v12341, 2
  %v12343 = vadd.f32 %v12341, %v12342
  %v12344 = vrot.slane %v12343, 1
  %v12345 = vadd.f32 %v12343, %v12344
  %v12346 = vrcp.pop 256.0
  %v12347 = vmul.f32 %v12345, %v12346
  %v12348 = vsub.f32 %v12245, %v12347
  %v12349 = vsub.f32 %v12246, %v12347
  %v12350 = vsub.f32 %v12247, %v12347
  %v12351 = vsub.f32 %v12248, %v12347
  %v12352 = vsub.f32 %v12249, %v12347
  %v12353 = vsub.f32 %v12250, %v12347
  %v12354 = vsub.f32 %v12251, %v12347
  %v12355 = vsub.f32 %v12252, %v12347
  %v12356 = vsub.f32 %v12253, %v12347
  %v12357 = vsub.f32 %v12254, %v12347
  %v12358 = vsub.f32 %v12255, %v12347
  %v12359 = vsub.f32 %v12256, %v12347
  %v12360 = vsub.f32 %v12257, %v12347
  %v12361 = vsub.f32 %v12258, %v12347
  %v12362 = vsub.f32 %v12259, %v12347
  %v12363 = vsub.f32 %v12260, %v12347
  %v12364 = vsub.f32 %v12261, %v12347
  %v12365 = vsub.f32 %v12262, %v12347
  %v12366 = vsub.f32 %v12263, %v12347
  %v12367 = vsub.f32 %v12264, %v12347
  %v12368 = vsub.f32 %v12265, %v12347
  %v12369 = vsub.f32 %v12266, %v12347
  %v12370 = vsub.f32 %v12267, %v12347
  %v12371 = vsub.f32 %v12268, %v12347
  %v12372 = vsub.f32 %v12269, %v12347
  %v12373 = vsub.f32 %v12270, %v12347
  %v12374 = vsub.f32 %v12271, %v12347
  %v12375 = vsub.f32 %v12272, %v12347
  %v12376 = vsub.f32 %v12273, %v12347
  %v12377 = vsub.f32 %v12274, %v12347
  %v12378 = vsub.f32 %v12275, %v12347
  %v12379 = vsub.f32 %v12276, %v12347
  %v12380 = vmul.f32 %v12348, %v12348
  %v12381 = vmul.f32 %v12349, %v12349
  %v12382 = vmul.f32 %v12350, %v12350
  %v12383 = vmul.f32 %v12351, %v12351
  %v12384 = vmul.f32 %v12352, %v12352
  %v12385 = vmul.f32 %v12353, %v12353
  %v12386 = vmul.f32 %v12354, %v12354
  %v12387 = vmul.f32 %v12355, %v12355
  %v12388 = vmul.f32 %v12356, %v12356
  %v12389 = vmul.f32 %v12357, %v12357
  %v12390 = vmul.f32 %v12358, %v12358
  %v12391 = vmul.f32 %v12359, %v12359
  %v12392 = vmul.f32 %v12360, %v12360
  %v12393 = vmul.f32 %v12361, %v12361
  %v12394 = vmul.f32 %v12362, %v12362
  %v12395 = vmul.f32 %v12363, %v12363
  %v12396 = vmul.f32 %v12364, %v12364
  %v12397 = vmul.f32 %v12365, %v12365
  %v12398 = vmul.f32 %v12366, %v12366
  %v12399 = vmul.f32 %v12367, %v12367
  %v12400 = vmul.f32 %v12368, %v12368
  %v12401 = vmul.f32 %v12369, %v12369
  %v12402 = vmul.f32 %v12370, %v12370
  %v12403 = vmul.f32 %v12371, %v12371
  %v12404 = vmul.f32 %v12372, %v12372
  %v12405 = vmul.f32 %v12373, %v12373
  %v12406 = vmul.f32 %v12374, %v12374
  %v12407 = vmul.f32 %v12375, %v12375
  %v12408 = vmul.f32 %v12376, %v12376
  %v12409 = vmul.f32 %v12377, %v12377
  %v12410 = vmul.f32 %v12378, %v12378
  %v12411 = vmul.f32 %v12379, %v12379
  %v12412 = vsel %vm116, %v12380, 0.0
  %v12413 = vsel %vm116, %v12381, 0.0
  %v12414 = vadd.f32 %v12412, %v12413
  %v12415 = vsel %vm116, %v12382, 0.0
  %v12416 = vadd.f32 %v12414, %v12415
  %v12417 = vsel %vm116, %v12383, 0.0
  %v12418 = vadd.f32 %v12416, %v12417
  %v12419 = vsel %vm116, %v12384, 0.0
  %v12420 = vadd.f32 %v12418, %v12419
  %v12421 = vsel %vm116, %v12385, 0.0
  %v12422 = vadd.f32 %v12420, %v12421
  %v12423 = vsel %vm116, %v12386, 0.0
  %v12424 = vadd.f32 %v12422, %v12423
  %v12425 = vsel %vm116, %v12387, 0.0
  %v12426 = vadd.f32 %v12424, %v12425
  %v12427 = vsel %vm116, %v12388, 0.0
  %v12428 = vadd.f32 %v12426, %v12427
  %v12429 = vsel %vm116, %v12389, 0.0
  %v12430 = vadd.f32 %v12428, %v12429
  %v12431 = vsel %vm116, %v12390, 0.0
  %v12432 = vadd.f32 %v12430, %v12431
  %v12433 = vsel %vm116, %v12391, 0.0
  %v12434 = vadd.f32 %v12432, %v12433
  %v12435 = vsel %vm116, %v12392, 0.0
  %v12436 = vadd.f32 %v12434, %v12435
  %v12437 = vsel %vm116, %v12393, 0.0
  %v12438 = vadd.f32 %v12436, %v12437
  %v12439 = vsel %vm116, %v12394, 0.0
  %v12440 = vadd.f32 %v12438, %v12439
  %v12441 = vsel %vm116, %v12395, 0.0
  %v12442 = vadd.f32 %v12440, %v12441
  %v12443 = vsel %vm116, %v12396, 0.0
  %v12444 = vadd.f32 %v12442, %v12443
  %v12445 = vsel %vm116, %v12397, 0.0
  %v12446 = vadd.f32 %v12444, %v12445
  %v12447 = vsel %vm116, %v12398, 0.0
  %v12448 = vadd.f32 %v12446, %v12447
  %v12449 = vsel %vm116, %v12399, 0.0
  %v12450 = vadd.f32 %v12448, %v12449
  %v12451 = vsel %vm116, %v12400, 0.0
  %v12452 = vadd.f32 %v12450, %v12451
  %v12453 = vsel %vm116, %v12401, 0.0
  %v12454 = vadd.f32 %v12452, %v12453
  %v12455 = vsel %vm116, %v12402, 0.0
  %v12456 = vadd.f32 %v12454, %v12455
  %v12457 = vsel %vm116, %v12403, 0.0
  %v12458 = vadd.f32 %v12456, %v12457
  %v12459 = vsel %vm116, %v12404, 0.0
  %v12460 = vadd.f32 %v12458, %v12459
  %v12461 = vsel %vm116, %v12405, 0.0
  %v12462 = vadd.f32 %v12460, %v12461
  %v12463 = vsel %vm116, %v12406, 0.0
  %v12464 = vadd.f32 %v12462, %v12463
  %v12465 = vsel %vm116, %v12407, 0.0
  %v12466 = vadd.f32 %v12464, %v12465
  %v12467 = vsel %vm116, %v12408, 0.0
  %v12468 = vadd.f32 %v12466, %v12467
  %v12469 = vsel %vm116, %v12409, 0.0
  %v12470 = vadd.f32 %v12468, %v12469
  %v12471 = vsel %vm116, %v12410, 0.0
  %v12472 = vadd.f32 %v12470, %v12471
  %v12473 = vsel %vm116, %v12411, 0.0
  %v12474 = vadd.f32 %v12472, %v12473
  %v12475 = vrot.slane %v12474, 4
  %v12476 = vadd.f32 %v12474, %v12475
  %v12477 = vrot.slane %v12476, 2
  %v12478 = vadd.f32 %v12476, %v12477
  %v12479 = vrot.slane %v12478, 1
  %v12480 = vadd.f32 %v12478, %v12479
  %v12481 = vmul.f32 %v12480, %v12346
  %v12482 = vadd.f32 %v12481, 1e-05
  %v12483 = vrsqrt.pop %v12482
  %v12484 = vmul.f32 %v12348, %v12483
  %v12485 = vmul.f32 %v12349, %v12483
  %v12486 = vmul.f32 %v12350, %v12483
  %v12487 = vmul.f32 %v12351, %v12483
  %v12488 = vmul.f32 %v12352, %v12483
  %v12489 = vmul.f32 %v12353, %v12483
  %v12490 = vmul.f32 %v12354, %v12483
  %v12491 = vmul.f32 %v12355, %v12483
  %v12492 = vmul.f32 %v12356, %v12483
  %v12493 = vmul.f32 %v12357, %v12483
  %v12494 = vmul.f32 %v12358, %v12483
  %v12495 = vmul.f32 %v12359, %v12483
  %v12496 = vmul.f32 %v12360, %v12483
  %v12497 = vmul.f32 %v12361, %v12483
  %v12498 = vmul.f32 %v12362, %v12483
  %v12499 = vmul.f32 %v12363, %v12483
  %v12500 = vmul.f32 %v12364, %v12483
  %v12501 = vmul.f32 %v12365, %v12483
  %v12502 = vmul.f32 %v12366, %v12483
  %v12503 = vmul.f32 %v12367, %v12483
  %v12504 = vmul.f32 %v12368, %v12483
  %v12505 = vmul.f32 %v12369, %v12483
  %v12506 = vmul.f32 %v12370, %v12483
  %v12507 = vmul.f32 %v12371, %v12483
  %v12508 = vmul.f32 %v12372, %v12483
  %v12509 = vmul.f32 %v12373, %v12483
  %v12510 = vmul.f32 %v12374, %v12483
  %v12511 = vmul.f32 %v12375, %v12483
  %v12512 = vmul.f32 %v12376, %v12483
  %v12513 = vmul.f32 %v12377, %v12483
  %v12514 = vmul.f32 %v12378, %v12483
  %v12515 = vmul.f32 %v12379, %v12483
  %v12516 = vld [vmem:[%s5] sm:$0x1]
  %v12518 = vlaneseq
  %v12519 = vshrl.u32 %v12518, 7
  %v12520 = vsub.s32 0, %v12519
  %v12521 = vrot.slane %v12516, %v12520
  %v12523 = vmul.f32 %v12484, %v12521
  %v12524 = vmul.f32 %v12485, %v12521
  %v12525 = vmul.f32 %v12486, %v12521
  %v12526 = vmul.f32 %v12487, %v12521
  %v12527 = vmul.f32 %v12488, %v12521
  %v12528 = vmul.f32 %v12489, %v12521
  %v12529 = vmul.f32 %v12490, %v12521
  %v12530 = vmul.f32 %v12491, %v12521
  %v12531 = vmul.f32 %v12492, %v12521
  %v12532 = vmul.f32 %v12493, %v12521
  %v12533 = vmul.f32 %v12494, %v12521
  %v12534 = vmul.f32 %v12495, %v12521
  %v12535 = vmul.f32 %v12496, %v12521
  %v12536 = vmul.f32 %v12497, %v12521
  %v12537 = vmul.f32 %v12498, %v12521
  %v12538 = vmul.f32 %v12499, %v12521
  %v12539 = vmul.f32 %v12500, %v12521
  %v12540 = vmul.f32 %v12501, %v12521
  %v12541 = vmul.f32 %v12502, %v12521
  %v12542 = vmul.f32 %v12503, %v12521
  %v12543 = vmul.f32 %v12504, %v12521
  %v12544 = vmul.f32 %v12505, %v12521
  %v12545 = vmul.f32 %v12506, %v12521
  %v12546 = vmul.f32 %v12507, %v12521
  %v12547 = vmul.f32 %v12508, %v12521
  %v12548 = vmul.f32 %v12509, %v12521
  %v12549 = vmul.f32 %v12510, %v12521
  %v12550 = vmul.f32 %v12511, %v12521
  %v12551 = vmul.f32 %v12512, %v12521
  %v12552 = vmul.f32 %v12513, %v12521
  %v12553 = vmul.f32 %v12514, %v12521
  %v12554 = vmul.f32 %v12515, %v12521
  %v12555 = vld [vmem:[%s6] sm:$0x1]
  %v12557 = vlaneseq
  %v12558 = vshrl.u32 %v12557, 7
  %v12559 = vsub.s32 0, %v12558
  %v12560 = vrot.slane %v12555, %v12559
  %v12562 = vadd.f32 %v12523, %v12560
  %v12563 = vadd.f32 %v12524, %v12560
  %v12564 = vadd.f32 %v12525, %v12560
  %v12565 = vadd.f32 %v12526, %v12560
  %v12566 = vadd.f32 %v12527, %v12560
  %v12567 = vadd.f32 %v12528, %v12560
  %v12568 = vadd.f32 %v12529, %v12560
  %v12569 = vadd.f32 %v12530, %v12560
  %v12570 = vadd.f32 %v12531, %v12560
  %v12571 = vadd.f32 %v12532, %v12560
  %v12572 = vadd.f32 %v12533, %v12560
  %v12573 = vadd.f32 %v12534, %v12560
  %v12574 = vadd.f32 %v12535, %v12560
  %v12575 = vadd.f32 %v12536, %v12560
  %v12576 = vadd.f32 %v12537, %v12560
  %v12577 = vadd.f32 %v12538, %v12560
  %v12578 = vadd.f32 %v12539, %v12560
  %v12579 = vadd.f32 %v12540, %v12560
  %v12580 = vadd.f32 %v12541, %v12560
  %v12581 = vadd.f32 %v12542, %v12560
  %v12582 = vadd.f32 %v12543, %v12560
  %v12583 = vadd.f32 %v12544, %v12560
  %v12584 = vadd.f32 %v12545, %v12560
  %v12585 = vadd.f32 %v12546, %v12560
  %v12586 = vadd.f32 %v12547, %v12560
  %v12587 = vadd.f32 %v12548, %v12560
  %v12588 = vadd.f32 %v12549, %v12560
  %v12589 = vadd.f32 %v12550, %v12560
  %v12590 = vadd.f32 %v12551, %v12560
  %v12591 = vadd.f32 %v12552, %v12560
  %v12592 = vadd.f32 %v12553, %v12560
  %v12593 = vadd.f32 %v12554, %v12560
  %v12594 = vpack.c.bf16 %v12563, %v12562
  %v12595 = vpack.c.bf16 %v12565, %v12564
  %v12596 = vpack.c.bf16 %v12567, %v12566
  %v12597 = vpack.c.bf16 %v12569, %v12568
  %v12598 = vpack.c.bf16 %v12571, %v12570
  %v12599 = vpack.c.bf16 %v12573, %v12572
  %v12600 = vpack.c.bf16 %v12575, %v12574
  %v12601 = vpack.c.bf16 %v12577, %v12576
  %v12602 = vpack.c.bf16 %v12579, %v12578
  %v12603 = vpack.c.bf16 %v12581, %v12580
  %v12604 = vpack.c.bf16 %v12583, %v12582
  %v12605 = vpack.c.bf16 %v12585, %v12584
  %v12606 = vpack.c.bf16 %v12587, %v12586
  %v12607 = vpack.c.bf16 %v12589, %v12588
  %v12608 = vpack.c.bf16 %v12591, %v12590
  %v12609 = vpack.c.bf16 %v12593, %v12592
  %v12610 = vld [vmem:[%s9] sm:$0xf]
  %v12611 = vld [vmem:[%s9 + $0x4] sm:$0xf]
  %v12612 = vld [vmem:[%s9 + $0x8] sm:$0xf]
  %v12613 = vld [vmem:[%s9 + $0xc] sm:$0xf]
  %v12614 = vld [vmem:[%s10] sm:$0x1]
  %v12616 = vlaneseq
  %v12617 = vshrl.u32 %v12616, 7
  %v12618 = vsub.s32 0, %v12617
  %v12619 = vrot.slane %v12614, %v12618
  %v12625 = vunpack.c.l.b16 %v12610
  %v12626 = vunpack.c.l.b16 %v12611
  %v12627 = vunpack.c.l.b16 %v12612
  %v12628 = vunpack.c.l.b16 %v12613
  %v12629 = vpack.c.b16 %v12626, %v12625
  %v12630 = vpack.c.b16 %v12628, %v12627
  %v12634 = vsel %vm116, %v12594, 0
  %v12637 = vsel %vm116, %v12595, 0
  %v12640 = vsel %vm116, %v12596, 0
  %v12643 = vsel %vm116, %v12597, 0
  %v12646 = vsel %vm116, %v12598, 0
  %v12649 = vsel %vm116, %v12599, 0
  %v12652 = vsel %vm116, %v12600, 0
  %v12655 = vsel %vm116, %v12601, 0
  %v12658 = vsel %vm116, %v12602, 0
  %v12661 = vsel %vm116, %v12603, 0
  %v12664 = vsel %vm116, %v12604, 0
  %v12667 = vsel %vm116, %v12605, 0
  %v12670 = vsel %vm116, %v12606, 0
  %v12673 = vsel %vm116, %v12607, 0
  %v12676 = vsel %vm116, %v12608, 0
  %v12679 = vsel %vm116, %v12609, 0
  %12681 = vmatprep.subr.bf16.mxu0 0
  %12682 = vmatpush1.bf16.msra.mxu0 0
  %12683 = vmatprep.subr.bf16.mxu0 0
  %12684 = vmatpush1.bf16.msra.mxu0 0
  %12685 = vmatprep.subr.bf16.mxu0 0
  %12686 = vmatpush1.bf16.msra.mxu0 0
  %12687 = vmatprep.subr.bf16.mxu0 0
  %12688 = vmatpush1.bf16.msra.mxu0 0
  %12689 = vmatprep.subr.bf16.mxu0 0
  %12690 = vmatpush1.bf16.msra.mxu0 0
  %12691 = vmatprep.subr.bf16.mxu0 0
  %12692 = vmatpush1.bf16.msra.mxu0 0
  %12693 = vmatprep.subr.bf16.mxu0 0
  %12694 = vmatpush1.bf16.msra.mxu0 %v12630
  %12695 = vmatprep.subr.bf16.mxu0 0
  %12696 = vmatpush1.bf16.msra.mxu0 %v12629
  %12697 = vmatprep.subr.bf16.mxu0 0
  %12698 = vmatpush2.bf16.msra.mxu0 0
  %12699 = vmatprep.subr.bf16.mxu0 0
  %12700 = vmatpush2.bf16.msra.mxu0 0
  %12701 = vmatprep.subr.bf16.mxu0 0
  %12702 = vmatpush2.bf16.msra.mxu0 0
  %12703 = vmatprep.subr.bf16.mxu0 0
  %12704 = vmatpush2.bf16.msra.mxu0 0
  %12705 = vmatprep.subr.bf16.mxu0 0
  %12706 = vmatpush2.bf16.msra.mxu0 0
  %12707 = vmatprep.subr.bf16.mxu0 0
  %12708 = vmatpush2.bf16.msra.mxu0 0
  %12709 = vmatprep.subr.bf16.mxu0 0
  %12710 = vmatpush2.bf16.msra.mxu0 0
  %12711 = vmatprep.subr.bf16.mxu0 0
  %12712 = vmatpush2.bf16.msra.mxu0 0
  %12713 = vmatprep.mubr.bf16.mxu0 0
  %12714 = vmatmul.mubr.bf16.gmra.mxu0 %v12634
  %v12715 = vpop.f32.mrf.mxu0
  %v12716 = vadd.f32 %v12619, %v12715
  %v12717 = vpop.f32.mrf.mxu0
  %v12718 = vpop.f32.mrf.mxu0
  %v12719 = vadd.f32 %v12619, %v12718
  %v12720 = vpop.f32.mrf.mxu0
  %12721 = vmatprep.mubr.bf16.mxu0 0
  %12722 = vmatmul.mubr.bf16.gmra.mxu0 %v12637
  %v12723 = vpop.f32.mrf.mxu0
  %v12724 = vadd.f32 %v12619, %v12723
  %v12725 = vpop.f32.mrf.mxu0
  %v12726 = vpop.f32.mrf.mxu0
  %v12727 = vadd.f32 %v12619, %v12726
  %v12728 = vpop.f32.mrf.mxu0
  %12729 = vmatprep.mubr.bf16.mxu0 0
  %12730 = vmatmul.mubr.bf16.gmra.mxu0 %v12640
  %v12731 = vpop.f32.mrf.mxu0
  %v12732 = vadd.f32 %v12619, %v12731
  %v12733 = vpop.f32.mrf.mxu0
  %v12734 = vpop.f32.mrf.mxu0
  %v12735 = vadd.f32 %v12619, %v12734
  %v12736 = vpop.f32.mrf.mxu0
  %12737 = vmatprep.mubr.bf16.mxu0 0
  %12738 = vmatmul.mubr.bf16.gmra.mxu0 %v12643
  %v12739 = vpop.f32.mrf.mxu0
  %v12740 = vadd.f32 %v12619, %v12739
  %v12741 = vpop.f32.mrf.mxu0
  %v12742 = vpop.f32.mrf.mxu0
  %v12743 = vadd.f32 %v12619, %v12742
  %v12744 = vpop.f32.mrf.mxu0
  %12745 = vmatprep.mubr.bf16.mxu0 0
  %12746 = vmatmul.mubr.bf16.gmra.mxu0 %v12646
  %v12747 = vpop.f32.mrf.mxu0
  %v12748 = vadd.f32 %v12619, %v12747
  %v12749 = vpop.f32.mrf.mxu0
  %v12750 = vpop.f32.mrf.mxu0
  %v12751 = vadd.f32 %v12619, %v12750
  %v12752 = vpop.f32.mrf.mxu0
  %12753 = vmatprep.mubr.bf16.mxu0 0
  %12754 = vmatmul.mubr.bf16.gmra.mxu0 %v12649
  %v12755 = vpop.f32.mrf.mxu0
  %v12756 = vadd.f32 %v12619, %v12755
  %v12757 = vpop.f32.mrf.mxu0
  %v12758 = vpop.f32.mrf.mxu0
  %v12759 = vadd.f32 %v12619, %v12758
  %v12760 = vpop.f32.mrf.mxu0
  %12761 = vmatprep.mubr.bf16.mxu0 0
  %12762 = vmatmul.mubr.bf16.gmra.mxu0 %v12652
  %v12763 = vpop.f32.mrf.mxu0
  %v12764 = vadd.f32 %v12619, %v12763
  %v12765 = vpop.f32.mrf.mxu0
  %v12766 = vpop.f32.mrf.mxu0
  %v12767 = vadd.f32 %v12619, %v12766
  %v12768 = vpop.f32.mrf.mxu0
  %12769 = vmatprep.mubr.bf16.mxu0 0
  %12770 = vmatmul.mubr.bf16.gmra.mxu0 %v12655
  %v12771 = vpop.f32.mrf.mxu0
  %v12772 = vadd.f32 %v12619, %v12771
  %v12773 = vpop.f32.mrf.mxu0
  %v12774 = vpop.f32.mrf.mxu0
  %v12775 = vadd.f32 %v12619, %v12774
  %v12776 = vpop.f32.mrf.mxu0
  %12777 = vmatprep.mubr.bf16.mxu0 0
  %12778 = vmatmul.mubr.bf16.gmra.mxu0 %v12658
  %v12779 = vpop.f32.mrf.mxu0
  %v12780 = vadd.f32 %v12619, %v12779
  %v12781 = vpop.f32.mrf.mxu0
  %v12782 = vpop.f32.mrf.mxu0
  %v12783 = vadd.f32 %v12619, %v12782
  %v12784 = vpop.f32.mrf.mxu0
  %12785 = vmatprep.mubr.bf16.mxu0 0
  %12786 = vmatmul.mubr.bf16.gmra.mxu0 %v12661
  %v12787 = vpop.f32.mrf.mxu0
  %v12788 = vadd.f32 %v12619, %v12787
  %v12789 = vpop.f32.mrf.mxu0
  %v12790 = vpop.f32.mrf.mxu0
  %v12791 = vadd.f32 %v12619, %v12790
  %v12792 = vpop.f32.mrf.mxu0
  %12793 = vmatprep.mubr.bf16.mxu0 0
  %12794 = vmatmul.mubr.bf16.gmra.mxu0 %v12664
  %v12795 = vpop.f32.mrf.mxu0
  %v12796 = vadd.f32 %v12619, %v12795
  %v12797 = vpop.f32.mrf.mxu0
  %v12798 = vpop.f32.mrf.mxu0
  %v12799 = vadd.f32 %v12619, %v12798
  %v12800 = vpop.f32.mrf.mxu0
  %12801 = vmatprep.mubr.bf16.mxu0 0
  %12802 = vmatmul.mubr.bf16.gmra.mxu0 %v12667
  %v12803 = vpop.f32.mrf.mxu0
  %v12804 = vadd.f32 %v12619, %v12803
  %v12805 = vpop.f32.mrf.mxu0
  %v12806 = vpop.f32.mrf.mxu0
  %v12807 = vadd.f32 %v12619, %v12806
  %v12808 = vpop.f32.mrf.mxu0
  %12809 = vmatprep.mubr.bf16.mxu0 0
  %12810 = vmatmul.mubr.bf16.gmra.mxu0 %v12670
  %v12811 = vpop.f32.mrf.mxu0
  %v12812 = vadd.f32 %v12619, %v12811
  %v12813 = vpop.f32.mrf.mxu0
  %v12814 = vpop.f32.mrf.mxu0
  %v12815 = vadd.f32 %v12619, %v12814
  %v12816 = vpop.f32.mrf.mxu0
  %12817 = vmatprep.mubr.bf16.mxu0 0
  %12818 = vmatmul.mubr.bf16.gmra.mxu0 %v12673
  %v12819 = vpop.f32.mrf.mxu0
  %v12820 = vadd.f32 %v12619, %v12819
  %v12821 = vpop.f32.mrf.mxu0
  %v12822 = vpop.f32.mrf.mxu0
  %v12823 = vadd.f32 %v12619, %v12822
  %v12824 = vpop.f32.mrf.mxu0
  %12825 = vmatprep.mubr.bf16.mxu0 0
  %12826 = vmatmul.mubr.bf16.gmra.mxu0 %v12676
  %v12827 = vpop.f32.mrf.mxu0
  %v12828 = vadd.f32 %v12619, %v12827
  %v12829 = vpop.f32.mrf.mxu0
  %v12830 = vpop.f32.mrf.mxu0
  %v12831 = vadd.f32 %v12619, %v12830
  %v12832 = vpop.f32.mrf.mxu0
  %12833 = vmatprep.mubr.bf16.mxu0 0
  %12834 = vmatmul.mubr.bf16.gmra.mxu0 %v12679
  %v12835 = vpop.f32.mrf.mxu0
  %v12836 = vadd.f32 %v12619, %v12835
  %v12837 = vpop.f32.mrf.mxu0
  %v12838 = vpop.f32.mrf.mxu0
  %v12839 = vadd.f32 %v12619, %v12838
  %v12840 = vpop.f32.mrf.mxu0
  %12841 = vdwg.mxu0
  %v12842 = vmax.f32 %v12716, 0.0
  %v12843 = vmax.f32 %v12719, 0.0
  %v12844 = vmax.f32 %v12724, 0.0
  %v12845 = vmax.f32 %v12727, 0.0
  %v12846 = vmax.f32 %v12732, 0.0
  %v12847 = vmax.f32 %v12735, 0.0
  %v12848 = vmax.f32 %v12740, 0.0
  %v12849 = vmax.f32 %v12743, 0.0
  %v12850 = vmax.f32 %v12748, 0.0
  %v12851 = vmax.f32 %v12751, 0.0
  %v12852 = vmax.f32 %v12756, 0.0
  %v12853 = vmax.f32 %v12759, 0.0
  %v12854 = vmax.f32 %v12764, 0.0
  %v12855 = vmax.f32 %v12767, 0.0
  %v12856 = vmax.f32 %v12772, 0.0
  %v12857 = vmax.f32 %v12775, 0.0
  %v12858 = vmax.f32 %v12780, 0.0
  %v12859 = vmax.f32 %v12783, 0.0
  %v12860 = vmax.f32 %v12788, 0.0
  %v12861 = vmax.f32 %v12791, 0.0
  %v12862 = vmax.f32 %v12796, 0.0
  %v12863 = vmax.f32 %v12799, 0.0
  %v12864 = vmax.f32 %v12804, 0.0
  %v12865 = vmax.f32 %v12807, 0.0
  %v12866 = vmax.f32 %v12812, 0.0
  %v12867 = vmax.f32 %v12815, 0.0
  %v12868 = vmax.f32 %v12820, 0.0
  %v12869 = vmax.f32 %v12823, 0.0
  %v12870 = vmax.f32 %v12828, 0.0
  %v12871 = vmax.f32 %v12831, 0.0
  %v12872 = vmax.f32 %v12836, 0.0
  %v12873 = vmax.f32 %v12839, 0.0
  %v12874 = vpack.c.bf16 %v12843, %v12842
  %v12875 = vpack.c.bf16 %v12845, %v12844
  %v12876 = vpack.c.bf16 %v12847, %v12846
  %v12877 = vpack.c.bf16 %v12849, %v12848
  %v12878 = vpack.c.bf16 %v12851, %v12850
  %v12879 = vpack.c.bf16 %v12853, %v12852
  %v12880 = vpack.c.bf16 %v12855, %v12854
  %v12881 = vpack.c.bf16 %v12857, %v12856
  %v12882 = vpack.c.bf16 %v12859, %v12858
  %v12883 = vpack.c.bf16 %v12861, %v12860
  %v12884 = vpack.c.bf16 %v12863, %v12862
  %v12885 = vpack.c.bf16 %v12865, %v12864
  %v12886 = vpack.c.bf16 %v12867, %v12866
  %v12887 = vpack.c.bf16 %v12869, %v12868
  %v12888 = vpack.c.bf16 %v12871, %v12870
  %v12889 = vpack.c.bf16 %v12873, %v12872
  %v12890 = vld [vmem:[%s11] sm:$0xf]
  %v12891 = vld [vmem:[%s11 + $0x4] sm:$0xf]
  %v12892 = vld [vmem:[%s11 + $0x8] sm:$0xf]
  %v12893 = vld [vmem:[%s11 + $0xc] sm:$0xf]
  %v12894 = vld [vmem:[%s11 + $0x10] sm:$0xf]
  %v12895 = vld [vmem:[%s11 + $0x14] sm:$0xf]
  %v12896 = vld [vmem:[%s11 + $0x18] sm:$0xf]
  %v12897 = vld [vmem:[%s11 + $0x1c] sm:$0xf]
  %v12898 = vld [vmem:[%s12] sm:$0x1]
  %v12900 = vlaneseq
  %v12901 = vshrl.u32 %v12900, 7
  %v12902 = vsub.s32 0, %v12901
  %v12903 = vrot.slane %v12898, %v12902
  %v12913 = vunpack.c.l.b16 %v12890
  %v12914 = vunpack.c.l.b16 %v12891
  %v12915 = vunpack.c.l.b16 %v12892
  %v12916 = vunpack.c.l.b16 %v12893
  %v12917 = vunpack.c.l.b16 %v12894
  %v12918 = vunpack.c.l.b16 %v12895
  %v12919 = vunpack.c.l.b16 %v12896
  %v12920 = vunpack.c.l.b16 %v12897
  %v12921 = vpack.c.b16 %v12914, %v12913
  %v12922 = vpack.c.b16 %v12916, %v12915
  %v12923 = vpack.c.b16 %v12918, %v12917
  %v12924 = vpack.c.b16 %v12920, %v12919
  %vm12929 = vcmask 523264
  %v12931 = vsel %vm12929, %v12874, 0
  %v12934 = vsel %vm12929, %v12875, 0
  %v12937 = vsel %vm12929, %v12876, 0
  %v12940 = vsel %vm12929, %v12877, 0
  %v12943 = vsel %vm12929, %v12878, 0
  %v12946 = vsel %vm12929, %v12879, 0
  %v12949 = vsel %vm12929, %v12880, 0
  %v12952 = vsel %vm12929, %v12881, 0
  %v12955 = vsel %vm12929, %v12882, 0
  %v12958 = vsel %vm12929, %v12883, 0
  %v12961 = vsel %vm12929, %v12884, 0
  %v12964 = vsel %vm12929, %v12885, 0
  %v12967 = vsel %vm12929, %v12886, 0
  %v12970 = vsel %vm12929, %v12887, 0
  %v12973 = vsel %vm12929, %v12888, 0
  %v12976 = vsel %vm12929, %v12889, 0
  %12978 = vmatprep.subr.bf16.mxu0 0
  %12979 = vmatpush1.bf16.msra.mxu0 0
  %12980 = vmatprep.subr.bf16.mxu0 0
  %12981 = vmatpush1.bf16.msra.mxu0 0
  %12982 = vmatprep.subr.bf16.mxu0 0
  %12983 = vmatpush1.bf16.msra.mxu0 0
  %12984 = vmatprep.subr.bf16.mxu0 0
  %12985 = vmatpush1.bf16.msra.mxu0 0
  %12986 = vmatprep.subr.bf16.mxu0 0
  %12987 = vmatpush1.bf16.msra.mxu0 %v12924
  %12988 = vmatprep.subr.bf16.mxu0 0
  %12989 = vmatpush1.bf16.msra.mxu0 %v12923
  %12990 = vmatprep.subr.bf16.mxu0 0
  %12991 = vmatpush1.bf16.msra.mxu0 %v12922
  %12992 = vmatprep.subr.bf16.mxu0 0
  %12993 = vmatpush1.bf16.msra.mxu0 %v12921
  %12994 = vmatprep.subr.bf16.mxu0 0
  %12995 = vmatpush2.bf16.msra.mxu0 0
  %12996 = vmatprep.subr.bf16.mxu0 0
  %12997 = vmatpush2.bf16.msra.mxu0 0
  %12998 = vmatprep.subr.bf16.mxu0 0
  %12999 = vmatpush2.bf16.msra.mxu0 0
  %13000 = vmatprep.subr.bf16.mxu0 0
  %13001 = vmatpush2.bf16.msra.mxu0 0
  %13002 = vmatprep.subr.bf16.mxu0 0
  %13003 = vmatpush2.bf16.msra.mxu0 0
  %13004 = vmatprep.subr.bf16.mxu0 0
  %13005 = vmatpush2.bf16.msra.mxu0 0
  %13006 = vmatprep.subr.bf16.mxu0 0
  %13007 = vmatpush2.bf16.msra.mxu0 0
  %13008 = vmatprep.subr.bf16.mxu0 0
  %13009 = vmatpush2.bf16.msra.mxu0 0
  %13010 = vmatprep.mubr.bf16.mxu0 0
  %13011 = vmatmul.mubr.bf16.gmra.mxu0 %v12931
  %v13012 = vpop.f32.mrf.mxu0
  %v13013 = vadd.f32 %v12903, %v13012
  %v13014 = vpop.f32.mrf.mxu0
  %v13015 = vpop.f32.mrf.mxu0
  %v13016 = vadd.f32 %v12903, %v13015
  %v13017 = vpop.f32.mrf.mxu0
  %13018 = vmatprep.mubr.bf16.mxu0 0
  %13019 = vmatmul.mubr.bf16.gmra.mxu0 %v12934
  %v13020 = vpop.f32.mrf.mxu0
  %v13021 = vadd.f32 %v12903, %v13020
  %v13022 = vpop.f32.mrf.mxu0
  %v13023 = vpop.f32.mrf.mxu0
  %v13024 = vadd.f32 %v12903, %v13023
  %v13025 = vpop.f32.mrf.mxu0
  %13026 = vmatprep.mubr.bf16.mxu0 0
  %13027 = vmatmul.mubr.bf16.gmra.mxu0 %v12937
  %v13028 = vpop.f32.mrf.mxu0
  %v13029 = vadd.f32 %v12903, %v13028
  %v13030 = vpop.f32.mrf.mxu0
  %v13031 = vpop.f32.mrf.mxu0
  %v13032 = vadd.f32 %v12903, %v13031
  %v13033 = vpop.f32.mrf.mxu0
  %13034 = vmatprep.mubr.bf16.mxu0 0
  %13035 = vmatmul.mubr.bf16.gmra.mxu0 %v12940
  %v13036 = vpop.f32.mrf.mxu0
  %v13037 = vadd.f32 %v12903, %v13036
  %v13038 = vpop.f32.mrf.mxu0
  %v13039 = vpop.f32.mrf.mxu0
  %v13040 = vadd.f32 %v12903, %v13039
  %v13041 = vpop.f32.mrf.mxu0
  %13042 = vmatprep.mubr.bf16.mxu0 0
  %13043 = vmatmul.mubr.bf16.gmra.mxu0 %v12943
  %v13044 = vpop.f32.mrf.mxu0
  %v13045 = vadd.f32 %v12903, %v13044
  %v13046 = vpop.f32.mrf.mxu0
  %v13047 = vpop.f32.mrf.mxu0
  %v13048 = vadd.f32 %v12903, %v13047
  %v13049 = vpop.f32.mrf.mxu0
  %13050 = vmatprep.mubr.bf16.mxu0 0
  %13051 = vmatmul.mubr.bf16.gmra.mxu0 %v12946
  %v13052 = vpop.f32.mrf.mxu0
  %v13053 = vadd.f32 %v12903, %v13052
  %v13054 = vpop.f32.mrf.mxu0
  %v13055 = vpop.f32.mrf.mxu0
  %v13056 = vadd.f32 %v12903, %v13055
  %v13057 = vpop.f32.mrf.mxu0
  %13058 = vmatprep.mubr.bf16.mxu0 0
  %13059 = vmatmul.mubr.bf16.gmra.mxu0 %v12949
  %v13060 = vpop.f32.mrf.mxu0
  %v13061 = vadd.f32 %v12903, %v13060
  %v13062 = vpop.f32.mrf.mxu0
  %v13063 = vpop.f32.mrf.mxu0
  %v13064 = vadd.f32 %v12903, %v13063
  %v13065 = vpop.f32.mrf.mxu0
  %13066 = vmatprep.mubr.bf16.mxu0 0
  %13067 = vmatmul.mubr.bf16.gmra.mxu0 %v12952
  %v13068 = vpop.f32.mrf.mxu0
  %v13069 = vadd.f32 %v12903, %v13068
  %v13070 = vpop.f32.mrf.mxu0
  %v13071 = vpop.f32.mrf.mxu0
  %v13072 = vadd.f32 %v12903, %v13071
  %v13073 = vpop.f32.mrf.mxu0
  %13074 = vmatprep.mubr.bf16.mxu0 0
  %13075 = vmatmul.mubr.bf16.gmra.mxu0 %v12955
  %v13076 = vpop.f32.mrf.mxu0
  %v13077 = vadd.f32 %v12903, %v13076
  %v13078 = vpop.f32.mrf.mxu0
  %v13079 = vpop.f32.mrf.mxu0
  %v13080 = vadd.f32 %v12903, %v13079
  %v13081 = vpop.f32.mrf.mxu0
  %13082 = vmatprep.mubr.bf16.mxu0 0
  %13083 = vmatmul.mubr.bf16.gmra.mxu0 %v12958
  %v13084 = vpop.f32.mrf.mxu0
  %v13085 = vadd.f32 %v12903, %v13084
  %v13086 = vpop.f32.mrf.mxu0
  %v13087 = vpop.f32.mrf.mxu0
  %v13088 = vadd.f32 %v12903, %v13087
  %v13089 = vpop.f32.mrf.mxu0
  %13090 = vmatprep.mubr.bf16.mxu0 0
  %13091 = vmatmul.mubr.bf16.gmra.mxu0 %v12961
  %v13092 = vpop.f32.mrf.mxu0
  %v13093 = vadd.f32 %v12903, %v13092
  %v13094 = vpop.f32.mrf.mxu0
  %v13095 = vpop.f32.mrf.mxu0
  %v13096 = vadd.f32 %v12903, %v13095
  %v13097 = vpop.f32.mrf.mxu0
  %13098 = vmatprep.mubr.bf16.mxu0 0
  %13099 = vmatmul.mubr.bf16.gmra.mxu0 %v12964
  %v13100 = vpop.f32.mrf.mxu0
  %v13101 = vadd.f32 %v12903, %v13100
  %v13102 = vpop.f32.mrf.mxu0
  %v13103 = vpop.f32.mrf.mxu0
  %v13104 = vadd.f32 %v12903, %v13103
  %v13105 = vpop.f32.mrf.mxu0
  %13106 = vmatprep.mubr.bf16.mxu0 0
  %13107 = vmatmul.mubr.bf16.gmra.mxu0 %v12967
  %v13108 = vpop.f32.mrf.mxu0
  %v13109 = vadd.f32 %v12903, %v13108
  %v13110 = vpop.f32.mrf.mxu0
  %v13111 = vpop.f32.mrf.mxu0
  %v13112 = vadd.f32 %v12903, %v13111
  %v13113 = vpop.f32.mrf.mxu0
  %13114 = vmatprep.mubr.bf16.mxu0 0
  %13115 = vmatmul.mubr.bf16.gmra.mxu0 %v12970
  %v13116 = vpop.f32.mrf.mxu0
  %v13117 = vadd.f32 %v12903, %v13116
  %v13118 = vpop.f32.mrf.mxu0
  %v13119 = vpop.f32.mrf.mxu0
  %v13120 = vadd.f32 %v12903, %v13119
  %v13121 = vpop.f32.mrf.mxu0
  %13122 = vmatprep.mubr.bf16.mxu0 0
  %13123 = vmatmul.mubr.bf16.gmra.mxu0 %v12973
  %v13124 = vpop.f32.mrf.mxu0
  %v13125 = vadd.f32 %v12903, %v13124
  %v13126 = vpop.f32.mrf.mxu0
  %v13127 = vpop.f32.mrf.mxu0
  %v13128 = vadd.f32 %v12903, %v13127
  %v13129 = vpop.f32.mrf.mxu0
  %13130 = vmatprep.mubr.bf16.mxu0 0
  %13131 = vmatmul.mubr.bf16.gmra.mxu0 %v12976
  %v13132 = vpop.f32.mrf.mxu0
  %v13133 = vadd.f32 %v12903, %v13132
  %v13134 = vpop.f32.mrf.mxu0
  %v13135 = vpop.f32.mrf.mxu0
  %v13136 = vadd.f32 %v12903, %v13135
  %v13137 = vpop.f32.mrf.mxu0
  %13138 = vdwg.mxu0
  %v13139 = vadd.f32 %v12562, %v13013
  %v13140 = vadd.f32 %v12563, %v13016
  %v13141 = vadd.f32 %v12564, %v13021
  %v13142 = vadd.f32 %v12565, %v13024
  %v13143 = vadd.f32 %v12566, %v13029
  %v13144 = vadd.f32 %v12567, %v13032
  %v13145 = vadd.f32 %v12568, %v13037
  %v13146 = vadd.f32 %v12569, %v13040
  %v13147 = vadd.f32 %v12570, %v13045
  %v13148 = vadd.f32 %v12571, %v13048
  %v13149 = vadd.f32 %v12572, %v13053
  %v13150 = vadd.f32 %v12573, %v13056
  %v13151 = vadd.f32 %v12574, %v13061
  %v13152 = vadd.f32 %v12575, %v13064
  %v13153 = vadd.f32 %v12576, %v13069
  %v13154 = vadd.f32 %v12577, %v13072
  %v13155 = vadd.f32 %v12578, %v13077
  %v13156 = vadd.f32 %v12579, %v13080
  %v13157 = vadd.f32 %v12580, %v13085
  %v13158 = vadd.f32 %v12581, %v13088
  %v13159 = vadd.f32 %v12582, %v13093
  %v13160 = vadd.f32 %v12583, %v13096
  %v13161 = vadd.f32 %v12584, %v13101
  %v13162 = vadd.f32 %v12585, %v13104
  %v13163 = vadd.f32 %v12586, %v13109
  %v13164 = vadd.f32 %v12587, %v13112
  %v13165 = vadd.f32 %v12588, %v13117
  %v13166 = vadd.f32 %v12589, %v13120
  %v13167 = vadd.f32 %v12590, %v13125
  %v13168 = vadd.f32 %v12591, %v13128
  %v13169 = vadd.f32 %v12592, %v13133
  %v13170 = vadd.f32 %v12593, %v13136
  %v13171 = vsel %vm116, %v13139, 0.0
  %v13172 = vsel %vm116, %v13140, 0.0
  %v13173 = vadd.f32 %v13171, %v13172
  %v13174 = vsel %vm116, %v13141, 0.0
  %v13175 = vadd.f32 %v13173, %v13174
  %v13176 = vsel %vm116, %v13142, 0.0
  %v13177 = vadd.f32 %v13175, %v13176
  %v13178 = vsel %vm116, %v13143, 0.0
  %v13179 = vadd.f32 %v13177, %v13178
  %v13180 = vsel %vm116, %v13144, 0.0
  %v13181 = vadd.f32 %v13179, %v13180
  %v13182 = vsel %vm116, %v13145, 0.0
  %v13183 = vadd.f32 %v13181, %v13182
  %v13184 = vsel %vm116, %v13146, 0.0
  %v13185 = vadd.f32 %v13183, %v13184
  %v13186 = vsel %vm116, %v13147, 0.0
  %v13187 = vadd.f32 %v13185, %v13186
  %v13188 = vsel %vm116, %v13148, 0.0
  %v13189 = vadd.f32 %v13187, %v13188
  %v13190 = vsel %vm116, %v13149, 0.0
  %v13191 = vadd.f32 %v13189, %v13190
  %v13192 = vsel %vm116, %v13150, 0.0
  %v13193 = vadd.f32 %v13191, %v13192
  %v13194 = vsel %vm116, %v13151, 0.0
  %v13195 = vadd.f32 %v13193, %v13194
  %v13196 = vsel %vm116, %v13152, 0.0
  %v13197 = vadd.f32 %v13195, %v13196
  %v13198 = vsel %vm116, %v13153, 0.0
  %v13199 = vadd.f32 %v13197, %v13198
  %v13200 = vsel %vm116, %v13154, 0.0
  %v13201 = vadd.f32 %v13199, %v13200
  %v13202 = vsel %vm116, %v13155, 0.0
  %v13203 = vadd.f32 %v13201, %v13202
  %v13204 = vsel %vm116, %v13156, 0.0
  %v13205 = vadd.f32 %v13203, %v13204
  %v13206 = vsel %vm116, %v13157, 0.0
  %v13207 = vadd.f32 %v13205, %v13206
  %v13208 = vsel %vm116, %v13158, 0.0
  %v13209 = vadd.f32 %v13207, %v13208
  %v13210 = vsel %vm116, %v13159, 0.0
  %v13211 = vadd.f32 %v13209, %v13210
  %v13212 = vsel %vm116, %v13160, 0.0
  %v13213 = vadd.f32 %v13211, %v13212
  %v13214 = vsel %vm116, %v13161, 0.0
  %v13215 = vadd.f32 %v13213, %v13214
  %v13216 = vsel %vm116, %v13162, 0.0
  %v13217 = vadd.f32 %v13215, %v13216
  %v13218 = vsel %vm116, %v13163, 0.0
  %v13219 = vadd.f32 %v13217, %v13218
  %v13220 = vsel %vm116, %v13164, 0.0
  %v13221 = vadd.f32 %v13219, %v13220
  %v13222 = vsel %vm116, %v13165, 0.0
  %v13223 = vadd.f32 %v13221, %v13222
  %v13224 = vsel %vm116, %v13166, 0.0
  %v13225 = vadd.f32 %v13223, %v13224
  %v13226 = vsel %vm116, %v13167, 0.0
  %v13227 = vadd.f32 %v13225, %v13226
  %v13228 = vsel %vm116, %v13168, 0.0
  %v13229 = vadd.f32 %v13227, %v13228
  %v13230 = vsel %vm116, %v13169, 0.0
  %v13231 = vadd.f32 %v13229, %v13230
  %v13232 = vsel %vm116, %v13170, 0.0
  %v13233 = vadd.f32 %v13231, %v13232
  %v13234 = vrot.slane %v13233, 4
  %v13235 = vadd.f32 %v13233, %v13234
  %v13236 = vrot.slane %v13235, 2
  %v13237 = vadd.f32 %v13235, %v13236
  %v13238 = vrot.slane %v13237, 1
  %v13239 = vadd.f32 %v13237, %v13238
  %v13240 = vmul.f32 %v13239, %v12346
  %v13241 = vsub.f32 %v13139, %v13240
  %v13242 = vsub.f32 %v13140, %v13240
  %v13243 = vsub.f32 %v13141, %v13240
  %v13244 = vsub.f32 %v13142, %v13240
  %v13245 = vsub.f32 %v13143, %v13240
  %v13246 = vsub.f32 %v13144, %v13240
  %v13247 = vsub.f32 %v13145, %v13240
  %v13248 = vsub.f32 %v13146, %v13240
  %v13249 = vsub.f32 %v13147, %v13240
  %v13250 = vsub.f32 %v13148, %v13240
  %v13251 = vsub.f32 %v13149, %v13240
  %v13252 = vsub.f32 %v13150, %v13240
  %v13253 = vsub.f32 %v13151, %v13240
  %v13254 = vsub.f32 %v13152, %v13240
  %v13255 = vsub.f32 %v13153, %v13240
  %v13256 = vsub.f32 %v13154, %v13240
  %v13257 = vsub.f32 %v13155, %v13240
  %v13258 = vsub.f32 %v13156, %v13240
  %v13259 = vsub.f32 %v13157, %v13240
  %v13260 = vsub.f32 %v13158, %v13240
  %v13261 = vsub.f32 %v13159, %v13240
  %v13262 = vsub.f32 %v13160, %v13240
  %v13263 = vsub.f32 %v13161, %v13240
  %v13264 = vsub.f32 %v13162, %v13240
  %v13265 = vsub.f32 %v13163, %v13240
  %v13266 = vsub.f32 %v13164, %v13240
  %v13267 = vsub.f32 %v13165, %v13240
  %v13268 = vsub.f32 %v13166, %v13240
  %v13269 = vsub.f32 %v13167, %v13240
  %v13270 = vsub.f32 %v13168, %v13240
  %v13271 = vsub.f32 %v13169, %v13240
  %v13272 = vsub.f32 %v13170, %v13240
  %v13273 = vmul.f32 %v13241, %v13241
  %v13274 = vmul.f32 %v13242, %v13242
  %v13275 = vmul.f32 %v13243, %v13243
  %v13276 = vmul.f32 %v13244, %v13244
  %v13277 = vmul.f32 %v13245, %v13245
  %v13278 = vmul.f32 %v13246, %v13246
  %v13279 = vmul.f32 %v13247, %v13247
  %v13280 = vmul.f32 %v13248, %v13248
  %v13281 = vmul.f32 %v13249, %v13249
  %v13282 = vmul.f32 %v13250, %v13250
  %v13283 = vmul.f32 %v13251, %v13251
  %v13284 = vmul.f32 %v13252, %v13252
  %v13285 = vmul.f32 %v13253, %v13253
  %v13286 = vmul.f32 %v13254, %v13254
  %v13287 = vmul.f32 %v13255, %v13255
  %v13288 = vmul.f32 %v13256, %v13256
  %v13289 = vmul.f32 %v13257, %v13257
  %v13290 = vmul.f32 %v13258, %v13258
  %v13291 = vmul.f32 %v13259, %v13259
  %v13292 = vmul.f32 %v13260, %v13260
  %v13293 = vmul.f32 %v13261, %v13261
  %v13294 = vmul.f32 %v13262, %v13262
  %v13295 = vmul.f32 %v13263, %v13263
  %v13296 = vmul.f32 %v13264, %v13264
  %v13297 = vmul.f32 %v13265, %v13265
  %v13298 = vmul.f32 %v13266, %v13266
  %v13299 = vmul.f32 %v13267, %v13267
  %v13300 = vmul.f32 %v13268, %v13268
  %v13301 = vmul.f32 %v13269, %v13269
  %v13302 = vmul.f32 %v13270, %v13270
  %v13303 = vmul.f32 %v13271, %v13271
  %v13304 = vmul.f32 %v13272, %v13272
  %v13305 = vsel %vm116, %v13273, 0.0
  %v13306 = vsel %vm116, %v13274, 0.0
  %v13307 = vadd.f32 %v13305, %v13306
  %v13308 = vsel %vm116, %v13275, 0.0
  %v13309 = vadd.f32 %v13307, %v13308
  %v13310 = vsel %vm116, %v13276, 0.0
  %v13311 = vadd.f32 %v13309, %v13310
  %v13312 = vsel %vm116, %v13277, 0.0
  %v13313 = vadd.f32 %v13311, %v13312
  %v13314 = vsel %vm116, %v13278, 0.0
  %v13315 = vadd.f32 %v13313, %v13314
  %v13316 = vsel %vm116, %v13279, 0.0
  %v13317 = vadd.f32 %v13315, %v13316
  %v13318 = vsel %vm116, %v13280, 0.0
  %v13319 = vadd.f32 %v13317, %v13318
  %v13320 = vsel %vm116, %v13281, 0.0
  %v13321 = vadd.f32 %v13319, %v13320
  %v13322 = vsel %vm116, %v13282, 0.0
  %v13323 = vadd.f32 %v13321, %v13322
  %v13324 = vsel %vm116, %v13283, 0.0
  %v13325 = vadd.f32 %v13323, %v13324
  %v13326 = vsel %vm116, %v13284, 0.0
  %v13327 = vadd.f32 %v13325, %v13326
  %v13328 = vsel %vm116, %v13285, 0.0
  %v13329 = vadd.f32 %v13327, %v13328
  %v13330 = vsel %vm116, %v13286, 0.0
  %v13331 = vadd.f32 %v13329, %v13330
  %v13332 = vsel %vm116, %v13287, 0.0
  %v13333 = vadd.f32 %v13331, %v13332
  %v13334 = vsel %vm116, %v13288, 0.0
  %v13335 = vadd.f32 %v13333, %v13334
  %v13336 = vsel %vm116, %v13289, 0.0
  %v13337 = vadd.f32 %v13335, %v13336
  %v13338 = vsel %vm116, %v13290, 0.0
  %v13339 = vadd.f32 %v13337, %v13338
  %v13340 = vsel %vm116, %v13291, 0.0
  %v13341 = vadd.f32 %v13339, %v13340
  %v13342 = vsel %vm116, %v13292, 0.0
  %v13343 = vadd.f32 %v13341, %v13342
  %v13344 = vsel %vm116, %v13293, 0.0
  %v13345 = vadd.f32 %v13343, %v13344
  %v13346 = vsel %vm116, %v13294, 0.0
  %v13347 = vadd.f32 %v13345, %v13346
  %v13348 = vsel %vm116, %v13295, 0.0
  %v13349 = vadd.f32 %v13347, %v13348
  %v13350 = vsel %vm116, %v13296, 0.0
  %v13351 = vadd.f32 %v13349, %v13350
  %v13352 = vsel %vm116, %v13297, 0.0
  %v13353 = vadd.f32 %v13351, %v13352
  %v13354 = vsel %vm116, %v13298, 0.0
  %v13355 = vadd.f32 %v13353, %v13354
  %v13356 = vsel %vm116, %v13299, 0.0
  %v13357 = vadd.f32 %v13355, %v13356
  %v13358 = vsel %vm116, %v13300, 0.0
  %v13359 = vadd.f32 %v13357, %v13358
  %v13360 = vsel %vm116, %v13301, 0.0
  %v13361 = vadd.f32 %v13359, %v13360
  %v13362 = vsel %vm116, %v13302, 0.0
  %v13363 = vadd.f32 %v13361, %v13362
  %v13364 = vsel %vm116, %v13303, 0.0
  %v13365 = vadd.f32 %v13363, %v13364
  %v13366 = vsel %vm116, %v13304, 0.0
  %v13367 = vadd.f32 %v13365, %v13366
  %v13368 = vrot.slane %v13367, 4
  %v13369 = vadd.f32 %v13367, %v13368
  %v13370 = vrot.slane %v13369, 2
  %v13371 = vadd.f32 %v13369, %v13370
  %v13372 = vrot.slane %v13371, 1
  %v13373 = vadd.f32 %v13371, %v13372
  %v13374 = vmul.f32 %v13373, %v12346
  %v13375 = vadd.f32 %v13374, 1e-05
  %v13376 = vrsqrt.pop %v13375
  %v13377 = vmul.f32 %v13241, %v13376
  %v13378 = vmul.f32 %v13242, %v13376
  %v13379 = vmul.f32 %v13243, %v13376
  %v13380 = vmul.f32 %v13244, %v13376
  %v13381 = vmul.f32 %v13245, %v13376
  %v13382 = vmul.f32 %v13246, %v13376
  %v13383 = vmul.f32 %v13247, %v13376
  %v13384 = vmul.f32 %v13248, %v13376
  %v13385 = vmul.f32 %v13249, %v13376
  %v13386 = vmul.f32 %v13250, %v13376
  %v13387 = vmul.f32 %v13251, %v13376
  %v13388 = vmul.f32 %v13252, %v13376
  %v13389 = vmul.f32 %v13253, %v13376
  %v13390 = vmul.f32 %v13254, %v13376
  %v13391 = vmul.f32 %v13255, %v13376
  %v13392 = vmul.f32 %v13256, %v13376
  %v13393 = vmul.f32 %v13257, %v13376
  %v13394 = vmul.f32 %v13258, %v13376
  %v13395 = vmul.f32 %v13259, %v13376
  %v13396 = vmul.f32 %v13260, %v13376
  %v13397 = vmul.f32 %v13261, %v13376
  %v13398 = vmul.f32 %v13262, %v13376
  %v13399 = vmul.f32 %v13263, %v13376
  %v13400 = vmul.f32 %v13264, %v13376
  %v13401 = vmul.f32 %v13265, %v13376
  %v13402 = vmul.f32 %v13266, %v13376
  %v13403 = vmul.f32 %v13267, %v13376
  %v13404 = vmul.f32 %v13268, %v13376
  %v13405 = vmul.f32 %v13269, %v13376
  %v13406 = vmul.f32 %v13270, %v13376
  %v13407 = vmul.f32 %v13271, %v13376
  %v13408 = vmul.f32 %v13272, %v13376
  %v13409 = vld [vmem:[%s7] sm:$0x1]
  %v13411 = vlaneseq
  %v13412 = vshrl.u32 %v13411, 7
  %v13413 = vsub.s32 0, %v13412
  %v13414 = vrot.slane %v13409, %v13413
  %v13416 = vmul.f32 %v13377, %v13414
  %v13417 = vmul.f32 %v13378, %v13414
  %v13418 = vmul.f32 %v13379, %v13414
  %v13419 = vmul.f32 %v13380, %v13414
  %v13420 = vmul.f32 %v13381, %v13414
  %v13421 = vmul.f32 %v13382, %v13414
  %v13422 = vmul.f32 %v13383, %v13414
  %v13423 = vmul.f32 %v13384, %v13414
  %v13424 = vmul.f32 %v13385, %v13414
  %v13425 = vmul.f32 %v13386, %v13414
  %v13426 = vmul.f32 %v13387, %v13414
  %v13427 = vmul.f32 %v13388, %v13414
  %v13428 = vmul.f32 %v13389, %v13414
  %v13429 = vmul.f32 %v13390, %v13414
  %v13430 = vmul.f32 %v13391, %v13414
  %v13431 = vmul.f32 %v13392, %v13414
  %v13432 = vmul.f32 %v13393, %v13414
  %v13433 = vmul.f32 %v13394, %v13414
  %v13434 = vmul.f32 %v13395, %v13414
  %v13435 = vmul.f32 %v13396, %v13414
  %v13436 = vmul.f32 %v13397, %v13414
  %v13437 = vmul.f32 %v13398, %v13414
  %v13438 = vmul.f32 %v13399, %v13414
  %v13439 = vmul.f32 %v13400, %v13414
  %v13440 = vmul.f32 %v13401, %v13414
  %v13441 = vmul.f32 %v13402, %v13414
  %v13442 = vmul.f32 %v13403, %v13414
  %v13443 = vmul.f32 %v13404, %v13414
  %v13444 = vmul.f32 %v13405, %v13414
  %v13445 = vmul.f32 %v13406, %v13414
  %v13446 = vmul.f32 %v13407, %v13414
  %v13447 = vmul.f32 %v13408, %v13414
  %v13448 = vld [vmem:[%s8] sm:$0x1]
  %v13450 = vlaneseq
  %v13451 = vshrl.u32 %v13450, 7
  %v13452 = vsub.s32 0, %v13451
  %v13453 = vrot.slane %v13448, %v13452
  %v13455 = vadd.f32 %v13416, %v13453
  %v13456 = vadd.f32 %v13417, %v13453
  %v13457 = vadd.f32 %v13418, %v13453
  %v13458 = vadd.f32 %v13419, %v13453
  %v13459 = vadd.f32 %v13420, %v13453
  %v13460 = vadd.f32 %v13421, %v13453
  %v13461 = vadd.f32 %v13422, %v13453
  %v13462 = vadd.f32 %v13423, %v13453
  %v13463 = vadd.f32 %v13424, %v13453
  %v13464 = vadd.f32 %v13425, %v13453
  %v13465 = vadd.f32 %v13426, %v13453
  %v13466 = vadd.f32 %v13427, %v13453
  %v13467 = vadd.f32 %v13428, %v13453
  %v13468 = vadd.f32 %v13429, %v13453
  %v13469 = vadd.f32 %v13430, %v13453
  %v13470 = vadd.f32 %v13431, %v13453
  %v13471 = vadd.f32 %v13432, %v13453
  %v13472 = vadd.f32 %v13433, %v13453
  %v13473 = vadd.f32 %v13434, %v13453
  %v13474 = vadd.f32 %v13435, %v13453
  %v13475 = vadd.f32 %v13436, %v13453
  %v13476 = vadd.f32 %v13437, %v13453
  %v13477 = vadd.f32 %v13438, %v13453
  %v13478 = vadd.f32 %v13439, %v13453
  %v13479 = vadd.f32 %v13440, %v13453
  %v13480 = vadd.f32 %v13441, %v13453
  %v13481 = vadd.f32 %v13442, %v13453
  %v13482 = vadd.f32 %v13443, %v13453
  %v13483 = vadd.f32 %v13444, %v13453
  %v13484 = vadd.f32 %v13445, %v13453
  %v13485 = vadd.f32 %v13446, %v13453
  %v13486 = vadd.f32 %v13447, %v13453
  %13487 = vst.msk [vmem:[%s13] sm:$0xff] %vm116, %v13455
  %13488 = vst.msk [vmem:[%s13 + $0x8] sm:$0xff] %vm116, %v13456
  %13489 = vst.msk [vmem:[%s13 + $0x10] sm:$0xff] %vm116, %v13457
  %13490 = vst.msk [vmem:[%s13 + $0x18] sm:$0xff] %vm116, %v13458
  %13491 = vst.msk [vmem:[%s13 + $0x20] sm:$0xff] %vm116, %v13459
  %13492 = vst.msk [vmem:[%s13 + $0x28] sm:$0xff] %vm116, %v13460
  %13493 = vst.msk [vmem:[%s13 + $0x30] sm:$0xff] %vm116, %v13461
  %13494 = vst.msk [vmem:[%s13 + $0x38] sm:$0xff] %vm116, %v13462
  %13495 = vst.msk [vmem:[%s13 + $0x40] sm:$0xff] %vm116, %v13463
  %13496 = vst.msk [vmem:[%s13 + $0x48] sm:$0xff] %vm116, %v13464
  %13497 = vst.msk [vmem:[%s13 + $0x50] sm:$0xff] %vm116, %v13465
  %13498 = vst.msk [vmem:[%s13 + $0x58] sm:$0xff] %vm116, %v13466
  %13499 = vst.msk [vmem:[%s13 + $0x60] sm:$0xff] %vm116, %v13467
  %13500 = vst.msk [vmem:[%s13 + $0x68] sm:$0xff] %vm116, %v13468
  %13501 = vst.msk [vmem:[%s13 + $0x70] sm:$0xff] %vm116, %v13469
  %13502 = vst.msk [vmem:[%s13 + $0x78] sm:$0xff] %vm116, %v13470
  %13503 = vst.msk [vmem:[%s13 + $0x80] sm:$0xff] %vm116, %v13471
  %13504 = vst.msk [vmem:[%s13 + $0x88] sm:$0xff] %vm116, %v13472
  %13505 = vst.msk [vmem:[%s13 + $0x90] sm:$0xff] %vm116, %v13473
  %13506 = vst.msk [vmem:[%s13 + $0x98] sm:$0xff] %vm116, %v13474
  %13507 = vst.msk [vmem:[%s13 + $0xa0] sm:$0xff] %vm116, %v13475
  %13508 = vst.msk [vmem:[%s13 + $0xa8] sm:$0xff] %vm116, %v13476
  %13509 = vst.msk [vmem:[%s13 + $0xb0] sm:$0xff] %vm116, %v13477
  %13510 = vst.msk [vmem:[%s13 + $0xb8] sm:$0xff] %vm116, %v13478
  %13511 = vst.msk [vmem:[%s13 + $0xc0] sm:$0xff] %vm116, %v13479
  %13512 = vst.msk [vmem:[%s13 + $0xc8] sm:$0xff] %vm116, %v13480
  %13513 = vst.msk [vmem:[%s13 + $0xd0] sm:$0xff] %vm116, %v13481
  %13514 = vst.msk [vmem:[%s13 + $0xd8] sm:$0xff] %vm116, %v13482
  %13515 = vst.msk [vmem:[%s13 + $0xe0] sm:$0xff] %vm116, %v13483
  %13516 = vst.msk [vmem:[%s13 + $0xe8] sm:$0xff] %vm116, %v13484
  %13517 = vst.msk [vmem:[%s13 + $0xf0] sm:$0xff] %vm116, %v13485
  %13518 = vst.msk [vmem:[%s13 + $0xf8] sm:$0xff] %vm116, %v13486
  // Predicated region
  $region54: #{tpu_custom_call.1} parent=0 // pred_check
    _
  $region55: #{tpu_custom_call.1} parent=0 // pred_check_branch
    %13520 = sbr.rel (0) target = $region57
  $region56: #{tpu_custom_call.1} parent=0 // pred_region
    _
  $region57: #{tpu_custom_call.1} parent=0 // pred_fallthru
    _
  // Predicated region
  $region58: #{tpu_custom_call.1} parent=0 // pred_check
    _
  $region59: #{tpu_custom_call.1} parent=0 // pred_check_branch
    %13522 = sbr.rel (0) target = $region61
  $region60: #{tpu_custom_call.1} parent=0 // pred_region
    _
  $region61: #{tpu_custom_call.1} parent=0 // pred_fallthru
    _

</llo_original>
